<compile_context>
chip_gen: v6e
topology: v6e:2x2x1
jax: 0.10.0
libtpu: 0.0.40
codegen_flags: <defaults>
</compile_context>

<pallas_src>
import functools
import math

import jax
import jax.numpy as jnp
from jax.experimental import pallas as pl
from jax.experimental.pallas import tpu as pltpu

EPS = 1e-5  # nn.LayerNorm default


# --------------------------------------------------------------------------
# helpers
# --------------------------------------------------------------------------
def _round_up(n, m):
    return ((n + m - 1) // m) * m


def _itemsize(dt):
    return jnp.dtype(dt).itemsize


def _query_vmem_capacity():
    try:
        cap = getattr(pltpu.get_tpu_info(), "vmem_capacity_bytes", None)
        if cap:
            return int(cap)
    except Exception:
        pass
    return 128 << 20  # v5e/v6e default


_VMEM_CAP = _query_vmem_capacity()


def _vmem_limit(block_bytes):
    """Scoped-VMEM limit: tiles + double buffering + headroom, capped at ~75%
    of physical per-core VMEM (important on v7x where physical is 64 MiB)."""
    cap = (_VMEM_CAP * 3) // 4
    want = 3 * int(block_bytes) + (8 << 20)
    return int(max(16 << 20, min(want, cap)))


def _tile_rows(m0, target=256):
    """Fixed-target row tile: pad rows up to a multiple of the tile instead of
    hunting for divisors (which previously collapsed to 8/64-row tiles)."""
    tm = min(target, _round_up(m0, 8))
    return tm, _round_up(m0, tm)


def _pad_rows_to(x, m):
    if x.shape[0] != m:
        x = jnp.pad(x, ((0, m - x.shape[0]),) + ((0, 0),) * (x.ndim - 1))
    return x


def _ln(x, w, b):
    """LayerNorm over the last axis in f32 (biased variance, like PyTorch)."""
    mu = jnp.mean(x, axis=-1, keepdims=True)
    var = jnp.mean(jnp.square(x - mu), axis=-1, keepdims=True)
    return (x - mu) * jax.lax.rsqrt(var + EPS) * w + b


# --------------------------------------------------------------------------
# Kernel 1: plain GEMM + bias (patch embedding == strided Conv2d, flattened)
# --------------------------------------------------------------------------
def _gemm_bias_kernel(x_ref, w_ref, b_ref, o_ref):
    acc = jnp.dot(x_ref[...], w_ref[...], preferred_element_type=jnp.float32)
    o_ref[...] = (acc + b_ref[...]).astype(o_ref.dtype)


def gemm_bias(x, w, b, *, out_dtype=jnp.bfloat16, tile_m=256):
    m0, kdim = x.shape
    n = w.shape[1]
    tm, m = _tile_rows(m0, tile_m)
    x = _pad_rows_to(x, m)
    blk = 2 * (tm * kdim + kdim * n + tm * n) + 4 * n
    cost = pl.CostEstimate(
        flops=2 * m * kdim * n, transcendentals=0,
        bytes_accessed=int(m * kdim * x.dtype.itemsize + kdim * n * 2 + n * 4
                           + m * n * _itemsize(out_dtype)))
    out = pl.pallas_call(
        _gemm_bias_kernel,
        out_shape=jax.ShapeDtypeStruct((m, n), out_dtype),
        grid=(m // tm,),
        in_specs=[
            pl.BlockSpec((tm, kdim), lambda i: (i, 0)),
            pl.BlockSpec((kdim, n), lambda i: (0, 0)),
            pl.BlockSpec((1, n), lambda i: (0, 0)),
        ],
        out_specs=pl.BlockSpec((tm, n), lambda i: (i, 0)),
        cost_estimate=cost,
        compiler_params=pltpu.CompilerParams(
            dimension_semantics=("parallel",),
            vmem_limit_bytes=_vmem_limit(blk)),
    )(x, w, b)
    return out[:m0]


# --------------------------------------------------------------------------
# Kernel 2: LayerNorm + GEMM + bias   (QKV projection, classifier head)
# --------------------------------------------------------------------------
def _ln_gemm_bias_kernel(x_ref, lnw_ref, lnb_ref, w_ref, b_ref, o_ref):
    h = _ln(x_ref[...].astype(jnp.float32), lnw_ref[...], lnb_ref[...])
    acc = jnp.dot(h.astype(jnp.bfloat16), w_ref[...],
                  preferred_element_type=jnp.float32)
    o_ref[...] = (acc + b_ref[...]).astype(o_ref.dtype)


def ln_gemm_bias(x, lnw, lnb, w, b, *, out_dtype=jnp.bfloat16, tile_m=256):
    m0, kdim = x.shape
    n = w.shape[1]
    tm, m = _tile_rows(m0, tile_m)
    x = _pad_rows_to(x, m)
    blk = 2 * (tm * kdim + kdim * n + tm * n) + 4 * (2 * kdim + n) + 4 * tm * kdim
    cost = pl.CostEstimate(
        flops=2 * m * kdim * n + 8 * m * kdim, transcendentals=m,
        bytes_accessed=int(m * kdim * x.dtype.itemsize + kdim * n * 2
                           + (2 * kdim + n) * 4 + m * n * _itemsize(out_dtype)))
    out = pl.pallas_call(
        _ln_gemm_bias_kernel,
        out_shape=jax.ShapeDtypeStruct((m, n), out_dtype),
        grid=(m // tm,),
        in_specs=[
            pl.BlockSpec((tm, kdim), lambda i: (i, 0)),
            pl.BlockSpec((1, kdim), lambda i: (0, 0)),
            pl.BlockSpec((1, kdim), lambda i: (0, 0)),
            pl.BlockSpec((kdim, n), lambda i: (0, 0)),
            pl.BlockSpec((1, n), lambda i: (0, 0)),
        ],
        out_specs=pl.BlockSpec((tm, n), lambda i: (i, 0)),
        cost_estimate=cost,
        compiler_params=pltpu.CompilerParams(
            dimension_semantics=("parallel",),
            vmem_limit_bytes=_vmem_limit(blk)),
    )(x, lnw, lnb, w, b)
    return out[:m0]


# --------------------------------------------------------------------------
# Kernel 3: fused MLP block  (x += fc2(GELU(fc1(LN2(x)))))
#           The 4*D hidden activation never leaves VMEM.
# --------------------------------------------------------------------------
def _mlp_block_kernel(x_ref, lnw_ref, lnb_ref, w1_ref, b1_ref, w2_ref, b2_ref,
                      o_ref):
    x = x_ref[...].astype(jnp.float32)
    h = _ln(x, lnw_ref[...], lnb_ref[...])
    h = jnp.dot(h.astype(jnp.bfloat16), w1_ref[...],
                preferred_element_type=jnp.float32) + b1_ref[...]
    h = jax.nn.gelu(h, approximate=True)   # tanh GELU -> EUP
    acc = jnp.dot(h.astype(jnp.bfloat16), w2_ref[...],
                  preferred_element_type=jnp.float32)
    o_ref[...] = (x + acc + b2_ref[...]).astype(o_ref.dtype)


def mlp_block(x, lnw, lnb, w1, b1, w2, b2, *, out_dtype=jnp.bfloat16,
              tile_m=256):
    m0, d = x.shape
    f = w1.shape[1]
    tm, m = _tile_rows(m0, tile_m)
    x = _pad_rows_to(x, m)
    blk = (2 * tm * d * 2 + (d * f + f * d) * 2 + (f + 3 * d) * 4
           + 4 * tm * f + 4 * tm * d)
    cost = pl.CostEstimate(
        flops=4 * m * d * f + 8 * m * d, transcendentals=m * f,
        bytes_accessed=int(2 * m * d * 2 + 2 * d * f * 2 + (f + 3 * d) * 4))
    out = pl.pallas_call(
        _mlp_block_kernel,
        out_shape=jax.ShapeDtypeStruct((m, d), out_dtype),
        grid=(m // tm,),
        in_specs=[
            pl.BlockSpec((tm, d), lambda i: (i, 0)),
            pl.BlockSpec((1, d), lambda i: (0, 0)),
            pl.BlockSpec((1, d), lambda i: (0, 0)),
            pl.BlockSpec((d, f), lambda i: (0, 0)),
            pl.BlockSpec((1, f), lambda i: (0, 0)),
            pl.BlockSpec((f, d), lambda i: (0, 0)),
            pl.BlockSpec((1, d), lambda i: (0, 0)),
        ],
        out_specs=pl.BlockSpec((tm, d), lambda i: (i, 0)),
        input_output_aliases={0: 0},
        cost_estimate=cost,
        compiler_params=pltpu.CompilerParams(
            dimension_semantics=("parallel",),
            vmem_limit_bytes=_vmem_limit(blk)),
    )(x, lnw, lnb, w1, b1, w2, b2)
    return out[:m0]


# --------------------------------------------------------------------------
# Kernel 4: fused multi-head attention + output projection + residual.
#   grid = (B,).  qkv is read straight out of its packed (B, Sp, 3, H, dh)
#   reshape (BlockSpecs pin the "3" axis; pl.Squeezed singleton dims), the
#   head merge is folded into per-head accumulation against wo row-blocks,
#   and the single HBM store per step is the lane-dense (Sp, D) residual tile.
# --------------------------------------------------------------------------
def _attn_out_kernel(seq_len, scale, num_heads,
                     q_ref, k_ref, v_ref, res_ref, wo_ref, bo_ref, o_ref):
    sp = q_ref.shape[0]
    dh = q_ref.shape[2]
    key_mask = jax.lax.broadcasted_iota(jnp.int32, (1, sp), 1) < seq_len
    acc = res_ref[...].astype(jnp.float32) + bo_ref[...]          # (Sp, D)
    for h in range(num_heads):                                    # static unroll
        q_h = q_ref[:, h, :].astype(jnp.float32) * scale          # (Sp, dh)
        k_h = k_ref[:, h, :]
        v_h = v_ref[:, h, :]
        s = jax.lax.dot_general(                                  # q @ k.T
            q_h.astype(jnp.bfloat16), k_h,
            dimension_numbers=(((1,), (1,)), ((), ())),
            preferred_element_type=jnp.float32)                   # (Sp, Sp)
        s = jnp.where(key_mask, s, -1e30)                         # mask pad keys
        s = s - jnp.max(s, axis=-1, keepdims=True)
        p = jnp.exp(s)
        p = p * pl.reciprocal(jnp.sum(p, axis=-1, keepdims=True), approx=True)
        o_h = jnp.dot(p.astype(jnp.bfloat16), v_h,
                      preferred_element_type=jnp.float32)         # (Sp, dh)
        acc = acc + jnp.dot(o_h.astype(jnp.bfloat16),
                            wo_ref[h * dh:(h + 1) * dh, :],
                            preferred_element_type=jnp.float32)   # (Sp, D)
    o_ref[...] = acc.astype(o_ref.dtype)


def attention_out_proj(qkv5, xres, wo, bo, *, seq_len, scale):
    """qkv5: (B, Sp, 3, H, dh) bf16; xres: (B, Sp, D) bf16; wo: (D, D) bf16;
    bo: (1, D) f32 -> (B, Sp, D) bf16 = xres + attn(qkv) @ wo + bo."""
    b, sp, three, h, dh = qkv5.shape
    assert three == 3
    d = h * dh
    kern = functools.partial(_attn_out_kernel, seq_len, scale, h)

    def qkv_spec(sel):
        return pl.BlockSpec(
            (pl.Squeezed(), sp, pl.Squeezed(), h, dh),
            lambda bi, sel=sel: (bi, 0, sel, 0, 0))

    blk = (5 * sp * d * 2 + d * d * 2 + d * 4 + sp * sp * 4 + 2 * sp * d * 4)
    cost = pl.CostEstimate(
        flops=b * (4 * sp * sp * d + 2 * sp * d * d),
        transcendentals=b * h * sp * sp,
        bytes_accessed=int(3 * b * sp * d * 2 + 2 * b * sp * d * 2
                           + d * d * 2 + d * 4))
    # NOTE: batch is the only grid axis; with B >= 2 it already feeds both v7x
    # TensorCores, and on single-TC v5e/v6e extra grid steps would only add
    # per-step overhead.
    return pl.pallas_call(
        kern,
        out_shape=jax.ShapeDtypeStruct((b, sp, d), jnp.bfloat16),
        grid=(b,),
        in_specs=[
            qkv_spec(0), qkv_spec(1), qkv_spec(2),
            pl.BlockSpec((pl.Squeezed(), sp, d), lambda bi: (bi, 0, 0)),
            pl.BlockSpec((d, d), lambda bi: (0, 0)),
            pl.BlockSpec((1, d), lambda bi: (0, 0)),
        ],
        out_specs=pl.BlockSpec((pl.Squeezed(), sp, d), lambda bi: (bi, 0, 0)),
        input_output_aliases={3: 0},   # residual buffer re-used for the output
        cost_estimate=cost,
        compiler_params=pltpu.CompilerParams(
            dimension_semantics=("parallel",),
            vmem_limit_bytes=_vmem_limit(blk)),
    )(qkv5, qkv5, qkv5, xres, wo, bo)


# --------------------------------------------------------------------------
# Glue (plain JAX): patch unfolding, params, driver
# --------------------------------------------------------------------------
def extract_patches(x_nchw, p):
    """NCHW image -> (B, num_patches, C*p*p); flattening order matches the
    Conv2d(patch_size, stride=patch_size) patch embedding."""
    B, C, H, W = x_nchw.shape
    gh, gw = H // p, W // p
    x = x_nchw.reshape(B, C, gh, p, gw, p)
    x = x.transpose(0, 2, 4, 1, 3, 5)            # (B, gh, gw, C, p, p)
    return x.reshape(B, gh * gw, C * p * p)


def init_params(key, *, in_channels, patch_size, embed_dim, num_layers,
                ff_expansion, num_classes, num_patches):
    D = embed_dim
    F = ff_expansion * D
    Cpp = in_channels * patch_size * patch_size
    Ncls = _round_up(num_classes, 128)           # lane-dense classifier output

    def nrm(k, shape, std=0.02):
        return std * jax.random.normal(k, shape, jnp.float32)

    keys = iter(jax.random.split(key, 8 + num_layers * 4))
    fcw = nrm(next(keys), (D, num_classes))
    params = {
        "patch_w": nrm(next(keys), (Cpp, D)).astype(jnp.bfloat16),
        "patch_b": jnp.zeros((1, D), jnp.float32),
        "cls": nrm(next(keys), (1, 1, D)),       # trunc_normal(std=0.02) approx
        "pos": nrm(next(keys), (1, 1 + num_patches, D)),
        "lnw": jnp.ones((1, D), jnp.float32),
        "lnb": jnp.zeros((1, D), jnp.float32),
        "fcw": jnp.pad(fcw, ((0, 0), (0, Ncls - num_classes))).astype(jnp.bfloat16),
        "fcb": jnp.zeros((1, Ncls), jnp.float32),
        "blocks": [],
    }
    for _ in range(num_layers):
        params["blocks"].append({
            "ln1w": jnp.ones((1, D), jnp.float32),
            "ln1b": jnp.zeros((1, D), jnp.float32),
            # columns ordered [Wq | Wk | Wv], each head-major (H, dh)
            "wqkv": nrm(next(keys), (D, 3 * D)).astype(jnp.bfloat16),
            "bqkv": jnp.zeros((1, 3 * D), jnp.float32),
            "wo": nrm(next(keys), (D, D)).astype(jnp.bfloat16),
            "bo": jnp.zeros((1, D), jnp.float32),
            "ln2w": jnp.ones((1, D), jnp.float32),
            "ln2b": jnp.zeros((1, D), jnp.float32),
            "w1": nrm(next(keys), (D, F)).astype(jnp.bfloat16),
            "b1": jnp.zeros((1, F), jnp.float32),
            "w2": nrm(next(keys), (F, D)).astype(jnp.bfloat16),
            "b2": jnp.zeros((1, D), jnp.float32),
        })
    return params


def vit_forward(x_img, params, *, patch_size, num_heads, num_classes):
    B = x_img.shape[0]
    D = params["patch_w"].shape[1]
    H = num_heads
    dh = D // H
    scale = 1.0 / math.sqrt(dh)

    # --- patch embedding (strided conv as flattened-patch GEMM) ---
    patches = extract_patches(x_img, patch_size).astype(jnp.bfloat16)
    P = patches.shape[1]
    emb = gemm_bias(patches.reshape(B * P, -1),
                    params["patch_w"], params["patch_b"])
    emb = emb.reshape(B, P, D).astype(jnp.float32)

    # --- cls token + positional embedding; pad S for bf16 sublane packing ---
    cls = jnp.broadcast_to(params["cls"], (B, 1, D))
    x = jnp.concatenate([cls, emb], axis=1) + params["pos"]      # (B, S, D) f32
    S = 1 + P
    Sp = _round_up(S, 16)   # use 128 on v6e/v7x if the extra rows are acceptable
    x = jnp.pad(x, ((0, 0), (0, Sp - S), (0, 0))).astype(jnp.bfloat16)
    # nn.Dropout: identity at inference time.
    # NOTE: padded rows S..Sp-1 carry garbage through the residual stream and
    # are sliced off before the classifier head (keys are masked in softmax).

    xf = x.reshape(B * Sp, D)                                    # token-major rows
    for blk in params["blocks"]:
        # x += MHA(LN1(x))  -- QKV GEMM, then fused attention+out-proj+residual
        qkv = ln_gemm_bias(xf, blk["ln1w"], blk["ln1b"],
                           blk["wqkv"], blk["bqkv"])             # (B*Sp, 3D) bf16
        qkv5 = qkv.reshape(B, Sp, 3, H, dh)                      # free reshape
        x3 = attention_out_proj(qkv5, xf.reshape(B, Sp, D),
                                blk["wo"], blk["bo"],
                                seq_len=S, scale=scale)          # (B, Sp, D)
        xf = x3.reshape(B * Sp, D)
        # x += MLP(LN2(x))  -- fully fused
        xf = mlp_block(xf, blk["ln2w"], blk["ln2b"],
                       blk["w1"], blk["b1"], blk["w2"], blk["b2"])

    cls_final = xf.reshape(B, Sp, D)[:, 0]                       # (B, D)
    logits = ln_gemm_bias(cls_final, params["lnw"], params["lnb"],
                          params["fcw"], params["fcb"],
                          out_dtype=jnp.float32)                 # (B, 128) padded
    return logits[:, :num_classes]


if __name__ == "__main__":
    # Small, self-consistent configuration.
    B, C, Himg, Wimg = 2, 4, 16, 16
    patch_size = 4
    embed_dim = 32
    num_heads = 4
    num_layers = 2
    ff_expansion = 4
    num_classes = 10
    num_patches = (Himg // patch_size) * (Wimg // patch_size)    # 16

    key = jax.random.PRNGKey(0)
    kx, kp = jax.random.split(key)
    x = jax.random.normal(kx, (B, C, Himg, Wimg), jnp.float32)

    params = init_params(
        kp,
        in_channels=C,
        patch_size=patch_size,
        embed_dim=embed_dim,
        num_layers=num_layers,
        ff_expansion=ff_expansion,
        num_classes=num_classes,
        num_patches=num_patches,
    )

    fwd = jax.jit(functools.partial(vit_forward, patch_size=patch_size,
                                    num_heads=num_heads,
                                    num_classes=num_classes))
    out = jax.block_until_ready(fwd(x, params))
    assert out.shape == (B, num_classes)
    assert bool(jnp.all(jnp.isfinite(out)))
    print("KERNEL_OK")
</pallas_src>

<mosaic_0001>
module attributes {stable_mosaic.version = 11 : i64} {
  func.func @_gemm_bias_kernel(%arg0: i32, %arg1: memref<32x64xbf16, #tpu.memory_space<vmem>>, %arg2: memref<64x32xbf16, #tpu.memory_space<vmem>>, %arg3: memref<1x32xf32, #tpu.memory_space<vmem>>, %arg4: memref<32x32xbf16, #tpu.memory_space<vmem>>) attributes {dimension_semantics = [#tpu.dimension_semantics<parallel>], iteration_bounds = array<i64: 1>, scalar_prefetch = 0 : i64, scratch_operands = 0 : i64, tpu.core_type = #tpu.core_type<tc>, window_params = [{transform_indices = @transform_0, window_bounds = array<i64: 32, 64>}, {pipeline_mode = #tpu.pipeline_mode<synchronous>, transform_indices = @transform_1, window_bounds = array<i64: 64, 32>}, {pipeline_mode = #tpu.pipeline_mode<synchronous>, transform_indices = @transform_2, window_bounds = array<i64: 1, 32>}, {transform_indices = @transform_3, window_bounds = array<i64: 32, 32>}]} {
    %c0 = arith.constant 0 : index
    %c0_0 = arith.constant 0 : index
    %0 = vector.load %arg1[%c0, %c0_0] : memref<32x64xbf16, #tpu.memory_space<vmem>>, vector<32x64xbf16>
    %c0_1 = arith.constant 0 : index
    %c0_2 = arith.constant 0 : index
    %1 = vector.load %arg2[%c0_1, %c0_2] : memref<64x32xbf16, #tpu.memory_space<vmem>>, vector<64x32xbf16>
    %cst = arith.constant dense<0.000000e+00> : vector<32x32xf32>
    %2 = tpu.matmul %0, %1, %cst {dimension_numbers = #tpu.dot_dimension_numbers<[1], [0], [0], [1], [0, 0, 1, 1], [], []>} : vector<32x64xbf16>, vector<64x32xbf16>, vector<32x32xf32> -> vector<32x32xf32>
    %c0_3 = arith.constant 0 : index
    %c0_4 = arith.constant 0 : index
    %3 = vector.load %arg3[%c0_3, %c0_4] : memref<1x32xf32, #tpu.memory_space<vmem>>, vector<1x32xf32>
    %4 = vector.broadcast %3 : vector<1x32xf32> to vector<32x32xf32>
    %5 = arith.addf %2, %4 : vector<32x32xf32>
    %6 = arith.truncf %5 : vector<32x32xf32> to vector<32x32xbf16>
    %c0_5 = arith.constant 0 : index
    %c0_6 = arith.constant 0 : index
    %7 = vector.load %arg4[%c0_5, %c0_6] : memref<32x32xbf16, #tpu.memory_space<vmem>>, vector<32x32xbf16>
    tpu.vector_store %arg4[%c0_5, %c0_6], %6 {strides = array<i32>} : memref<32x32xbf16, #tpu.memory_space<vmem>>, vector<32x32xbf16>,
    return
  }
  func.func @transform_0(%arg0: i32) -> (i32, i32) {
    %c0_i32 = arith.constant 0 : i32
    %c0_i32_0 = arith.constant 0 : i32
    return %arg0, %c0_i32 : i32, i32
  }
  func.func @transform_1(%arg0: i32) -> (i32, i32) {
    %c0_i32 = arith.constant 0 : i32
    %c0_i32_0 = arith.constant 0 : i32
    %c0_i32_1 = arith.constant 0 : i32
    return %c0_i32, %c0_i32_0 : i32, i32
  }
  func.func @transform_2(%arg0: i32) -> (i32, i32) {
    %c0_i32 = arith.constant 0 : i32
    %c0_i32_0 = arith.constant 0 : i32
    %c0_i32_1 = arith.constant 0 : i32
    return %c0_i32, %c0_i32_0 : i32, i32
  }
  func.func @transform_3(%arg0: i32) -> (i32, i32) {
    %c0_i32 = arith.constant 0 : i32
    %c0_i32_0 = arith.constant 0 : i32
    return %arg0, %c0_i32 : i32, i32
  }
}

module attributes {stable_mosaic.version = 11 : i64} {
  func.func @_ln_gemm_bias_kernel(%arg0: i32, %arg1: memref<64x32xbf16, #tpu.memory_space<vmem>>, %arg2: memref<1x32xf32, #tpu.memory_space<vmem>>, %arg3: memref<1x32xf32, #tpu.memory_space<vmem>>, %arg4: memref<32x96xbf16, #tpu.memory_space<vmem>>, %arg5: memref<1x96xf32, #tpu.memory_space<vmem>>, %arg6: memref<64x96xbf16, #tpu.memory_space<vmem>>) attributes {dimension_semantics = [#tpu.dimension_semantics<parallel>], iteration_bounds = array<i64: 1>, scalar_prefetch = 0 : i64, scratch_operands = 0 : i64, tpu.core_type = #tpu.core_type<tc>, window_params = [{transform_indices = @transform_0, window_bounds = array<i64: 64, 32>}, {pipeline_mode = #tpu.pipeline_mode<synchronous>, transform_indices = @transform_1, window_bounds = array<i64: 1, 32>}, {pipeline_mode = #tpu.pipeline_mode<synchronous>, transform_indices = @transform_2, window_bounds = array<i64: 1, 32>}, {pipeline_mode = #tpu.pipeline_mode<synchronous>, transform_indices = @transform_3, window_bounds = array<i64: 32, 96>}, {pipeline_mode = #tpu.pipeline_mode<synchronous>, transform_indices = @transform_4, window_bounds = array<i64: 1, 96>}, {transform_indices = @transform_5, window_bounds = array<i64: 64, 96>}]} {
    %c0 = arith.constant 0 : index
    %c0_0 = arith.constant 0 : index
    %0 = vector.load %arg1[%c0, %c0_0] : memref<64x32xbf16, #tpu.memory_space<vmem>>, vector<64x32xbf16>
    %1 = arith.extf %0 : vector<64x32xbf16> to vector<64x32xf32>
    %c0_1 = arith.constant 0 : index
    %c0_2 = arith.constant 0 : index
    %2 = vector.load %arg2[%c0_1, %c0_2] : memref<1x32xf32, #tpu.memory_space<vmem>>, vector<1x32xf32>
    %c0_3 = arith.constant 0 : index
    %c0_4 = arith.constant 0 : index
    %3 = vector.load %arg3[%c0_3, %c0_4] : memref<1x32xf32, #tpu.memory_space<vmem>>, vector<1x32xf32>
    %cst = arith.constant dense<0.000000e+00> : vector<64xf32>
    %4 = vector.multi_reduction <add>, %1, %cst [1] : vector<64x32xf32> to vector<64xf32>
    %5 = vector.shape_cast %4 : vector<64xf32> to vector<64x1xf32>
    %cst_5 = arith.constant 3.200000e+01 : f32
    %6 = vector.broadcast %cst_5 : f32 to vector<64x1xf32>
    %7 = arith.divf %5, %6 : vector<64x1xf32>
    %8 = vector.broadcast %7 : vector<64x1xf32> to vector<64x32xf32>
    %9 = arith.subf %1, %8 : vector<64x32xf32>
    %10 = arith.mulf %9, %9 : vector<64x32xf32>
    %cst_6 = arith.constant dense<0.000000e+00> : vector<64xf32>
    %11 = vector.multi_reduction <add>, %10, %cst_6 [1] : vector<64x32xf32> to vector<64xf32>
    %12 = vector.shape_cast %11 : vector<64xf32> to vector<64x1xf32>
    %cst_7 = arith.constant 3.200000e+01 : f32
    %13 = vector.broadcast %cst_7 : f32 to vector<64x1xf32>
    %14 = arith.divf %12, %13 : vector<64x1xf32>
    %15 = vector.broadcast %7 : vector<64x1xf32> to vector<64x32xf32>
    %16 = arith.subf %1, %15 : vector<64x32xf32>
    %cst_8 = arith.constant 9.99999974E-6 : f32
    %17 = vector.broadcast %cst_8 : f32 to vector<64x1xf32>
    %18 = arith.addf %14, %17 : vector<64x1xf32>
    %19 = math.rsqrt %18 : vector<64x1xf32>
    %20 = vector.broadcast %19 : vector<64x1xf32> to vector<64x32xf32>
    %21 = arith.mulf %16, %20 : vector<64x32xf32>
    %22 = vector.broadcast %2 : vector<1x32xf32> to vector<64x32xf32>
    %23 = arith.mulf %21, %22 : vector<64x32xf32>
    %24 = vector.broadcast %3 : vector<1x32xf32> to vector<64x32xf32>
    %25 = arith.addf %23, %24 : vector<64x32xf32>
    %26 = arith.truncf %25 : vector<64x32xf32> to vector<64x32xbf16>
    %c0_9 = arith.constant 0 : index
    %c0_10 = arith.constant 0 : index
    %27 = vector.load %arg4[%c0_9, %c0_10] : memref<32x96xbf16, #tpu.memory_space<vmem>>, vector<32x96xbf16>
    %cst_11 = arith.constant dense<0.000000e+00> : vector<64x96xf32>
    %28 = tpu.matmul %26, %27, %cst_11 {dimension_numbers = #tpu.dot_dimension_numbers<[1], [0], [0], [1], [0, 0, 1, 1], [], []>} : vector<64x32xbf16>, vector<32x96xbf16>, vector<64x96xf32> -> vector<64x96xf32>
    %c0_12 = arith.constant 0 : index
    %c0_13 = arith.constant 0 : index
    %29 = vector.load %arg5[%c0_12, %c0_13] : memref<1x96xf32, #tpu.memory_space<vmem>>, vector<1x96xf32>
    %30 = vector.broadcast %29 : vector<1x96xf32> to vector<64x96xf32>
    %31 = arith.addf %28, %30 : vector<64x96xf32>
    %32 = arith.truncf %31 : vector<64x96xf32> to vector<64x96xbf16>
    %c0_14 = arith.constant 0 : index
    %c0_15 = arith.constant 0 : index
    %33 = vector.load %arg6[%c0_14, %c0_15] : memref<64x96xbf16, #tpu.memory_space<vmem>>, vector<64x96xbf16>
    tpu.vector_store %arg6[%c0_14, %c0_15], %32 {strides = array<i32>} : memref<64x96xbf16, #tpu.memory_space<vmem>>, vector<64x96xbf16>,
    return
  }
  func.func @transform_0(%arg0: i32) -> (i32, i32) {
    %c0_i32 = arith.constant 0 : i32
    %c0_i32_0 = arith.constant 0 : i32
    return %arg0, %c0_i32 : i32, i32
  }
  func.func @transform_1(%arg0: i32) -> (i32, i32) {
    %c0_i32 = arith.constant 0 : i32
    %c0_i32_0 = arith.constant 0 : i32
    %c0_i32_1 = arith.constant 0 : i32
    return %c0_i32, %c0_i32_0 : i32, i32
  }
  func.func @transform_2(%arg0: i32) -> (i32, i32) {
    %c0_i32 = arith.constant 0 : i32
    %c0_i32_0 = arith.constant 0 : i32
    %c0_i32_1 = arith.constant 0 : i32
    return %c0_i32, %c0_i32_0 : i32, i32
  }
  func.func @transform_3(%arg0: i32) -> (i32, i32) {
    %c0_i32 = arith.constant 0 : i32
    %c0_i32_0 = arith.constant 0 : i32
    %c0_i32_1 = arith.constant 0 : i32
    return %c0_i32, %c0_i32_0 : i32, i32
  }
  func.func @transform_4(%arg0: i32) -> (i32, i32) {
    %c0_i32 = arith.constant 0 : i32
    %c0_i32_0 = arith.constant 0 : i32
    %c0_i32_1 = arith.constant 0 : i32
    return %c0_i32, %c0_i32_0 : i32, i32
  }
  func.func @transform_5(%arg0: i32) -> (i32, i32) {
    %c0_i32 = arith.constant 0 : i32
    %c0_i32_0 = arith.constant 0 : i32
    return %arg0, %c0_i32 : i32, i32
  }
}

module attributes {stable_mosaic.version = 11 : i64} {
  func.func @_attn_out_kernel(%arg0: i32, %arg1: memref<1x32x1x4x8xbf16, #tpu.memory_space<vmem>>, %arg2: memref<1x32x1x4x8xbf16, #tpu.memory_space<vmem>>, %arg3: memref<1x32x1x4x8xbf16, #tpu.memory_space<vmem>>, %arg4: memref<1x32x32xbf16, #tpu.memory_space<vmem>>, %arg5: memref<32x32xbf16, #tpu.memory_space<vmem>>, %arg6: memref<1x32xf32, #tpu.memory_space<vmem>>, %arg7: memref<1x32x32xbf16, #tpu.memory_space<vmem>>) attributes {dimension_semantics = [#tpu.dimension_semantics<parallel>], iteration_bounds = array<i64: 2>, scalar_prefetch = 0 : i64, scratch_operands = 0 : i64, tpu.core_type = #tpu.core_type<tc>, window_params = [{transform_indices = @transform_0, window_bounds = array<i64: 1, 32, 1, 4, 8>}, {transform_indices = @transform_1, window_bounds = array<i64: 1, 32, 1, 4, 8>}, {transform_indices = @transform_2, window_bounds = array<i64: 1, 32, 1, 4, 8>}, {transform_indices = @transform_3, window_bounds = array<i64: 1, 32, 32>}, {pipeline_mode = #tpu.pipeline_mode<synchronous>, transform_indices = @transform_4, window_bounds = array<i64: 32, 32>}, {pipeline_mode = #tpu.pipeline_mode<synchronous>, transform_indices = @transform_5, window_bounds = array<i64: 1, 32>}, {transform_indices = @transform_6, window_bounds = array<i64: 1, 32, 32>}]} {
    %0 = tpu.iota {dimensions = array<i32: 1>} : vector<1x32xi32>
    %c17_i32 = arith.constant 17 : i32
    %1 = vector.broadcast %c17_i32 : i32 to vector<1x32xi32>
    %2 = arith.cmpi slt, %0, %1 : vector<1x32xi32>
    %c0 = arith.constant 0 : index
    %c0_0 = arith.constant 0 : index
    %c0_1 = arith.constant 0 : index
    %3 = vector.load %arg4[%c0, %c0_0, %c0_1] : memref<1x32x32xbf16, #tpu.memory_space<vmem>>, vector<1x32x32xbf16>
    %4 = vector.shape_cast %3 : vector<1x32x32xbf16> to vector<32x32xbf16>
    %5 = arith.extf %4 : vector<32x32xbf16> to vector<32x32xf32>
    %c0_2 = arith.constant 0 : index
    %c0_3 = arith.constant 0 : index
    %6 = vector.load %arg6[%c0_2, %c0_3] : memref<1x32xf32, #tpu.memory_space<vmem>>, vector<1x32xf32>
    %7 = vector.broadcast %6 : vector<1x32xf32> to vector<32x32xf32>
    %8 = arith.addf %5, %7 : vector<32x32xf32>
    %c0_4 = arith.constant 0 : index
    %c0_5 = arith.constant 0 : index
    %c0_6 = arith.constant 0 : index
    %c0_7 = arith.constant 0 : index
    %c0_8 = arith.constant 0 : index
    %9 = vector.load %arg1[%c0_4, %c0_5, %c0_6, %c0_7, %c0_8] : memref<1x32x1x4x8xbf16, #tpu.memory_space<vmem>>, vector<1x32x1x1x8xbf16>
    %10 = vector.shape_cast %9 : vector<1x32x1x1x8xbf16> to vector<32x8xbf16>
    %11 = arith.extf %10 : vector<32x8xbf16> to vector<32x8xf32>
    %cst = arith.constant 0.353553385 : f32
    %12 = vector.broadcast %cst : f32 to vector<32x8xf32>
    %13 = arith.mulf %11, %12 : vector<32x8xf32>
    %c0_9 = arith.constant 0 : index
    %c0_10 = arith.constant 0 : index
    %c0_11 = arith.constant 0 : index
    %c0_12 = arith.constant 0 : index
    %c0_13 = arith.constant 0 : index
    %14 = vector.load %arg2[%c0_9, %c0_10, %c0_11, %c0_12, %c0_13] : memref<1x32x1x4x8xbf16, #tpu.memory_space<vmem>>, vector<1x32x1x1x8xbf16>
    %15 = vector.shape_cast %14 : vector<1x32x1x1x8xbf16> to vector<32x8xbf16>
    %c0_14 = arith.constant 0 : index
    %c0_15 = arith.constant 0 : index
    %c0_16 = arith.constant 0 : index
    %c0_17 = arith.constant 0 : index
    %c0_18 = arith.constant 0 : index
    %16 = vector.load %arg3[%c0_14, %c0_15, %c0_16, %c0_17, %c0_18] : memref<1x32x1x4x8xbf16, #tpu.memory_space<vmem>>, vector<1x32x1x1x8xbf16>
    %17 = vector.shape_cast %16 : vector<1x32x1x1x8xbf16> to vector<32x8xbf16>
    %18 = arith.truncf %13 : vector<32x8xf32> to vector<32x8xbf16>
    %cst_19 = arith.constant dense<0.000000e+00> : vector<32x32xf32>
    %19 = tpu.matmul %18, %15, %cst_19 {dimension_numbers = #tpu.dot_dimension_numbers<[1], [1], [0], [0], [0, 0, 1, 0], [], []>} : vector<32x8xbf16>, vector<32x8xbf16>, vector<32x32xf32> -> vector<32x32xf32>
    %cst_20 = arith.constant -1.000000e+30 : f32
    %20 = vector.shape_cast %2 : vector<1x32xi1> to vector<1x32xi1>
    %21 = vector.broadcast %20 : vector<1x32xi1> to vector<32x32xi1>
    %22 = vector.broadcast %cst_20 : f32 to vector<32x32xf32>
    %23 = arith.select %21, %19, %22 : vector<32x32xi1>, vector<32x32xf32>
    %cst_21 = arith.constant dense<0xFF800000> : vector<32xf32>
    %24 = vector.multi_reduction <maximumf>, %23, %cst_21 [1] : vector<32x32xf32> to vector<32xf32>
    %25 = vector.shape_cast %24 : vector<32xf32> to vector<32x1xf32>
    %26 = vector.broadcast %25 : vector<32x1xf32> to vector<32x32xf32>
    %27 = arith.subf %23, %26 : vector<32x32xf32>
    %28 = math.exp %27 : vector<32x32xf32>
    %cst_22 = arith.constant dense<0.000000e+00> : vector<32xf32>
    %29 = vector.multi_reduction <add>, %28, %cst_22 [1] : vector<32x32xf32> to vector<32xf32>
    %30 = vector.shape_cast %29 : vector<32xf32> to vector<32x1xf32>
    %31 = tpu.reciprocal %30 {approx = true} : vector<32x1xf32> -> vector<32x1xf32>
    %32 = vector.broadcast %31 : vector<32x1xf32> to vector<32x32xf32>
    %33 = arith.mulf %28, %32 : vector<32x32xf32>
    %34 = arith.truncf %33 : vector<32x32xf32> to vector<32x32xbf16>
    %cst_23 = arith.constant dense<0.000000e+00> : vector<32x8xf32>
    %35 = tpu.matmul %34, %17, %cst_23 {dimension_numbers = #tpu.dot_dimension_numbers<[1], [0], [0], [1], [0, 0, 1, 1], [], []>} : vector<32x32xbf16>, vector<32x8xbf16>, vector<32x8xf32> -> vector<32x8xf32>
    %36 = arith.truncf %35 : vector<32x8xf32> to vector<32x8xbf16>
    %c0_24 = arith.constant 0 : index
    %c0_25 = arith.constant 0 : index
    %37 = vector.load %arg5[%c0_24, %c0_25] : memref<32x32xbf16, #tpu.memory_space<vmem>>, vector<8x32xbf16>
    %cst_26 = arith.constant dense<0.000000e+00> : vector<32x32xf32>
    %38 = tpu.matmul %36, %37, %cst_26 {dimension_numbers = #tpu.dot_dimension_numbers<[1], [0], [0], [1], [0, 0, 1, 1], [], []>} : vector<32x8xbf16>, vector<8x32xbf16>, vector<32x32xf32> -> vector<32x32xf32>
    %39 = arith.addf %8, %38 : vector<32x32xf32>
    %c0_27 = arith.constant 0 : index
    %c0_28 = arith.constant 0 : index
    %c0_29 = arith.constant 0 : index
    %c1 = arith.constant 1 : index
    %c0_30 = arith.constant 0 : index
    %40 = vector.load %arg1[%c0_27, %c0_28, %c0_29, %c1, %c0_30] : memref<1x32x1x4x8xbf16, #tpu.memory_space<vmem>>, vector<1x32x1x1x8xbf16>
    %41 = vector.shape_cast %40 : vector<1x32x1x1x8xbf16> to vector<32x8xbf16>
    %42 = arith.extf %41 : vector<32x8xbf16> to vector<32x8xf32>
    %cst_31 = arith.constant 0.353553385 : f32
    %43 = vector.broadcast %cst_31 : f32 to vector<32x8xf32>
    %44 = arith.mulf %42, %43 : vector<32x8xf32>
    %c0_32 = arith.constant 0 : index
    %c0_33 = arith.constant 0 : index
    %c0_34 = arith.constant 0 : index
    %c1_35 = arith.constant 1 : index
    %c0_36 = arith.constant 0 : index
    %45 = vector.load %arg2[%c0_32, %c0_33, %c0_34, %c1_35, %c0_36] : memref<1x32x1x4x8xbf16, #tpu.memory_space<vmem>>, vector<1x32x1x1x8xbf16>
    %46 = vector.shape_cast %45 : vector<1x32x1x1x8xbf16> to vector<32x8xbf16>
    %c0_37 = arith.constant 0 : index
    %c0_38 = arith.constant 0 : index
    %c0_39 = arith.constant 0 : index
    %c1_40 = arith.constant 1 : index
    %c0_41 = arith.constant 0 : index
    %47 = vector.load %arg3[%c0_37, %c0_38, %c0_39, %c1_40, %c0_41] : memref<1x32x1x4x8xbf16, #tpu.memory_space<vmem>>, vector<1x32x1x1x8xbf16>
    %48 = vector.shape_cast %47 : vector<1x32x1x1x8xbf16> to vector<32x8xbf16>
    %49 = arith.truncf %44 : vector<32x8xf32> to vector<32x8xbf16>
    %cst_42 = arith.constant dense<0.000000e+00> : vector<32x32xf32>
    %50 = tpu.matmul %49, %46, %cst_42 {dimension_numbers = #tpu.dot_dimension_numbers<[1], [1], [0], [0], [0, 0, 1, 0], [], []>} : vector<32x8xbf16>, vector<32x8xbf16>, vector<32x32xf32> -> vector<32x32xf32>
    %cst_43 = arith.constant -1.000000e+30 : f32
    %51 = vector.shape_cast %2 : vector<1x32xi1> to vector<1x32xi1>
    %52 = vector.broadcast %51 : vector<1x32xi1> to vector<32x32xi1>
    %53 = vector.broadcast %cst_43 : f32 to vector<32x32xf32>
    %54 = arith.select %52, %50, %53 : vector<32x32xi1>, vector<32x32xf32>
    %cst_44 = arith.constant dense<0xFF800000> : vector<32xf32>
    %55 = vector.multi_reduction <maximumf>, %54, %cst_44 [1] : vector<32x32xf32> to vector<32xf32>
    %56 = vector.shape_cast %55 : vector<32xf32> to vector<32x1xf32>
    %57 = vector.broadcast %56 : vector<32x1xf32> to vector<32x32xf32>
    %58 = arith.subf %54, %57 : vector<32x32xf32>
    %59 = math.exp %58 : vector<32x32xf32>
    %cst_45 = arith.constant dense<0.000000e+00> : vector<32xf32>
    %60 = vector.multi_reduction <add>, %59, %cst_45 [1] : vector<32x32xf32> to vector<32xf32>
    %61 = vector.shape_cast %60 : vector<32xf32> to vector<32x1xf32>
    %62 = tpu.reciprocal %61 {approx = true} : vector<32x1xf32> -> vector<32x1xf32>
    %63 = vector.broadcast %62 : vector<32x1xf32> to vector<32x32xf32>
    %64 = arith.mulf %59, %63 : vector<32x32xf32>
    %65 = arith.truncf %64 : vector<32x32xf32> to vector<32x32xbf16>
    %cst_46 = arith.constant dense<0.000000e+00> : vector<32x8xf32>
    %66 = tpu.matmul %65, %48, %cst_46 {dimension_numbers = #tpu.dot_dimension_numbers<[1], [0], [0], [1], [0, 0, 1, 1], [], []>} : vector<32x32xbf16>, vector<32x8xbf16>, vector<32x8xf32> -> vector<32x8xf32>
    %67 = arith.truncf %66 : vector<32x8xf32> to vector<32x8xbf16>
    %c8 = arith.constant 8 : index
    %c0_47 = arith.constant 0 : index
    %68 = vector.load %arg5[%c8, %c0_47] : memref<32x32xbf16, #tpu.memory_space<vmem>>, vector<8x32xbf16>
    %cst_48 = arith.constant dense<0.000000e+00> : vector<32x32xf32>
    %69 = tpu.matmul %67, %68, %cst_48 {dimension_numbers = #tpu.dot_dimension_numbers<[1], [0], [0], [1], [0, 0, 1, 1], [], []>} : vector<32x8xbf16>, vector<8x32xbf16>, vector<32x32xf32> -> vector<32x32xf32>
    %70 = arith.addf %39, %69 : vector<32x32xf32>
    %c0_49 = arith.constant 0 : index
    %c0_50 = arith.constant 0 : index
    %c0_51 = arith.constant 0 : index
    %c2 = arith.constant 2 : index
    %c0_52 = arith.constant 0 : index
    %71 = vector.load %arg1[%c0_49, %c0_50, %c0_51, %c2, %c0_52] : memref<1x32x1x4x8xbf16, #tpu.memory_space<vmem>>, vector<1x32x1x1x8xbf16>
    %72 = vector.shape_cast %71 : vector<1x32x1x1x8xbf16> to vector<32x8xbf16>
    %73 = arith.extf %72 : vector<32x8xbf16> to vector<32x8xf32>
    %cst_53 = arith.constant 0.353553385 : f32
    %74 = vector.broadcast %cst_53 : f32 to vector<32x8xf32>
    %75 = arith.mulf %73, %74 : vector<32x8xf32>
    %c0_54 = arith.constant 0 : index
    %c0_55 = arith.constant 0 : index
    %c0_56 = arith.constant 0 : index
    %c2_57 = arith.constant 2 : index
    %c0_58 = arith.constant 0 : index
    %76 = vector.load %arg2[%c0_54, %c0_55, %c0_56, %c2_57, %c0_58] : memref<1x32x1x4x8xbf16, #tpu.memory_space<vmem>>, vector<1x32x1x1x8xbf16>
    %77 = vector.shape_cast %76 : vector<1x32x1x1x8xbf16> to vector<32x8xbf16>
    %c0_59 = arith.constant 0 : index
    %c0_60 = arith.constant 0 : index
    %c0_61 = arith.constant 0 : index
    %c2_62 = arith.constant 2 : index
    %c0_63 = arith.constant 0 : index
    %78 = vector.load %arg3[%c0_59, %c0_60, %c0_61, %c2_62, %c0_63] : memref<1x32x1x4x8xbf16, #tpu.memory_space<vmem>>, vector<1x32x1x1x8xbf16>
    %79 = vector.shape_cast %78 : vector<1x32x1x1x8xbf16> to vector<32x8xbf16>
    %80 = arith.truncf %75 : vector<32x8xf32> to vector<32x8xbf16>
    %cst_64 = arith.constant dense<0.000000e+00> : vector<32x32xf32>
    %81 = tpu.matmul %80, %77, %cst_64 {dimension_numbers = #tpu.dot_dimension_numbers<[1], [1], [0], [0], [0, 0, 1, 0], [], []>} : vector<32x8xbf16>, vector<32x8xbf16>, vector<32x32xf32> -> vector<32x32xf32>
    %cst_65 = arith.constant -1.000000e+30 : f32
    %82 = vector.shape_cast %2 : vector<1x32xi1> to vector<1x32xi1>
    %83 = vector.broadcast %82 : vector<1x32xi1> to vector<32x32xi1>
    %84 = vector.broadcast %cst_65 : f32 to vector<32x32xf32>
    %85 = arith.select %83, %81, %84 : vector<32x32xi1>, vector<32x32xf32>
    %cst_66 = arith.constant dense<0xFF800000> : vector<32xf32>
    %86 = vector.multi_reduction <maximumf>, %85, %cst_66 [1] : vector<32x32xf32> to vector<32xf32>
    %87 = vector.shape_cast %86 : vector<32xf32> to vector<32x1xf32>
    %88 = vector.broadcast %87 : vector<32x1xf32> to vector<32x32xf32>
    %89 = arith.subf %85, %88 : vector<32x32xf32>
    %90 = math.exp %89 : vector<32x32xf32>
    %cst_67 = arith.constant dense<0.000000e+00> : vector<32xf32>
    %91 = vector.multi_reduction <add>, %90, %cst_67 [1] : vector<32x32xf32> to vector<32xf32>
    %92 = vector.shape_cast %91 : vector<32xf32> to vector<32x1xf32>
    %93 = tpu.reciprocal %92 {approx = true} : vector<32x1xf32> -> vector<32x1xf32>
    %94 = vector.broadcast %93 : vector<32x1xf32> to vector<32x32xf32>
    %95 = arith.mulf %90, %94 : vector<32x32xf32>
    %96 = arith.truncf %95 : vector<32x32xf32> to vector<32x32xbf16>
    %cst_68 = arith.constant dense<0.000000e+00> : vector<32x8xf32>
    %97 = tpu.matmul %96, %79, %cst_68 {dimension_numbers = #tpu.dot_dimension_numbers<[1], [0], [0], [1], [0, 0, 1, 1], [], []>} : vector<32x32xbf16>, vector<32x8xbf16>, vector<32x8xf32> -> vector<32x8xf32>
    %98 = arith.truncf %97 : vector<32x8xf32> to vector<32x8xbf16>
    %c16 = arith.constant 16 : index
    %c0_69 = arith.constant 0 : index
    %99 = vector.load %arg5[%c16, %c0_69] : memref<32x32xbf16, #tpu.memory_space<vmem>>, vector<8x32xbf16>
    %cst_70 = arith.constant dense<0.000000e+00> : vector<32x32xf32>
    %100 = tpu.matmul %98, %99, %cst_70 {dimension_numbers = #tpu.dot_dimension_numbers<[1], [0], [0], [1], [0, 0, 1, 1], [], []>} : vector<32x8xbf16>, vector<8x32xbf16>, vector<32x32xf32> -> vector<32x32xf32>
    %101 = arith.addf %70, %100 : vector<32x32xf32>
    %c0_71 = arith.constant 0 : index
    %c0_72 = arith.constant 0 : index
    %c0_73 = arith.constant 0 : index
    %c3 = arith.constant 3 : index
    %c0_74 = arith.constant 0 : index
    %102 = vector.load %arg1[%c0_71, %c0_72, %c0_73, %c3, %c0_74] : memref<1x32x1x4x8xbf16, #tpu.memory_space<vmem>>, vector<1x32x1x1x8xbf16>
    %103 = vector.shape_cast %102 : vector<1x32x1x1x8xbf16> to vector<32x8xbf16>
    %104 = arith.extf %103 : vector<32x8xbf16> to vector<32x8xf32>
    %cst_75 = arith.constant 0.353553385 : f32
    %105 = vector.broadcast %cst_75 : f32 to vector<32x8xf32>
    %106 = arith.mulf %104, %105 : vector<32x8xf32>
    %c0_76 = arith.constant 0 : index
    %c0_77 = arith.constant 0 : index
    %c0_78 = arith.constant 0 : index
    %c3_79 = arith.constant 3 : index
    %c0_80 = arith.constant 0 : index
    %107 = vector.load %arg2[%c0_76, %c0_77, %c0_78, %c3_79, %c0_80] : memref<1x32x1x4x8xbf16, #tpu.memory_space<vmem>>, vector<1x32x1x1x8xbf16>
    %108 = vector.shape_cast %107 : vector<1x32x1x1x8xbf16> to vector<32x8xbf16>
    %c0_81 = arith.constant 0 : index
    %c0_82 = arith.constant 0 : index
    %c0_83 = arith.constant 0 : index
    %c3_84 = arith.constant 3 : index
    %c0_85 = arith.constant 0 : index
    %109 = vector.load %arg3[%c0_81, %c0_82, %c0_83, %c3_84, %c0_85] : memref<1x32x1x4x8xbf16, #tpu.memory_space<vmem>>, vector<1x32x1x1x8xbf16>
    %110 = vector.shape_cast %109 : vector<1x32x1x1x8xbf16> to vector<32x8xbf16>
    %111 = arith.truncf %106 : vector<32x8xf32> to vector<32x8xbf16>
    %cst_86 = arith.constant dense<0.000000e+00> : vector<32x32xf32>
    %112 = tpu.matmul %111, %108, %cst_86 {dimension_numbers = #tpu.dot_dimension_numbers<[1], [1], [0], [0], [0, 0, 1, 0], [], []>} : vector<32x8xbf16>, vector<32x8xbf16>, vector<32x32xf32> -> vector<32x32xf32>
    %cst_87 = arith.constant -1.000000e+30 : f32
    %113 = vector.shape_cast %2 : vector<1x32xi1> to vector<1x32xi1>
    %114 = vector.broadcast %113 : vector<1x32xi1> to vector<32x32xi1>
    %115 = vector.broadcast %cst_87 : f32 to vector<32x32xf32>
    %116 = arith.select %114, %112, %115 : vector<32x32xi1>, vector<32x32xf32>
    %cst_88 = arith.constant dense<0xFF800000> : vector<32xf32>
    %117 = vector.multi_reduction <maximumf>, %116, %cst_88 [1] : vector<32x32xf32> to vector<32xf32>
    %118 = vector.shape_cast %117 : vector<32xf32> to vector<32x1xf32>
    %119 = vector.broadcast %118 : vector<32x1xf32> to vector<32x32xf32>
    %120 = arith.subf %116, %119 : vector<32x32xf32>
    %121 = math.exp %120 : vector<32x32xf32>
    %cst_89 = arith.constant dense<0.000000e+00> : vector<32xf32>
    %122 = vector.multi_reduction <add>, %121, %cst_89 [1] : vector<32x32xf32> to vector<32xf32>
    %123 = vector.shape_cast %122 : vector<32xf32> to vector<32x1xf32>
    %124 = tpu.reciprocal %123 {approx = true} : vector<32x1xf32> -> vector<32x1xf32>
    %125 = vector.broadcast %124 : vector<32x1xf32> to vector<32x32xf32>
    %126 = arith.mulf %121, %125 : vector<32x32xf32>
    %127 = arith.truncf %126 : vector<32x32xf32> to vector<32x32xbf16>
    %cst_90 = arith.constant dense<0.000000e+00> : vector<32x8xf32>
    %128 = tpu.matmul %127, %110, %cst_90 {dimension_numbers = #tpu.dot_dimension_numbers<[1], [0], [0], [1], [0, 0, 1, 1], [], []>} : vector<32x32xbf16>, vector<32x8xbf16>, vector<32x8xf32> -> vector<32x8xf32>
    %129 = arith.truncf %128 : vector<32x8xf32> to vector<32x8xbf16>
    %c24 = arith.constant 24 : index
    %c0_91 = arith.constant 0 : index
    %130 = vector.load %arg5[%c24, %c0_91] : memref<32x32xbf16, #tpu.memory_space<vmem>>, vector<8x32xbf16>
    %cst_92 = arith.constant dense<0.000000e+00> : vector<32x32xf32>
    %131 = tpu.matmul %129, %130, %cst_92 {dimension_numbers = #tpu.dot_dimension_numbers<[1], [0], [0], [1], [0, 0, 1, 1], [], []>} : vector<32x8xbf16>, vector<8x32xbf16>, vector<32x32xf32> -> vector<32x32xf32>
    %132 = arith.addf %101, %131 : vector<32x32xf32>
    %133 = arith.truncf %132 : vector<32x32xf32> to vector<32x32xbf16>
    %c0_93 = arith.constant 0 : index
    %c0_94 = arith.constant 0 : index
    %c0_95 = arith.constant 0 : index
    %134 = vector.load %arg7[%c0_93, %c0_94, %c0_95] : memref<1x32x32xbf16, #tpu.memory_space<vmem>>, vector<1x32x32xbf16>
    %135 = vector.shape_cast %134 : vector<1x32x32xbf16> to vector<32x32xbf16>
    %136 = vector.shape_cast %133 : vector<32x32xbf16> to vector<1x32x32xbf16>
    tpu.vector_store %arg7[%c0_93, %c0_94, %c0_95], %136 {strides = array<i32>} : memref<1x32x32xbf16, #tpu.memory_space<vmem>>, vector<1x32x32xbf16>,
    return
  }
  func.func @transform_0(%arg0: i32) -> (i32, i32, i32, i32, i32) {
    %c0_i32 = arith.constant 0 : i32
    %c0_i32_0 = arith.constant 0 : i32
    %c0_i32_1 = arith.constant 0 : i32
    %c0_i32_2 = arith.constant 0 : i32
    %c0_i32_3 = arith.constant 0 : i32
    return %arg0, %c0_i32, %c0_i32_0, %c0_i32_1, %c0_i32_2 : i32, i32, i32, i32, i32
  }
  func.func @transform_1(%arg0: i32) -> (i32, i32, i32, i32, i32) {
    %c0_i32 = arith.constant 0 : i32
    %c1_i32 = arith.constant 1 : i32
    %c0_i32_0 = arith.constant 0 : i32
    %c0_i32_1 = arith.constant 0 : i32
    %c0_i32_2 = arith.constant 0 : i32
    return %arg0, %c0_i32, %c1_i32, %c0_i32_0, %c0_i32_1 : i32, i32, i32, i32, i32
  }
  func.func @transform_2(%arg0: i32) -> (i32, i32, i32, i32, i32) {
    %c0_i32 = arith.constant 0 : i32
    %c2_i32 = arith.constant 2 : i32
    %c0_i32_0 = arith.constant 0 : i32
    %c0_i32_1 = arith.constant 0 : i32
    %c0_i32_2 = arith.constant 0 : i32
    return %arg0, %c0_i32, %c2_i32, %c0_i32_0, %c0_i32_1 : i32, i32, i32, i32, i32
  }
  func.func @transform_3(%arg0: i32) -> (i32, i32, i32) {
    %c0_i32 = arith.constant 0 : i32
    %c0_i32_0 = arith.constant 0 : i32
    %c0_i32_1 = arith.constant 0 : i32
    return %arg0, %c0_i32, %c0_i32_0 : i32, i32, i32
  }
  func.func @transform_4(%arg0: i32) -> (i32, i32) {
    %c0_i32 = arith.constant 0 : i32
    %c0_i32_0 = arith.constant 0 : i32
    %c0_i32_1 = arith.constant 0 : i32
    return %c0_i32, %c0_i32_0 : i32, i32
  }
  func.func @transform_5(%arg0: i32) -> (i32, i32) {
    %c0_i32 = arith.constant 0 : i32
    %c0_i32_0 = arith.constant 0 : i32
    %c0_i32_1 = arith.constant 0 : i32
    return %c0_i32, %c0_i32_0 : i32, i32
  }
  func.func @transform_6(%arg0: i32) -> (i32, i32, i32) {
    %c0_i32 = arith.constant 0 : i32
    %c0_i32_0 = arith.constant 0 : i32
    %c0_i32_1 = arith.constant 0 : i32
    return %arg0, %c0_i32, %c0_i32_0 : i32, i32, i32
  }
}

module attributes {stable_mosaic.version = 11 : i64} {
  func.func @_mlp_block_kernel(%arg0: i32, %arg1: memref<64x32xbf16, #tpu.memory_space<vmem>>, %arg2: memref<1x32xf32, #tpu.memory_space<vmem>>, %arg3: memref<1x32xf32, #tpu.memory_space<vmem>>, %arg4: memref<32x128xbf16, #tpu.memory_space<vmem>>, %arg5: memref<1x128xf32, #tpu.memory_space<vmem>>, %arg6: memref<128x32xbf16, #tpu.memory_space<vmem>>, %arg7: memref<1x32xf32, #tpu.memory_space<vmem>>, %arg8: memref<64x32xbf16, #tpu.memory_space<vmem>>) attributes {dimension_semantics = [#tpu.dimension_semantics<parallel>], iteration_bounds = array<i64: 1>, scalar_prefetch = 0 : i64, scratch_operands = 0 : i64, tpu.core_type = #tpu.core_type<tc>, window_params = [{transform_indices = @transform_0, window_bounds = array<i64: 64, 32>}, {pipeline_mode = #tpu.pipeline_mode<synchronous>, transform_indices = @transform_1, window_bounds = array<i64: 1, 32>}, {pipeline_mode = #tpu.pipeline_mode<synchronous>, transform_indices = @transform_2, window_bounds = array<i64: 1, 32>}, {pipeline_mode = #tpu.pipeline_mode<synchronous>, transform_indices = @transform_3, window_bounds = array<i64: 32, 128>}, {pipeline_mode = #tpu.pipeline_mode<synchronous>, transform_indices = @transform_4, window_bounds = array<i64: 1, 128>}, {pipeline_mode = #tpu.pipeline_mode<synchronous>, transform_indices = @transform_5, window_bounds = array<i64: 128, 32>}, {pipeline_mode = #tpu.pipeline_mode<synchronous>, transform_indices = @transform_6, window_bounds = array<i64: 1, 32>}, {transform_indices = @transform_7, window_bounds = array<i64: 64, 32>}]} {
    %c0 = arith.constant 0 : index
    %c0_0 = arith.constant 0 : index
    %0 = vector.load %arg1[%c0, %c0_0] : memref<64x32xbf16, #tpu.memory_space<vmem>>, vector<64x32xbf16>
    %1 = arith.extf %0 : vector<64x32xbf16> to vector<64x32xf32>
    %c0_1 = arith.constant 0 : index
    %c0_2 = arith.constant 0 : index
    %2 = vector.load %arg2[%c0_1, %c0_2] : memref<1x32xf32, #tpu.memory_space<vmem>>, vector<1x32xf32>
    %c0_3 = arith.constant 0 : index
    %c0_4 = arith.constant 0 : index
    %3 = vector.load %arg3[%c0_3, %c0_4] : memref<1x32xf32, #tpu.memory_space<vmem>>, vector<1x32xf32>
    %cst = arith.constant dense<0.000000e+00> : vector<64xf32>
    %4 = vector.multi_reduction <add>, %1, %cst [1] : vector<64x32xf32> to vector<64xf32>
    %5 = vector.shape_cast %4 : vector<64xf32> to vector<64x1xf32>
    %cst_5 = arith.constant 3.200000e+01 : f32
    %6 = vector.broadcast %cst_5 : f32 to vector<64x1xf32>
    %7 = arith.divf %5, %6 : vector<64x1xf32>
    %8 = vector.broadcast %7 : vector<64x1xf32> to vector<64x32xf32>
    %9 = arith.subf %1, %8 : vector<64x32xf32>
    %10 = arith.mulf %9, %9 : vector<64x32xf32>
    %cst_6 = arith.constant dense<0.000000e+00> : vector<64xf32>
    %11 = vector.multi_reduction <add>, %10, %cst_6 [1] : vector<64x32xf32> to vector<64xf32>
    %12 = vector.shape_cast %11 : vector<64xf32> to vector<64x1xf32>
    %cst_7 = arith.constant 3.200000e+01 : f32
    %13 = vector.broadcast %cst_7 : f32 to vector<64x1xf32>
    %14 = arith.divf %12, %13 : vector<64x1xf32>
    %15 = vector.broadcast %7 : vector<64x1xf32> to vector<64x32xf32>
    %16 = arith.subf %1, %15 : vector<64x32xf32>
    %cst_8 = arith.constant 9.99999974E-6 : f32
    %17 = vector.broadcast %cst_8 : f32 to vector<64x1xf32>
    %18 = arith.addf %14, %17 : vector<64x1xf32>
    %19 = math.rsqrt %18 : vector<64x1xf32>
    %20 = vector.broadcast %19 : vector<64x1xf32> to vector<64x32xf32>
    %21 = arith.mulf %16, %20 : vector<64x32xf32>
    %22 = vector.broadcast %2 : vector<1x32xf32> to vector<64x32xf32>
    %23 = arith.mulf %21, %22 : vector<64x32xf32>
    %24 = vector.broadcast %3 : vector<1x32xf32> to vector<64x32xf32>
    %25 = arith.addf %23, %24 : vector<64x32xf32>
    %26 = arith.truncf %25 : vector<64x32xf32> to vector<64x32xbf16>
    %c0_9 = arith.constant 0 : index
    %c0_10 = arith.constant 0 : index
    %27 = vector.load %arg4[%c0_9, %c0_10] : memref<32x128xbf16, #tpu.memory_space<vmem>>, vector<32x128xbf16>
    %cst_11 = arith.constant dense<0.000000e+00> : vector<64x128xf32>
    %28 = tpu.matmul %26, %27, %cst_11 {dimension_numbers = #tpu.dot_dimension_numbers<[1], [0], [0], [1], [0, 0, 1, 1], [], []>} : vector<64x32xbf16>, vector<32x128xbf16>, vector<64x128xf32> -> vector<64x128xf32>
    %c0_12 = arith.constant 0 : index
    %c0_13 = arith.constant 0 : index
    %29 = vector.load %arg5[%c0_12, %c0_13] : memref<1x128xf32, #tpu.memory_space<vmem>>, vector<1x128xf32>
    %30 = vector.broadcast %29 : vector<1x128xf32> to vector<64x128xf32>
    %31 = arith.addf %28, %30 : vector<64x128xf32>
    %32 = arith.mulf %31, %31 : vector<64x128xf32>
    %33 = arith.mulf %31, %32 : vector<64x128xf32>
    %cst_14 = arith.constant 4.471500e-02 : f32
    %34 = vector.broadcast %cst_14 : f32 to vector<64x128xf32>
    %35 = arith.mulf %34, %33 : vector<64x128xf32>
    %36 = arith.addf %31, %35 : vector<64x128xf32>
    %cst_15 = arith.constant 0.797884583 : f32
    %37 = vector.broadcast %cst_15 : f32 to vector<64x128xf32>
    %38 = arith.mulf %37, %36 : vector<64x128xf32>
    %39 = math.tanh %38 : vector<64x128xf32>
    %cst_16 = arith.constant 1.000000e+00 : f32
    %40 = vector.broadcast %cst_16 : f32 to vector<64x128xf32>
    %41 = arith.addf %40, %39 : vector<64x128xf32>
    %cst_17 = arith.constant 5.000000e-01 : f32
    %42 = vector.broadcast %cst_17 : f32 to vector<64x128xf32>
    %43 = arith.mulf %42, %41 : vector<64x128xf32>
    %44 = arith.mulf %31, %43 : vector<64x128xf32>
    %45 = arith.truncf %44 : vector<64x128xf32> to vector<64x128xbf16>
    %c0_18 = arith.constant 0 : index
    %c0_19 = arith.constant 0 : index
    %46 = vector.load %arg6[%c0_18, %c0_19] : memref<128x32xbf16, #tpu.memory_space<vmem>>, vector<128x32xbf16>
    %cst_20 = arith.constant dense<0.000000e+00> : vector<64x32xf32>
    %47 = tpu.matmul %45, %46, %cst_20 {dimension_numbers = #tpu.dot_dimension_numbers<[1], [0], [0], [1], [0, 0, 1, 1], [], []>} : vector<64x128xbf16>, vector<128x32xbf16>, vector<64x32xf32> -> vector<64x32xf32>
    %48 = arith.addf %1, %47 : vector<64x32xf32>
    %c0_21 = arith.constant 0 : index
    %c0_22 = arith.constant 0 : index
    %49 = vector.load %arg7[%c0_21, %c0_22] : memref<1x32xf32, #tpu.memory_space<vmem>>, vector<1x32xf32>
    %50 = vector.broadcast %49 : vector<1x32xf32> to vector<64x32xf32>
    %51 = arith.addf %48, %50 : vector<64x32xf32>
    %52 = arith.truncf %51 : vector<64x32xf32> to vector<64x32xbf16>
    %c0_23 = arith.constant 0 : index
    %c0_24 = arith.constant 0 : index
    %53 = vector.load %arg8[%c0_23, %c0_24] : memref<64x32xbf16, #tpu.memory_space<vmem>>, vector<64x32xbf16>
    tpu.vector_store %arg8[%c0_23, %c0_24], %52 {strides = array<i32>} : memref<64x32xbf16, #tpu.memory_space<vmem>>, vector<64x32xbf16>,
    return
  }
  func.func @transform_0(%arg0: i32) -> (i32, i32) {
    %c0_i32 = arith.constant 0 : i32
    %c0_i32_0 = arith.constant 0 : i32
    return %arg0, %c0_i32 : i32, i32
  }
  func.func @transform_1(%arg0: i32) -> (i32, i32) {
    %c0_i32 = arith.constant 0 : i32
    %c0_i32_0 = arith.constant 0 : i32
    %c0_i32_1 = arith.constant 0 : i32
    return %c0_i32, %c0_i32_0 : i32, i32
  }
  func.func @transform_2(%arg0: i32) -> (i32, i32) {
    %c0_i32 = arith.constant 0 : i32
    %c0_i32_0 = arith.constant 0 : i32
    %c0_i32_1 = arith.constant 0 : i32
    return %c0_i32, %c0_i32_0 : i32, i32
  }
  func.func @transform_3(%arg0: i32) -> (i32, i32) {
    %c0_i32 = arith.constant 0 : i32
    %c0_i32_0 = arith.constant 0 : i32
    %c0_i32_1 = arith.constant 0 : i32
    return %c0_i32, %c0_i32_0 : i32, i32
  }
  func.func @transform_4(%arg0: i32) -> (i32, i32) {
    %c0_i32 = arith.constant 0 : i32
    %c0_i32_0 = arith.constant 0 : i32
    %c0_i32_1 = arith.constant 0 : i32
    return %c0_i32, %c0_i32_0 : i32, i32
  }
  func.func @transform_5(%arg0: i32) -> (i32, i32) {
    %c0_i32 = arith.constant 0 : i32
    %c0_i32_0 = arith.constant 0 : i32
    %c0_i32_1 = arith.constant 0 : i32
    return %c0_i32, %c0_i32_0 : i32, i32
  }
  func.func @transform_6(%arg0: i32) -> (i32, i32) {
    %c0_i32 = arith.constant 0 : i32
    %c0_i32_0 = arith.constant 0 : i32
    %c0_i32_1 = arith.constant 0 : i32
    return %c0_i32, %c0_i32_0 : i32, i32
  }
  func.func @transform_7(%arg0: i32) -> (i32, i32) {
    %c0_i32 = arith.constant 0 : i32
    %c0_i32_0 = arith.constant 0 : i32
    return %arg0, %c0_i32 : i32, i32
  }
}

module attributes {stable_mosaic.version = 11 : i64} {
  func.func @_ln_gemm_bias_kernel(%arg0: i32, %arg1: memref<8x32xbf16, #tpu.memory_space<vmem>>, %arg2: memref<1x32xf32, #tpu.memory_space<vmem>>, %arg3: memref<1x32xf32, #tpu.memory_space<vmem>>, %arg4: memref<32x128xbf16, #tpu.memory_space<vmem>>, %arg5: memref<1x128xf32, #tpu.memory_space<vmem>>, %arg6: memref<8x128xf32, #tpu.memory_space<vmem>>) attributes {dimension_semantics = [#tpu.dimension_semantics<parallel>], iteration_bounds = array<i64: 1>, scalar_prefetch = 0 : i64, scratch_operands = 0 : i64, tpu.core_type = #tpu.core_type<tc>, window_params = [{transform_indices = @transform_0, window_bounds = array<i64: 8, 32>}, {pipeline_mode = #tpu.pipeline_mode<synchronous>, transform_indices = @transform_1, window_bounds = array<i64: 1, 32>}, {pipeline_mode = #tpu.pipeline_mode<synchronous>, transform_indices = @transform_2, window_bounds = array<i64: 1, 32>}, {pipeline_mode = #tpu.pipeline_mode<synchronous>, transform_indices = @transform_3, window_bounds = array<i64: 32, 128>}, {pipeline_mode = #tpu.pipeline_mode<synchronous>, transform_indices = @transform_4, window_bounds = array<i64: 1, 128>}, {transform_indices = @transform_5, window_bounds = array<i64: 8, 128>}]} {
    %c0 = arith.constant 0 : index
    %c0_0 = arith.constant 0 : index
    %0 = vector.load %arg1[%c0, %c0_0] : memref<8x32xbf16, #tpu.memory_space<vmem>>, vector<8x32xbf16>
    %1 = arith.extf %0 : vector<8x32xbf16> to vector<8x32xf32>
    %c0_1 = arith.constant 0 : index
    %c0_2 = arith.constant 0 : index
    %2 = vector.load %arg2[%c0_1, %c0_2] : memref<1x32xf32, #tpu.memory_space<vmem>>, vector<1x32xf32>
    %c0_3 = arith.constant 0 : index
    %c0_4 = arith.constant 0 : index
    %3 = vector.load %arg3[%c0_3, %c0_4] : memref<1x32xf32, #tpu.memory_space<vmem>>, vector<1x32xf32>
    %cst = arith.constant dense<0.000000e+00> : vector<8xf32>
    %4 = vector.multi_reduction <add>, %1, %cst [1] : vector<8x32xf32> to vector<8xf32>
    %5 = vector.shape_cast %4 : vector<8xf32> to vector<8x1xf32>
    %cst_5 = arith.constant 3.200000e+01 : f32
    %6 = vector.broadcast %cst_5 : f32 to vector<8x1xf32>
    %7 = arith.divf %5, %6 : vector<8x1xf32>
    %8 = vector.broadcast %7 : vector<8x1xf32> to vector<8x32xf32>
    %9 = arith.subf %1, %8 : vector<8x32xf32>
    %10 = arith.mulf %9, %9 : vector<8x32xf32>
    %cst_6 = arith.constant dense<0.000000e+00> : vector<8xf32>
    %11 = vector.multi_reduction <add>, %10, %cst_6 [1] : vector<8x32xf32> to vector<8xf32>
    %12 = vector.shape_cast %11 : vector<8xf32> to vector<8x1xf32>
    %cst_7 = arith.constant 3.200000e+01 : f32
    %13 = vector.broadcast %cst_7 : f32 to vector<8x1xf32>
    %14 = arith.divf %12, %13 : vector<8x1xf32>
    %15 = vector.broadcast %7 : vector<8x1xf32> to vector<8x32xf32>
    %16 = arith.subf %1, %15 : vector<8x32xf32>
    %cst_8 = arith.constant 9.99999974E-6 : f32
    %17 = vector.broadcast %cst_8 : f32 to vector<8x1xf32>
    %18 = arith.addf %14, %17 : vector<8x1xf32>
    %19 = math.rsqrt %18 : vector<8x1xf32>
    %20 = vector.broadcast %19 : vector<8x1xf32> to vector<8x32xf32>
    %21 = arith.mulf %16, %20 : vector<8x32xf32>
    %22 = vector.broadcast %2 : vector<1x32xf32> to vector<8x32xf32>
    %23 = arith.mulf %21, %22 : vector<8x32xf32>
    %24 = vector.broadcast %3 : vector<1x32xf32> to vector<8x32xf32>
    %25 = arith.addf %23, %24 : vector<8x32xf32>
    %26 = arith.truncf %25 : vector<8x32xf32> to vector<8x32xbf16>
    %c0_9 = arith.constant 0 : index
    %c0_10 = arith.constant 0 : index
    %27 = vector.load %arg4[%c0_9, %c0_10] : memref<32x128xbf16, #tpu.memory_space<vmem>>, vector<32x128xbf16>
    %cst_11 = arith.constant dense<0.000000e+00> : vector<8x128xf32>
    %28 = tpu.matmul %26, %27, %cst_11 {dimension_numbers = #tpu.dot_dimension_numbers<[1], [0], [0], [1], [0, 0, 1, 1], [], []>} : vector<8x32xbf16>, vector<32x128xbf16>, vector<8x128xf32> -> vector<8x128xf32>
    %c0_12 = arith.constant 0 : index
    %c0_13 = arith.constant 0 : index
    %29 = vector.load %arg5[%c0_12, %c0_13] : memref<1x128xf32, #tpu.memory_space<vmem>>, vector<1x128xf32>
    %30 = vector.broadcast %29 : vector<1x128xf32> to vector<8x128xf32>
    %31 = arith.addf %28, %30 : vector<8x128xf32>
    %c0_14 = arith.constant 0 : index
    %c0_15 = arith.constant 0 : index
    %32 = vector.load %arg6[%c0_14, %c0_15] : memref<8x128xf32, #tpu.memory_space<vmem>>, vector<8x128xf32>
    tpu.vector_store %arg6[%c0_14, %c0_15], %31 {strides = array<i32>} : memref<8x128xf32, #tpu.memory_space<vmem>>, vector<8x128xf32>,
    return
  }
  func.func @transform_0(%arg0: i32) -> (i32, i32) {
    %c0_i32 = arith.constant 0 : i32
    %c0_i32_0 = arith.constant 0 : i32
    return %arg0, %c0_i32 : i32, i32
  }
  func.func @transform_1(%arg0: i32) -> (i32, i32) {
    %c0_i32 = arith.constant 0 : i32
    %c0_i32_0 = arith.constant 0 : i32
    %c0_i32_1 = arith.constant 0 : i32
    return %c0_i32, %c0_i32_0 : i32, i32
  }
  func.func @transform_2(%arg0: i32) -> (i32, i32) {
    %c0_i32 = arith.constant 0 : i32
    %c0_i32_0 = arith.constant 0 : i32
    %c0_i32_1 = arith.constant 0 : i32
    return %c0_i32, %c0_i32_0 : i32, i32
  }
  func.func @transform_3(%arg0: i32) -> (i32, i32) {
    %c0_i32 = arith.constant 0 : i32
    %c0_i32_0 = arith.constant 0 : i32
    %c0_i32_1 = arith.constant 0 : i32
    return %c0_i32, %c0_i32_0 : i32, i32
  }
  func.func @transform_4(%arg0: i32) -> (i32, i32) {
    %c0_i32 = arith.constant 0 : i32
    %c0_i32_0 = arith.constant 0 : i32
    %c0_i32_1 = arith.constant 0 : i32
    return %c0_i32, %c0_i32_0 : i32, i32
  }
  func.func @transform_5(%arg0: i32) -> (i32, i32) {
    %c0_i32 = arith.constant 0 : i32
    %c0_i32_0 = arith.constant 0 : i32
    return %arg0, %c0_i32 : i32, i32
  }
}

</mosaic_0001>

<llo_original>
// kernel: vit_forward.8
$region0: #{vit_forward.8}
  #allocation0 [shape = 'u32[]', space=smem, size = 0x4, offset = 0x4, fixed_abs, tag = 'smem constant byte address 0x4 - core index']
  #allocation1 [shape = 'u32[144,128]{1,0:T(1,128)}', space=vmem, size = 0x12000, scoped, tag = 'internal scratch']
  %s0 = inlined_call_operand.vmem [shape: bf16[32,64], index: 0, kind: input, shape index: {}]
  %s1 = inlined_call_operand.vmem [shape: bf16[64,32], index: 1, kind: input, shape index: {}]
  %s2 = inlined_call_operand.vmem [shape: f32[1,32], index: 2, kind: input, shape index: {}]
  %s3 = inlined_call_operand.vmem [shape: bf16[32,32], index: 3, kind: output, shape index: {}]
  %s4 = sld [smem:[#allocation0]]
  $region22: #{vit_forward.8} parent=0
    _
  %s6 = ssub.s32 1, %s4
  %s7 = scalar_select 0, %s6, %s4
  // Predicated region
  $region2: #{vit_forward.8} parent=0 // pred_check
    _
  $region3: #{vit_forward.8} parent=0 // pred_check_branch
    %9 = sbr.rel (0) target = $region5
  $region4: #{vit_forward.8} parent=0 // pred_region
    _
  $region5: #{vit_forward.8} parent=0 // pred_fallthru
    _
  // Predicated region
  $region6: #{vit_forward.8} parent=0 // pred_check
    _
  $region7: #{vit_forward.8} parent=0 // pred_check_branch
    %11 = sbr.rel (0) target = $region9
  $region8: #{vit_forward.8} parent=0 // pred_region
    _
  $region9: #{vit_forward.8} parent=0 // pred_fallthru
    _
  // Predicated region
  $region10: #{vit_forward.8} parent=0 // pred_check
    _
  $region11: #{vit_forward.8} parent=0 // pred_check_branch
    %13 = sbr.rel (0) target = $region13
  $region12: #{vit_forward.8} parent=0 // pred_region
    _
  $region13: #{vit_forward.8} parent=0 // pred_fallthru
    _
  %v15 = vld [vmem:[%s0] sm:$0xf]
  %v16 = vld [vmem:[%s0 + $0x4] sm:$0xf]
  %v17 = vld [vmem:[%s0 + $0x8] sm:$0xf]
  %v18 = vld [vmem:[%s0 + $0xc] sm:$0xf]
  %v19 = vld [vmem:[%s1] sm:$0xf]
  %v20 = vld [vmem:[%s1 + $0x4] sm:$0xf]
  %v21 = vld [vmem:[%s1 + $0x8] sm:$0xf]
  %v22 = vld [vmem:[%s1 + $0xc] sm:$0xf]
  %v23 = vld [vmem:[%s1 + $0x10] sm:$0xf]
  %v24 = vld [vmem:[%s1 + $0x14] sm:$0xf]
  %v25 = vld [vmem:[%s1 + $0x18] sm:$0xf]
  %v26 = vld [vmem:[%s1 + $0x1c] sm:$0xf]
  %v27 = vld [vmem:[%s2] sm:$0x1]
  %v29 = vlaneseq
  %v30 = vshrl.u32 %v29, 7
  %v31 = vsub.s32 0, %v30
  %v32 = vrot.slane %v27, %v31
  %v38 = vunpack.c.l.b16 %v15
  %v39 = vunpack.c.l.b16 %v16
  %v40 = vunpack.c.l.b16 %v17
  %v41 = vunpack.c.l.b16 %v18
  %v42 = vpack.c.b16 %v39, %v38
  %v43 = vpack.c.b16 %v41, %v40
  %v52 = vunpack.c.l.b16 %v19
  %v53 = vunpack.c.l.b16 %v20
  %v54 = vunpack.c.l.b16 %v21
  %v55 = vunpack.c.l.b16 %v22
  %v56 = vunpack.c.l.b16 %v23
  %v57 = vunpack.c.l.b16 %v24
  %v58 = vunpack.c.l.b16 %v25
  %v59 = vunpack.c.l.b16 %v26
  %v60 = vpack.c.b16 %v53, %v52
  %v61 = vpack.c.b16 %v55, %v54
  %v62 = vpack.c.b16 %v57, %v56
  %v63 = vpack.c.b16 %v59, %v58
  %vm68 = vcmask 523264
  %v70 = vsel %vm68, %v42, 0
  %v73 = vsel %vm68, %v43, 0
  %75 = vmatprep.subr.bf16.mxu0 0
  %76 = vmatpush1.bf16.msra.mxu0 0
  %77 = vmatprep.subr.bf16.mxu0 0
  %78 = vmatpush1.bf16.msra.mxu0 0
  %79 = vmatprep.subr.bf16.mxu0 0
  %80 = vmatpush1.bf16.msra.mxu0 0
  %81 = vmatprep.subr.bf16.mxu0 0
  %82 = vmatpush1.bf16.msra.mxu0 0
  %83 = vmatprep.subr.bf16.mxu0 0
  %84 = vmatpush1.bf16.msra.mxu0 %v63
  %85 = vmatprep.subr.bf16.mxu0 0
  %86 = vmatpush1.bf16.msra.mxu0 %v62
  %87 = vmatprep.subr.bf16.mxu0 0
  %88 = vmatpush1.bf16.msra.mxu0 %v61
  %89 = vmatprep.subr.bf16.mxu0 0
  %90 = vmatpush1.bf16.msra.mxu0 %v60
  %91 = vmatprep.subr.bf16.mxu0 0
  %92 = vmatpush2.bf16.msra.mxu0 0
  %93 = vmatprep.subr.bf16.mxu0 0
  %94 = vmatpush2.bf16.msra.mxu0 0
  %95 = vmatprep.subr.bf16.mxu0 0
  %96 = vmatpush2.bf16.msra.mxu0 0
  %97 = vmatprep.subr.bf16.mxu0 0
  %98 = vmatpush2.bf16.msra.mxu0 0
  %99 = vmatprep.subr.bf16.mxu0 0
  %100 = vmatpush2.bf16.msra.mxu0 0
  %101 = vmatprep.subr.bf16.mxu0 0
  %102 = vmatpush2.bf16.msra.mxu0 0
  %103 = vmatprep.subr.bf16.mxu0 0
  %104 = vmatpush2.bf16.msra.mxu0 0
  %105 = vmatprep.subr.bf16.mxu0 0
  %106 = vmatpush2.bf16.msra.mxu0 0
  %107 = vmatprep.mubr.bf16.mxu0 0
  %108 = vmatmul.mubr.bf16.gmra.mxu0 %v70
  %v109 = vpop.f32.mrf.mxu0
  %v110 = vadd.f32 %v32, %v109
  %v111 = vpop.f32.mrf.mxu0
  %v112 = vpop.f32.mrf.mxu0
  %v113 = vadd.f32 %v32, %v112
  %v114 = vpop.f32.mrf.mxu0
  %115 = vmatprep.mubr.bf16.mxu0 0
  %116 = vmatmul.mubr.bf16.gmra.mxu0 %v73
  %v117 = vpop.f32.mrf.mxu0
  %v118 = vadd.f32 %v32, %v117
  %v119 = vpop.f32.mrf.mxu0
  %v120 = vpop.f32.mrf.mxu0
  %v121 = vadd.f32 %v32, %v120
  %v122 = vpop.f32.mrf.mxu0
  %123 = vdwg.mxu0
  %v124 = vpack.c.bf16 %v113, %v110
  %v125 = vpack.c.bf16 %v121, %v118
  %v128 = vunpack.c.l.b16 %v124
  %v129 = vunpack.c.h.b16 %v124
  %v130 = vunpack.c.l.b16 %v125
  %v131 = vunpack.c.h.b16 %v125
  %v132 = vpack.c.b16 %v128, %v128
  %v133 = vpack.c.b16 %v129, %v129
  %v134 = vpack.c.b16 %v130, %v130
  %v135 = vpack.c.b16 %v131, %v131
  %vm140 = vcmask 257024
  %141 = vst.msk [vmem:[%s3] sm:$0xf] %vm140, %v132
  %142 = vst.msk [vmem:[%s3 + $0x4] sm:$0xf] %vm140, %v133
  %143 = vst.msk [vmem:[%s3 + $0x8] sm:$0xf] %vm140, %v134
  %144 = vst.msk [vmem:[%s3 + $0xc] sm:$0xf] %vm140, %v135
  // Predicated region
  $region14: #{vit_forward.8} parent=0 // pred_check
    _
  $region15: #{vit_forward.8} parent=0 // pred_check_branch
    %146 = sbr.rel (0) target = $region17
  $region16: #{vit_forward.8} parent=0 // pred_region
    _
  $region17: #{vit_forward.8} parent=0 // pred_fallthru
    _
  // Predicated region
  $region18: #{vit_forward.8} parent=0 // pred_check
    _
  $region19: #{vit_forward.8} parent=0 // pred_check_branch
    %148 = sbr.rel (0) target = $region21
  $region20: #{vit_forward.8} parent=0 // pred_region
    _
  $region21: #{vit_forward.8} parent=0 // pred_fallthru
    _

// kernel: vit_forward.9
$region0: #{vit_forward.9}
  #allocation0 [shape = 'u32[]', space=smem, size = 0x4, offset = 0x4, fixed_abs, tag = 'smem constant byte address 0x4 - core index']
  #allocation1 [shape = 'u32[144,128]{1,0:T(1,128)}', space=vmem, size = 0x12000, scoped, tag = 'internal scratch']
  %s0 = inlined_call_operand.vmem [shape: bf16[64,32], index: 0, kind: input, shape index: {}]
  %s1 = inlined_call_operand.vmem [shape: f32[1,32], index: 1, kind: input, shape index: {}]
  %s2 = inlined_call_operand.vmem [shape: f32[1,32], index: 2, kind: input, shape index: {}]
  %s3 = inlined_call_operand.vmem [shape: bf16[32,96], index: 3, kind: input, shape index: {}]
  %s4 = inlined_call_operand.vmem [shape: f32[1,96], index: 4, kind: input, shape index: {}]
  %s5 = inlined_call_operand.vmem [shape: bf16[64,96], index: 5, kind: output, shape index: {}]
  %s6 = sld [smem:[#allocation0]]
  $region30: #{vit_forward.9} parent=0
    _
  %s8 = ssub.s32 1, %s6
  %s9 = scalar_select 0, %s8, %s6
  // Predicated region
  $region2: #{vit_forward.9} parent=0 // pred_check
    _
  $region3: #{vit_forward.9} parent=0 // pred_check_branch
    %11 = sbr.rel (0) target = $region5
  $region4: #{vit_forward.9} parent=0 // pred_region
    _
  $region5: #{vit_forward.9} parent=0 // pred_fallthru
    _
  // Predicated region
  $region6: #{vit_forward.9} parent=0 // pred_check
    _
  $region7: #{vit_forward.9} parent=0 // pred_check_branch
    %13 = sbr.rel (0) target = $region9
  $region8: #{vit_forward.9} parent=0 // pred_region
    _
  $region9: #{vit_forward.9} parent=0 // pred_fallthru
    _
  // Predicated region
  $region10: #{vit_forward.9} parent=0 // pred_check
    _
  $region11: #{vit_forward.9} parent=0 // pred_check_branch
    %15 = sbr.rel (0) target = $region13
  $region12: #{vit_forward.9} parent=0 // pred_region
    _
  $region13: #{vit_forward.9} parent=0 // pred_fallthru
    _
  // Predicated region
  $region14: #{vit_forward.9} parent=0 // pred_check
    _
  $region15: #{vit_forward.9} parent=0 // pred_check_branch
    %17 = sbr.rel (0) target = $region17
  $region16: #{vit_forward.9} parent=0 // pred_region
    _
  $region17: #{vit_forward.9} parent=0 // pred_fallthru
    _
  // Predicated region
  $region18: #{vit_forward.9} parent=0 // pred_check
    _
  $region19: #{vit_forward.9} parent=0 // pred_check_branch
    %19 = sbr.rel (0) target = $region21
  $region20: #{vit_forward.9} parent=0 // pred_region
    _
  $region21: #{vit_forward.9} parent=0 // pred_fallthru
    _
  %v21 = vld [vmem:[%s0] sm:$0xf]
  %v22 = vld [vmem:[%s0 + $0x4] sm:$0xf]
  %v23 = vld [vmem:[%s0 + $0x8] sm:$0xf]
  %v24 = vld [vmem:[%s0 + $0xc] sm:$0xf]
  %v25 = vld [vmem:[%s0 + $0x10] sm:$0xf]
  %v26 = vld [vmem:[%s0 + $0x14] sm:$0xf]
  %v27 = vld [vmem:[%s0 + $0x18] sm:$0xf]
  %v28 = vld [vmem:[%s0 + $0x1c] sm:$0xf]
  %v29 = vunpack.c.l.bf16 %v21
  %v30 = vunpack.c.l.bf16 %v22
  %v31 = vunpack.c.l.bf16 %v23
  %v32 = vunpack.c.l.bf16 %v24
  %v33 = vunpack.c.l.bf16 %v25
  %v34 = vunpack.c.l.bf16 %v26
  %v35 = vunpack.c.l.bf16 %v27
  %v36 = vunpack.c.l.bf16 %v28
  %v37 = vld [vmem:[%s1] sm:$0x1]
  %v38 = vld [vmem:[%s2] sm:$0x1]
  %vm39 = vcmask 261120
  %v40 = vsel %vm39, %v29, 0.0
  %41 = vadd.xlane.f32.xlu0 %v40
  %v42 = vpop.xlane.xlu0 %41
  %v43 = vsel %vm39, %v30, 0.0
  %44 = vadd.xlane.f32.xlu0 %v43
  %v45 = vpop.xlane.xlu0 %44
  %v46 = vsel %vm39, %v31, 0.0
  %47 = vadd.xlane.f32.xlu0 %v46
  %v48 = vpop.xlane.xlu0 %47
  %v49 = vsel %vm39, %v32, 0.0
  %50 = vadd.xlane.f32.xlu0 %v49
  %v51 = vpop.xlane.xlu0 %50
  %v52 = vsel %vm39, %v33, 0.0
  %53 = vadd.xlane.f32.xlu0 %v52
  %v54 = vpop.xlane.xlu0 %53
  %v55 = vsel %vm39, %v34, 0.0
  %56 = vadd.xlane.f32.xlu0 %v55
  %v57 = vpop.xlane.xlu0 %56
  %v58 = vsel %vm39, %v35, 0.0
  %59 = vadd.xlane.f32.xlu0 %v58
  %v60 = vpop.xlane.xlu0 %59
  %v61 = vsel %vm39, %v36, 0.0
  %62 = vadd.xlane.f32.xlu0 %v61
  %v63 = vpop.xlane.xlu0 %62
  %v64 = vrcp.pop 32.0
  %v65 = vmul.f32 %v42, %v64
  %v66 = vmul.f32 %v45, %v64
  %v67 = vmul.f32 %v48, %v64
  %v68 = vmul.f32 %v51, %v64
  %v69 = vmul.f32 %v54, %v64
  %v70 = vmul.f32 %v57, %v64
  %v71 = vmul.f32 %v60, %v64
  %v72 = vmul.f32 %v63, %v64
  %v73 = vsub.f32 %v29, %v65
  %v74 = vsub.f32 %v30, %v66
  %v75 = vsub.f32 %v31, %v67
  %v76 = vsub.f32 %v32, %v68
  %v77 = vsub.f32 %v33, %v69
  %v78 = vsub.f32 %v34, %v70
  %v79 = vsub.f32 %v35, %v71
  %v80 = vsub.f32 %v36, %v72
  %v81 = vmul.f32 %v73, %v73
  %v82 = vmul.f32 %v74, %v74
  %v83 = vmul.f32 %v75, %v75
  %v84 = vmul.f32 %v76, %v76
  %v85 = vmul.f32 %v77, %v77
  %v86 = vmul.f32 %v78, %v78
  %v87 = vmul.f32 %v79, %v79
  %v88 = vmul.f32 %v80, %v80
  %v89 = vsel %vm39, %v81, 0.0
  %90 = vadd.xlane.f32.xlu0 %v89
  %v91 = vpop.xlane.xlu0 %90
  %v92 = vsel %vm39, %v82, 0.0
  %93 = vadd.xlane.f32.xlu0 %v92
  %v94 = vpop.xlane.xlu0 %93
  %v95 = vsel %vm39, %v83, 0.0
  %96 = vadd.xlane.f32.xlu0 %v95
  %v97 = vpop.xlane.xlu0 %96
  %v98 = vsel %vm39, %v84, 0.0
  %99 = vadd.xlane.f32.xlu0 %v98
  %v100 = vpop.xlane.xlu0 %99
  %v101 = vsel %vm39, %v85, 0.0
  %102 = vadd.xlane.f32.xlu0 %v101
  %v103 = vpop.xlane.xlu0 %102
  %v104 = vsel %vm39, %v86, 0.0
  %105 = vadd.xlane.f32.xlu0 %v104
  %v106 = vpop.xlane.xlu0 %105
  %v107 = vsel %vm39, %v87, 0.0
  %108 = vadd.xlane.f32.xlu0 %v107
  %v109 = vpop.xlane.xlu0 %108
  %v110 = vsel %vm39, %v88, 0.0
  %111 = vadd.xlane.f32.xlu0 %v110
  %v112 = vpop.xlane.xlu0 %111
  %v113 = vmul.f32 %v91, %v64
  %v114 = vmul.f32 %v94, %v64
  %v115 = vmul.f32 %v97, %v64
  %v116 = vmul.f32 %v100, %v64
  %v117 = vmul.f32 %v103, %v64
  %v118 = vmul.f32 %v106, %v64
  %v119 = vmul.f32 %v109, %v64
  %v120 = vmul.f32 %v112, %v64
  %v121 = vadd.f32 %v113, 1e-05
  %v122 = vadd.f32 %v114, 1e-05
  %v123 = vadd.f32 %v115, 1e-05
  %v124 = vadd.f32 %v116, 1e-05
  %v125 = vadd.f32 %v117, 1e-05
  %v126 = vadd.f32 %v118, 1e-05
  %v127 = vadd.f32 %v119, 1e-05
  %v128 = vadd.f32 %v120, 1e-05
  %v129 = vrsqrt.pop %v121
  %v130 = vrsqrt.pop %v122
  %v131 = vrsqrt.pop %v123
  %v132 = vrsqrt.pop %v124
  %v133 = vrsqrt.pop %v125
  %v134 = vrsqrt.pop %v126
  %v135 = vrsqrt.pop %v127
  %v136 = vrsqrt.pop %v128
  %v137 = vmul.f32 %v73, %v129
  %v138 = vmul.f32 %v74, %v130
  %v139 = vmul.f32 %v75, %v131
  %v140 = vmul.f32 %v76, %v132
  %v141 = vmul.f32 %v77, %v133
  %v142 = vmul.f32 %v78, %v134
  %v143 = vmul.f32 %v79, %v135
  %v144 = vmul.f32 %v80, %v136
  %v146 = vlaneseq
  %v147 = vshrl.u32 %v146, 7
  %v148 = vsub.s32 0, %v147
  %v149 = vrot.slane %v37, %v148
  %v151 = vmul.f32 %v137, %v149
  %v152 = vmul.f32 %v138, %v149
  %v153 = vmul.f32 %v139, %v149
  %v154 = vmul.f32 %v140, %v149
  %v155 = vmul.f32 %v141, %v149
  %v156 = vmul.f32 %v142, %v149
  %v157 = vmul.f32 %v143, %v149
  %v158 = vmul.f32 %v144, %v149
  %v160 = vlaneseq
  %v161 = vshrl.u32 %v160, 7
  %v162 = vsub.s32 0, %v161
  %v163 = vrot.slane %v38, %v162
  %v165 = vadd.f32 %v151, %v163
  %v166 = vadd.f32 %v152, %v163
  %v167 = vadd.f32 %v153, %v163
  %v168 = vadd.f32 %v154, %v163
  %v169 = vadd.f32 %v155, %v163
  %v170 = vadd.f32 %v156, %v163
  %v171 = vadd.f32 %v157, %v163
  %v172 = vadd.f32 %v158, %v163
  %v173 = vpack.c.bf16 %v166, %v165
  %v174 = vpack.c.bf16 %v168, %v167
  %v175 = vpack.c.bf16 %v170, %v169
  %v176 = vpack.c.bf16 %v172, %v171
  %v177 = vld [vmem:[%s3] sm:$0xf]
  %v178 = vld [vmem:[%s3 + $0x4] sm:$0xf]
  %v179 = vld [vmem:[%s3 + $0x8] sm:$0xf]
  %v180 = vld [vmem:[%s3 + $0xc] sm:$0xf]
  %v181 = vld [vmem:[%s4] sm:$0x1]
  %v183 = vlaneseq
  %v184 = vshrl.u32 %v183, 7
  %v185 = vsub.s32 0, %v184
  %v186 = vrot.slane %v181, %v185
  %v192 = vunpack.c.l.b16 %v177
  %v193 = vunpack.c.l.b16 %v178
  %v194 = vunpack.c.l.b16 %v179
  %v195 = vunpack.c.l.b16 %v180
  %v196 = vpack.c.b16 %v193, %v192
  %v197 = vpack.c.b16 %v195, %v194
  %v201 = vsel %vm39, %v173, 0
  %v204 = vsel %vm39, %v174, 0
  %v207 = vsel %vm39, %v175, 0
  %v210 = vsel %vm39, %v176, 0
  %212 = vmatprep.subr.bf16.mxu0 0
  %213 = vmatpush1.bf16.msra.mxu0 0
  %214 = vmatprep.subr.bf16.mxu0 0
  %215 = vmatpush1.bf16.msra.mxu0 0
  %216 = vmatprep.subr.bf16.mxu0 0
  %217 = vmatpush1.bf16.msra.mxu0 0
  %218 = vmatprep.subr.bf16.mxu0 0
  %219 = vmatpush1.bf16.msra.mxu0 0
  %220 = vmatprep.subr.bf16.mxu0 0
  %221 = vmatpush1.bf16.msra.mxu0 0
  %222 = vmatprep.subr.bf16.mxu0 0
  %223 = vmatpush1.bf16.msra.mxu0 0
  %224 = vmatprep.subr.bf16.mxu0 0
  %225 = vmatpush1.bf16.msra.mxu0 %v197
  %226 = vmatprep.subr.bf16.mxu0 0
  %227 = vmatpush1.bf16.msra.mxu0 %v196
  %228 = vmatprep.subr.bf16.mxu0 0
  %229 = vmatpush2.bf16.msra.mxu0 0
  %230 = vmatprep.subr.bf16.mxu0 0
  %231 = vmatpush2.bf16.msra.mxu0 0
  %232 = vmatprep.subr.bf16.mxu0 0
  %233 = vmatpush2.bf16.msra.mxu0 0
  %234 = vmatprep.subr.bf16.mxu0 0
  %235 = vmatpush2.bf16.msra.mxu0 0
  %236 = vmatprep.subr.bf16.mxu0 0
  %237 = vmatpush2.bf16.msra.mxu0 0
  %238 = vmatprep.subr.bf16.mxu0 0
  %239 = vmatpush2.bf16.msra.mxu0 0
  %240 = vmatprep.subr.bf16.mxu0 0
  %241 = vmatpush2.bf16.msra.mxu0 0
  %242 = vmatprep.subr.bf16.mxu0 0
  %243 = vmatpush2.bf16.msra.mxu0 0
  %244 = vmatprep.mubr.bf16.mxu0 0
  %245 = vmatmul.mubr.bf16.gmra.mxu0 %v201
  %v246 = vpop.f32.mrf.mxu0
  %v247 = vadd.f32 %v186, %v246
  %v248 = vpop.f32.mrf.mxu0
  %v249 = vpop.f32.mrf.mxu0
  %v250 = vadd.f32 %v186, %v249
  %v251 = vpop.f32.mrf.mxu0
  %252 = vmatprep.mubr.bf16.mxu0 0
  %253 = vmatmul.mubr.bf16.gmra.mxu0 %v204
  %v254 = vpop.f32.mrf.mxu0
  %v255 = vadd.f32 %v186, %v254
  %v256 = vpop.f32.mrf.mxu0
  %v257 = vpop.f32.mrf.mxu0
  %v258 = vadd.f32 %v186, %v257
  %v259 = vpop.f32.mrf.mxu0
  %260 = vmatprep.mubr.bf16.mxu0 0
  %261 = vmatmul.mubr.bf16.gmra.mxu0 %v207
  %v262 = vpop.f32.mrf.mxu0
  %v263 = vadd.f32 %v186, %v262
  %v264 = vpop.f32.mrf.mxu0
  %v265 = vpop.f32.mrf.mxu0
  %v266 = vadd.f32 %v186, %v265
  %v267 = vpop.f32.mrf.mxu0
  %268 = vmatprep.mubr.bf16.mxu0 0
  %269 = vmatmul.mubr.bf16.gmra.mxu0 %v210
  %v270 = vpop.f32.mrf.mxu0
  %v271 = vadd.f32 %v186, %v270
  %v272 = vpop.f32.mrf.mxu0
  %v273 = vpop.f32.mrf.mxu0
  %v274 = vadd.f32 %v186, %v273
  %v275 = vpop.f32.mrf.mxu0
  %276 = vdwg.mxu0
  %v277 = vpack.c.bf16 %v250, %v247
  %v278 = vpack.c.bf16 %v258, %v255
  %v279 = vpack.c.bf16 %v266, %v263
  %v280 = vpack.c.bf16 %v274, %v271
  %v285 = vunpack.c.l.b16 %v277
  %v286 = vunpack.c.h.b16 %v277
  %v287 = vunpack.c.l.b16 %v278
  %v288 = vunpack.c.h.b16 %v278
  %v289 = vunpack.c.l.b16 %v279
  %v290 = vunpack.c.h.b16 %v279
  %v291 = vunpack.c.l.b16 %v280
  %v292 = vunpack.c.h.b16 %v280
  %v293 = vpack.c.b16 %v285, %v285
  %v294 = vpack.c.b16 %v286, %v286
  %v295 = vpack.c.b16 %v287, %v287
  %v296 = vpack.c.b16 %v288, %v288
  %v297 = vpack.c.b16 %v289, %v289
  %v298 = vpack.c.b16 %v290, %v290
  %v299 = vpack.c.b16 %v291, %v291
  %v300 = vpack.c.b16 %v292, %v292
  %vm309 = vcmask 781312
  %310 = vst.msk [vmem:[%s5] sm:$0xf] %vm309, %v293
  %311 = vst.msk [vmem:[%s5 + $0x4] sm:$0xf] %vm309, %v294
  %312 = vst.msk [vmem:[%s5 + $0x8] sm:$0xf] %vm309, %v295
  %313 = vst.msk [vmem:[%s5 + $0xc] sm:$0xf] %vm309, %v296
  %314 = vst.msk [vmem:[%s5 + $0x10] sm:$0xf] %vm309, %v297
  %315 = vst.msk [vmem:[%s5 + $0x14] sm:$0xf] %vm309, %v298
  %316 = vst.msk [vmem:[%s5 + $0x18] sm:$0xf] %vm309, %v299
  %317 = vst.msk [vmem:[%s5 + $0x1c] sm:$0xf] %vm309, %v300
  // Predicated region
  $region22: #{vit_forward.9} parent=0 // pred_check
    _
  $region23: #{vit_forward.9} parent=0 // pred_check_branch
    %319 = sbr.rel (0) target = $region25
  $region24: #{vit_forward.9} parent=0 // pred_region
    _
  $region25: #{vit_forward.9} parent=0 // pred_fallthru
    _
  // Predicated region
  $region26: #{vit_forward.9} parent=0 // pred_check
    _
  $region27: #{vit_forward.9} parent=0 // pred_check_branch
    %321 = sbr.rel (0) target = $region29
  $region28: #{vit_forward.9} parent=0 // pred_region
    _
  $region29: #{vit_forward.9} parent=0 // pred_fallthru
    _

// kernel: vit_forward.11
$region0: #{vit_forward.11}
  #allocation0 [shape = 'u32[]', space=smem, size = 0x4, offset = 0x4, fixed_abs, tag = 'smem constant byte address 0x4 - core index']
  #allocation1 [shape = 'u32[144,128]{1,0:T(1,128)}', space=vmem, size = 0x12000, scoped, tag = 'internal scratch']
  %s0 = inlined_call_operand.vmem [shape: bf16[64,32], index: 0, kind: input, shape index: {}, may-alias: {0,7}]
  %s1 = inlined_call_operand.vmem [shape: f32[1,32], index: 1, kind: input, shape index: {}]
  %s2 = inlined_call_operand.vmem [shape: f32[1,32], index: 2, kind: input, shape index: {}]
  %s3 = inlined_call_operand.vmem [shape: bf16[32,128], index: 3, kind: input, shape index: {}]
  %s4 = inlined_call_operand.vmem [shape: f32[1,128], index: 4, kind: input, shape index: {}]
  %s5 = inlined_call_operand.vmem [shape: bf16[128,32], index: 5, kind: input, shape index: {}]
  %s6 = inlined_call_operand.vmem [shape: f32[1,32], index: 6, kind: input, shape index: {}]
  %s7 = inlined_call_operand.vmem [shape: bf16[64,32], index: 7, kind: output, shape index: {}, may-alias: {0,7}]
  %s8 = sld [smem:[#allocation0]]
  $region38: #{vit_forward.11} parent=0
    _
  %s10 = ssub.s32 1, %s8
  %s11 = scalar_select 0, %s10, %s8
  // Predicated region
  $region2: #{vit_forward.11} parent=0 // pred_check
    _
  $region3: #{vit_forward.11} parent=0 // pred_check_branch
    %13 = sbr.rel (0) target = $region5
  $region4: #{vit_forward.11} parent=0 // pred_region
    _
  $region5: #{vit_forward.11} parent=0 // pred_fallthru
    _
  // Predicated region
  $region6: #{vit_forward.11} parent=0 // pred_check
    _
  $region7: #{vit_forward.11} parent=0 // pred_check_branch
    %15 = sbr.rel (0) target = $region9
  $region8: #{vit_forward.11} parent=0 // pred_region
    _
  $region9: #{vit_forward.11} parent=0 // pred_fallthru
    _
  // Predicated region
  $region10: #{vit_forward.11} parent=0 // pred_check
    _
  $region11: #{vit_forward.11} parent=0 // pred_check_branch
    %17 = sbr.rel (0) target = $region13
  $region12: #{vit_forward.11} parent=0 // pred_region
    _
  $region13: #{vit_forward.11} parent=0 // pred_fallthru
    _
  // Predicated region
  $region14: #{vit_forward.11} parent=0 // pred_check
    _
  $region15: #{vit_forward.11} parent=0 // pred_check_branch
    %19 = sbr.rel (0) target = $region17
  $region16: #{vit_forward.11} parent=0 // pred_region
    _
  $region17: #{vit_forward.11} parent=0 // pred_fallthru
    _
  // Predicated region
  $region18: #{vit_forward.11} parent=0 // pred_check
    _
  $region19: #{vit_forward.11} parent=0 // pred_check_branch
    %21 = sbr.rel (0) target = $region21
  $region20: #{vit_forward.11} parent=0 // pred_region
    _
  $region21: #{vit_forward.11} parent=0 // pred_fallthru
    _
  // Predicated region
  $region22: #{vit_forward.11} parent=0 // pred_check
    _
  $region23: #{vit_forward.11} parent=0 // pred_check_branch
    %23 = sbr.rel (0) target = $region25
  $region24: #{vit_forward.11} parent=0 // pred_region
    _
  $region25: #{vit_forward.11} parent=0 // pred_fallthru
    _
  // Predicated region
  $region26: #{vit_forward.11} parent=0 // pred_check
    _
  $region27: #{vit_forward.11} parent=0 // pred_check_branch
    %25 = sbr.rel (0) target = $region29
  $region28: #{vit_forward.11} parent=0 // pred_region
    _
  $region29: #{vit_forward.11} parent=0 // pred_fallthru
    _
  %v27 = vld [vmem:[%s0] sm:$0xf]
  %v28 = vld [vmem:[%s0 + $0x4] sm:$0xf]
  %v29 = vld [vmem:[%s0 + $0x8] sm:$0xf]
  %v30 = vld [vmem:[%s0 + $0xc] sm:$0xf]
  %v31 = vld [vmem:[%s0 + $0x10] sm:$0xf]
  %v32 = vld [vmem:[%s0 + $0x14] sm:$0xf]
  %v33 = vld [vmem:[%s0 + $0x18] sm:$0xf]
  %v34 = vld [vmem:[%s0 + $0x1c] sm:$0xf]
  %v35 = vunpack.c.l.bf16 %v27
  %v36 = vunpack.c.l.bf16 %v28
  %v37 = vunpack.c.l.bf16 %v29
  %v38 = vunpack.c.l.bf16 %v30
  %v39 = vunpack.c.l.bf16 %v31
  %v40 = vunpack.c.l.bf16 %v32
  %v41 = vunpack.c.l.bf16 %v33
  %v42 = vunpack.c.l.bf16 %v34
  %v43 = vld [vmem:[%s1] sm:$0x1]
  %v44 = vld [vmem:[%s2] sm:$0x1]
  %vm45 = vcmask 261120
  %v46 = vsel %vm45, %v35, 0.0
  %47 = vadd.xlane.f32.xlu0 %v46
  %v48 = vpop.xlane.xlu0 %47
  %v49 = vsel %vm45, %v36, 0.0
  %50 = vadd.xlane.f32.xlu0 %v49
  %v51 = vpop.xlane.xlu0 %50
  %v52 = vsel %vm45, %v37, 0.0
  %53 = vadd.xlane.f32.xlu0 %v52
  %v54 = vpop.xlane.xlu0 %53
  %v55 = vsel %vm45, %v38, 0.0
  %56 = vadd.xlane.f32.xlu0 %v55
  %v57 = vpop.xlane.xlu0 %56
  %v58 = vsel %vm45, %v39, 0.0
  %59 = vadd.xlane.f32.xlu0 %v58
  %v60 = vpop.xlane.xlu0 %59
  %v61 = vsel %vm45, %v40, 0.0
  %62 = vadd.xlane.f32.xlu0 %v61
  %v63 = vpop.xlane.xlu0 %62
  %v64 = vsel %vm45, %v41, 0.0
  %65 = vadd.xlane.f32.xlu0 %v64
  %v66 = vpop.xlane.xlu0 %65
  %v67 = vsel %vm45, %v42, 0.0
  %68 = vadd.xlane.f32.xlu0 %v67
  %v69 = vpop.xlane.xlu0 %68
  %v70 = vrcp.pop 32.0
  %v71 = vmul.f32 %v48, %v70
  %v72 = vmul.f32 %v51, %v70
  %v73 = vmul.f32 %v54, %v70
  %v74 = vmul.f32 %v57, %v70
  %v75 = vmul.f32 %v60, %v70
  %v76 = vmul.f32 %v63, %v70
  %v77 = vmul.f32 %v66, %v70
  %v78 = vmul.f32 %v69, %v70
  %v79 = vsub.f32 %v35, %v71
  %v80 = vsub.f32 %v36, %v72
  %v81 = vsub.f32 %v37, %v73
  %v82 = vsub.f32 %v38, %v74
  %v83 = vsub.f32 %v39, %v75
  %v84 = vsub.f32 %v40, %v76
  %v85 = vsub.f32 %v41, %v77
  %v86 = vsub.f32 %v42, %v78
  %v87 = vmul.f32 %v79, %v79
  %v88 = vmul.f32 %v80, %v80
  %v89 = vmul.f32 %v81, %v81
  %v90 = vmul.f32 %v82, %v82
  %v91 = vmul.f32 %v83, %v83
  %v92 = vmul.f32 %v84, %v84
  %v93 = vmul.f32 %v85, %v85
  %v94 = vmul.f32 %v86, %v86
  %v95 = vsel %vm45, %v87, 0.0
  %96 = vadd.xlane.f32.xlu0 %v95
  %v97 = vpop.xlane.xlu0 %96
  %v98 = vsel %vm45, %v88, 0.0
  %99 = vadd.xlane.f32.xlu0 %v98
  %v100 = vpop.xlane.xlu0 %99
  %v101 = vsel %vm45, %v89, 0.0
  %102 = vadd.xlane.f32.xlu0 %v101
  %v103 = vpop.xlane.xlu0 %102
  %v104 = vsel %vm45, %v90, 0.0
  %105 = vadd.xlane.f32.xlu0 %v104
  %v106 = vpop.xlane.xlu0 %105
  %v107 = vsel %vm45, %v91, 0.0
  %108 = vadd.xlane.f32.xlu0 %v107
  %v109 = vpop.xlane.xlu0 %108
  %v110 = vsel %vm45, %v92, 0.0
  %111 = vadd.xlane.f32.xlu0 %v110
  %v112 = vpop.xlane.xlu0 %111
  %v113 = vsel %vm45, %v93, 0.0
  %114 = vadd.xlane.f32.xlu0 %v113
  %v115 = vpop.xlane.xlu0 %114
  %v116 = vsel %vm45, %v94, 0.0
  %117 = vadd.xlane.f32.xlu0 %v116
  %v118 = vpop.xlane.xlu0 %117
  %v119 = vmul.f32 %v97, %v70
  %v120 = vmul.f32 %v100, %v70
  %v121 = vmul.f32 %v103, %v70
  %v122 = vmul.f32 %v106, %v70
  %v123 = vmul.f32 %v109, %v70
  %v124 = vmul.f32 %v112, %v70
  %v125 = vmul.f32 %v115, %v70
  %v126 = vmul.f32 %v118, %v70
  %v127 = vadd.f32 %v119, 1e-05
  %v128 = vadd.f32 %v120, 1e-05
  %v129 = vadd.f32 %v121, 1e-05
  %v130 = vadd.f32 %v122, 1e-05
  %v131 = vadd.f32 %v123, 1e-05
  %v132 = vadd.f32 %v124, 1e-05
  %v133 = vadd.f32 %v125, 1e-05
  %v134 = vadd.f32 %v126, 1e-05
  %v135 = vrsqrt.pop %v127
  %v136 = vrsqrt.pop %v128
  %v137 = vrsqrt.pop %v129
  %v138 = vrsqrt.pop %v130
  %v139 = vrsqrt.pop %v131
  %v140 = vrsqrt.pop %v132
  %v141 = vrsqrt.pop %v133
  %v142 = vrsqrt.pop %v134
  %v143 = vmul.f32 %v79, %v135
  %v144 = vmul.f32 %v80, %v136
  %v145 = vmul.f32 %v81, %v137
  %v146 = vmul.f32 %v82, %v138
  %v147 = vmul.f32 %v83, %v139
  %v148 = vmul.f32 %v84, %v140
  %v149 = vmul.f32 %v85, %v141
  %v150 = vmul.f32 %v86, %v142
  %v152 = vlaneseq
  %v153 = vshrl.u32 %v152, 7
  %v154 = vsub.s32 0, %v153
  %v155 = vrot.slane %v43, %v154
  %v157 = vmul.f32 %v143, %v155
  %v158 = vmul.f32 %v144, %v155
  %v159 = vmul.f32 %v145, %v155
  %v160 = vmul.f32 %v146, %v155
  %v161 = vmul.f32 %v147, %v155
  %v162 = vmul.f32 %v148, %v155
  %v163 = vmul.f32 %v149, %v155
  %v164 = vmul.f32 %v150, %v155
  %v166 = vlaneseq
  %v167 = vshrl.u32 %v166, 7
  %v168 = vsub.s32 0, %v167
  %v169 = vrot.slane %v44, %v168
  %v171 = vadd.f32 %v157, %v169
  %v172 = vadd.f32 %v158, %v169
  %v173 = vadd.f32 %v159, %v169
  %v174 = vadd.f32 %v160, %v169
  %v175 = vadd.f32 %v161, %v169
  %v176 = vadd.f32 %v162, %v169
  %v177 = vadd.f32 %v163, %v169
  %v178 = vadd.f32 %v164, %v169
  %v179 = vpack.c.bf16 %v172, %v171
  %v180 = vpack.c.bf16 %v174, %v173
  %v181 = vpack.c.bf16 %v176, %v175
  %v182 = vpack.c.bf16 %v178, %v177
  %v183 = vld [vmem:[%s3] sm:$0xf]
  %v184 = vld [vmem:[%s3 + $0x4] sm:$0xf]
  %v185 = vld [vmem:[%s3 + $0x8] sm:$0xf]
  %v186 = vld [vmem:[%s3 + $0xc] sm:$0xf]
  %v187 = vld [vmem:[%s4] sm:$0x1]
  %v189 = vlaneseq
  %v190 = vshrl.u32 %v189, 7
  %v191 = vsub.s32 0, %v190
  %v192 = vrot.slane %v187, %v191
  %v198 = vunpack.c.l.b16 %v183
  %v199 = vunpack.c.l.b16 %v184
  %v200 = vunpack.c.l.b16 %v185
  %v201 = vunpack.c.l.b16 %v186
  %v202 = vpack.c.b16 %v199, %v198
  %v203 = vpack.c.b16 %v201, %v200
  %v207 = vsel %vm45, %v179, 0
  %v210 = vsel %vm45, %v180, 0
  %v213 = vsel %vm45, %v181, 0
  %v216 = vsel %vm45, %v182, 0
  %218 = vmatprep.subr.bf16.mxu0 0
  %219 = vmatpush1.bf16.msra.mxu0 0
  %220 = vmatprep.subr.bf16.mxu0 0
  %221 = vmatpush1.bf16.msra.mxu0 0
  %222 = vmatprep.subr.bf16.mxu0 0
  %223 = vmatpush1.bf16.msra.mxu0 0
  %224 = vmatprep.subr.bf16.mxu0 0
  %225 = vmatpush1.bf16.msra.mxu0 0
  %226 = vmatprep.subr.bf16.mxu0 0
  %227 = vmatpush1.bf16.msra.mxu0 0
  %228 = vmatprep.subr.bf16.mxu0 0
  %229 = vmatpush1.bf16.msra.mxu0 0
  %230 = vmatprep.subr.bf16.mxu0 0
  %231 = vmatpush1.bf16.msra.mxu0 %v203
  %232 = vmatprep.subr.bf16.mxu0 0
  %233 = vmatpush1.bf16.msra.mxu0 %v202
  %234 = vmatprep.subr.bf16.mxu0 0
  %235 = vmatpush2.bf16.msra.mxu0 0
  %236 = vmatprep.subr.bf16.mxu0 0
  %237 = vmatpush2.bf16.msra.mxu0 0
  %238 = vmatprep.subr.bf16.mxu0 0
  %239 = vmatpush2.bf16.msra.mxu0 0
  %240 = vmatprep.subr.bf16.mxu0 0
  %241 = vmatpush2.bf16.msra.mxu0 0
  %242 = vmatprep.subr.bf16.mxu0 0
  %243 = vmatpush2.bf16.msra.mxu0 0
  %244 = vmatprep.subr.bf16.mxu0 0
  %245 = vmatpush2.bf16.msra.mxu0 0
  %246 = vmatprep.subr.bf16.mxu0 0
  %247 = vmatpush2.bf16.msra.mxu0 0
  %248 = vmatprep.subr.bf16.mxu0 0
  %249 = vmatpush2.bf16.msra.mxu0 0
  %250 = vmatprep.mubr.bf16.mxu0 0
  %251 = vmatmul.mubr.bf16.gmra.mxu0 %v207
  %v252 = vpop.f32.mrf.mxu0
  %v253 = vadd.f32 %v192, %v252
  %v254 = vpop.f32.mrf.mxu0
  %v255 = vpop.f32.mrf.mxu0
  %v256 = vadd.f32 %v192, %v255
  %v257 = vpop.f32.mrf.mxu0
  %258 = vmatprep.mubr.bf16.mxu0 0
  %259 = vmatmul.mubr.bf16.gmra.mxu0 %v210
  %v260 = vpop.f32.mrf.mxu0
  %v261 = vadd.f32 %v192, %v260
  %v262 = vpop.f32.mrf.mxu0
  %v263 = vpop.f32.mrf.mxu0
  %v264 = vadd.f32 %v192, %v263
  %v265 = vpop.f32.mrf.mxu0
  %266 = vmatprep.mubr.bf16.mxu0 0
  %267 = vmatmul.mubr.bf16.gmra.mxu0 %v213
  %v268 = vpop.f32.mrf.mxu0
  %v269 = vadd.f32 %v192, %v268
  %v270 = vpop.f32.mrf.mxu0
  %v271 = vpop.f32.mrf.mxu0
  %v272 = vadd.f32 %v192, %v271
  %v273 = vpop.f32.mrf.mxu0
  %274 = vmatprep.mubr.bf16.mxu0 0
  %275 = vmatmul.mubr.bf16.gmra.mxu0 %v216
  %v276 = vpop.f32.mrf.mxu0
  %v277 = vadd.f32 %v192, %v276
  %v278 = vpop.f32.mrf.mxu0
  %v279 = vpop.f32.mrf.mxu0
  %v280 = vadd.f32 %v192, %v279
  %v281 = vpop.f32.mrf.mxu0
  %282 = vdwg.mxu0
  %v283 = vmul.f32 %v253, %v253
  %v284 = vmul.f32 %v256, %v256
  %v285 = vmul.f32 %v261, %v261
  %v286 = vmul.f32 %v264, %v264
  %v287 = vmul.f32 %v269, %v269
  %v288 = vmul.f32 %v272, %v272
  %v289 = vmul.f32 %v277, %v277
  %v290 = vmul.f32 %v280, %v280
  %v291 = vmul.f32 %v253, %v283
  %v292 = vmul.f32 %v256, %v284
  %v293 = vmul.f32 %v261, %v285
  %v294 = vmul.f32 %v264, %v286
  %v295 = vmul.f32 %v269, %v287
  %v296 = vmul.f32 %v272, %v288
  %v297 = vmul.f32 %v277, %v289
  %v298 = vmul.f32 %v280, %v290
  %v299 = vmul.f32 %v291, 0.044715
  %v300 = vmul.f32 %v292, 0.044715
  %v301 = vmul.f32 %v293, 0.044715
  %v302 = vmul.f32 %v294, 0.044715
  %v303 = vmul.f32 %v295, 0.044715
  %v304 = vmul.f32 %v296, 0.044715
  %v305 = vmul.f32 %v297, 0.044715
  %v306 = vmul.f32 %v298, 0.044715
  %v307 = vadd.f32 %v253, %v299
  %v308 = vadd.f32 %v256, %v300
  %v309 = vadd.f32 %v261, %v301
  %v310 = vadd.f32 %v264, %v302
  %v311 = vadd.f32 %v269, %v303
  %v312 = vadd.f32 %v272, %v304
  %v313 = vadd.f32 %v277, %v305
  %v314 = vadd.f32 %v280, %v306
  %v315 = vmul.f32 %v307, 0.7978846
  %v316 = vmul.f32 %v308, 0.7978846
  %v317 = vmul.f32 %v309, 0.7978846
  %v318 = vmul.f32 %v310, 0.7978846
  %v319 = vmul.f32 %v311, 0.7978846
  %v320 = vmul.f32 %v312, 0.7978846
  %v321 = vmul.f32 %v313, 0.7978846
  %v322 = vmul.f32 %v314, 0.7978846
  %v323 = vtanh.pop %v315
  %v324 = vtanh.pop %v316
  %v325 = vtanh.pop %v317
  %v326 = vtanh.pop %v318
  %v327 = vtanh.pop %v319
  %v328 = vtanh.pop %v320
  %v329 = vtanh.pop %v321
  %v330 = vtanh.pop %v322
  %v331 = vadd.f32 %v323, 1.0
  %v332 = vadd.f32 %v324, 1.0
  %v333 = vadd.f32 %v325, 1.0
  %v334 = vadd.f32 %v326, 1.0
  %v335 = vadd.f32 %v327, 1.0
  %v336 = vadd.f32 %v328, 1.0
  %v337 = vadd.f32 %v329, 1.0
  %v338 = vadd.f32 %v330, 1.0
  %v339 = vmul.f32 %v331, 0.5
  %v340 = vmul.f32 %v332, 0.5
  %v341 = vmul.f32 %v333, 0.5
  %v342 = vmul.f32 %v334, 0.5
  %v343 = vmul.f32 %v335, 0.5
  %v344 = vmul.f32 %v336, 0.5
  %v345 = vmul.f32 %v337, 0.5
  %v346 = vmul.f32 %v338, 0.5
  %v347 = vmul.f32 %v253, %v339
  %v348 = vmul.f32 %v256, %v340
  %v349 = vmul.f32 %v261, %v341
  %v350 = vmul.f32 %v264, %v342
  %v351 = vmul.f32 %v269, %v343
  %v352 = vmul.f32 %v272, %v344
  %v353 = vmul.f32 %v277, %v345
  %v354 = vmul.f32 %v280, %v346
  %v355 = vpack.c.bf16 %v348, %v347
  %v356 = vpack.c.bf16 %v350, %v349
  %v357 = vpack.c.bf16 %v352, %v351
  %v358 = vpack.c.bf16 %v354, %v353
  %v359 = vld [vmem:[%s5] sm:$0xf]
  %v360 = vld [vmem:[%s5 + $0x4] sm:$0xf]
  %v361 = vld [vmem:[%s5 + $0x8] sm:$0xf]
  %v362 = vld [vmem:[%s5 + $0xc] sm:$0xf]
  %v363 = vld [vmem:[%s5 + $0x10] sm:$0xf]
  %v364 = vld [vmem:[%s5 + $0x14] sm:$0xf]
  %v365 = vld [vmem:[%s5 + $0x18] sm:$0xf]
  %v366 = vld [vmem:[%s5 + $0x1c] sm:$0xf]
  %v367 = vld [vmem:[%s5 + $0x20] sm:$0xf]
  %v368 = vld [vmem:[%s5 + $0x24] sm:$0xf]
  %v369 = vld [vmem:[%s5 + $0x28] sm:$0xf]
  %v370 = vld [vmem:[%s5 + $0x2c] sm:$0xf]
  %v371 = vld [vmem:[%s5 + $0x30] sm:$0xf]
  %v372 = vld [vmem:[%s5 + $0x34] sm:$0xf]
  %v373 = vld [vmem:[%s5 + $0x38] sm:$0xf]
  %v374 = vld [vmem:[%s5 + $0x3c] sm:$0xf]
  %v391 = vunpack.c.l.b16 %v359
  %v392 = vunpack.c.l.b16 %v360
  %v393 = vunpack.c.l.b16 %v361
  %v394 = vunpack.c.l.b16 %v362
  %v395 = vunpack.c.l.b16 %v363
  %v396 = vunpack.c.l.b16 %v364
  %v397 = vunpack.c.l.b16 %v365
  %v398 = vunpack.c.l.b16 %v366
  %v399 = vunpack.c.l.b16 %v367
  %v400 = vunpack.c.l.b16 %v368
  %v401 = vunpack.c.l.b16 %v369
  %v402 = vunpack.c.l.b16 %v370
  %v403 = vunpack.c.l.b16 %v371
  %v404 = vunpack.c.l.b16 %v372
  %v405 = vunpack.c.l.b16 %v373
  %v406 = vunpack.c.l.b16 %v374
  %v407 = vpack.c.b16 %v392, %v391
  %v408 = vpack.c.b16 %v394, %v393
  %v409 = vpack.c.b16 %v396, %v395
  %v410 = vpack.c.b16 %v398, %v397
  %v411 = vpack.c.b16 %v400, %v399
  %v412 = vpack.c.b16 %v402, %v401
  %v413 = vpack.c.b16 %v404, %v403
  %v414 = vpack.c.b16 %v406, %v405
  %423 = vmatprep.subr.bf16.mxu0 0
  %424 = vmatpush1.bf16.msra.mxu0 %v414
  %425 = vmatprep.subr.bf16.mxu0 0
  %426 = vmatpush1.bf16.msra.mxu0 %v413
  %427 = vmatprep.subr.bf16.mxu0 0
  %428 = vmatpush1.bf16.msra.mxu0 %v412
  %429 = vmatprep.subr.bf16.mxu0 0
  %430 = vmatpush1.bf16.msra.mxu0 %v411
  %431 = vmatprep.subr.bf16.mxu0 0
  %432 = vmatpush1.bf16.msra.mxu0 %v410
  %433 = vmatprep.subr.bf16.mxu0 0
  %434 = vmatpush1.bf16.msra.mxu0 %v409
  %435 = vmatprep.subr.bf16.mxu0 0
  %436 = vmatpush1.bf16.msra.mxu0 %v408
  %437 = vmatprep.subr.bf16.mxu0 0
  %438 = vmatpush1.bf16.msra.mxu0 %v407
  %439 = vmatprep.subr.bf16.mxu0 0
  %440 = vmatpush2.bf16.msra.mxu0 0
  %441 = vmatprep.subr.bf16.mxu0 0
  %442 = vmatpush2.bf16.msra.mxu0 0
  %443 = vmatprep.subr.bf16.mxu0 0
  %444 = vmatpush2.bf16.msra.mxu0 0
  %445 = vmatprep.subr.bf16.mxu0 0
  %446 = vmatpush2.bf16.msra.mxu0 0
  %447 = vmatprep.subr.bf16.mxu0 0
  %448 = vmatpush2.bf16.msra.mxu0 0
  %449 = vmatprep.subr.bf16.mxu0 0
  %450 = vmatpush2.bf16.msra.mxu0 0
  %451 = vmatprep.subr.bf16.mxu0 0
  %452 = vmatpush2.bf16.msra.mxu0 0
  %453 = vmatprep.subr.bf16.mxu0 0
  %454 = vmatpush2.bf16.msra.mxu0 0
  %455 = vmatprep.mubr.bf16.mxu0 0
  %456 = vmatmul.mubr.bf16.gmra.mxu0 %v355
  %v457 = vpop.f32.mrf.mxu0
  %v458 = vadd.f32 0.0, %v457
  %v459 = vpop.f32.mrf.mxu0
  %v460 = vpop.f32.mrf.mxu0
  %v461 = vadd.f32 0.0, %v460
  %v462 = vpop.f32.mrf.mxu0
  %463 = vmatprep.mubr.bf16.mxu0 0
  %464 = vmatmul.mubr.bf16.gmra.mxu0 %v356
  %v465 = vpop.f32.mrf.mxu0
  %v466 = vadd.f32 0.0, %v465
  %v467 = vpop.f32.mrf.mxu0
  %v468 = vpop.f32.mrf.mxu0
  %v469 = vadd.f32 0.0, %v468
  %v470 = vpop.f32.mrf.mxu0
  %471 = vmatprep.mubr.bf16.mxu0 0
  %472 = vmatmul.mubr.bf16.gmra.mxu0 %v357
  %v473 = vpop.f32.mrf.mxu0
  %v474 = vadd.f32 0.0, %v473
  %v475 = vpop.f32.mrf.mxu0
  %v476 = vpop.f32.mrf.mxu0
  %v477 = vadd.f32 0.0, %v476
  %v478 = vpop.f32.mrf.mxu0
  %479 = vmatprep.mubr.bf16.mxu0 0
  %480 = vmatmul.mubr.bf16.gmra.mxu0 %v358
  %v481 = vpop.f32.mrf.mxu0
  %v482 = vadd.f32 0.0, %v481
  %v483 = vpop.f32.mrf.mxu0
  %v484 = vpop.f32.mrf.mxu0
  %v485 = vadd.f32 0.0, %v484
  %v486 = vpop.f32.mrf.mxu0
  %487 = vdwg.mxu0
  %v488 = vadd.f32 %v35, %v458
  %v489 = vadd.f32 %v36, %v461
  %v490 = vadd.f32 %v37, %v466
  %v491 = vadd.f32 %v38, %v469
  %v492 = vadd.f32 %v39, %v474
  %v493 = vadd.f32 %v40, %v477
  %v494 = vadd.f32 %v41, %v482
  %v495 = vadd.f32 %v42, %v485
  %v496 = vld [vmem:[%s6] sm:$0x1]
  %v498 = vlaneseq
  %v499 = vshrl.u32 %v498, 7
  %v500 = vsub.s32 0, %v499
  %v501 = vrot.slane %v496, %v500
  %v503 = vadd.f32 %v488, %v501
  %v504 = vadd.f32 %v489, %v501
  %v505 = vadd.f32 %v490, %v501
  %v506 = vadd.f32 %v491, %v501
  %v507 = vadd.f32 %v492, %v501
  %v508 = vadd.f32 %v493, %v501
  %v509 = vadd.f32 %v494, %v501
  %v510 = vadd.f32 %v495, %v501
  %v511 = vpack.c.bf16 %v504, %v503
  %v512 = vpack.c.bf16 %v506, %v505
  %v513 = vpack.c.bf16 %v508, %v507
  %v514 = vpack.c.bf16 %v510, %v509
  %v519 = vunpack.c.l.b16 %v511
  %v520 = vunpack.c.h.b16 %v511
  %v521 = vunpack.c.l.b16 %v512
  %v522 = vunpack.c.h.b16 %v512
  %v523 = vunpack.c.l.b16 %v513
  %v524 = vunpack.c.h.b16 %v513
  %v525 = vunpack.c.l.b16 %v514
  %v526 = vunpack.c.h.b16 %v514
  %v527 = vpack.c.b16 %v519, %v519
  %v528 = vpack.c.b16 %v520, %v520
  %v529 = vpack.c.b16 %v521, %v521
  %v530 = vpack.c.b16 %v522, %v522
  %v531 = vpack.c.b16 %v523, %v523
  %v532 = vpack.c.b16 %v524, %v524
  %v533 = vpack.c.b16 %v525, %v525
  %v534 = vpack.c.b16 %v526, %v526
  %vm543 = vcmask 257024
  %544 = vst.msk [vmem:[%s7] sm:$0xf] %vm543, %v527
  %545 = vst.msk [vmem:[%s7 + $0x4] sm:$0xf] %vm543, %v528
  %546 = vst.msk [vmem:[%s7 + $0x8] sm:$0xf] %vm543, %v529
  %547 = vst.msk [vmem:[%s7 + $0xc] sm:$0xf] %vm543, %v530
  %548 = vst.msk [vmem:[%s7 + $0x10] sm:$0xf] %vm543, %v531
  %549 = vst.msk [vmem:[%s7 + $0x14] sm:$0xf] %vm543, %v532
  %550 = vst.msk [vmem:[%s7 + $0x18] sm:$0xf] %vm543, %v533
  %551 = vst.msk [vmem:[%s7 + $0x1c] sm:$0xf] %vm543, %v534
  // Predicated region
  $region30: #{vit_forward.11} parent=0 // pred_check
    _
  $region31: #{vit_forward.11} parent=0 // pred_check_branch
    %553 = sbr.rel (0) target = $region33
  $region32: #{vit_forward.11} parent=0 // pred_region
    _
  $region33: #{vit_forward.11} parent=0 // pred_fallthru
    _
  // Predicated region
  $region34: #{vit_forward.11} parent=0 // pred_check
    _
  $region35: #{vit_forward.11} parent=0 // pred_check_branch
    %555 = sbr.rel (0) target = $region37
  $region36: #{vit_forward.11} parent=0 // pred_region
    _
  $region37: #{vit_forward.11} parent=0 // pred_fallthru
    _

// kernel: vit_forward.15
$region0: #{vit_forward.15}
  #allocation0 [shape = 'u32[]', space=smem, size = 0x4, offset = 0x4, fixed_abs, tag = 'smem constant byte address 0x4 - core index']
  #allocation1 [shape = 'u32[144,128]{1,0:T(1,128)}', space=vmem, size = 0x12000, scoped, tag = 'internal scratch']
  %s0 = inlined_call_operand.vmem [shape: bf16[8,32], index: 0, kind: input, shape index: {}]
  %s1 = inlined_call_operand.vmem [shape: f32[1,32], index: 1, kind: input, shape index: {}]
  %s2 = inlined_call_operand.vmem [shape: f32[1,32], index: 2, kind: input, shape index: {}]
  %s3 = inlined_call_operand.vmem [shape: bf16[32,128], index: 3, kind: input, shape index: {}]
  %s4 = inlined_call_operand.vmem [shape: f32[1,128], index: 4, kind: input, shape index: {}]
  %s5 = inlined_call_operand.vmem [shape: f32[8,128], index: 5, kind: output, shape index: {}]
  %s6 = sld [smem:[#allocation0]]
  $region30: #{vit_forward.15} parent=0
    _
  %s8 = ssub.s32 1, %s6
  %s9 = scalar_select 0, %s8, %s6
  // Predicated region
  $region2: #{vit_forward.15} parent=0 // pred_check
    _
  $region3: #{vit_forward.15} parent=0 // pred_check_branch
    %11 = sbr.rel (0) target = $region5
  $region4: #{vit_forward.15} parent=0 // pred_region
    _
  $region5: #{vit_forward.15} parent=0 // pred_fallthru
    _
  // Predicated region
  $region6: #{vit_forward.15} parent=0 // pred_check
    _
  $region7: #{vit_forward.15} parent=0 // pred_check_branch
    %13 = sbr.rel (0) target = $region9
  $region8: #{vit_forward.15} parent=0 // pred_region
    _
  $region9: #{vit_forward.15} parent=0 // pred_fallthru
    _
  // Predicated region
  $region10: #{vit_forward.15} parent=0 // pred_check
    _
  $region11: #{vit_forward.15} parent=0 // pred_check_branch
    %15 = sbr.rel (0) target = $region13
  $region12: #{vit_forward.15} parent=0 // pred_region
    _
  $region13: #{vit_forward.15} parent=0 // pred_fallthru
    _
  // Predicated region
  $region14: #{vit_forward.15} parent=0 // pred_check
    _
  $region15: #{vit_forward.15} parent=0 // pred_check_branch
    %17 = sbr.rel (0) target = $region17
  $region16: #{vit_forward.15} parent=0 // pred_region
    _
  $region17: #{vit_forward.15} parent=0 // pred_fallthru
    _
  // Predicated region
  $region18: #{vit_forward.15} parent=0 // pred_check
    _
  $region19: #{vit_forward.15} parent=0 // pred_check_branch
    %19 = sbr.rel (0) target = $region21
  $region20: #{vit_forward.15} parent=0 // pred_region
    _
  $region21: #{vit_forward.15} parent=0 // pred_fallthru
    _
  %v21 = vld [vmem:[%s0] sm:$0xf]
  %v22 = vunpack.c.l.bf16 %v21
  %v23 = vld [vmem:[%s1] sm:$0x1]
  %v24 = vld [vmem:[%s2] sm:$0x1]
  %vm25 = vcmask 261120
  %v26 = vsel %vm25, %v22, 0.0
  %27 = vadd.xlane.f32.xlu0 %v26
  %v28 = vpop.xlane.xlu0 %27
  %v29 = vrcp.pop 32.0
  %v30 = vmul.f32 %v28, %v29
  %v31 = vsub.f32 %v22, %v30
  %v32 = vmul.f32 %v31, %v31
  %v33 = vsel %vm25, %v32, 0.0
  %34 = vadd.xlane.f32.xlu0 %v33
  %v35 = vpop.xlane.xlu0 %34
  %v36 = vmul.f32 %v35, %v29
  %v37 = vadd.f32 %v36, 1e-05
  %v38 = vrsqrt.pop %v37
  %v39 = vmul.f32 %v31, %v38
  %v41 = vlaneseq
  %v42 = vshrl.u32 %v41, 7
  %v43 = vsub.s32 0, %v42
  %v44 = vrot.slane %v23, %v43
  %v46 = vmul.f32 %v39, %v44
  %v48 = vlaneseq
  %v49 = vshrl.u32 %v48, 7
  %v50 = vsub.s32 0, %v49
  %v51 = vrot.slane %v24, %v50
  %v53 = vadd.f32 %v46, %v51
  %v54 = vpack.c.bf16 %v53, %v53
  %v55 = vld [vmem:[%s3] sm:$0xf]
  %v56 = vld [vmem:[%s3 + $0x4] sm:$0xf]
  %v57 = vld [vmem:[%s3 + $0x8] sm:$0xf]
  %v58 = vld [vmem:[%s3 + $0xc] sm:$0xf]
  %v59 = vld [vmem:[%s4] sm:$0x1]
  %v61 = vlaneseq
  %v62 = vshrl.u32 %v61, 7
  %v63 = vsub.s32 0, %v62
  %v64 = vrot.slane %v59, %v63
  %v70 = vunpack.c.l.b16 %v55
  %v71 = vunpack.c.l.b16 %v56
  %v72 = vunpack.c.l.b16 %v57
  %v73 = vunpack.c.l.b16 %v58
  %v74 = vpack.c.b16 %v71, %v70
  %v75 = vpack.c.b16 %v73, %v72
  %v79 = vsel %vm25, %v54, 0
  %81 = vmatprep.subr.bf16.mxu0 0
  %82 = vmatpush1.bf16.msra.mxu0 0
  %83 = vmatprep.subr.bf16.mxu0 0
  %84 = vmatpush1.bf16.msra.mxu0 0
  %85 = vmatprep.subr.bf16.mxu0 0
  %86 = vmatpush1.bf16.msra.mxu0 0
  %87 = vmatprep.subr.bf16.mxu0 0
  %88 = vmatpush1.bf16.msra.mxu0 0
  %89 = vmatprep.subr.bf16.mxu0 0
  %90 = vmatpush1.bf16.msra.mxu0 0
  %91 = vmatprep.subr.bf16.mxu0 0
  %92 = vmatpush1.bf16.msra.mxu0 0
  %93 = vmatprep.subr.bf16.mxu0 0
  %94 = vmatpush1.bf16.msra.mxu0 %v75
  %95 = vmatprep.subr.bf16.mxu0 0
  %96 = vmatpush1.bf16.msra.mxu0 %v74
  %97 = vmatprep.subr.bf16.mxu0 0
  %98 = vmatpush2.bf16.msra.mxu0 0
  %99 = vmatprep.subr.bf16.mxu0 0
  %100 = vmatpush2.bf16.msra.mxu0 0
  %101 = vmatprep.subr.bf16.mxu0 0
  %102 = vmatpush2.bf16.msra.mxu0 0
  %103 = vmatprep.subr.bf16.mxu0 0
  %104 = vmatpush2.bf16.msra.mxu0 0
  %105 = vmatprep.subr.bf16.mxu0 0
  %106 = vmatpush2.bf16.msra.mxu0 0
  %107 = vmatprep.subr.bf16.mxu0 0
  %108 = vmatpush2.bf16.msra.mxu0 0
  %109 = vmatprep.subr.bf16.mxu0 0
  %110 = vmatpush2.bf16.msra.mxu0 0
  %111 = vmatprep.subr.bf16.mxu0 0
  %112 = vmatpush2.bf16.msra.mxu0 0
  %113 = vmatprep.mubr.bf16.mxu0 0
  %114 = vmatmul.mubr.bf16.gmra.mxu0 %v79
  %v115 = vpop.f32.mrf.mxu0
  %v116 = vadd.f32 %v64, %v115
  %v117 = vpop.f32.mrf.mxu0
  %v118 = vpop.f32.mrf.mxu0
  %v119 = vpop.f32.mrf.mxu0
  %120 = vdwg.mxu0
  %121 = vst [vmem:[%s5] sm:$0xff] %v116
  // Predicated region
  $region22: #{vit_forward.15} parent=0 // pred_check
    _
  $region23: #{vit_forward.15} parent=0 // pred_check_branch
    %123 = sbr.rel (0) target = $region25
  $region24: #{vit_forward.15} parent=0 // pred_region
    _
  $region25: #{vit_forward.15} parent=0 // pred_fallthru
    _
  // Predicated region
  $region26: #{vit_forward.15} parent=0 // pred_check
    _
  $region27: #{vit_forward.15} parent=0 // pred_check_branch
    %125 = sbr.rel (0) target = $region29
  $region28: #{vit_forward.15} parent=0 // pred_region
    _
  $region29: #{vit_forward.15} parent=0 // pred_fallthru
    _

// kernel: vit_forward.10
$region0: #{vit_forward.10}
  #allocation0 [shape = 'u32[]', space=smem, size = 0x4, offset = 0x4, fixed_abs, tag = 'smem constant byte address 0x4 - core index']
  #allocation1 [shape = 'u32[144,128]{1,0:T(1,128)}', space=vmem, size = 0x12000, scoped, tag = 'internal scratch']
  %s0 = inlined_call_operand.vmem [shape: bf16[2,32,3,4,8], index: 0, kind: input, shape index: {}, may-alias: {0,1,2}]
  %s1 = inlined_call_operand.vmem [shape: bf16[2,32,3,4,8], index: 1, kind: input, shape index: {}, may-alias: {0,1,2}]
  %s2 = inlined_call_operand.vmem [shape: bf16[2,32,3,4,8], index: 2, kind: input, shape index: {}, may-alias: {0,1,2}]
  %s3 = inlined_call_operand.vmem [shape: bf16[2,32,32], index: 3, kind: input, shape index: {}, may-alias: {3,6}]
  %s4 = inlined_call_operand.vmem [shape: bf16[32,32], index: 4, kind: input, shape index: {}]
  %s5 = inlined_call_operand.vmem [shape: f32[1,32], index: 5, kind: input, shape index: {}]
  %s6 = inlined_call_operand.vmem [shape: bf16[2,32,32], index: 6, kind: output, shape index: {}, may-alias: {3,6}]
  %s7 = sld [smem:[#allocation0]]
  $region180: #{vit_forward.10} parent=0
    _
  %s9 = ssub.s32 1, %s7
  %s10 = scalar_select 0, %s9, %s7
  $region1: #{vit_forward.10} parent=0
    #allocation2 [shape = 'u8[65536]{0}', space=vmem, size = 0x10000, scoped, tag = 'input window, operand 0']
    #allocation3 [shape = 'u8[65536]{0}', space=vmem, size = 0x10000, scoped, tag = 'input window, operand 1']
    #allocation4 [shape = 'u8[65536]{0}', space=vmem, size = 0x10000, scoped, tag = 'input window, operand 2']
    loop: start=0, step=1, limit=4
    $region2: #{vit_forward.10} parent=1 // loop_pre_header
      _
    $region3: #{vit_forward.10} parent=1 // loop_header
      %s12 = sphi 0, %s16
      %p13 = scmp.ge.s32.totalorder %s12, 4
      %s22 = sphi 0, %s24
      %s25 = sphi 0, %s22
      %s26 = sphi 0, %s25
      %s42 = sphi 0, %s26
      %s48 = sphi 0, %s50
      %s51 = sphi 0, %s48
      %s52 = sphi 0, %s51
      %s68 = sphi 0, %s52
      %s74 = sphi 0, %s76
      %s77 = sphi 0, %s74
      %s78 = sphi 0, %s77
      %s94 = sphi 0, %s78
      %s100 = sphi 0, %s102
      %s103 = sphi 0, %s100
      %s104 = sphi 0, %s103
      %s120 = sphi 0, %s104
      %s124 = sphi 0, %s124
      %s126 = sphi 0, %s124
      %s127 = sphi 0, %s126
      %s141 = sphi 0, %s127
      %s145 = sphi 0, %s145
      %s147 = sphi 0, %s145
      %s148 = sphi 0, %s147
      %s162 = sphi 0, %s148
      %s168 = sphi 0, %s170
      %s171 = sphi 0, %s168
      %s172 = sphi 0, %s171
      %s188 = sphi 0, %s172
    $region4: #{vit_forward.10} parent=1 // loop_header_branch
      %15 = sbr.rel (%p13) target = $region8
    $region5: #{vit_forward.10} parent=1 // loop_body
      %s17 = ssub.s32 %s12, 1
      %s18 = ssub.s32 %s12, 2
      %s19 = sadd.s32 %s12, 1
      %s20 = ssub.s32 %s12, %s19
      %p21 = scmp.eq.s32.totalorder %s20, 0
      %s23 = sadd.s32 %s22, 1
      %s24 = scalar_select %p21, %s22, %s23
      %p27 = pneg %p21
      %p28 = scmp.eq.s32.totalorder %s12, 1
      %p29 = por %p27, %p28
      %p30 = scmp.ne.s32.totalorder %s22, %s25
      %p31 = scmp.eq.s32.totalorder %s12, 0
      %p32 = por %p30, %p31
      %p33 = scmp.ne.s32.totalorder %s22, %s25
      %p34 = scmp.eq.s32.totalorder %s17, 1
      %p35 = por %p33, %p34
      %p36 = scmp.ne.s32.totalorder %s25, %s26
      %p37 = scmp.eq.s32.totalorder %s17, 0
      %p38 = por %p36, %p37
      %p39 = scmp.ne.s32.totalorder %s25, %s26
      %p40 = scmp.eq.s32.totalorder %s18, 1
      %p41 = por %p39, %p40
      %p43 = scmp.ne.s32.totalorder %s26, %s42
      %p44 = scmp.eq.s32.totalorder %s18, 0
      %p45 = por %p43, %p44
      %s46 = ssub.s32 %s12, %s19
      %p47 = scmp.eq.s32.totalorder %s46, 0
      %s49 = sadd.s32 %s48, 1
      %s50 = scalar_select %p47, %s48, %s49
      %p53 = pneg %p47
      %p54 = scmp.eq.s32.totalorder %s12, 1
      %p55 = por %p53, %p54
      %p56 = scmp.ne.s32.totalorder %s48, %s51
      %p57 = scmp.eq.s32.totalorder %s12, 0
      %p58 = por %p56, %p57
      %p59 = scmp.ne.s32.totalorder %s48, %s51
      %p60 = scmp.eq.s32.totalorder %s17, 1
      %p61 = por %p59, %p60
      %p62 = scmp.ne.s32.totalorder %s51, %s52
      %p63 = scmp.eq.s32.totalorder %s17, 0
      %p64 = por %p62, %p63
      %p65 = scmp.ne.s32.totalorder %s51, %s52
      %p66 = scmp.eq.s32.totalorder %s18, 1
      %p67 = por %p65, %p66
      %p69 = scmp.ne.s32.totalorder %s52, %s68
      %p70 = scmp.eq.s32.totalorder %s18, 0
      %p71 = por %p69, %p70
      %s72 = ssub.s32 %s12, %s19
      %p73 = scmp.eq.s32.totalorder %s72, 0
      %s75 = sadd.s32 %s74, 1
      %s76 = scalar_select %p73, %s74, %s75
      %p79 = pneg %p73
      %p80 = scmp.eq.s32.totalorder %s12, 1
      %p81 = por %p79, %p80
      %p82 = scmp.ne.s32.totalorder %s74, %s77
      %p83 = scmp.eq.s32.totalorder %s12, 0
      %p84 = por %p82, %p83
      %p85 = scmp.ne.s32.totalorder %s74, %s77
      %p86 = scmp.eq.s32.totalorder %s17, 1
      %p87 = por %p85, %p86
      %p88 = scmp.ne.s32.totalorder %s77, %s78
      %p89 = scmp.eq.s32.totalorder %s17, 0
      %p90 = por %p88, %p89
      %p91 = scmp.ne.s32.totalorder %s77, %s78
      %p92 = scmp.eq.s32.totalorder %s18, 1
      %p93 = por %p91, %p92
      %p95 = scmp.ne.s32.totalorder %s78, %s94
      %p96 = scmp.eq.s32.totalorder %s18, 0
      %p97 = por %p95, %p96
      %s98 = ssub.s32 %s12, %s19
      %p99 = scmp.eq.s32.totalorder %s98, 0
      %s101 = sadd.s32 %s100, 1
      %s102 = scalar_select %p99, %s100, %s101
      %p105 = pneg %p99
      %p106 = scmp.eq.s32.totalorder %s12, 1
      %p107 = por %p105, %p106
      %p108 = scmp.ne.s32.totalorder %s100, %s103
      %p109 = scmp.eq.s32.totalorder %s12, 0
      %p110 = por %p108, %p109
      %p111 = scmp.ne.s32.totalorder %s100, %s103
      %p112 = scmp.eq.s32.totalorder %s17, 1
      %p113 = por %p111, %p112
      %p114 = scmp.ne.s32.totalorder %s103, %s104
      %p115 = scmp.eq.s32.totalorder %s17, 0
      %p116 = por %p114, %p115
      %p117 = scmp.ne.s32.totalorder %s103, %s104
      %p118 = scmp.eq.s32.totalorder %s18, 1
      %p119 = por %p117, %p118
      %p121 = scmp.ne.s32.totalorder %s104, %s120
      %p122 = scmp.eq.s32.totalorder %s18, 0
      %p123 = por %p121, %p122
      %s125 = sadd.s32 %s124, 1
      %p128 = scmp.eq.s32.totalorder %s12, 1
      %p129 = scmp.ne.s32.totalorder %s124, %s126
      %p130 = scmp.eq.s32.totalorder %s12, 0
      %p131 = por %p129, %p130
      %p132 = scmp.ne.s32.totalorder %s124, %s126
      %p133 = scmp.eq.s32.totalorder %s17, 1
      %p134 = por %p132, %p133
      %p135 = scmp.ne.s32.totalorder %s126, %s127
      %p136 = scmp.eq.s32.totalorder %s17, 0
      %p137 = por %p135, %p136
      %p138 = scmp.ne.s32.totalorder %s126, %s127
      %p139 = scmp.eq.s32.totalorder %s18, 1
      %p140 = por %p138, %p139
      %p142 = scmp.ne.s32.totalorder %s127, %s141
      %p143 = scmp.eq.s32.totalorder %s18, 0
      %p144 = por %p142, %p143
      %s146 = sadd.s32 %s145, 1
      %p149 = scmp.eq.s32.totalorder %s12, 1
      %p150 = scmp.ne.s32.totalorder %s145, %s147
      %p151 = scmp.eq.s32.totalorder %s12, 0
      %p152 = por %p150, %p151
      %p153 = scmp.ne.s32.totalorder %s145, %s147
      %p154 = scmp.eq.s32.totalorder %s17, 1
      %p155 = por %p153, %p154
      %p156 = scmp.ne.s32.totalorder %s147, %s148
      %p157 = scmp.eq.s32.totalorder %s17, 0
      %p158 = por %p156, %p157
      %p159 = scmp.ne.s32.totalorder %s147, %s148
      %p160 = scmp.eq.s32.totalorder %s18, 1
      %p161 = por %p159, %p160
      %p163 = scmp.ne.s32.totalorder %s148, %s162
      %p164 = scmp.eq.s32.totalorder %s18, 0
      %p165 = por %p163, %p164
      %s166 = ssub.s32 %s12, %s19
      %p167 = scmp.eq.s32.totalorder %s166, 0
      %s169 = sadd.s32 %s168, 1
      %s170 = scalar_select %p167, %s168, %s169
      %p173 = pneg %p167
      %p174 = scmp.eq.s32.totalorder %s12, 1
      %p175 = por %p173, %p174
      %p176 = scmp.ne.s32.totalorder %s168, %s171
      %p177 = scmp.eq.s32.totalorder %s12, 0
      %p178 = por %p176, %p177
      %p179 = scmp.ne.s32.totalorder %s168, %s171
      %p180 = scmp.eq.s32.totalorder %s17, 1
      %p181 = por %p179, %p180
      %p182 = scmp.ne.s32.totalorder %s171, %s172
      %p183 = scmp.eq.s32.totalorder %s17, 0
      %p184 = por %p182, %p183
      %p185 = scmp.ne.s32.totalorder %s171, %s172
      %p186 = scmp.eq.s32.totalorder %s18, 1
      %p187 = por %p185, %p186
      %p189 = scmp.ne.s32.totalorder %s172, %s188
      %p190 = scmp.eq.s32.totalorder %s18, 0
      %p191 = por %p189, %p190
      %p192 = scmp.le.s32.totalorder 1, %s12
      %p193 = scmp.lt.s32.totalorder %s12, 3
      %p194 = pnand %p192, %p193
      %p195 = pneg %p194
      // Predicated region
      $region9: #{vit_forward.10} parent=5 // pred_check
        _
      $region10: #{vit_forward.10} parent=5 // pred_check_branch
        %197 = sbr.rel (%p194) target = $region12
      $region11: #{vit_forward.10} parent=5 // pred_region
        %s198 = ssub.s32 %s12, 1
        // Predicated region
        $region13: #{vit_forward.10} parent=11 // pred_check
          %p199 = pneg %p137
        $region14: #{vit_forward.10} parent=11 // pred_check_branch
          %201 = sbr.rel (%p199) target = $region16
        $region15: #{vit_forward.10} parent=11 // pred_region
          _
        $region16: #{vit_forward.10} parent=11 // pred_fallthru
          _
        // Predicated region
        $region17: #{vit_forward.10} parent=11 // pred_check
          %p202 = pneg %p158
        $region18: #{vit_forward.10} parent=11 // pred_check_branch
          %204 = sbr.rel (%p202) target = $region20
        $region19: #{vit_forward.10} parent=11 // pred_region
          _
        $region20: #{vit_forward.10} parent=11 // pred_fallthru
          _
      $region12: #{vit_forward.10} parent=5 // pred_fallthru
        _
      %p205 = scmp.lt.s32.totalorder %s12, 2
      // Predicated region
      $region21: #{vit_forward.10} parent=5 // pred_check
        %p206 = pneg %p205
      $region22: #{vit_forward.10} parent=5 // pred_check_branch
        %208 = sbr.rel (%p206) target = $region24
      $region23: #{vit_forward.10} parent=5 // pred_region
        // Predicated region
        $region25: #{vit_forward.10} parent=23 // pred_check
          %p209 = pneg %p32
        $region26: #{vit_forward.10} parent=23 // pred_check_branch
          %211 = sbr.rel (%p209) target = $region28
        $region27: #{vit_forward.10} parent=23 // pred_region
          %s212 = sand.u32 %s22, 1
          %s213 = sand.u32 %s22, 1
          %s214 = smul.addr %s213, 64
          %s215 = scalar_lea.vmem [#allocation2], %s214
          %s216 = smul.addr %s12, 96
          %s217 = smul.addr %s216, 2
          %s218 = scalar_lea.vmem %s0, %s217
          // Predicated region
          $region29: #{vit_forward.10} parent=27 // pred_check
            _
          $region30: #{vit_forward.10} parent=27 // pred_check_branch
            %220 = sbr.rel (0) target = $region32
          $region31: #{vit_forward.10} parent=27 // pred_region
            // Predicated region
            $region33: #{vit_forward.10} parent=31 // pred_check
              _
            $region34: #{vit_forward.10} parent=31 // pred_check_branch
              %222 = sbr.rel target = $region36
            $region35: #{vit_forward.10} parent=31 // pred_region
              // Predicated region
              $region48: #{vit_forward.10} parent=35 // pred_check
                _
              $region49: #{vit_forward.10} parent=35 // pred_check_branch
                %300 = sbr.rel (0) target = $region51
              $region50: #{vit_forward.10} parent=35 // pred_region
                loop: start=0, step=1, limit=1
                $region52: #{vit_forward.10} parent=50 // loop_pre_header
                  _
                $region53: #{vit_forward.10} parent=50 // loop_header
                  %s302 = sphi 0, %s306
                  %p303 = scmp.ge.s32.totalorder %s302, 1
                  %s307 = sphi %s218, %s218
                  %s308 = sphi %s215, %s215
                $region54: #{vit_forward.10} parent=50 // loop_header_branch
                  %305 = sbr.rel (%p303) target = $region58
                $region55: #{vit_forward.10} parent=50 // loop_body
                  _
                $region56: #{vit_forward.10} parent=50 // loop_footer
                  %s306 = sadd.s32 1, %s302
                $region57: #{vit_forward.10} parent=50 // loop_footer_branch
                  %301 = sbr.rel target = $region53
                $region58: #{vit_forward.10} parent=50 // loop_exit
                  _
                %s310 = ssub.s32 4, 1
                loop: start=0, step=1, limit=1
                $region59: #{vit_forward.10} parent=50 // loop_pre_header
                  _
                $region60: #{vit_forward.10} parent=50 // loop_header
                  %s312 = sphi 0, %s316
                  %p313 = scmp.ge.s32.totalorder %s312, 1
                  %s317 = sphi %s218, %s218
                  %s318 = sphi %s215, %s215
                $region61: #{vit_forward.10} parent=50 // loop_header_branch
                  %315 = sbr.rel (%p313) target = $region65
                $region62: #{vit_forward.10} parent=50 // loop_body
                  %v319 = vld [vmem:[%s317] sm:%s310]
                  %320 = vst [vmem:[%s318] sm:%s310] %v319
                  %v321 = vld [vmem:[%s317 + $0x6] sm:%s310]
                  %322 = vst [vmem:[%s318 + $0x2] sm:%s310] %v321
                  %v323 = vld [vmem:[%s317 + $0xc] sm:%s310]
                  %324 = vst [vmem:[%s318 + $0x4] sm:%s310] %v323
                  %v325 = vld [vmem:[%s317 + $0x12] sm:%s310]
                  %326 = vst [vmem:[%s318 + $0x6] sm:%s310] %v325
                  %v327 = vld [vmem:[%s317 + $0x18] sm:%s310]
                  %328 = vst [vmem:[%s318 + $0x8] sm:%s310] %v327
                  %v329 = vld [vmem:[%s317 + $0x1e] sm:%s310]
                  %330 = vst [vmem:[%s318 + $0xa] sm:%s310] %v329
                  %v331 = vld [vmem:[%s317 + $0x24] sm:%s310]
                  %332 = vst [vmem:[%s318 + $0xc] sm:%s310] %v331
                  %v333 = vld [vmem:[%s317 + $0x2a] sm:%s310]
                  %334 = vst [vmem:[%s318 + $0xe] sm:%s310] %v333
                  %v335 = vld [vmem:[%s317 + $0x30] sm:%s310]
                  %336 = vst [vmem:[%s318 + $0x10] sm:%s310] %v335
                  %v337 = vld [vmem:[%s317 + $0x36] sm:%s310]
                  %338 = vst [vmem:[%s318 + $0x12] sm:%s310] %v337
                  %v339 = vld [vmem:[%s317 + $0x3c] sm:%s310]
                  %340 = vst [vmem:[%s318 + $0x14] sm:%s310] %v339
                  %v341 = vld [vmem:[%s317 + $0x42] sm:%s310]
                  %342 = vst [vmem:[%s318 + $0x16] sm:%s310] %v341
                  %v343 = vld [vmem:[%s317 + $0x48] sm:%s310]
                  %344 = vst [vmem:[%s318 + $0x18] sm:%s310] %v343
                  %v345 = vld [vmem:[%s317 + $0x4e] sm:%s310]
                  %346 = vst [vmem:[%s318 + $0x1a] sm:%s310] %v345
                  %v347 = vld [vmem:[%s317 + $0x54] sm:%s310]
                  %348 = vst [vmem:[%s318 + $0x1c] sm:%s310] %v347
                  %v349 = vld [vmem:[%s317 + $0x5a] sm:%s310]
                  %350 = vst [vmem:[%s318 + $0x1e] sm:%s310] %v349
                  %v351 = vld [vmem:[%s317 + $0x60] sm:%s310]
                  %352 = vst [vmem:[%s318 + $0x20] sm:%s310] %v351
                  %v353 = vld [vmem:[%s317 + $0x66] sm:%s310]
                  %354 = vst [vmem:[%s318 + $0x22] sm:%s310] %v353
                  %v355 = vld [vmem:[%s317 + $0x6c] sm:%s310]
                  %356 = vst [vmem:[%s318 + $0x24] sm:%s310] %v355
                  %v357 = vld [vmem:[%s317 + $0x72] sm:%s310]
                  %358 = vst [vmem:[%s318 + $0x26] sm:%s310] %v357
                  %v359 = vld [vmem:[%s317 + $0x78] sm:%s310]
                  %360 = vst [vmem:[%s318 + $0x28] sm:%s310] %v359
                  %v361 = vld [vmem:[%s317 + $0x7e] sm:%s310]
                  %362 = vst [vmem:[%s318 + $0x2a] sm:%s310] %v361
                  %v363 = vld [vmem:[%s317 + $0x84] sm:%s310]
                  %364 = vst [vmem:[%s318 + $0x2c] sm:%s310] %v363
                  %v365 = vld [vmem:[%s317 + $0x8a] sm:%s310]
                  %366 = vst [vmem:[%s318 + $0x2e] sm:%s310] %v365
                  %v367 = vld [vmem:[%s317 + $0x90] sm:%s310]
                  %368 = vst [vmem:[%s318 + $0x30] sm:%s310] %v367
                  %v369 = vld [vmem:[%s317 + $0x96] sm:%s310]
                  %370 = vst [vmem:[%s318 + $0x32] sm:%s310] %v369
                  %v371 = vld [vmem:[%s317 + $0x9c] sm:%s310]
                  %372 = vst [vmem:[%s318 + $0x34] sm:%s310] %v371
                  %v373 = vld [vmem:[%s317 + $0xa2] sm:%s310]
                  %374 = vst [vmem:[%s318 + $0x36] sm:%s310] %v373
                  %v375 = vld [vmem:[%s317 + $0xa8] sm:%s310]
                  %376 = vst [vmem:[%s318 + $0x38] sm:%s310] %v375
                  %v377 = vld [vmem:[%s317 + $0xae] sm:%s310]
                  %378 = vst [vmem:[%s318 + $0x3a] sm:%s310] %v377
                  %v379 = vld [vmem:[%s317 + $0xb4] sm:%s310]
                  %380 = vst [vmem:[%s318 + $0x3c] sm:%s310] %v379
                  %v381 = vld [vmem:[%s317 + $0xba] sm:%s310]
                  %382 = vst [vmem:[%s318 + $0x3e] sm:%s310] %v381
                $region63: #{vit_forward.10} parent=50 // loop_footer
                  %s316 = sadd.s32 1, %s312
                $region64: #{vit_forward.10} parent=50 // loop_footer_branch
                  %311 = sbr.rel target = $region60
                $region65: #{vit_forward.10} parent=50 // loop_exit
                  _
              $region51: #{vit_forward.10} parent=35 // pred_fallthru
                _
            $region36: #{vit_forward.10} parent=31 // pred_fallthru
              _
            // Predicated region
            $region37: #{vit_forward.10} parent=31 // pred_check
              _
            $region38: #{vit_forward.10} parent=31 // pred_check_branch
              %224 = sbr.rel (0) target = $region40
            $region39: #{vit_forward.10} parent=31 // pred_region
              %s226 = ssub.s32 4, 1
              loop: start=0, step=1, limit=1
              $region41: #{vit_forward.10} parent=39 // loop_pre_header
                _
              $region42: #{vit_forward.10} parent=39 // loop_header
                %s228 = sphi 0, %s232
                %p229 = scmp.ge.s32.totalorder %s228, 1
                %s233 = sphi %s218, %s218
                %s234 = sphi %s215, %s215
              $region43: #{vit_forward.10} parent=39 // loop_header_branch
                %231 = sbr.rel (%p229) target = $region47
              $region44: #{vit_forward.10} parent=39 // loop_body
                %v235 = vld [vmem:[%s233] sm:%s226]
                %236 = vst [vmem:[%s234] sm:%s226] %v235
                %v237 = vld [vmem:[%s233 + $0x6] sm:%s226]
                %238 = vst [vmem:[%s234 + $0x2] sm:%s226] %v237
                %v239 = vld [vmem:[%s233 + $0xc] sm:%s226]
                %240 = vst [vmem:[%s234 + $0x4] sm:%s226] %v239
                %v241 = vld [vmem:[%s233 + $0x12] sm:%s226]
                %242 = vst [vmem:[%s234 + $0x6] sm:%s226] %v241
                %v243 = vld [vmem:[%s233 + $0x18] sm:%s226]
                %244 = vst [vmem:[%s234 + $0x8] sm:%s226] %v243
                %v245 = vld [vmem:[%s233 + $0x1e] sm:%s226]
                %246 = vst [vmem:[%s234 + $0xa] sm:%s226] %v245
                %v247 = vld [vmem:[%s233 + $0x24] sm:%s226]
                %248 = vst [vmem:[%s234 + $0xc] sm:%s226] %v247
                %v249 = vld [vmem:[%s233 + $0x2a] sm:%s226]
                %250 = vst [vmem:[%s234 + $0xe] sm:%s226] %v249
                %v251 = vld [vmem:[%s233 + $0x30] sm:%s226]
                %252 = vst [vmem:[%s234 + $0x10] sm:%s226] %v251
                %v253 = vld [vmem:[%s233 + $0x36] sm:%s226]
                %254 = vst [vmem:[%s234 + $0x12] sm:%s226] %v253
                %v255 = vld [vmem:[%s233 + $0x3c] sm:%s226]
                %256 = vst [vmem:[%s234 + $0x14] sm:%s226] %v255
                %v257 = vld [vmem:[%s233 + $0x42] sm:%s226]
                %258 = vst [vmem:[%s234 + $0x16] sm:%s226] %v257
                %v259 = vld [vmem:[%s233 + $0x48] sm:%s226]
                %260 = vst [vmem:[%s234 + $0x18] sm:%s226] %v259
                %v261 = vld [vmem:[%s233 + $0x4e] sm:%s226]
                %262 = vst [vmem:[%s234 + $0x1a] sm:%s226] %v261
                %v263 = vld [vmem:[%s233 + $0x54] sm:%s226]
                %264 = vst [vmem:[%s234 + $0x1c] sm:%s226] %v263
                %v265 = vld [vmem:[%s233 + $0x5a] sm:%s226]
                %266 = vst [vmem:[%s234 + $0x1e] sm:%s226] %v265
                %v267 = vld [vmem:[%s233 + $0x60] sm:%s226]
                %268 = vst [vmem:[%s234 + $0x20] sm:%s226] %v267
                %v269 = vld [vmem:[%s233 + $0x66] sm:%s226]
                %270 = vst [vmem:[%s234 + $0x22] sm:%s226] %v269
                %v271 = vld [vmem:[%s233 + $0x6c] sm:%s226]
                %272 = vst [vmem:[%s234 + $0x24] sm:%s226] %v271
                %v273 = vld [vmem:[%s233 + $0x72] sm:%s226]
                %274 = vst [vmem:[%s234 + $0x26] sm:%s226] %v273
                %v275 = vld [vmem:[%s233 + $0x78] sm:%s226]
                %276 = vst [vmem:[%s234 + $0x28] sm:%s226] %v275
                %v277 = vld [vmem:[%s233 + $0x7e] sm:%s226]
                %278 = vst [vmem:[%s234 + $0x2a] sm:%s226] %v277
                %v279 = vld [vmem:[%s233 + $0x84] sm:%s226]
                %280 = vst [vmem:[%s234 + $0x2c] sm:%s226] %v279
                %v281 = vld [vmem:[%s233 + $0x8a] sm:%s226]
                %282 = vst [vmem:[%s234 + $0x2e] sm:%s226] %v281
                %v283 = vld [vmem:[%s233 + $0x90] sm:%s226]
                %284 = vst [vmem:[%s234 + $0x30] sm:%s226] %v283
                %v285 = vld [vmem:[%s233 + $0x96] sm:%s226]
                %286 = vst [vmem:[%s234 + $0x32] sm:%s226] %v285
                %v287 = vld [vmem:[%s233 + $0x9c] sm:%s226]
                %288 = vst [vmem:[%s234 + $0x34] sm:%s226] %v287
                %v289 = vld [vmem:[%s233 + $0xa2] sm:%s226]
                %290 = vst [vmem:[%s234 + $0x36] sm:%s226] %v289
                %v291 = vld [vmem:[%s233 + $0xa8] sm:%s226]
                %292 = vst [vmem:[%s234 + $0x38] sm:%s226] %v291
                %v293 = vld [vmem:[%s233 + $0xae] sm:%s226]
                %294 = vst [vmem:[%s234 + $0x3a] sm:%s226] %v293
                %v295 = vld [vmem:[%s233 + $0xb4] sm:%s226]
                %296 = vst [vmem:[%s234 + $0x3c] sm:%s226] %v295
                %v297 = vld [vmem:[%s233 + $0xba] sm:%s226]
                %298 = vst [vmem:[%s234 + $0x3e] sm:%s226] %v297
              $region45: #{vit_forward.10} parent=39 // loop_footer
                %s232 = sadd.s32 1, %s228
              $region46: #{vit_forward.10} parent=39 // loop_footer_branch
                %227 = sbr.rel target = $region42
              $region47: #{vit_forward.10} parent=39 // loop_exit
                _
            $region40: #{vit_forward.10} parent=31 // pred_fallthru
              _
          $region32: #{vit_forward.10} parent=27 // pred_fallthru
            _
          %383 = vnop
        $region28: #{vit_forward.10} parent=23 // pred_fallthru
          _
        // Predicated region
        $region66: #{vit_forward.10} parent=23 // pred_check
          %p384 = pneg %p58
        $region67: #{vit_forward.10} parent=23 // pred_check_branch
          %386 = sbr.rel (%p384) target = $region69
        $region68: #{vit_forward.10} parent=23 // pred_region
          %s387 = sand.u32 %s48, 1
          %s388 = sand.u32 %s48, 1
          %s389 = smul.addr %s388, 64
          %s390 = scalar_lea.vmem [#allocation3], %s389
          %s391 = smul.addr %s12, 96
          %s392 = sadd.s32 1, %s391
          %s393 = smul.addr %s392, 2
          %s394 = scalar_lea.vmem %s1, %s393
          // Predicated region
          $region70: #{vit_forward.10} parent=68 // pred_check
            _
          $region71: #{vit_forward.10} parent=68 // pred_check_branch
            %396 = sbr.rel (0) target = $region73
          $region72: #{vit_forward.10} parent=68 // pred_region
            // Predicated region
            $region74: #{vit_forward.10} parent=72 // pred_check
              _
            $region75: #{vit_forward.10} parent=72 // pred_check_branch
              %398 = sbr.rel target = $region77
            $region76: #{vit_forward.10} parent=72 // pred_region
              // Predicated region
              $region89: #{vit_forward.10} parent=76 // pred_check
                _
              $region90: #{vit_forward.10} parent=76 // pred_check_branch
                %476 = sbr.rel (0) target = $region92
              $region91: #{vit_forward.10} parent=76 // pred_region
                loop: start=0, step=1, limit=1
                $region93: #{vit_forward.10} parent=91 // loop_pre_header
                  _
                $region94: #{vit_forward.10} parent=91 // loop_header
                  %s478 = sphi 0, %s482
                  %p479 = scmp.ge.s32.totalorder %s478, 1
                  %s483 = sphi %s394, %s394
                  %s484 = sphi %s390, %s390
                $region95: #{vit_forward.10} parent=91 // loop_header_branch
                  %481 = sbr.rel (%p479) target = $region99
                $region96: #{vit_forward.10} parent=91 // loop_body
                  _
                $region97: #{vit_forward.10} parent=91 // loop_footer
                  %s482 = sadd.s32 1, %s478
                $region98: #{vit_forward.10} parent=91 // loop_footer_branch
                  %477 = sbr.rel target = $region94
                $region99: #{vit_forward.10} parent=91 // loop_exit
                  _
                %s486 = ssub.s32 4, 1
                loop: start=0, step=1, limit=1
                $region100: #{vit_forward.10} parent=91 // loop_pre_header
                  _
                $region101: #{vit_forward.10} parent=91 // loop_header
                  %s488 = sphi 0, %s492
                  %p489 = scmp.ge.s32.totalorder %s488, 1
                  %s493 = sphi %s394, %s394
                  %s494 = sphi %s390, %s390
                $region102: #{vit_forward.10} parent=91 // loop_header_branch
                  %491 = sbr.rel (%p489) target = $region106
                $region103: #{vit_forward.10} parent=91 // loop_body
                  %v495 = vld [vmem:[%s493] sm:%s486]
                  %496 = vst [vmem:[%s494] sm:%s486] %v495
                  %v497 = vld [vmem:[%s493 + $0x6] sm:%s486]
                  %498 = vst [vmem:[%s494 + $0x2] sm:%s486] %v497
                  %v499 = vld [vmem:[%s493 + $0xc] sm:%s486]
                  %500 = vst [vmem:[%s494 + $0x4] sm:%s486] %v499
                  %v501 = vld [vmem:[%s493 + $0x12] sm:%s486]
                  %502 = vst [vmem:[%s494 + $0x6] sm:%s486] %v501
                  %v503 = vld [vmem:[%s493 + $0x18] sm:%s486]
                  %504 = vst [vmem:[%s494 + $0x8] sm:%s486] %v503
                  %v505 = vld [vmem:[%s493 + $0x1e] sm:%s486]
                  %506 = vst [vmem:[%s494 + $0xa] sm:%s486] %v505
                  %v507 = vld [vmem:[%s493 + $0x24] sm:%s486]
                  %508 = vst [vmem:[%s494 + $0xc] sm:%s486] %v507
                  %v509 = vld [vmem:[%s493 + $0x2a] sm:%s486]
                  %510 = vst [vmem:[%s494 + $0xe] sm:%s486] %v509
                  %v511 = vld [vmem:[%s493 + $0x30] sm:%s486]
                  %512 = vst [vmem:[%s494 + $0x10] sm:%s486] %v511
                  %v513 = vld [vmem:[%s493 + $0x36] sm:%s486]
                  %514 = vst [vmem:[%s494 + $0x12] sm:%s486] %v513
                  %v515 = vld [vmem:[%s493 + $0x3c] sm:%s486]
                  %516 = vst [vmem:[%s494 + $0x14] sm:%s486] %v515
                  %v517 = vld [vmem:[%s493 + $0x42] sm:%s486]
                  %518 = vst [vmem:[%s494 + $0x16] sm:%s486] %v517
                  %v519 = vld [vmem:[%s493 + $0x48] sm:%s486]
                  %520 = vst [vmem:[%s494 + $0x18] sm:%s486] %v519
                  %v521 = vld [vmem:[%s493 + $0x4e] sm:%s486]
                  %522 = vst [vmem:[%s494 + $0x1a] sm:%s486] %v521
                  %v523 = vld [vmem:[%s493 + $0x54] sm:%s486]
                  %524 = vst [vmem:[%s494 + $0x1c] sm:%s486] %v523
                  %v525 = vld [vmem:[%s493 + $0x5a] sm:%s486]
                  %526 = vst [vmem:[%s494 + $0x1e] sm:%s486] %v525
                  %v527 = vld [vmem:[%s493 + $0x60] sm:%s486]
                  %528 = vst [vmem:[%s494 + $0x20] sm:%s486] %v527
                  %v529 = vld [vmem:[%s493 + $0x66] sm:%s486]
                  %530 = vst [vmem:[%s494 + $0x22] sm:%s486] %v529
                  %v531 = vld [vmem:[%s493 + $0x6c] sm:%s486]
                  %532 = vst [vmem:[%s494 + $0x24] sm:%s486] %v531
                  %v533 = vld [vmem:[%s493 + $0x72] sm:%s486]
                  %534 = vst [vmem:[%s494 + $0x26] sm:%s486] %v533
                  %v535 = vld [vmem:[%s493 + $0x78] sm:%s486]
                  %536 = vst [vmem:[%s494 + $0x28] sm:%s486] %v535
                  %v537 = vld [vmem:[%s493 + $0x7e] sm:%s486]
                  %538 = vst [vmem:[%s494 + $0x2a] sm:%s486] %v537
                  %v539 = vld [vmem:[%s493 + $0x84] sm:%s486]
                  %540 = vst [vmem:[%s494 + $0x2c] sm:%s486] %v539
                  %v541 = vld [vmem:[%s493 + $0x8a] sm:%s486]
                  %542 = vst [vmem:[%s494 + $0x2e] sm:%s486] %v541
                  %v543 = vld [vmem:[%s493 + $0x90] sm:%s486]
                  %544 = vst [vmem:[%s494 + $0x30] sm:%s486] %v543
                  %v545 = vld [vmem:[%s493 + $0x96] sm:%s486]
                  %546 = vst [vmem:[%s494 + $0x32] sm:%s486] %v545
                  %v547 = vld [vmem:[%s493 + $0x9c] sm:%s486]
                  %548 = vst [vmem:[%s494 + $0x34] sm:%s486] %v547
                  %v549 = vld [vmem:[%s493 + $0xa2] sm:%s486]
                  %550 = vst [vmem:[%s494 + $0x36] sm:%s486] %v549
                  %v551 = vld [vmem:[%s493 + $0xa8] sm:%s486]
                  %552 = vst [vmem:[%s494 + $0x38] sm:%s486] %v551
                  %v553 = vld [vmem:[%s493 + $0xae] sm:%s486]
                  %554 = vst [vmem:[%s494 + $0x3a] sm:%s486] %v553
                  %v555 = vld [vmem:[%s493 + $0xb4] sm:%s486]
                  %556 = vst [vmem:[%s494 + $0x3c] sm:%s486] %v555
                  %v557 = vld [vmem:[%s493 + $0xba] sm:%s486]
                  %558 = vst [vmem:[%s494 + $0x3e] sm:%s486] %v557
                $region104: #{vit_forward.10} parent=91 // loop_footer
                  %s492 = sadd.s32 1, %s488
                $region105: #{vit_forward.10} parent=91 // loop_footer_branch
                  %487 = sbr.rel target = $region101
                $region106: #{vit_forward.10} parent=91 // loop_exit
                  _
              $region92: #{vit_forward.10} parent=76 // pred_fallthru
                _
            $region77: #{vit_forward.10} parent=72 // pred_fallthru
              _
            // Predicated region
            $region78: #{vit_forward.10} parent=72 // pred_check
              _
            $region79: #{vit_forward.10} parent=72 // pred_check_branch
              %400 = sbr.rel (0) target = $region81
            $region80: #{vit_forward.10} parent=72 // pred_region
              %s402 = ssub.s32 4, 1
              loop: start=0, step=1, limit=1
              $region82: #{vit_forward.10} parent=80 // loop_pre_header
                _
              $region83: #{vit_forward.10} parent=80 // loop_header
                %s404 = sphi 0, %s408
                %p405 = scmp.ge.s32.totalorder %s404, 1
                %s409 = sphi %s394, %s394
                %s410 = sphi %s390, %s390
              $region84: #{vit_forward.10} parent=80 // loop_header_branch
                %407 = sbr.rel (%p405) target = $region88
              $region85: #{vit_forward.10} parent=80 // loop_body
                %v411 = vld [vmem:[%s409] sm:%s402]
                %412 = vst [vmem:[%s410] sm:%s402] %v411
                %v413 = vld [vmem:[%s409 + $0x6] sm:%s402]
                %414 = vst [vmem:[%s410 + $0x2] sm:%s402] %v413
                %v415 = vld [vmem:[%s409 + $0xc] sm:%s402]
                %416 = vst [vmem:[%s410 + $0x4] sm:%s402] %v415
                %v417 = vld [vmem:[%s409 + $0x12] sm:%s402]
                %418 = vst [vmem:[%s410 + $0x6] sm:%s402] %v417
                %v419 = vld [vmem:[%s409 + $0x18] sm:%s402]
                %420 = vst [vmem:[%s410 + $0x8] sm:%s402] %v419
                %v421 = vld [vmem:[%s409 + $0x1e] sm:%s402]
                %422 = vst [vmem:[%s410 + $0xa] sm:%s402] %v421
                %v423 = vld [vmem:[%s409 + $0x24] sm:%s402]
                %424 = vst [vmem:[%s410 + $0xc] sm:%s402] %v423
                %v425 = vld [vmem:[%s409 + $0x2a] sm:%s402]
                %426 = vst [vmem:[%s410 + $0xe] sm:%s402] %v425
                %v427 = vld [vmem:[%s409 + $0x30] sm:%s402]
                %428 = vst [vmem:[%s410 + $0x10] sm:%s402] %v427
                %v429 = vld [vmem:[%s409 + $0x36] sm:%s402]
                %430 = vst [vmem:[%s410 + $0x12] sm:%s402] %v429
                %v431 = vld [vmem:[%s409 + $0x3c] sm:%s402]
                %432 = vst [vmem:[%s410 + $0x14] sm:%s402] %v431
                %v433 = vld [vmem:[%s409 + $0x42] sm:%s402]
                %434 = vst [vmem:[%s410 + $0x16] sm:%s402] %v433
                %v435 = vld [vmem:[%s409 + $0x48] sm:%s402]
                %436 = vst [vmem:[%s410 + $0x18] sm:%s402] %v435
                %v437 = vld [vmem:[%s409 + $0x4e] sm:%s402]
                %438 = vst [vmem:[%s410 + $0x1a] sm:%s402] %v437
                %v439 = vld [vmem:[%s409 + $0x54] sm:%s402]
                %440 = vst [vmem:[%s410 + $0x1c] sm:%s402] %v439
                %v441 = vld [vmem:[%s409 + $0x5a] sm:%s402]
                %442 = vst [vmem:[%s410 + $0x1e] sm:%s402] %v441
                %v443 = vld [vmem:[%s409 + $0x60] sm:%s402]
                %444 = vst [vmem:[%s410 + $0x20] sm:%s402] %v443
                %v445 = vld [vmem:[%s409 + $0x66] sm:%s402]
                %446 = vst [vmem:[%s410 + $0x22] sm:%s402] %v445
                %v447 = vld [vmem:[%s409 + $0x6c] sm:%s402]
                %448 = vst [vmem:[%s410 + $0x24] sm:%s402] %v447
                %v449 = vld [vmem:[%s409 + $0x72] sm:%s402]
                %450 = vst [vmem:[%s410 + $0x26] sm:%s402] %v449
                %v451 = vld [vmem:[%s409 + $0x78] sm:%s402]
                %452 = vst [vmem:[%s410 + $0x28] sm:%s402] %v451
                %v453 = vld [vmem:[%s409 + $0x7e] sm:%s402]
                %454 = vst [vmem:[%s410 + $0x2a] sm:%s402] %v453
                %v455 = vld [vmem:[%s409 + $0x84] sm:%s402]
                %456 = vst [vmem:[%s410 + $0x2c] sm:%s402] %v455
                %v457 = vld [vmem:[%s409 + $0x8a] sm:%s402]
                %458 = vst [vmem:[%s410 + $0x2e] sm:%s402] %v457
                %v459 = vld [vmem:[%s409 + $0x90] sm:%s402]
                %460 = vst [vmem:[%s410 + $0x30] sm:%s402] %v459
                %v461 = vld [vmem:[%s409 + $0x96] sm:%s402]
                %462 = vst [vmem:[%s410 + $0x32] sm:%s402] %v461
                %v463 = vld [vmem:[%s409 + $0x9c] sm:%s402]
                %464 = vst [vmem:[%s410 + $0x34] sm:%s402] %v463
                %v465 = vld [vmem:[%s409 + $0xa2] sm:%s402]
                %466 = vst [vmem:[%s410 + $0x36] sm:%s402] %v465
                %v467 = vld [vmem:[%s409 + $0xa8] sm:%s402]
                %468 = vst [vmem:[%s410 + $0x38] sm:%s402] %v467
                %v469 = vld [vmem:[%s409 + $0xae] sm:%s402]
                %470 = vst [vmem:[%s410 + $0x3a] sm:%s402] %v469
                %v471 = vld [vmem:[%s409 + $0xb4] sm:%s402]
                %472 = vst [vmem:[%s410 + $0x3c] sm:%s402] %v471
                %v473 = vld [vmem:[%s409 + $0xba] sm:%s402]
                %474 = vst [vmem:[%s410 + $0x3e] sm:%s402] %v473
              $region86: #{vit_forward.10} parent=80 // loop_footer
                %s408 = sadd.s32 1, %s404
              $region87: #{vit_forward.10} parent=80 // loop_footer_branch
                %403 = sbr.rel target = $region83
              $region88: #{vit_forward.10} parent=80 // loop_exit
                _
            $region81: #{vit_forward.10} parent=72 // pred_fallthru
              _
          $region73: #{vit_forward.10} parent=68 // pred_fallthru
            _
          %559 = vnop
        $region69: #{vit_forward.10} parent=23 // pred_fallthru
          _
        // Predicated region
        $region107: #{vit_forward.10} parent=23 // pred_check
          %p560 = pneg %p84
        $region108: #{vit_forward.10} parent=23 // pred_check_branch
          %562 = sbr.rel (%p560) target = $region110
        $region109: #{vit_forward.10} parent=23 // pred_region
          %s563 = sand.u32 %s74, 1
          %s564 = sand.u32 %s74, 1
          %s565 = smul.addr %s564, 64
          %s566 = scalar_lea.vmem [#allocation4], %s565
          %s567 = smul.addr %s12, 96
          %s568 = sadd.s32 2, %s567
          %s569 = smul.addr %s568, 2
          %s570 = scalar_lea.vmem %s2, %s569
          // Predicated region
          $region111: #{vit_forward.10} parent=109 // pred_check
            _
          $region112: #{vit_forward.10} parent=109 // pred_check_branch
            %572 = sbr.rel (0) target = $region114
          $region113: #{vit_forward.10} parent=109 // pred_region
            // Predicated region
            $region115: #{vit_forward.10} parent=113 // pred_check
              _
            $region116: #{vit_forward.10} parent=113 // pred_check_branch
              %574 = sbr.rel target = $region118
            $region117: #{vit_forward.10} parent=113 // pred_region
              // Predicated region
              $region130: #{vit_forward.10} parent=117 // pred_check
                _
              $region131: #{vit_forward.10} parent=117 // pred_check_branch
                %652 = sbr.rel (0) target = $region133
              $region132: #{vit_forward.10} parent=117 // pred_region
                loop: start=0, step=1, limit=1
                $region134: #{vit_forward.10} parent=132 // loop_pre_header
                  _
                $region135: #{vit_forward.10} parent=132 // loop_header
                  %s654 = sphi 0, %s658
                  %p655 = scmp.ge.s32.totalorder %s654, 1
                  %s659 = sphi %s570, %s570
                  %s660 = sphi %s566, %s566
                $region136: #{vit_forward.10} parent=132 // loop_header_branch
                  %657 = sbr.rel (%p655) target = $region140
                $region137: #{vit_forward.10} parent=132 // loop_body
                  _
                $region138: #{vit_forward.10} parent=132 // loop_footer
                  %s658 = sadd.s32 1, %s654
                $region139: #{vit_forward.10} parent=132 // loop_footer_branch
                  %653 = sbr.rel target = $region135
                $region140: #{vit_forward.10} parent=132 // loop_exit
                  _
                %s662 = ssub.s32 4, 1
                loop: start=0, step=1, limit=1
                $region141: #{vit_forward.10} parent=132 // loop_pre_header
                  _
                $region142: #{vit_forward.10} parent=132 // loop_header
                  %s664 = sphi 0, %s668
                  %p665 = scmp.ge.s32.totalorder %s664, 1
                  %s669 = sphi %s570, %s570
                  %s670 = sphi %s566, %s566
                $region143: #{vit_forward.10} parent=132 // loop_header_branch
                  %667 = sbr.rel (%p665) target = $region147
                $region144: #{vit_forward.10} parent=132 // loop_body
                  %v671 = vld [vmem:[%s669] sm:%s662]
                  %672 = vst [vmem:[%s670] sm:%s662] %v671
                  %v673 = vld [vmem:[%s669 + $0x6] sm:%s662]
                  %674 = vst [vmem:[%s670 + $0x2] sm:%s662] %v673
                  %v675 = vld [vmem:[%s669 + $0xc] sm:%s662]
                  %676 = vst [vmem:[%s670 + $0x4] sm:%s662] %v675
                  %v677 = vld [vmem:[%s669 + $0x12] sm:%s662]
                  %678 = vst [vmem:[%s670 + $0x6] sm:%s662] %v677
                  %v679 = vld [vmem:[%s669 + $0x18] sm:%s662]
                  %680 = vst [vmem:[%s670 + $0x8] sm:%s662] %v679
                  %v681 = vld [vmem:[%s669 + $0x1e] sm:%s662]
                  %682 = vst [vmem:[%s670 + $0xa] sm:%s662] %v681
                  %v683 = vld [vmem:[%s669 + $0x24] sm:%s662]
                  %684 = vst [vmem:[%s670 + $0xc] sm:%s662] %v683
                  %v685 = vld [vmem:[%s669 + $0x2a] sm:%s662]
                  %686 = vst [vmem:[%s670 + $0xe] sm:%s662] %v685
                  %v687 = vld [vmem:[%s669 + $0x30] sm:%s662]
                  %688 = vst [vmem:[%s670 + $0x10] sm:%s662] %v687
                  %v689 = vld [vmem:[%s669 + $0x36] sm:%s662]
                  %690 = vst [vmem:[%s670 + $0x12] sm:%s662] %v689
                  %v691 = vld [vmem:[%s669 + $0x3c] sm:%s662]
                  %692 = vst [vmem:[%s670 + $0x14] sm:%s662] %v691
                  %v693 = vld [vmem:[%s669 + $0x42] sm:%s662]
                  %694 = vst [vmem:[%s670 + $0x16] sm:%s662] %v693
                  %v695 = vld [vmem:[%s669 + $0x48] sm:%s662]
                  %696 = vst [vmem:[%s670 + $0x18] sm:%s662] %v695
                  %v697 = vld [vmem:[%s669 + $0x4e] sm:%s662]
                  %698 = vst [vmem:[%s670 + $0x1a] sm:%s662] %v697
                  %v699 = vld [vmem:[%s669 + $0x54] sm:%s662]
                  %700 = vst [vmem:[%s670 + $0x1c] sm:%s662] %v699
                  %v701 = vld [vmem:[%s669 + $0x5a] sm:%s662]
                  %702 = vst [vmem:[%s670 + $0x1e] sm:%s662] %v701
                  %v703 = vld [vmem:[%s669 + $0x60] sm:%s662]
                  %704 = vst [vmem:[%s670 + $0x20] sm:%s662] %v703
                  %v705 = vld [vmem:[%s669 + $0x66] sm:%s662]
                  %706 = vst [vmem:[%s670 + $0x22] sm:%s662] %v705
                  %v707 = vld [vmem:[%s669 + $0x6c] sm:%s662]
                  %708 = vst [vmem:[%s670 + $0x24] sm:%s662] %v707
                  %v709 = vld [vmem:[%s669 + $0x72] sm:%s662]
                  %710 = vst [vmem:[%s670 + $0x26] sm:%s662] %v709
                  %v711 = vld [vmem:[%s669 + $0x78] sm:%s662]
                  %712 = vst [vmem:[%s670 + $0x28] sm:%s662] %v711
                  %v713 = vld [vmem:[%s669 + $0x7e] sm:%s662]
                  %714 = vst [vmem:[%s670 + $0x2a] sm:%s662] %v713
                  %v715 = vld [vmem:[%s669 + $0x84] sm:%s662]
                  %716 = vst [vmem:[%s670 + $0x2c] sm:%s662] %v715
                  %v717 = vld [vmem:[%s669 + $0x8a] sm:%s662]
                  %718 = vst [vmem:[%s670 + $0x2e] sm:%s662] %v717
                  %v719 = vld [vmem:[%s669 + $0x90] sm:%s662]
                  %720 = vst [vmem:[%s670 + $0x30] sm:%s662] %v719
                  %v721 = vld [vmem:[%s669 + $0x96] sm:%s662]
                  %722 = vst [vmem:[%s670 + $0x32] sm:%s662] %v721
                  %v723 = vld [vmem:[%s669 + $0x9c] sm:%s662]
                  %724 = vst [vmem:[%s670 + $0x34] sm:%s662] %v723
                  %v725 = vld [vmem:[%s669 + $0xa2] sm:%s662]
                  %726 = vst [vmem:[%s670 + $0x36] sm:%s662] %v725
                  %v727 = vld [vmem:[%s669 + $0xa8] sm:%s662]
                  %728 = vst [vmem:[%s670 + $0x38] sm:%s662] %v727
                  %v729 = vld [vmem:[%s669 + $0xae] sm:%s662]
                  %730 = vst [vmem:[%s670 + $0x3a] sm:%s662] %v729
                  %v731 = vld [vmem:[%s669 + $0xb4] sm:%s662]
                  %732 = vst [vmem:[%s670 + $0x3c] sm:%s662] %v731
                  %v733 = vld [vmem:[%s669 + $0xba] sm:%s662]
                  %734 = vst [vmem:[%s670 + $0x3e] sm:%s662] %v733
                $region145: #{vit_forward.10} parent=132 // loop_footer
                  %s668 = sadd.s32 1, %s664
                $region146: #{vit_forward.10} parent=132 // loop_footer_branch
                  %663 = sbr.rel target = $region142
                $region147: #{vit_forward.10} parent=132 // loop_exit
                  _
              $region133: #{vit_forward.10} parent=117 // pred_fallthru
                _
            $region118: #{vit_forward.10} parent=113 // pred_fallthru
              _
            // Predicated region
            $region119: #{vit_forward.10} parent=113 // pred_check
              _
            $region120: #{vit_forward.10} parent=113 // pred_check_branch
              %576 = sbr.rel (0) target = $region122
            $region121: #{vit_forward.10} parent=113 // pred_region
              %s578 = ssub.s32 4, 1
              loop: start=0, step=1, limit=1
              $region123: #{vit_forward.10} parent=121 // loop_pre_header
                _
              $region124: #{vit_forward.10} parent=121 // loop_header
                %s580 = sphi 0, %s584
                %p581 = scmp.ge.s32.totalorder %s580, 1
                %s585 = sphi %s570, %s570
                %s586 = sphi %s566, %s566
              $region125: #{vit_forward.10} parent=121 // loop_header_branch
                %583 = sbr.rel (%p581) target = $region129
              $region126: #{vit_forward.10} parent=121 // loop_body
                %v587 = vld [vmem:[%s585] sm:%s578]
                %588 = vst [vmem:[%s586] sm:%s578] %v587
                %v589 = vld [vmem:[%s585 + $0x6] sm:%s578]
                %590 = vst [vmem:[%s586 + $0x2] sm:%s578] %v589
                %v591 = vld [vmem:[%s585 + $0xc] sm:%s578]
                %592 = vst [vmem:[%s586 + $0x4] sm:%s578] %v591
                %v593 = vld [vmem:[%s585 + $0x12] sm:%s578]
                %594 = vst [vmem:[%s586 + $0x6] sm:%s578] %v593
                %v595 = vld [vmem:[%s585 + $0x18] sm:%s578]
                %596 = vst [vmem:[%s586 + $0x8] sm:%s578] %v595
                %v597 = vld [vmem:[%s585 + $0x1e] sm:%s578]
                %598 = vst [vmem:[%s586 + $0xa] sm:%s578] %v597
                %v599 = vld [vmem:[%s585 + $0x24] sm:%s578]
                %600 = vst [vmem:[%s586 + $0xc] sm:%s578] %v599
                %v601 = vld [vmem:[%s585 + $0x2a] sm:%s578]
                %602 = vst [vmem:[%s586 + $0xe] sm:%s578] %v601
                %v603 = vld [vmem:[%s585 + $0x30] sm:%s578]
                %604 = vst [vmem:[%s586 + $0x10] sm:%s578] %v603
                %v605 = vld [vmem:[%s585 + $0x36] sm:%s578]
                %606 = vst [vmem:[%s586 + $0x12] sm:%s578] %v605
                %v607 = vld [vmem:[%s585 + $0x3c] sm:%s578]
                %608 = vst [vmem:[%s586 + $0x14] sm:%s578] %v607
                %v609 = vld [vmem:[%s585 + $0x42] sm:%s578]
                %610 = vst [vmem:[%s586 + $0x16] sm:%s578] %v609
                %v611 = vld [vmem:[%s585 + $0x48] sm:%s578]
                %612 = vst [vmem:[%s586 + $0x18] sm:%s578] %v611
                %v613 = vld [vmem:[%s585 + $0x4e] sm:%s578]
                %614 = vst [vmem:[%s586 + $0x1a] sm:%s578] %v613
                %v615 = vld [vmem:[%s585 + $0x54] sm:%s578]
                %616 = vst [vmem:[%s586 + $0x1c] sm:%s578] %v615
                %v617 = vld [vmem:[%s585 + $0x5a] sm:%s578]
                %618 = vst [vmem:[%s586 + $0x1e] sm:%s578] %v617
                %v619 = vld [vmem:[%s585 + $0x60] sm:%s578]
                %620 = vst [vmem:[%s586 + $0x20] sm:%s578] %v619
                %v621 = vld [vmem:[%s585 + $0x66] sm:%s578]
                %622 = vst [vmem:[%s586 + $0x22] sm:%s578] %v621
                %v623 = vld [vmem:[%s585 + $0x6c] sm:%s578]
                %624 = vst [vmem:[%s586 + $0x24] sm:%s578] %v623
                %v625 = vld [vmem:[%s585 + $0x72] sm:%s578]
                %626 = vst [vmem:[%s586 + $0x26] sm:%s578] %v625
                %v627 = vld [vmem:[%s585 + $0x78] sm:%s578]
                %628 = vst [vmem:[%s586 + $0x28] sm:%s578] %v627
                %v629 = vld [vmem:[%s585 + $0x7e] sm:%s578]
                %630 = vst [vmem:[%s586 + $0x2a] sm:%s578] %v629
                %v631 = vld [vmem:[%s585 + $0x84] sm:%s578]
                %632 = vst [vmem:[%s586 + $0x2c] sm:%s578] %v631
                %v633 = vld [vmem:[%s585 + $0x8a] sm:%s578]
                %634 = vst [vmem:[%s586 + $0x2e] sm:%s578] %v633
                %v635 = vld [vmem:[%s585 + $0x90] sm:%s578]
                %636 = vst [vmem:[%s586 + $0x30] sm:%s578] %v635
                %v637 = vld [vmem:[%s585 + $0x96] sm:%s578]
                %638 = vst [vmem:[%s586 + $0x32] sm:%s578] %v637
                %v639 = vld [vmem:[%s585 + $0x9c] sm:%s578]
                %640 = vst [vmem:[%s586 + $0x34] sm:%s578] %v639
                %v641 = vld [vmem:[%s585 + $0xa2] sm:%s578]
                %642 = vst [vmem:[%s586 + $0x36] sm:%s578] %v641
                %v643 = vld [vmem:[%s585 + $0xa8] sm:%s578]
                %644 = vst [vmem:[%s586 + $0x38] sm:%s578] %v643
                %v645 = vld [vmem:[%s585 + $0xae] sm:%s578]
                %646 = vst [vmem:[%s586 + $0x3a] sm:%s578] %v645
                %v647 = vld [vmem:[%s585 + $0xb4] sm:%s578]
                %648 = vst [vmem:[%s586 + $0x3c] sm:%s578] %v647
                %v649 = vld [vmem:[%s585 + $0xba] sm:%s578]
                %650 = vst [vmem:[%s586 + $0x3e] sm:%s578] %v649
              $region127: #{vit_forward.10} parent=121 // loop_footer
                %s584 = sadd.s32 1, %s580
              $region128: #{vit_forward.10} parent=121 // loop_footer_branch
                %579 = sbr.rel target = $region124
              $region129: #{vit_forward.10} parent=121 // loop_exit
                _
            $region122: #{vit_forward.10} parent=113 // pred_fallthru
              _
          $region114: #{vit_forward.10} parent=109 // pred_fallthru
            _
          %735 = vnop
        $region110: #{vit_forward.10} parent=23 // pred_fallthru
          _
        // Predicated region
        $region148: #{vit_forward.10} parent=23 // pred_check
          %p736 = pneg %p110
        $region149: #{vit_forward.10} parent=23 // pred_check_branch
          %738 = sbr.rel (%p736) target = $region151
        $region150: #{vit_forward.10} parent=23 // pred_region
          %p739 = scmp.lt.s32.totalorder %s12, 1
          %s740 = scalar_select %p739, %s12, 1
          %s741 = smul.addr %s740, 4
          %s742 = smul.addr %s741, 4
          %s743 = scalar_lea.vmem %s3, %s742
        $region151: #{vit_forward.10} parent=23 // pred_fallthru
          _
      $region24: #{vit_forward.10} parent=5 // pred_fallthru
        _
      %p744 = scmp.le.s32.totalorder 1, %s12
      %p745 = scmp.lt.s32.totalorder %s12, 3
      %p746 = pnand %p744, %p745
      %p747 = pneg %p746
      // Predicated region
      $region152: #{vit_forward.10} parent=5 // pred_check
        _
      $region153: #{vit_forward.10} parent=5 // pred_check_branch
        %749 = sbr.rel (%p746) target = $region155
      $region154: #{vit_forward.10} parent=5 // pred_region
        %s750 = ssub.s32 %s12, 1
        %s751 = sand.u32 %s25, 1
        %s752 = sand.u32 %s25, 1
        %s753 = smul.addr %s752, 64
        %s754 = scalar_lea.vmem [#allocation2], %s753
        // Predicated region
        $region156: #{vit_forward.10} parent=154 // pred_check
          %p755 = pneg %p38
        $region157: #{vit_forward.10} parent=154 // pred_check_branch
          %757 = sbr.rel (%p755) target = $region159
        $region158: #{vit_forward.10} parent=154 // pred_region
          _
        $region159: #{vit_forward.10} parent=154 // pred_fallthru
          _
        %s758 = sand.u32 %s51, 1
        %s759 = sand.u32 %s51, 1
        %s760 = smul.addr %s759, 64
        %s761 = scalar_lea.vmem [#allocation3], %s760
        // Predicated region
        $region160: #{vit_forward.10} parent=154 // pred_check
          %p762 = pneg %p64
        $region161: #{vit_forward.10} parent=154 // pred_check_branch
          %764 = sbr.rel (%p762) target = $region163
        $region162: #{vit_forward.10} parent=154 // pred_region
          _
        $region163: #{vit_forward.10} parent=154 // pred_fallthru
          _
        %s765 = sand.u32 %s77, 1
        %s766 = sand.u32 %s77, 1
        %s767 = smul.addr %s766, 64
        %s768 = scalar_lea.vmem [#allocation4], %s767
        // Predicated region
        $region164: #{vit_forward.10} parent=154 // pred_check
          %p769 = pneg %p90
        $region165: #{vit_forward.10} parent=154 // pred_check_branch
          %771 = sbr.rel (%p769) target = $region167
        $region166: #{vit_forward.10} parent=154 // pred_region
          _
        $region167: #{vit_forward.10} parent=154 // pred_fallthru
          _
        %s772 = sand.u32 %s25, 1
        %s773 = sand.u32 %s25, 1
        %s774 = smul.addr %s773, 64
        %s775 = scalar_lea.vmem [#allocation2], %s774
        %p776 = pneg %p38
        %p777 = pneg %p35
        %s778 = sand.u32 %s51, 1
        %s779 = sand.u32 %s51, 1
        %s780 = smul.addr %s779, 64
        %s781 = scalar_lea.vmem [#allocation3], %s780
        %p782 = pneg %p64
        %p783 = pneg %p61
        %s784 = sand.u32 %s77, 1
        %s785 = sand.u32 %s77, 1
        %s786 = smul.addr %s785, 64
        %s787 = scalar_lea.vmem [#allocation4], %s786
        %p788 = pneg %p90
        %p789 = pneg %p87
        %p790 = scmp.lt.s32.totalorder %s17, 1
        %s791 = scalar_select %p790, %s17, 1
        %s792 = smul.addr %s791, 4
        %s793 = smul.addr %s792, 4
        %s794 = scalar_lea.vmem %s3, %s793
        %p795 = pneg %p116
        %p796 = pneg %p113
        %p797 = pneg %p137
        %p798 = pneg %p134
        %p799 = pneg %p158
        %p800 = pneg %p155
        %p801 = pneg %p184
        %p802 = pneg %p181
        %p803 = scmp.lt.s32.totalorder %s17, 1
        %s804 = scalar_select %p803, %s17, 1
        %s805 = smul.addr %s804, 4
        %s806 = smul.addr %s805, 4
        %s807 = scalar_lea.vmem %s6, %s806
        %p808 = scmp.lt.s32.totalorder %s17, 1
        %s809 = scalar_select %p808, %s17, 1
        %s810 = smul.addr %s809, 4
        %s811 = smul.addr %s810, 4
        %s812 = scalar_lea.vmem %s3, %s811
        %p813 = scmp.lt.s32.totalorder %s17, 1
        %s814 = scalar_select %p813, %s17, 1
        %s815 = smul.addr %s814, 4
        %s816 = smul.addr %s815, 4
        %s817 = scalar_lea.vmem %s6, %s816
        %v819 = vlaneseq
        %v820 = vand.u32 %v819, 127
        %vm821 = vcmp.lt.s32.totalorder %v820, 17
        %v822 = vld [vmem:[%s812] sm:$0xf]
        %v823 = vld [vmem:[%s812 + $0x4] sm:$0xf]
        %v824 = vld [vmem:[%s812 + $0x8] sm:$0xf]
        %v825 = vld [vmem:[%s812 + $0xc] sm:$0xf]
        %v826 = vunpack.c.l.bf16 %v822
        %v827 = vunpack.c.l.bf16 %v823
        %v828 = vunpack.c.l.bf16 %v824
        %v829 = vunpack.c.l.bf16 %v825
        %v830 = vld [vmem:[%s5] sm:$0x1]
        %v832 = vlaneseq
        %v833 = vshrl.u32 %v832, 7
        %v834 = vsub.s32 0, %v833
        %v835 = vrot.slane %v830, %v834
        %v837 = vadd.f32 %v826, %v835
        %v838 = vadd.f32 %v827, %v835
        %v839 = vadd.f32 %v828, %v835
        %v840 = vadd.f32 %v829, %v835
        %v841 = vld [vmem:[%s754] sm:$0x1]
        %v842 = vld [vmem:[%s754 + $0x2] sm:$0x1]
        %v843 = vld [vmem:[%s754 + $0x4] sm:$0x1]
        %v844 = vld [vmem:[%s754 + $0x6] sm:$0x1]
        %v845 = vld [vmem:[%s754 + $0x8] sm:$0x1]
        %v846 = vld [vmem:[%s754 + $0xa] sm:$0x1]
        %v847 = vld [vmem:[%s754 + $0xc] sm:$0x1]
        %v848 = vld [vmem:[%s754 + $0xe] sm:$0x1]
        %v849 = vld [vmem:[%s754 + $0x10] sm:$0x1]
        %v850 = vld [vmem:[%s754 + $0x12] sm:$0x1]
        %v851 = vld [vmem:[%s754 + $0x14] sm:$0x1]
        %v852 = vld [vmem:[%s754 + $0x16] sm:$0x1]
        %v853 = vld [vmem:[%s754 + $0x18] sm:$0x1]
        %v854 = vld [vmem:[%s754 + $0x1a] sm:$0x1]
        %v855 = vld [vmem:[%s754 + $0x1c] sm:$0x1]
        %v856 = vld [vmem:[%s754 + $0x1e] sm:$0x1]
        %v857 = vld [vmem:[%s754 + $0x20] sm:$0x1]
        %v858 = vld [vmem:[%s754 + $0x22] sm:$0x1]
        %v859 = vld [vmem:[%s754 + $0x24] sm:$0x1]
        %v860 = vld [vmem:[%s754 + $0x26] sm:$0x1]
        %v861 = vld [vmem:[%s754 + $0x28] sm:$0x1]
        %v862 = vld [vmem:[%s754 + $0x2a] sm:$0x1]
        %v863 = vld [vmem:[%s754 + $0x2c] sm:$0x1]
        %v864 = vld [vmem:[%s754 + $0x2e] sm:$0x1]
        %v865 = vld [vmem:[%s754 + $0x30] sm:$0x1]
        %v866 = vld [vmem:[%s754 + $0x32] sm:$0x1]
        %v867 = vld [vmem:[%s754 + $0x34] sm:$0x1]
        %v868 = vld [vmem:[%s754 + $0x36] sm:$0x1]
        %v869 = vld [vmem:[%s754 + $0x38] sm:$0x1]
        %v870 = vld [vmem:[%s754 + $0x3a] sm:$0x1]
        %v871 = vld [vmem:[%s754 + $0x3c] sm:$0x1]
        %v872 = vld [vmem:[%s754 + $0x3e] sm:$0x1]
        %v873 = vunpack.c.l.bf16 %v841
        %v874 = vunpack.c.l.bf16 %v842
        %v875 = vunpack.c.l.bf16 %v843
        %v876 = vunpack.c.l.bf16 %v844
        %v877 = vunpack.c.l.bf16 %v845
        %v878 = vunpack.c.l.bf16 %v846
        %v879 = vunpack.c.l.bf16 %v847
        %v880 = vunpack.c.l.bf16 %v848
        %v881 = vunpack.c.l.bf16 %v849
        %v882 = vunpack.c.l.bf16 %v850
        %v883 = vunpack.c.l.bf16 %v851
        %v884 = vunpack.c.l.bf16 %v852
        %v885 = vunpack.c.l.bf16 %v853
        %v886 = vunpack.c.l.bf16 %v854
        %v887 = vunpack.c.l.bf16 %v855
        %v888 = vunpack.c.l.bf16 %v856
        %v889 = vunpack.c.l.bf16 %v857
        %v890 = vunpack.c.l.bf16 %v858
        %v891 = vunpack.c.l.bf16 %v859
        %v892 = vunpack.c.l.bf16 %v860
        %v893 = vunpack.c.l.bf16 %v861
        %v894 = vunpack.c.l.bf16 %v862
        %v895 = vunpack.c.l.bf16 %v863
        %v896 = vunpack.c.l.bf16 %v864
        %v897 = vunpack.c.l.bf16 %v865
        %v898 = vunpack.c.l.bf16 %v866
        %v899 = vunpack.c.l.bf16 %v867
        %v900 = vunpack.c.l.bf16 %v868
        %v901 = vunpack.c.l.bf16 %v869
        %v902 = vunpack.c.l.bf16 %v870
        %v903 = vunpack.c.l.bf16 %v871
        %v904 = vunpack.c.l.bf16 %v872
        %v905 = vmul.f32 %v873, 0.35355338
        %v906 = vmul.f32 %v874, 0.35355338
        %v907 = vmul.f32 %v875, 0.35355338
        %v908 = vmul.f32 %v876, 0.35355338
        %v909 = vmul.f32 %v877, 0.35355338
        %v910 = vmul.f32 %v878, 0.35355338
        %v911 = vmul.f32 %v879, 0.35355338
        %v912 = vmul.f32 %v880, 0.35355338
        %v913 = vmul.f32 %v881, 0.35355338
        %v914 = vmul.f32 %v882, 0.35355338
        %v915 = vmul.f32 %v883, 0.35355338
        %v916 = vmul.f32 %v884, 0.35355338
        %v917 = vmul.f32 %v885, 0.35355338
        %v918 = vmul.f32 %v886, 0.35355338
        %v919 = vmul.f32 %v887, 0.35355338
        %v920 = vmul.f32 %v888, 0.35355338
        %v921 = vmul.f32 %v889, 0.35355338
        %v922 = vmul.f32 %v890, 0.35355338
        %v923 = vmul.f32 %v891, 0.35355338
        %v924 = vmul.f32 %v892, 0.35355338
        %v925 = vmul.f32 %v893, 0.35355338
        %v926 = vmul.f32 %v894, 0.35355338
        %v927 = vmul.f32 %v895, 0.35355338
        %v928 = vmul.f32 %v896, 0.35355338
        %v929 = vmul.f32 %v897, 0.35355338
        %v930 = vmul.f32 %v898, 0.35355338
        %v931 = vmul.f32 %v899, 0.35355338
        %v932 = vmul.f32 %v900, 0.35355338
        %v933 = vmul.f32 %v901, 0.35355338
        %v934 = vmul.f32 %v902, 0.35355338
        %v935 = vmul.f32 %v903, 0.35355338
        %v936 = vmul.f32 %v904, 0.35355338
        %v937 = vld [vmem:[%s761] sm:$0x1]
        %v938 = vld [vmem:[%s761 + $0x2] sm:$0x1]
        %v939 = vld [vmem:[%s761 + $0x4] sm:$0x1]
        %v940 = vld [vmem:[%s761 + $0x6] sm:$0x1]
        %v941 = vld [vmem:[%s761 + $0x8] sm:$0x1]
        %v942 = vld [vmem:[%s761 + $0xa] sm:$0x1]
        %v943 = vld [vmem:[%s761 + $0xc] sm:$0x1]
        %v944 = vld [vmem:[%s761 + $0xe] sm:$0x1]
        %v945 = vld [vmem:[%s761 + $0x10] sm:$0x1]
        %v946 = vld [vmem:[%s761 + $0x12] sm:$0x1]
        %v947 = vld [vmem:[%s761 + $0x14] sm:$0x1]
        %v948 = vld [vmem:[%s761 + $0x16] sm:$0x1]
        %v949 = vld [vmem:[%s761 + $0x18] sm:$0x1]
        %v950 = vld [vmem:[%s761 + $0x1a] sm:$0x1]
        %v951 = vld [vmem:[%s761 + $0x1c] sm:$0x1]
        %v952 = vld [vmem:[%s761 + $0x1e] sm:$0x1]
        %v953 = vld [vmem:[%s761 + $0x20] sm:$0x1]
        %v954 = vld [vmem:[%s761 + $0x22] sm:$0x1]
        %v955 = vld [vmem:[%s761 + $0x24] sm:$0x1]
        %v956 = vld [vmem:[%s761 + $0x26] sm:$0x1]
        %v957 = vld [vmem:[%s761 + $0x28] sm:$0x1]
        %v958 = vld [vmem:[%s761 + $0x2a] sm:$0x1]
        %v959 = vld [vmem:[%s761 + $0x2c] sm:$0x1]
        %v960 = vld [vmem:[%s761 + $0x2e] sm:$0x1]
        %v961 = vld [vmem:[%s761 + $0x30] sm:$0x1]
        %v962 = vld [vmem:[%s761 + $0x32] sm:$0x1]
        %v963 = vld [vmem:[%s761 + $0x34] sm:$0x1]
        %v964 = vld [vmem:[%s761 + $0x36] sm:$0x1]
        %v965 = vld [vmem:[%s761 + $0x38] sm:$0x1]
        %v966 = vld [vmem:[%s761 + $0x3a] sm:$0x1]
        %v967 = vld [vmem:[%s761 + $0x3c] sm:$0x1]
        %v968 = vld [vmem:[%s761 + $0x3e] sm:$0x1]
        %v969 = vld [vmem:[%s768] sm:$0x1]
        %v970 = vld [vmem:[%s768 + $0x2] sm:$0x1]
        %v971 = vld [vmem:[%s768 + $0x4] sm:$0x1]
        %v972 = vld [vmem:[%s768 + $0x6] sm:$0x1]
        %v973 = vld [vmem:[%s768 + $0x8] sm:$0x1]
        %v974 = vld [vmem:[%s768 + $0xa] sm:$0x1]
        %v975 = vld [vmem:[%s768 + $0xc] sm:$0x1]
        %v976 = vld [vmem:[%s768 + $0xe] sm:$0x1]
        %v977 = vld [vmem:[%s768 + $0x10] sm:$0x1]
        %v978 = vld [vmem:[%s768 + $0x12] sm:$0x1]
        %v979 = vld [vmem:[%s768 + $0x14] sm:$0x1]
        %v980 = vld [vmem:[%s768 + $0x16] sm:$0x1]
        %v981 = vld [vmem:[%s768 + $0x18] sm:$0x1]
        %v982 = vld [vmem:[%s768 + $0x1a] sm:$0x1]
        %v983 = vld [vmem:[%s768 + $0x1c] sm:$0x1]
        %v984 = vld [vmem:[%s768 + $0x1e] sm:$0x1]
        %v985 = vld [vmem:[%s768 + $0x20] sm:$0x1]
        %v986 = vld [vmem:[%s768 + $0x22] sm:$0x1]
        %v987 = vld [vmem:[%s768 + $0x24] sm:$0x1]
        %v988 = vld [vmem:[%s768 + $0x26] sm:$0x1]
        %v989 = vld [vmem:[%s768 + $0x28] sm:$0x1]
        %v990 = vld [vmem:[%s768 + $0x2a] sm:$0x1]
        %v991 = vld [vmem:[%s768 + $0x2c] sm:$0x1]
        %v992 = vld [vmem:[%s768 + $0x2e] sm:$0x1]
        %v993 = vld [vmem:[%s768 + $0x30] sm:$0x1]
        %v994 = vld [vmem:[%s768 + $0x32] sm:$0x1]
        %v995 = vld [vmem:[%s768 + $0x34] sm:$0x1]
        %v996 = vld [vmem:[%s768 + $0x36] sm:$0x1]
        %v997 = vld [vmem:[%s768 + $0x38] sm:$0x1]
        %v998 = vld [vmem:[%s768 + $0x3a] sm:$0x1]
        %v999 = vld [vmem:[%s768 + $0x3c] sm:$0x1]
        %v1000 = vld [vmem:[%s768 + $0x3e] sm:$0x1]
        %v1001 = vpack.c.bf16 %v905, %v905
        %v1002 = vpack.c.bf16 %v906, %v906
        %v1003 = vpack.c.bf16 %v907, %v907
        %v1004 = vpack.c.bf16 %v908, %v908
        %v1005 = vpack.c.bf16 %v909, %v909
        %v1006 = vpack.c.bf16 %v910, %v910
        %v1007 = vpack.c.bf16 %v911, %v911
        %v1008 = vpack.c.bf16 %v912, %v912
        %v1009 = vpack.c.bf16 %v913, %v913
        %v1010 = vpack.c.bf16 %v914, %v914
        %v1011 = vpack.c.bf16 %v915, %v915
        %v1012 = vpack.c.bf16 %v916, %v916
        %v1013 = vpack.c.bf16 %v917, %v917
        %v1014 = vpack.c.bf16 %v918, %v918
        %v1015 = vpack.c.bf16 %v919, %v919
        %v1016 = vpack.c.bf16 %v920, %v920
        %v1017 = vpack.c.bf16 %v921, %v921
        %v1018 = vpack.c.bf16 %v922, %v922
        %v1019 = vpack.c.bf16 %v923, %v923
        %v1020 = vpack.c.bf16 %v924, %v924
        %v1021 = vpack.c.bf16 %v925, %v925
        %v1022 = vpack.c.bf16 %v926, %v926
        %v1023 = vpack.c.bf16 %v927, %v927
        %v1024 = vpack.c.bf16 %v928, %v928
        %v1025 = vpack.c.bf16 %v929, %v929
        %v1026 = vpack.c.bf16 %v930, %v930
        %v1027 = vpack.c.bf16 %v931, %v931
        %v1028 = vpack.c.bf16 %v932, %v932
        %v1029 = vpack.c.bf16 %v933, %v933
        %v1030 = vpack.c.bf16 %v934, %v934
        %v1031 = vpack.c.bf16 %v935, %v935
        %v1032 = vpack.c.bf16 %v936, %v936
        %v1065 = vunpack.c.l.b16 %v1001
        %v1066 = vunpack.c.l.b16 %v1002
        %v1067 = vunpack.c.l.b16 %v1003
        %v1068 = vunpack.c.l.b16 %v1004
        %v1069 = vunpack.c.l.b16 %v1005
        %v1070 = vunpack.c.l.b16 %v1006
        %v1071 = vunpack.c.l.b16 %v1007
        %v1072 = vunpack.c.l.b16 %v1008
        %v1073 = vunpack.c.l.b16 %v1009
        %v1074 = vunpack.c.l.b16 %v1010
        %v1075 = vunpack.c.l.b16 %v1011
        %v1076 = vunpack.c.l.b16 %v1012
        %v1077 = vunpack.c.l.b16 %v1013
        %v1078 = vunpack.c.l.b16 %v1014
        %v1079 = vunpack.c.l.b16 %v1015
        %v1080 = vunpack.c.l.b16 %v1016
        %v1081 = vunpack.c.l.b16 %v1017
        %v1082 = vunpack.c.l.b16 %v1018
        %v1083 = vunpack.c.l.b16 %v1019
        %v1084 = vunpack.c.l.b16 %v1020
        %v1085 = vunpack.c.l.b16 %v1021
        %v1086 = vunpack.c.l.b16 %v1022
        %v1087 = vunpack.c.l.b16 %v1023
        %v1088 = vunpack.c.l.b16 %v1024
        %v1089 = vunpack.c.l.b16 %v1025
        %v1090 = vunpack.c.l.b16 %v1026
        %v1091 = vunpack.c.l.b16 %v1027
        %v1092 = vunpack.c.l.b16 %v1028
        %v1093 = vunpack.c.l.b16 %v1029
        %v1094 = vunpack.c.l.b16 %v1030
        %v1095 = vunpack.c.l.b16 %v1031
        %v1096 = vunpack.c.l.b16 %v1032
        %v1097 = vrot.slane %v1066, 7
        %vm1098 = vcmask 1041409
        %v1099 = vsel %vm1098, %v1097, %v1065
        %v1100 = vrot.slane %v1067, 6
        %vm1101 = vcmask 1042434
        %v1102 = vsel %vm1101, %v1100, %v1099
        %v1103 = vrot.slane %v1068, 5
        %vm1104 = vcmask 1043459
        %v1105 = vsel %vm1104, %v1103, %v1102
        %v1106 = vrot.slane %v1069, 4
        %vm1107 = vcmask 1044484
        %v1108 = vsel %vm1107, %v1106, %v1105
        %v1109 = vrot.slane %v1070, 3
        %vm1110 = vcmask 1045509
        %v1111 = vsel %vm1110, %v1109, %v1108
        %v1112 = vrot.slane %v1071, 2
        %vm1113 = vcmask 1046534
        %v1114 = vsel %vm1113, %v1112, %v1111
        %v1115 = vrot.slane %v1072, 1
        %vm1116 = vcmask 1047559
        %v1117 = vsel %vm1116, %v1115, %v1114
        %v1118 = vrot.slane %v1074, 7
        %v1119 = vsel %vm1098, %v1118, %v1073
        %v1120 = vrot.slane %v1075, 6
        %v1121 = vsel %vm1101, %v1120, %v1119
        %v1122 = vrot.slane %v1076, 5
        %v1123 = vsel %vm1104, %v1122, %v1121
        %v1124 = vrot.slane %v1077, 4
        %v1125 = vsel %vm1107, %v1124, %v1123
        %v1126 = vrot.slane %v1078, 3
        %v1127 = vsel %vm1110, %v1126, %v1125
        %v1128 = vrot.slane %v1079, 2
        %v1129 = vsel %vm1113, %v1128, %v1127
        %v1130 = vrot.slane %v1080, 1
        %v1131 = vsel %vm1116, %v1130, %v1129
        %v1132 = vrot.slane %v1082, 7
        %v1133 = vsel %vm1098, %v1132, %v1081
        %v1134 = vrot.slane %v1083, 6
        %v1135 = vsel %vm1101, %v1134, %v1133
        %v1136 = vrot.slane %v1084, 5
        %v1137 = vsel %vm1104, %v1136, %v1135
        %v1138 = vrot.slane %v1085, 4
        %v1139 = vsel %vm1107, %v1138, %v1137
        %v1140 = vrot.slane %v1086, 3
        %v1141 = vsel %vm1110, %v1140, %v1139
        %v1142 = vrot.slane %v1087, 2
        %v1143 = vsel %vm1113, %v1142, %v1141
        %v1144 = vrot.slane %v1088, 1
        %v1145 = vsel %vm1116, %v1144, %v1143
        %v1146 = vrot.slane %v1090, 7
        %v1147 = vsel %vm1098, %v1146, %v1089
        %v1148 = vrot.slane %v1091, 6
        %v1149 = vsel %vm1101, %v1148, %v1147
        %v1150 = vrot.slane %v1092, 5
        %v1151 = vsel %vm1104, %v1150, %v1149
        %v1152 = vrot.slane %v1093, 4
        %v1153 = vsel %vm1107, %v1152, %v1151
        %v1154 = vrot.slane %v1094, 3
        %v1155 = vsel %vm1110, %v1154, %v1153
        %v1156 = vrot.slane %v1095, 2
        %v1157 = vsel %vm1113, %v1156, %v1155
        %v1158 = vrot.slane %v1096, 1
        %v1159 = vsel %vm1116, %v1158, %v1157
        %v1160 = vpack.c.b16 %v1131, %v1117
        %v1161 = vpack.c.b16 %v1159, %v1145
        %v1195 = vunpack.c.l.s4 1983009808
        %v1196 = vunpack.c.0.s8 %v1195
        %v1197 = vlaneseq
        %v1198 = vshrl.u32 %v1197, 7
        %v1199 = vsub.s32 %v1196, %v1198
        %v1200 = vrot.slane %v937, %v1199
        %v1202 = vunpack.c.l.s4 1983009808
        %v1203 = vunpack.c.0.s8 %v1202
        %v1204 = vlaneseq
        %v1205 = vshrl.u32 %v1204, 7
        %v1206 = vsub.s32 %v1203, %v1205
        %v1207 = vrot.slane %v938, %v1206
        %v1209 = vunpack.c.l.s4 1983009808
        %v1210 = vunpack.c.0.s8 %v1209
        %v1211 = vlaneseq
        %v1212 = vshrl.u32 %v1211, 7
        %v1213 = vsub.s32 %v1210, %v1212
        %v1214 = vrot.slane %v939, %v1213
        %v1216 = vunpack.c.l.s4 1983009808
        %v1217 = vunpack.c.0.s8 %v1216
        %v1218 = vlaneseq
        %v1219 = vshrl.u32 %v1218, 7
        %v1220 = vsub.s32 %v1217, %v1219
        %v1221 = vrot.slane %v940, %v1220
        %v1223 = vunpack.c.l.s4 1983009808
        %v1224 = vunpack.c.0.s8 %v1223
        %v1225 = vlaneseq
        %v1226 = vshrl.u32 %v1225, 7
        %v1227 = vsub.s32 %v1224, %v1226
        %v1228 = vrot.slane %v941, %v1227
        %v1230 = vunpack.c.l.s4 1983009808
        %v1231 = vunpack.c.0.s8 %v1230
        %v1232 = vlaneseq
        %v1233 = vshrl.u32 %v1232, 7
        %v1234 = vsub.s32 %v1231, %v1233
        %v1235 = vrot.slane %v942, %v1234
        %v1237 = vunpack.c.l.s4 1983009808
        %v1238 = vunpack.c.0.s8 %v1237
        %v1239 = vlaneseq
        %v1240 = vshrl.u32 %v1239, 7
        %v1241 = vsub.s32 %v1238, %v1240
        %v1242 = vrot.slane %v943, %v1241
        %v1244 = vunpack.c.l.s4 1983009808
        %v1245 = vunpack.c.0.s8 %v1244
        %v1246 = vlaneseq
        %v1247 = vshrl.u32 %v1246, 7
        %v1248 = vsub.s32 %v1245, %v1247
        %v1249 = vrot.slane %v944, %v1248
        %v1251 = vunpack.c.l.s4 1983009808
        %v1252 = vunpack.c.0.s8 %v1251
        %v1253 = vlaneseq
        %v1254 = vshrl.u32 %v1253, 7
        %v1255 = vsub.s32 %v1252, %v1254
        %v1256 = vrot.slane %v945, %v1255
        %v1258 = vunpack.c.l.s4 1983009808
        %v1259 = vunpack.c.0.s8 %v1258
        %v1260 = vlaneseq
        %v1261 = vshrl.u32 %v1260, 7
        %v1262 = vsub.s32 %v1259, %v1261
        %v1263 = vrot.slane %v946, %v1262
        %v1265 = vunpack.c.l.s4 1983009808
        %v1266 = vunpack.c.0.s8 %v1265
        %v1267 = vlaneseq
        %v1268 = vshrl.u32 %v1267, 7
        %v1269 = vsub.s32 %v1266, %v1268
        %v1270 = vrot.slane %v947, %v1269
        %v1272 = vunpack.c.l.s4 1983009808
        %v1273 = vunpack.c.0.s8 %v1272
        %v1274 = vlaneseq
        %v1275 = vshrl.u32 %v1274, 7
        %v1276 = vsub.s32 %v1273, %v1275
        %v1277 = vrot.slane %v948, %v1276
        %v1279 = vunpack.c.l.s4 1983009808
        %v1280 = vunpack.c.0.s8 %v1279
        %v1281 = vlaneseq
        %v1282 = vshrl.u32 %v1281, 7
        %v1283 = vsub.s32 %v1280, %v1282
        %v1284 = vrot.slane %v949, %v1283
        %v1286 = vunpack.c.l.s4 1983009808
        %v1287 = vunpack.c.0.s8 %v1286
        %v1288 = vlaneseq
        %v1289 = vshrl.u32 %v1288, 7
        %v1290 = vsub.s32 %v1287, %v1289
        %v1291 = vrot.slane %v950, %v1290
        %v1293 = vunpack.c.l.s4 1983009808
        %v1294 = vunpack.c.0.s8 %v1293
        %v1295 = vlaneseq
        %v1296 = vshrl.u32 %v1295, 7
        %v1297 = vsub.s32 %v1294, %v1296
        %v1298 = vrot.slane %v951, %v1297
        %v1300 = vunpack.c.l.s4 1983009808
        %v1301 = vunpack.c.0.s8 %v1300
        %v1302 = vlaneseq
        %v1303 = vshrl.u32 %v1302, 7
        %v1304 = vsub.s32 %v1301, %v1303
        %v1305 = vrot.slane %v952, %v1304
        %v1307 = vunpack.c.l.s4 1983009808
        %v1308 = vunpack.c.0.s8 %v1307
        %v1309 = vlaneseq
        %v1310 = vshrl.u32 %v1309, 7
        %v1311 = vsub.s32 %v1308, %v1310
        %v1312 = vrot.slane %v953, %v1311
        %v1314 = vunpack.c.l.s4 1983009808
        %v1315 = vunpack.c.0.s8 %v1314
        %v1316 = vlaneseq
        %v1317 = vshrl.u32 %v1316, 7
        %v1318 = vsub.s32 %v1315, %v1317
        %v1319 = vrot.slane %v954, %v1318
        %v1321 = vunpack.c.l.s4 1983009808
        %v1322 = vunpack.c.0.s8 %v1321
        %v1323 = vlaneseq
        %v1324 = vshrl.u32 %v1323, 7
        %v1325 = vsub.s32 %v1322, %v1324
        %v1326 = vrot.slane %v955, %v1325
        %v1328 = vunpack.c.l.s4 1983009808
        %v1329 = vunpack.c.0.s8 %v1328
        %v1330 = vlaneseq
        %v1331 = vshrl.u32 %v1330, 7
        %v1332 = vsub.s32 %v1329, %v1331
        %v1333 = vrot.slane %v956, %v1332
        %v1335 = vunpack.c.l.s4 1983009808
        %v1336 = vunpack.c.0.s8 %v1335
        %v1337 = vlaneseq
        %v1338 = vshrl.u32 %v1337, 7
        %v1339 = vsub.s32 %v1336, %v1338
        %v1340 = vrot.slane %v957, %v1339
        %v1342 = vunpack.c.l.s4 1983009808
        %v1343 = vunpack.c.0.s8 %v1342
        %v1344 = vlaneseq
        %v1345 = vshrl.u32 %v1344, 7
        %v1346 = vsub.s32 %v1343, %v1345
        %v1347 = vrot.slane %v958, %v1346
        %v1349 = vunpack.c.l.s4 1983009808
        %v1350 = vunpack.c.0.s8 %v1349
        %v1351 = vlaneseq
        %v1352 = vshrl.u32 %v1351, 7
        %v1353 = vsub.s32 %v1350, %v1352
        %v1354 = vrot.slane %v959, %v1353
        %v1356 = vunpack.c.l.s4 1983009808
        %v1357 = vunpack.c.0.s8 %v1356
        %v1358 = vlaneseq
        %v1359 = vshrl.u32 %v1358, 7
        %v1360 = vsub.s32 %v1357, %v1359
        %v1361 = vrot.slane %v960, %v1360
        %v1363 = vunpack.c.l.s4 1983009808
        %v1364 = vunpack.c.0.s8 %v1363
        %v1365 = vlaneseq
        %v1366 = vshrl.u32 %v1365, 7
        %v1367 = vsub.s32 %v1364, %v1366
        %v1368 = vrot.slane %v961, %v1367
        %v1370 = vunpack.c.l.s4 1983009808
        %v1371 = vunpack.c.0.s8 %v1370
        %v1372 = vlaneseq
        %v1373 = vshrl.u32 %v1372, 7
        %v1374 = vsub.s32 %v1371, %v1373
        %v1375 = vrot.slane %v962, %v1374
        %v1377 = vunpack.c.l.s4 1983009808
        %v1378 = vunpack.c.0.s8 %v1377
        %v1379 = vlaneseq
        %v1380 = vshrl.u32 %v1379, 7
        %v1381 = vsub.s32 %v1378, %v1380
        %v1382 = vrot.slane %v963, %v1381
        %v1384 = vunpack.c.l.s4 1983009808
        %v1385 = vunpack.c.0.s8 %v1384
        %v1386 = vlaneseq
        %v1387 = vshrl.u32 %v1386, 7
        %v1388 = vsub.s32 %v1385, %v1387
        %v1389 = vrot.slane %v964, %v1388
        %v1391 = vunpack.c.l.s4 1983009808
        %v1392 = vunpack.c.0.s8 %v1391
        %v1393 = vlaneseq
        %v1394 = vshrl.u32 %v1393, 7
        %v1395 = vsub.s32 %v1392, %v1394
        %v1396 = vrot.slane %v965, %v1395
        %v1398 = vunpack.c.l.s4 1983009808
        %v1399 = vunpack.c.0.s8 %v1398
        %v1400 = vlaneseq
        %v1401 = vshrl.u32 %v1400, 7
        %v1402 = vsub.s32 %v1399, %v1401
        %v1403 = vrot.slane %v966, %v1402
        %v1405 = vunpack.c.l.s4 1983009808
        %v1406 = vunpack.c.0.s8 %v1405
        %v1407 = vlaneseq
        %v1408 = vshrl.u32 %v1407, 7
        %v1409 = vsub.s32 %v1406, %v1408
        %v1410 = vrot.slane %v967, %v1409
        %v1412 = vunpack.c.l.s4 1983009808
        %v1413 = vunpack.c.0.s8 %v1412
        %v1414 = vlaneseq
        %v1415 = vshrl.u32 %v1414, 7
        %v1416 = vsub.s32 %v1413, %v1415
        %v1417 = vrot.slane %v968, %v1416
        %v1418 = vunpack.c.l.b16 %v1200
        %v1419 = vunpack.c.l.b16 %v1207
        %v1420 = vunpack.c.l.b16 %v1214
        %v1421 = vunpack.c.l.b16 %v1221
        %v1422 = vunpack.c.l.b16 %v1228
        %v1423 = vunpack.c.l.b16 %v1235
        %v1424 = vunpack.c.l.b16 %v1242
        %v1425 = vunpack.c.l.b16 %v1249
        %v1426 = vunpack.c.l.b16 %v1256
        %v1427 = vunpack.c.l.b16 %v1263
        %v1428 = vunpack.c.l.b16 %v1270
        %v1429 = vunpack.c.l.b16 %v1277
        %v1430 = vunpack.c.l.b16 %v1284
        %v1431 = vunpack.c.l.b16 %v1291
        %v1432 = vunpack.c.l.b16 %v1298
        %v1433 = vunpack.c.l.b16 %v1305
        %v1434 = vunpack.c.l.b16 %v1312
        %v1435 = vunpack.c.l.b16 %v1319
        %v1436 = vunpack.c.l.b16 %v1326
        %v1437 = vunpack.c.l.b16 %v1333
        %v1438 = vunpack.c.l.b16 %v1340
        %v1439 = vunpack.c.l.b16 %v1347
        %v1440 = vunpack.c.l.b16 %v1354
        %v1441 = vunpack.c.l.b16 %v1361
        %v1442 = vunpack.c.l.b16 %v1368
        %v1443 = vunpack.c.l.b16 %v1375
        %v1444 = vunpack.c.l.b16 %v1382
        %v1445 = vunpack.c.l.b16 %v1389
        %v1446 = vunpack.c.l.b16 %v1396
        %v1447 = vunpack.c.l.b16 %v1403
        %v1448 = vunpack.c.l.b16 %v1410
        %v1449 = vunpack.c.l.b16 %v1417
        %v1450 = vrot.slane %v1419, 7
        %v1451 = vsel %vm1098, %v1450, %v1418
        %v1452 = vrot.slane %v1420, 6
        %v1453 = vsel %vm1101, %v1452, %v1451
        %v1454 = vrot.slane %v1421, 5
        %v1455 = vsel %vm1104, %v1454, %v1453
        %v1456 = vrot.slane %v1422, 4
        %v1457 = vsel %vm1107, %v1456, %v1455
        %v1458 = vrot.slane %v1423, 3
        %v1459 = vsel %vm1110, %v1458, %v1457
        %v1460 = vrot.slane %v1424, 2
        %v1461 = vsel %vm1113, %v1460, %v1459
        %v1462 = vrot.slane %v1425, 1
        %v1463 = vsel %vm1116, %v1462, %v1461
        %v1464 = vrot.slane %v1427, 7
        %v1465 = vsel %vm1098, %v1464, %v1426
        %v1466 = vrot.slane %v1428, 6
        %v1467 = vsel %vm1101, %v1466, %v1465
        %v1468 = vrot.slane %v1429, 5
        %v1469 = vsel %vm1104, %v1468, %v1467
        %v1470 = vrot.slane %v1430, 4
        %v1471 = vsel %vm1107, %v1470, %v1469
        %v1472 = vrot.slane %v1431, 3
        %v1473 = vsel %vm1110, %v1472, %v1471
        %v1474 = vrot.slane %v1432, 2
        %v1475 = vsel %vm1113, %v1474, %v1473
        %v1476 = vrot.slane %v1433, 1
        %v1477 = vsel %vm1116, %v1476, %v1475
        %v1478 = vrot.slane %v1435, 7
        %v1479 = vsel %vm1098, %v1478, %v1434
        %v1480 = vrot.slane %v1436, 6
        %v1481 = vsel %vm1101, %v1480, %v1479
        %v1482 = vrot.slane %v1437, 5
        %v1483 = vsel %vm1104, %v1482, %v1481
        %v1484 = vrot.slane %v1438, 4
        %v1485 = vsel %vm1107, %v1484, %v1483
        %v1486 = vrot.slane %v1439, 3
        %v1487 = vsel %vm1110, %v1486, %v1485
        %v1488 = vrot.slane %v1440, 2
        %v1489 = vsel %vm1113, %v1488, %v1487
        %v1490 = vrot.slane %v1441, 1
        %v1491 = vsel %vm1116, %v1490, %v1489
        %v1492 = vrot.slane %v1443, 7
        %v1493 = vsel %vm1098, %v1492, %v1442
        %v1494 = vrot.slane %v1444, 6
        %v1495 = vsel %vm1101, %v1494, %v1493
        %v1496 = vrot.slane %v1445, 5
        %v1497 = vsel %vm1104, %v1496, %v1495
        %v1498 = vrot.slane %v1446, 4
        %v1499 = vsel %vm1107, %v1498, %v1497
        %v1500 = vrot.slane %v1447, 3
        %v1501 = vsel %vm1110, %v1500, %v1499
        %v1502 = vrot.slane %v1448, 2
        %v1503 = vsel %vm1113, %v1502, %v1501
        %v1504 = vrot.slane %v1449, 1
        %v1505 = vsel %vm1116, %v1504, %v1503
        %v1506 = vpack.c.b16 %v1477, %v1463
        %v1507 = vpack.c.b16 %v1505, %v1491
        %vm1508 = vcmask 64512
        %v1510 = vsel %vm1508, %v1160, 0
        %v1513 = vsel %vm1508, %v1161, 0
        %v1516 = vsel %vm1508, %v1506, 0
        %v1519 = vsel %vm1508, %v1507, 0
        %1521 = vmatprep.subr.bf16.mxu0 0
        %1522 = vmatpush1.bf16.xpose.msra.mxu0 0
        %1523 = vmatprep.subr.bf16.mxu0 0
        %1524 = vmatpush1.bf16.xpose.msra.mxu0 0
        %1525 = vmatprep.subr.bf16.mxu0 0
        %1526 = vmatpush1.bf16.xpose.msra.mxu0 0
        %1527 = vmatprep.subr.bf16.mxu0 0
        %1528 = vmatpush1.bf16.xpose.msra.mxu0 0
        %1529 = vmatprep.subr.bf16.mxu0 0
        %1530 = vmatpush1.bf16.xpose.msra.mxu0 0
        %1531 = vmatprep.subr.bf16.mxu0 0
        %1532 = vmatpush1.bf16.xpose.msra.mxu0 0
        %1533 = vmatprep.subr.bf16.mxu0 0
        %1534 = vmatpush1.bf16.xpose.msra.mxu0 %v1519
        %1535 = vmatprep.subr.bf16.mxu0 0
        %1536 = vmatpush1.bf16.xpose.msra.mxu0 %v1516
        %1537 = vmatprep.subr.bf16.mxu0 0
        %1538 = vmatpush2.bf16.xpose.msra.mxu0 0
        %1539 = vmatprep.subr.bf16.mxu0 0
        %1540 = vmatpush2.bf16.xpose.msra.mxu0 0
        %1541 = vmatprep.subr.bf16.mxu0 0
        %1542 = vmatpush2.bf16.xpose.msra.mxu0 0
        %1543 = vmatprep.subr.bf16.mxu0 0
        %1544 = vmatpush2.bf16.xpose.msra.mxu0 0
        %1545 = vmatprep.subr.bf16.mxu0 0
        %1546 = vmatpush2.bf16.xpose.msra.mxu0 0
        %1547 = vmatprep.subr.bf16.mxu0 0
        %1548 = vmatpush2.bf16.xpose.msra.mxu0 0
        %1549 = vmatprep.subr.bf16.mxu0 0
        %1550 = vmatpush2.bf16.xpose.msra.mxu0 0
        %1551 = vmatprep.subr.bf16.mxu0 0
        %1552 = vmatpush2.bf16.xpose.msra.mxu0 0
        %1553 = vmatprep.mubr.bf16.mxu0 0
        %1554 = vmatmul.mubr.bf16.gmra.mxu0 %v1510
        %v1555 = vpop.f32.mrf.mxu0
        %v1556 = vadd.f32 0.0, %v1555
        %v1557 = vpop.f32.mrf.mxu0
        %v1558 = vpop.f32.mrf.mxu0
        %v1559 = vadd.f32 0.0, %v1558
        %v1560 = vpop.f32.mrf.mxu0
        %1561 = vmatprep.mubr.bf16.mxu0 0
        %1562 = vmatmul.mubr.bf16.gmra.mxu0 %v1513
        %v1563 = vpop.f32.mrf.mxu0
        %v1564 = vadd.f32 0.0, %v1563
        %v1565 = vpop.f32.mrf.mxu0
        %v1566 = vpop.f32.mrf.mxu0
        %v1567 = vadd.f32 0.0, %v1566
        %v1568 = vpop.f32.mrf.mxu0
        %1569 = vdwg.mxu0
        %v1570 = vsel %vm821, 1, 0
        %vm1571 = vcmp.eq.s32.totalorder %v1570, 1
        %v1572 = vsel %vm1571, %v1556, -1e+30
        %v1573 = vsel %vm1571, %v1559, -1e+30
        %v1574 = vsel %vm1571, %v1564, -1e+30
        %v1575 = vsel %vm1571, %v1567, -1e+30
        %vm1576 = vcmask 261120
        %v1577 = vsel %vm1576, %v1572, -inf
        %1578 = vmax.xlane.f32.xlu0 %v1577
        %v1579 = vpop.xlane.xlu0 %1578
        %v1580 = vsel %vm1576, %v1573, -inf
        %1581 = vmax.xlane.f32.xlu0 %v1580
        %v1582 = vpop.xlane.xlu0 %1581
        %v1583 = vsel %vm1576, %v1574, -inf
        %1584 = vmax.xlane.f32.xlu0 %v1583
        %v1585 = vpop.xlane.xlu0 %1584
        %v1586 = vsel %vm1576, %v1575, -inf
        %1587 = vmax.xlane.f32.xlu0 %v1586
        %v1588 = vpop.xlane.xlu0 %1587
        %v1589 = vsub.f32 %v1572, %v1579
        %v1590 = vsub.f32 %v1573, %v1582
        %v1591 = vsub.f32 %v1574, %v1585
        %v1592 = vsub.f32 %v1575, %v1588
        %v1593 = vmul.f32 %v1589, 1.442695
        %v1594 = vpow.pop %v1593
        %v1595 = vmul.f32 %v1590, 1.442695
        %v1596 = vpow.pop %v1595
        %v1597 = vmul.f32 %v1591, 1.442695
        %v1598 = vpow.pop %v1597
        %v1599 = vmul.f32 %v1592, 1.442695
        %v1600 = vpow.pop %v1599
        %v1601 = vsel %vm1576, %v1594, 0.0
        %1602 = vadd.xlane.f32.xlu0 %v1601
        %v1603 = vpop.xlane.xlu0 %1602
        %v1604 = vsel %vm1576, %v1596, 0.0
        %1605 = vadd.xlane.f32.xlu0 %v1604
        %v1606 = vpop.xlane.xlu0 %1605
        %v1607 = vsel %vm1576, %v1598, 0.0
        %1608 = vadd.xlane.f32.xlu0 %v1607
        %v1609 = vpop.xlane.xlu0 %1608
        %v1610 = vsel %vm1576, %v1600, 0.0
        %1611 = vadd.xlane.f32.xlu0 %v1610
        %v1612 = vpop.xlane.xlu0 %1611
        %v1613 = vrcp.pop %v1603
        %v1614 = vrcp.pop %v1606
        %v1615 = vrcp.pop %v1609
        %v1616 = vrcp.pop %v1612
        %v1617 = vmul.f32 %v1594, %v1613
        %v1618 = vmul.f32 %v1596, %v1614
        %v1619 = vmul.f32 %v1598, %v1615
        %v1620 = vmul.f32 %v1600, %v1616
        %v1621 = vpack.c.bf16 %v1618, %v1617
        %v1622 = vpack.c.bf16 %v1620, %v1619
        %v1656 = vunpack.c.l.s4 1983009808
        %v1657 = vunpack.c.0.s8 %v1656
        %v1658 = vlaneseq
        %v1659 = vshrl.u32 %v1658, 7
        %v1660 = vsub.s32 %v1657, %v1659
        %v1661 = vrot.slane %v969, %v1660
        %v1663 = vunpack.c.l.s4 1983009808
        %v1664 = vunpack.c.0.s8 %v1663
        %v1665 = vlaneseq
        %v1666 = vshrl.u32 %v1665, 7
        %v1667 = vsub.s32 %v1664, %v1666
        %v1668 = vrot.slane %v970, %v1667
        %v1670 = vunpack.c.l.s4 1983009808
        %v1671 = vunpack.c.0.s8 %v1670
        %v1672 = vlaneseq
        %v1673 = vshrl.u32 %v1672, 7
        %v1674 = vsub.s32 %v1671, %v1673
        %v1675 = vrot.slane %v971, %v1674
        %v1677 = vunpack.c.l.s4 1983009808
        %v1678 = vunpack.c.0.s8 %v1677
        %v1679 = vlaneseq
        %v1680 = vshrl.u32 %v1679, 7
        %v1681 = vsub.s32 %v1678, %v1680
        %v1682 = vrot.slane %v972, %v1681
        %v1684 = vunpack.c.l.s4 1983009808
        %v1685 = vunpack.c.0.s8 %v1684
        %v1686 = vlaneseq
        %v1687 = vshrl.u32 %v1686, 7
        %v1688 = vsub.s32 %v1685, %v1687
        %v1689 = vrot.slane %v973, %v1688
        %v1691 = vunpack.c.l.s4 1983009808
        %v1692 = vunpack.c.0.s8 %v1691
        %v1693 = vlaneseq
        %v1694 = vshrl.u32 %v1693, 7
        %v1695 = vsub.s32 %v1692, %v1694
        %v1696 = vrot.slane %v974, %v1695
        %v1698 = vunpack.c.l.s4 1983009808
        %v1699 = vunpack.c.0.s8 %v1698
        %v1700 = vlaneseq
        %v1701 = vshrl.u32 %v1700, 7
        %v1702 = vsub.s32 %v1699, %v1701
        %v1703 = vrot.slane %v975, %v1702
        %v1705 = vunpack.c.l.s4 1983009808
        %v1706 = vunpack.c.0.s8 %v1705
        %v1707 = vlaneseq
        %v1708 = vshrl.u32 %v1707, 7
        %v1709 = vsub.s32 %v1706, %v1708
        %v1710 = vrot.slane %v976, %v1709
        %v1712 = vunpack.c.l.s4 1983009808
        %v1713 = vunpack.c.0.s8 %v1712
        %v1714 = vlaneseq
        %v1715 = vshrl.u32 %v1714, 7
        %v1716 = vsub.s32 %v1713, %v1715
        %v1717 = vrot.slane %v977, %v1716
        %v1719 = vunpack.c.l.s4 1983009808
        %v1720 = vunpack.c.0.s8 %v1719
        %v1721 = vlaneseq
        %v1722 = vshrl.u32 %v1721, 7
        %v1723 = vsub.s32 %v1720, %v1722
        %v1724 = vrot.slane %v978, %v1723
        %v1726 = vunpack.c.l.s4 1983009808
        %v1727 = vunpack.c.0.s8 %v1726
        %v1728 = vlaneseq
        %v1729 = vshrl.u32 %v1728, 7
        %v1730 = vsub.s32 %v1727, %v1729
        %v1731 = vrot.slane %v979, %v1730
        %v1733 = vunpack.c.l.s4 1983009808
        %v1734 = vunpack.c.0.s8 %v1733
        %v1735 = vlaneseq
        %v1736 = vshrl.u32 %v1735, 7
        %v1737 = vsub.s32 %v1734, %v1736
        %v1738 = vrot.slane %v980, %v1737
        %v1740 = vunpack.c.l.s4 1983009808
        %v1741 = vunpack.c.0.s8 %v1740
        %v1742 = vlaneseq
        %v1743 = vshrl.u32 %v1742, 7
        %v1744 = vsub.s32 %v1741, %v1743
        %v1745 = vrot.slane %v981, %v1744
        %v1747 = vunpack.c.l.s4 1983009808
        %v1748 = vunpack.c.0.s8 %v1747
        %v1749 = vlaneseq
        %v1750 = vshrl.u32 %v1749, 7
        %v1751 = vsub.s32 %v1748, %v1750
        %v1752 = vrot.slane %v982, %v1751
        %v1754 = vunpack.c.l.s4 1983009808
        %v1755 = vunpack.c.0.s8 %v1754
        %v1756 = vlaneseq
        %v1757 = vshrl.u32 %v1756, 7
        %v1758 = vsub.s32 %v1755, %v1757
        %v1759 = vrot.slane %v983, %v1758
        %v1761 = vunpack.c.l.s4 1983009808
        %v1762 = vunpack.c.0.s8 %v1761
        %v1763 = vlaneseq
        %v1764 = vshrl.u32 %v1763, 7
        %v1765 = vsub.s32 %v1762, %v1764
        %v1766 = vrot.slane %v984, %v1765
        %v1768 = vunpack.c.l.s4 1983009808
        %v1769 = vunpack.c.0.s8 %v1768
        %v1770 = vlaneseq
        %v1771 = vshrl.u32 %v1770, 7
        %v1772 = vsub.s32 %v1769, %v1771
        %v1773 = vrot.slane %v985, %v1772
        %v1775 = vunpack.c.l.s4 1983009808
        %v1776 = vunpack.c.0.s8 %v1775
        %v1777 = vlaneseq
        %v1778 = vshrl.u32 %v1777, 7
        %v1779 = vsub.s32 %v1776, %v1778
        %v1780 = vrot.slane %v986, %v1779
        %v1782 = vunpack.c.l.s4 1983009808
        %v1783 = vunpack.c.0.s8 %v1782
        %v1784 = vlaneseq
        %v1785 = vshrl.u32 %v1784, 7
        %v1786 = vsub.s32 %v1783, %v1785
        %v1787 = vrot.slane %v987, %v1786
        %v1789 = vunpack.c.l.s4 1983009808
        %v1790 = vunpack.c.0.s8 %v1789
        %v1791 = vlaneseq
        %v1792 = vshrl.u32 %v1791, 7
        %v1793 = vsub.s32 %v1790, %v1792
        %v1794 = vrot.slane %v988, %v1793
        %v1796 = vunpack.c.l.s4 1983009808
        %v1797 = vunpack.c.0.s8 %v1796
        %v1798 = vlaneseq
        %v1799 = vshrl.u32 %v1798, 7
        %v1800 = vsub.s32 %v1797, %v1799
        %v1801 = vrot.slane %v989, %v1800
        %v1803 = vunpack.c.l.s4 1983009808
        %v1804 = vunpack.c.0.s8 %v1803
        %v1805 = vlaneseq
        %v1806 = vshrl.u32 %v1805, 7
        %v1807 = vsub.s32 %v1804, %v1806
        %v1808 = vrot.slane %v990, %v1807
        %v1810 = vunpack.c.l.s4 1983009808
        %v1811 = vunpack.c.0.s8 %v1810
        %v1812 = vlaneseq
        %v1813 = vshrl.u32 %v1812, 7
        %v1814 = vsub.s32 %v1811, %v1813
        %v1815 = vrot.slane %v991, %v1814
        %v1817 = vunpack.c.l.s4 1983009808
        %v1818 = vunpack.c.0.s8 %v1817
        %v1819 = vlaneseq
        %v1820 = vshrl.u32 %v1819, 7
        %v1821 = vsub.s32 %v1818, %v1820
        %v1822 = vrot.slane %v992, %v1821
        %v1824 = vunpack.c.l.s4 1983009808
        %v1825 = vunpack.c.0.s8 %v1824
        %v1826 = vlaneseq
        %v1827 = vshrl.u32 %v1826, 7
        %v1828 = vsub.s32 %v1825, %v1827
        %v1829 = vrot.slane %v993, %v1828
        %v1831 = vunpack.c.l.s4 1983009808
        %v1832 = vunpack.c.0.s8 %v1831
        %v1833 = vlaneseq
        %v1834 = vshrl.u32 %v1833, 7
        %v1835 = vsub.s32 %v1832, %v1834
        %v1836 = vrot.slane %v994, %v1835
        %v1838 = vunpack.c.l.s4 1983009808
        %v1839 = vunpack.c.0.s8 %v1838
        %v1840 = vlaneseq
        %v1841 = vshrl.u32 %v1840, 7
        %v1842 = vsub.s32 %v1839, %v1841
        %v1843 = vrot.slane %v995, %v1842
        %v1845 = vunpack.c.l.s4 1983009808
        %v1846 = vunpack.c.0.s8 %v1845
        %v1847 = vlaneseq
        %v1848 = vshrl.u32 %v1847, 7
        %v1849 = vsub.s32 %v1846, %v1848
        %v1850 = vrot.slane %v996, %v1849
        %v1852 = vunpack.c.l.s4 1983009808
        %v1853 = vunpack.c.0.s8 %v1852
        %v1854 = vlaneseq
        %v1855 = vshrl.u32 %v1854, 7
        %v1856 = vsub.s32 %v1853, %v1855
        %v1857 = vrot.slane %v997, %v1856
        %v1859 = vunpack.c.l.s4 1983009808
        %v1860 = vunpack.c.0.s8 %v1859
        %v1861 = vlaneseq
        %v1862 = vshrl.u32 %v1861, 7
        %v1863 = vsub.s32 %v1860, %v1862
        %v1864 = vrot.slane %v998, %v1863
        %v1866 = vunpack.c.l.s4 1983009808
        %v1867 = vunpack.c.0.s8 %v1866
        %v1868 = vlaneseq
        %v1869 = vshrl.u32 %v1868, 7
        %v1870 = vsub.s32 %v1867, %v1869
        %v1871 = vrot.slane %v999, %v1870
        %v1873 = vunpack.c.l.s4 1983009808
        %v1874 = vunpack.c.0.s8 %v1873
        %v1875 = vlaneseq
        %v1876 = vshrl.u32 %v1875, 7
        %v1877 = vsub.s32 %v1874, %v1876
        %v1878 = vrot.slane %v1000, %v1877
        %v1879 = vunpack.c.l.b16 %v1661
        %v1880 = vunpack.c.l.b16 %v1668
        %v1881 = vunpack.c.l.b16 %v1675
        %v1882 = vunpack.c.l.b16 %v1682
        %v1883 = vunpack.c.l.b16 %v1689
        %v1884 = vunpack.c.l.b16 %v1696
        %v1885 = vunpack.c.l.b16 %v1703
        %v1886 = vunpack.c.l.b16 %v1710
        %v1887 = vunpack.c.l.b16 %v1717
        %v1888 = vunpack.c.l.b16 %v1724
        %v1889 = vunpack.c.l.b16 %v1731
        %v1890 = vunpack.c.l.b16 %v1738
        %v1891 = vunpack.c.l.b16 %v1745
        %v1892 = vunpack.c.l.b16 %v1752
        %v1893 = vunpack.c.l.b16 %v1759
        %v1894 = vunpack.c.l.b16 %v1766
        %v1895 = vunpack.c.l.b16 %v1773
        %v1896 = vunpack.c.l.b16 %v1780
        %v1897 = vunpack.c.l.b16 %v1787
        %v1898 = vunpack.c.l.b16 %v1794
        %v1899 = vunpack.c.l.b16 %v1801
        %v1900 = vunpack.c.l.b16 %v1808
        %v1901 = vunpack.c.l.b16 %v1815
        %v1902 = vunpack.c.l.b16 %v1822
        %v1903 = vunpack.c.l.b16 %v1829
        %v1904 = vunpack.c.l.b16 %v1836
        %v1905 = vunpack.c.l.b16 %v1843
        %v1906 = vunpack.c.l.b16 %v1850
        %v1907 = vunpack.c.l.b16 %v1857
        %v1908 = vunpack.c.l.b16 %v1864
        %v1909 = vunpack.c.l.b16 %v1871
        %v1910 = vunpack.c.l.b16 %v1878
        %v1911 = vrot.slane %v1880, 7
        %v1912 = vsel %vm1098, %v1911, %v1879
        %v1913 = vrot.slane %v1881, 6
        %v1914 = vsel %vm1101, %v1913, %v1912
        %v1915 = vrot.slane %v1882, 5
        %v1916 = vsel %vm1104, %v1915, %v1914
        %v1917 = vrot.slane %v1883, 4
        %v1918 = vsel %vm1107, %v1917, %v1916
        %v1919 = vrot.slane %v1884, 3
        %v1920 = vsel %vm1110, %v1919, %v1918
        %v1921 = vrot.slane %v1885, 2
        %v1922 = vsel %vm1113, %v1921, %v1920
        %v1923 = vrot.slane %v1886, 1
        %v1924 = vsel %vm1116, %v1923, %v1922
        %v1925 = vrot.slane %v1888, 7
        %v1926 = vsel %vm1098, %v1925, %v1887
        %v1927 = vrot.slane %v1889, 6
        %v1928 = vsel %vm1101, %v1927, %v1926
        %v1929 = vrot.slane %v1890, 5
        %v1930 = vsel %vm1104, %v1929, %v1928
        %v1931 = vrot.slane %v1891, 4
        %v1932 = vsel %vm1107, %v1931, %v1930
        %v1933 = vrot.slane %v1892, 3
        %v1934 = vsel %vm1110, %v1933, %v1932
        %v1935 = vrot.slane %v1893, 2
        %v1936 = vsel %vm1113, %v1935, %v1934
        %v1937 = vrot.slane %v1894, 1
        %v1938 = vsel %vm1116, %v1937, %v1936
        %v1939 = vrot.slane %v1896, 7
        %v1940 = vsel %vm1098, %v1939, %v1895
        %v1941 = vrot.slane %v1897, 6
        %v1942 = vsel %vm1101, %v1941, %v1940
        %v1943 = vrot.slane %v1898, 5
        %v1944 = vsel %vm1104, %v1943, %v1942
        %v1945 = vrot.slane %v1899, 4
        %v1946 = vsel %vm1107, %v1945, %v1944
        %v1947 = vrot.slane %v1900, 3
        %v1948 = vsel %vm1110, %v1947, %v1946
        %v1949 = vrot.slane %v1901, 2
        %v1950 = vsel %vm1113, %v1949, %v1948
        %v1951 = vrot.slane %v1902, 1
        %v1952 = vsel %vm1116, %v1951, %v1950
        %v1953 = vrot.slane %v1904, 7
        %v1954 = vsel %vm1098, %v1953, %v1903
        %v1955 = vrot.slane %v1905, 6
        %v1956 = vsel %vm1101, %v1955, %v1954
        %v1957 = vrot.slane %v1906, 5
        %v1958 = vsel %vm1104, %v1957, %v1956
        %v1959 = vrot.slane %v1907, 4
        %v1960 = vsel %vm1107, %v1959, %v1958
        %v1961 = vrot.slane %v1908, 3
        %v1962 = vsel %vm1110, %v1961, %v1960
        %v1963 = vrot.slane %v1909, 2
        %v1964 = vsel %vm1113, %v1963, %v1962
        %v1965 = vrot.slane %v1910, 1
        %v1966 = vsel %vm1116, %v1965, %v1964
        %v1967 = vpack.c.b16 %v1938, %v1924
        %v1968 = vpack.c.b16 %v1966, %v1952
        %v1972 = vsel %vm1576, %v1621, 0
        %v1975 = vsel %vm1576, %v1622, 0
        %1977 = vmatprep.subr.bf16.mxu0 0
        %1978 = vmatpush1.bf16.msra.mxu0 0
        %1979 = vmatprep.subr.bf16.mxu0 0
        %1980 = vmatpush1.bf16.msra.mxu0 0
        %1981 = vmatprep.subr.bf16.mxu0 0
        %1982 = vmatpush1.bf16.msra.mxu0 0
        %1983 = vmatprep.subr.bf16.mxu0 0
        %1984 = vmatpush1.bf16.msra.mxu0 0
        %1985 = vmatprep.subr.bf16.mxu0 0
        %1986 = vmatpush1.bf16.msra.mxu0 0
        %1987 = vmatprep.subr.bf16.mxu0 0
        %1988 = vmatpush1.bf16.msra.mxu0 0
        %1989 = vmatprep.subr.bf16.mxu0 0
        %1990 = vmatpush1.bf16.msra.mxu0 %v1968
        %1991 = vmatprep.subr.bf16.mxu0 0
        %1992 = vmatpush1.bf16.msra.mxu0 %v1967
        %1993 = vmatprep.subr.bf16.mxu0 0
        %1994 = vmatpush2.bf16.msra.mxu0 0
        %1995 = vmatprep.subr.bf16.mxu0 0
        %1996 = vmatpush2.bf16.msra.mxu0 0
        %1997 = vmatprep.subr.bf16.mxu0 0
        %1998 = vmatpush2.bf16.msra.mxu0 0
        %1999 = vmatprep.subr.bf16.mxu0 0
        %2000 = vmatpush2.bf16.msra.mxu0 0
        %2001 = vmatprep.subr.bf16.mxu0 0
        %2002 = vmatpush2.bf16.msra.mxu0 0
        %2003 = vmatprep.subr.bf16.mxu0 0
        %2004 = vmatpush2.bf16.msra.mxu0 0
        %2005 = vmatprep.subr.bf16.mxu0 0
        %2006 = vmatpush2.bf16.msra.mxu0 0
        %2007 = vmatprep.subr.bf16.mxu0 0
        %2008 = vmatpush2.bf16.msra.mxu0 0
        %2009 = vmatprep.mubr.bf16.mxu0 0
        %2010 = vmatmul.mubr.bf16.gmra.mxu0 %v1972
        %v2011 = vpop.f32.mrf.mxu0
        %v2012 = vadd.f32 0.0, %v2011
        %v2013 = vpop.f32.mrf.mxu0
        %v2014 = vpop.f32.mrf.mxu0
        %v2015 = vadd.f32 0.0, %v2014
        %v2016 = vpop.f32.mrf.mxu0
        %2017 = vmatprep.mubr.bf16.mxu0 0
        %2018 = vmatmul.mubr.bf16.gmra.mxu0 %v1975
        %v2019 = vpop.f32.mrf.mxu0
        %v2020 = vadd.f32 0.0, %v2019
        %v2021 = vpop.f32.mrf.mxu0
        %v2022 = vpop.f32.mrf.mxu0
        %v2023 = vadd.f32 0.0, %v2022
        %v2024 = vpop.f32.mrf.mxu0
        %2025 = vdwg.mxu0
        %v2026 = vpack.c.bf16 %v2015, %v2012
        %v2027 = vpack.c.bf16 %v2023, %v2020
        %v2028 = vld [vmem:[%s4] sm:$0xf]
        %v2030 = vsel %vm1508, %v2026, 0
        %v2033 = vsel %vm1508, %v2027, 0
        %vm2035 = vcmask 1043456
        %v2037 = vsel %vm2035, %v2028, 0
        %2039 = vmatprep.subr.bf16.mxu0 0
        %2040 = vmatpush1.bf16.msra.mxu0 0
        %2041 = vmatprep.subr.bf16.mxu0 0
        %2042 = vmatpush1.bf16.msra.mxu0 0
        %2043 = vmatprep.subr.bf16.mxu0 0
        %2044 = vmatpush1.bf16.msra.mxu0 0
        %2045 = vmatprep.subr.bf16.mxu0 0
        %2046 = vmatpush1.bf16.msra.mxu0 0
        %2047 = vmatprep.subr.bf16.mxu0 0
        %2048 = vmatpush1.bf16.msra.mxu0 0
        %2049 = vmatprep.subr.bf16.mxu0 0
        %2050 = vmatpush1.bf16.msra.mxu0 0
        %2051 = vmatprep.subr.bf16.mxu0 0
        %2052 = vmatpush1.bf16.msra.mxu0 0
        %2053 = vmatprep.subr.bf16.mxu0 0
        %2054 = vmatpush1.bf16.msra.mxu0 %v2037
        %2055 = vmatprep.subr.bf16.mxu0 0
        %2056 = vmatpush2.bf16.msra.mxu0 0
        %2057 = vmatprep.subr.bf16.mxu0 0
        %2058 = vmatpush2.bf16.msra.mxu0 0
        %2059 = vmatprep.subr.bf16.mxu0 0
        %2060 = vmatpush2.bf16.msra.mxu0 0
        %2061 = vmatprep.subr.bf16.mxu0 0
        %2062 = vmatpush2.bf16.msra.mxu0 0
        %2063 = vmatprep.subr.bf16.mxu0 0
        %2064 = vmatpush2.bf16.msra.mxu0 0
        %2065 = vmatprep.subr.bf16.mxu0 0
        %2066 = vmatpush2.bf16.msra.mxu0 0
        %2067 = vmatprep.subr.bf16.mxu0 0
        %2068 = vmatpush2.bf16.msra.mxu0 0
        %2069 = vmatprep.subr.bf16.mxu0 0
        %2070 = vmatpush2.bf16.msra.mxu0 0
        %2071 = vmatprep.mubr.bf16.mxu0 0
        %2072 = vmatmul.mubr.bf16.gmra.mxu0 %v2030
        %v2073 = vpop.f32.mrf.mxu0
        %v2074 = vadd.f32 0.0, %v2073
        %v2075 = vpop.f32.mrf.mxu0
        %v2076 = vpop.f32.mrf.mxu0
        %v2077 = vadd.f32 0.0, %v2076
        %v2078 = vpop.f32.mrf.mxu0
        %2079 = vmatprep.mubr.bf16.mxu0 0
        %2080 = vmatmul.mubr.bf16.gmra.mxu0 %v2033
        %v2081 = vpop.f32.mrf.mxu0
        %v2082 = vadd.f32 0.0, %v2081
        %v2083 = vpop.f32.mrf.mxu0
        %v2084 = vpop.f32.mrf.mxu0
        %v2085 = vadd.f32 0.0, %v2084
        %v2086 = vpop.f32.mrf.mxu0
        %2087 = vdwg.mxu0
        %v2088 = vadd.f32 %v837, %v2074
        %v2089 = vadd.f32 %v838, %v2077
        %v2090 = vadd.f32 %v839, %v2082
        %v2091 = vadd.f32 %v840, %v2085
        %v2092 = vld [vmem:[%s754] sm:$0x1]
        %v2093 = vld [vmem:[%s754 + $0x2] sm:$0x1]
        %v2094 = vld [vmem:[%s754 + $0x4] sm:$0x1]
        %v2095 = vld [vmem:[%s754 + $0x6] sm:$0x1]
        %v2096 = vld [vmem:[%s754 + $0x8] sm:$0x1]
        %v2097 = vld [vmem:[%s754 + $0xa] sm:$0x1]
        %v2098 = vld [vmem:[%s754 + $0xc] sm:$0x1]
        %v2099 = vld [vmem:[%s754 + $0xe] sm:$0x1]
        %v2100 = vld [vmem:[%s754 + $0x10] sm:$0x1]
        %v2101 = vld [vmem:[%s754 + $0x12] sm:$0x1]
        %v2102 = vld [vmem:[%s754 + $0x14] sm:$0x1]
        %v2103 = vld [vmem:[%s754 + $0x16] sm:$0x1]
        %v2104 = vld [vmem:[%s754 + $0x18] sm:$0x1]
        %v2105 = vld [vmem:[%s754 + $0x1a] sm:$0x1]
        %v2106 = vld [vmem:[%s754 + $0x1c] sm:$0x1]
        %v2107 = vld [vmem:[%s754 + $0x1e] sm:$0x1]
        %v2108 = vld [vmem:[%s754 + $0x20] sm:$0x1]
        %v2109 = vld [vmem:[%s754 + $0x22] sm:$0x1]
        %v2110 = vld [vmem:[%s754 + $0x24] sm:$0x1]
        %v2111 = vld [vmem:[%s754 + $0x26] sm:$0x1]
        %v2112 = vld [vmem:[%s754 + $0x28] sm:$0x1]
        %v2113 = vld [vmem:[%s754 + $0x2a] sm:$0x1]
        %v2114 = vld [vmem:[%s754 + $0x2c] sm:$0x1]
        %v2115 = vld [vmem:[%s754 + $0x2e] sm:$0x1]
        %v2116 = vld [vmem:[%s754 + $0x30] sm:$0x1]
        %v2117 = vld [vmem:[%s754 + $0x32] sm:$0x1]
        %v2118 = vld [vmem:[%s754 + $0x34] sm:$0x1]
        %v2119 = vld [vmem:[%s754 + $0x36] sm:$0x1]
        %v2120 = vld [vmem:[%s754 + $0x38] sm:$0x1]
        %v2121 = vld [vmem:[%s754 + $0x3a] sm:$0x1]
        %v2122 = vld [vmem:[%s754 + $0x3c] sm:$0x1]
        %v2123 = vld [vmem:[%s754 + $0x3e] sm:$0x1]
        %v2124 = vunpack.c.l.bf16 %v2092
        %v2125 = vunpack.c.l.bf16 %v2093
        %v2126 = vunpack.c.l.bf16 %v2094
        %v2127 = vunpack.c.l.bf16 %v2095
        %v2128 = vunpack.c.l.bf16 %v2096
        %v2129 = vunpack.c.l.bf16 %v2097
        %v2130 = vunpack.c.l.bf16 %v2098
        %v2131 = vunpack.c.l.bf16 %v2099
        %v2132 = vunpack.c.l.bf16 %v2100
        %v2133 = vunpack.c.l.bf16 %v2101
        %v2134 = vunpack.c.l.bf16 %v2102
        %v2135 = vunpack.c.l.bf16 %v2103
        %v2136 = vunpack.c.l.bf16 %v2104
        %v2137 = vunpack.c.l.bf16 %v2105
        %v2138 = vunpack.c.l.bf16 %v2106
        %v2139 = vunpack.c.l.bf16 %v2107
        %v2140 = vunpack.c.l.bf16 %v2108
        %v2141 = vunpack.c.l.bf16 %v2109
        %v2142 = vunpack.c.l.bf16 %v2110
        %v2143 = vunpack.c.l.bf16 %v2111
        %v2144 = vunpack.c.l.bf16 %v2112
        %v2145 = vunpack.c.l.bf16 %v2113
        %v2146 = vunpack.c.l.bf16 %v2114
        %v2147 = vunpack.c.l.bf16 %v2115
        %v2148 = vunpack.c.l.bf16 %v2116
        %v2149 = vunpack.c.l.bf16 %v2117
        %v2150 = vunpack.c.l.bf16 %v2118
        %v2151 = vunpack.c.l.bf16 %v2119
        %v2152 = vunpack.c.l.bf16 %v2120
        %v2153 = vunpack.c.l.bf16 %v2121
        %v2154 = vunpack.c.l.bf16 %v2122
        %v2155 = vunpack.c.l.bf16 %v2123
        %v2156 = vmul.f32 %v2124, 0.35355338
        %v2157 = vmul.f32 %v2125, 0.35355338
        %v2158 = vmul.f32 %v2126, 0.35355338
        %v2159 = vmul.f32 %v2127, 0.35355338
        %v2160 = vmul.f32 %v2128, 0.35355338
        %v2161 = vmul.f32 %v2129, 0.35355338
        %v2162 = vmul.f32 %v2130, 0.35355338
        %v2163 = vmul.f32 %v2131, 0.35355338
        %v2164 = vmul.f32 %v2132, 0.35355338
        %v2165 = vmul.f32 %v2133, 0.35355338
        %v2166 = vmul.f32 %v2134, 0.35355338
        %v2167 = vmul.f32 %v2135, 0.35355338
        %v2168 = vmul.f32 %v2136, 0.35355338
        %v2169 = vmul.f32 %v2137, 0.35355338
        %v2170 = vmul.f32 %v2138, 0.35355338
        %v2171 = vmul.f32 %v2139, 0.35355338
        %v2172 = vmul.f32 %v2140, 0.35355338
        %v2173 = vmul.f32 %v2141, 0.35355338
        %v2174 = vmul.f32 %v2142, 0.35355338
        %v2175 = vmul.f32 %v2143, 0.35355338
        %v2176 = vmul.f32 %v2144, 0.35355338
        %v2177 = vmul.f32 %v2145, 0.35355338
        %v2178 = vmul.f32 %v2146, 0.35355338
        %v2179 = vmul.f32 %v2147, 0.35355338
        %v2180 = vmul.f32 %v2148, 0.35355338
        %v2181 = vmul.f32 %v2149, 0.35355338
        %v2182 = vmul.f32 %v2150, 0.35355338
        %v2183 = vmul.f32 %v2151, 0.35355338
        %v2184 = vmul.f32 %v2152, 0.35355338
        %v2185 = vmul.f32 %v2153, 0.35355338
        %v2186 = vmul.f32 %v2154, 0.35355338
        %v2187 = vmul.f32 %v2155, 0.35355338
        %v2188 = vld [vmem:[%s761] sm:$0x1]
        %v2189 = vld [vmem:[%s761 + $0x2] sm:$0x1]
        %v2190 = vld [vmem:[%s761 + $0x4] sm:$0x1]
        %v2191 = vld [vmem:[%s761 + $0x6] sm:$0x1]
        %v2192 = vld [vmem:[%s761 + $0x8] sm:$0x1]
        %v2193 = vld [vmem:[%s761 + $0xa] sm:$0x1]
        %v2194 = vld [vmem:[%s761 + $0xc] sm:$0x1]
        %v2195 = vld [vmem:[%s761 + $0xe] sm:$0x1]
        %v2196 = vld [vmem:[%s761 + $0x10] sm:$0x1]
        %v2197 = vld [vmem:[%s761 + $0x12] sm:$0x1]
        %v2198 = vld [vmem:[%s761 + $0x14] sm:$0x1]
        %v2199 = vld [vmem:[%s761 + $0x16] sm:$0x1]
        %v2200 = vld [vmem:[%s761 + $0x18] sm:$0x1]
        %v2201 = vld [vmem:[%s761 + $0x1a] sm:$0x1]
        %v2202 = vld [vmem:[%s761 + $0x1c] sm:$0x1]
        %v2203 = vld [vmem:[%s761 + $0x1e] sm:$0x1]
        %v2204 = vld [vmem:[%s761 + $0x20] sm:$0x1]
        %v2205 = vld [vmem:[%s761 + $0x22] sm:$0x1]
        %v2206 = vld [vmem:[%s761 + $0x24] sm:$0x1]
        %v2207 = vld [vmem:[%s761 + $0x26] sm:$0x1]
        %v2208 = vld [vmem:[%s761 + $0x28] sm:$0x1]
        %v2209 = vld [vmem:[%s761 + $0x2a] sm:$0x1]
        %v2210 = vld [vmem:[%s761 + $0x2c] sm:$0x1]
        %v2211 = vld [vmem:[%s761 + $0x2e] sm:$0x1]
        %v2212 = vld [vmem:[%s761 + $0x30] sm:$0x1]
        %v2213 = vld [vmem:[%s761 + $0x32] sm:$0x1]
        %v2214 = vld [vmem:[%s761 + $0x34] sm:$0x1]
        %v2215 = vld [vmem:[%s761 + $0x36] sm:$0x1]
        %v2216 = vld [vmem:[%s761 + $0x38] sm:$0x1]
        %v2217 = vld [vmem:[%s761 + $0x3a] sm:$0x1]
        %v2218 = vld [vmem:[%s761 + $0x3c] sm:$0x1]
        %v2219 = vld [vmem:[%s761 + $0x3e] sm:$0x1]
        %v2220 = vld [vmem:[%s768] sm:$0x1]
        %v2221 = vld [vmem:[%s768 + $0x2] sm:$0x1]
        %v2222 = vld [vmem:[%s768 + $0x4] sm:$0x1]
        %v2223 = vld [vmem:[%s768 + $0x6] sm:$0x1]
        %v2224 = vld [vmem:[%s768 + $0x8] sm:$0x1]
        %v2225 = vld [vmem:[%s768 + $0xa] sm:$0x1]
        %v2226 = vld [vmem:[%s768 + $0xc] sm:$0x1]
        %v2227 = vld [vmem:[%s768 + $0xe] sm:$0x1]
        %v2228 = vld [vmem:[%s768 + $0x10] sm:$0x1]
        %v2229 = vld [vmem:[%s768 + $0x12] sm:$0x1]
        %v2230 = vld [vmem:[%s768 + $0x14] sm:$0x1]
        %v2231 = vld [vmem:[%s768 + $0x16] sm:$0x1]
        %v2232 = vld [vmem:[%s768 + $0x18] sm:$0x1]
        %v2233 = vld [vmem:[%s768 + $0x1a] sm:$0x1]
        %v2234 = vld [vmem:[%s768 + $0x1c] sm:$0x1]
        %v2235 = vld [vmem:[%s768 + $0x1e] sm:$0x1]
        %v2236 = vld [vmem:[%s768 + $0x20] sm:$0x1]
        %v2237 = vld [vmem:[%s768 + $0x22] sm:$0x1]
        %v2238 = vld [vmem:[%s768 + $0x24] sm:$0x1]
        %v2239 = vld [vmem:[%s768 + $0x26] sm:$0x1]
        %v2240 = vld [vmem:[%s768 + $0x28] sm:$0x1]
        %v2241 = vld [vmem:[%s768 + $0x2a] sm:$0x1]
        %v2242 = vld [vmem:[%s768 + $0x2c] sm:$0x1]
        %v2243 = vld [vmem:[%s768 + $0x2e] sm:$0x1]
        %v2244 = vld [vmem:[%s768 + $0x30] sm:$0x1]
        %v2245 = vld [vmem:[%s768 + $0x32] sm:$0x1]
        %v2246 = vld [vmem:[%s768 + $0x34] sm:$0x1]
        %v2247 = vld [vmem:[%s768 + $0x36] sm:$0x1]
        %v2248 = vld [vmem:[%s768 + $0x38] sm:$0x1]
        %v2249 = vld [vmem:[%s768 + $0x3a] sm:$0x1]
        %v2250 = vld [vmem:[%s768 + $0x3c] sm:$0x1]
        %v2251 = vld [vmem:[%s768 + $0x3e] sm:$0x1]
        %v2252 = vpack.c.bf16 %v2156, %v2156
        %v2253 = vpack.c.bf16 %v2157, %v2157
        %v2254 = vpack.c.bf16 %v2158, %v2158
        %v2255 = vpack.c.bf16 %v2159, %v2159
        %v2256 = vpack.c.bf16 %v2160, %v2160
        %v2257 = vpack.c.bf16 %v2161, %v2161
        %v2258 = vpack.c.bf16 %v2162, %v2162
        %v2259 = vpack.c.bf16 %v2163, %v2163
        %v2260 = vpack.c.bf16 %v2164, %v2164
        %v2261 = vpack.c.bf16 %v2165, %v2165
        %v2262 = vpack.c.bf16 %v2166, %v2166
        %v2263 = vpack.c.bf16 %v2167, %v2167
        %v2264 = vpack.c.bf16 %v2168, %v2168
        %v2265 = vpack.c.bf16 %v2169, %v2169
        %v2266 = vpack.c.bf16 %v2170, %v2170
        %v2267 = vpack.c.bf16 %v2171, %v2171
        %v2268 = vpack.c.bf16 %v2172, %v2172
        %v2269 = vpack.c.bf16 %v2173, %v2173
        %v2270 = vpack.c.bf16 %v2174, %v2174
        %v2271 = vpack.c.bf16 %v2175, %v2175
        %v2272 = vpack.c.bf16 %v2176, %v2176
        %v2273 = vpack.c.bf16 %v2177, %v2177
        %v2274 = vpack.c.bf16 %v2178, %v2178
        %v2275 = vpack.c.bf16 %v2179, %v2179
        %v2276 = vpack.c.bf16 %v2180, %v2180
        %v2277 = vpack.c.bf16 %v2181, %v2181
        %v2278 = vpack.c.bf16 %v2182, %v2182
        %v2279 = vpack.c.bf16 %v2183, %v2183
        %v2280 = vpack.c.bf16 %v2184, %v2184
        %v2281 = vpack.c.bf16 %v2185, %v2185
        %v2282 = vpack.c.bf16 %v2186, %v2186
        %v2283 = vpack.c.bf16 %v2187, %v2187
        %v2316 = vunpack.c.l.b16 %v2252
        %v2317 = vunpack.c.l.b16 %v2253
        %v2318 = vunpack.c.l.b16 %v2254
        %v2319 = vunpack.c.l.b16 %v2255
        %v2320 = vunpack.c.l.b16 %v2256
        %v2321 = vunpack.c.l.b16 %v2257
        %v2322 = vunpack.c.l.b16 %v2258
        %v2323 = vunpack.c.l.b16 %v2259
        %v2324 = vunpack.c.l.b16 %v2260
        %v2325 = vunpack.c.l.b16 %v2261
        %v2326 = vunpack.c.l.b16 %v2262
        %v2327 = vunpack.c.l.b16 %v2263
        %v2328 = vunpack.c.l.b16 %v2264
        %v2329 = vunpack.c.l.b16 %v2265
        %v2330 = vunpack.c.l.b16 %v2266
        %v2331 = vunpack.c.l.b16 %v2267
        %v2332 = vunpack.c.l.b16 %v2268
        %v2333 = vunpack.c.l.b16 %v2269
        %v2334 = vunpack.c.l.b16 %v2270
        %v2335 = vunpack.c.l.b16 %v2271
        %v2336 = vunpack.c.l.b16 %v2272
        %v2337 = vunpack.c.l.b16 %v2273
        %v2338 = vunpack.c.l.b16 %v2274
        %v2339 = vunpack.c.l.b16 %v2275
        %v2340 = vunpack.c.l.b16 %v2276
        %v2341 = vunpack.c.l.b16 %v2277
        %v2342 = vunpack.c.l.b16 %v2278
        %v2343 = vunpack.c.l.b16 %v2279
        %v2344 = vunpack.c.l.b16 %v2280
        %v2345 = vunpack.c.l.b16 %v2281
        %v2346 = vunpack.c.l.b16 %v2282
        %v2347 = vunpack.c.l.b16 %v2283
        %v2348 = vrot.slane %v2316, 1
        %v2349 = vsel %vm1098, %v2317, %v2348
        %v2350 = vrot.slane %v2318, 7
        %v2351 = vsel %vm1101, %v2350, %v2349
        %v2352 = vrot.slane %v2319, 6
        %v2353 = vsel %vm1104, %v2352, %v2351
        %v2354 = vrot.slane %v2320, 5
        %v2355 = vsel %vm1107, %v2354, %v2353
        %v2356 = vrot.slane %v2321, 4
        %v2357 = vsel %vm1110, %v2356, %v2355
        %v2358 = vrot.slane %v2322, 3
        %v2359 = vsel %vm1113, %v2358, %v2357
        %v2360 = vrot.slane %v2323, 2
        %v2361 = vsel %vm1116, %v2360, %v2359
        %v2362 = vrot.slane %v2324, 1
        %v2363 = vsel %vm1098, %v2325, %v2362
        %v2364 = vrot.slane %v2326, 7
        %v2365 = vsel %vm1101, %v2364, %v2363
        %v2366 = vrot.slane %v2327, 6
        %v2367 = vsel %vm1104, %v2366, %v2365
        %v2368 = vrot.slane %v2328, 5
        %v2369 = vsel %vm1107, %v2368, %v2367
        %v2370 = vrot.slane %v2329, 4
        %v2371 = vsel %vm1110, %v2370, %v2369
        %v2372 = vrot.slane %v2330, 3
        %v2373 = vsel %vm1113, %v2372, %v2371
        %v2374 = vrot.slane %v2331, 2
        %v2375 = vsel %vm1116, %v2374, %v2373
        %v2376 = vrot.slane %v2332, 1
        %v2377 = vsel %vm1098, %v2333, %v2376
        %v2378 = vrot.slane %v2334, 7
        %v2379 = vsel %vm1101, %v2378, %v2377
        %v2380 = vrot.slane %v2335, 6
        %v2381 = vsel %vm1104, %v2380, %v2379
        %v2382 = vrot.slane %v2336, 5
        %v2383 = vsel %vm1107, %v2382, %v2381
        %v2384 = vrot.slane %v2337, 4
        %v2385 = vsel %vm1110, %v2384, %v2383
        %v2386 = vrot.slane %v2338, 3
        %v2387 = vsel %vm1113, %v2386, %v2385
        %v2388 = vrot.slane %v2339, 2
        %v2389 = vsel %vm1116, %v2388, %v2387
        %v2390 = vrot.slane %v2340, 1
        %v2391 = vsel %vm1098, %v2341, %v2390
        %v2392 = vrot.slane %v2342, 7
        %v2393 = vsel %vm1101, %v2392, %v2391
        %v2394 = vrot.slane %v2343, 6
        %v2395 = vsel %vm1104, %v2394, %v2393
        %v2396 = vrot.slane %v2344, 5
        %v2397 = vsel %vm1107, %v2396, %v2395
        %v2398 = vrot.slane %v2345, 4
        %v2399 = vsel %vm1110, %v2398, %v2397
        %v2400 = vrot.slane %v2346, 3
        %v2401 = vsel %vm1113, %v2400, %v2399
        %v2402 = vrot.slane %v2347, 2
        %v2403 = vsel %vm1116, %v2402, %v2401
        %v2404 = vpack.c.b16 %v2375, %v2361
        %v2405 = vpack.c.b16 %v2403, %v2389
        %v2439 = vunpack.c.l.s4 1983009808
        %v2440 = vunpack.c.0.s8 %v2439
        %v2441 = vlaneseq
        %v2442 = vshrl.u32 %v2441, 7
        %v2443 = vsub.s32 %v2440, %v2442
        %v2444 = vrot.slane %v2188, %v2443
        %v2446 = vunpack.c.l.s4 1983009808
        %v2447 = vunpack.c.0.s8 %v2446
        %v2448 = vlaneseq
        %v2449 = vshrl.u32 %v2448, 7
        %v2450 = vsub.s32 %v2447, %v2449
        %v2451 = vrot.slane %v2189, %v2450
        %v2453 = vunpack.c.l.s4 1983009808
        %v2454 = vunpack.c.0.s8 %v2453
        %v2455 = vlaneseq
        %v2456 = vshrl.u32 %v2455, 7
        %v2457 = vsub.s32 %v2454, %v2456
        %v2458 = vrot.slane %v2190, %v2457
        %v2460 = vunpack.c.l.s4 1983009808
        %v2461 = vunpack.c.0.s8 %v2460
        %v2462 = vlaneseq
        %v2463 = vshrl.u32 %v2462, 7
        %v2464 = vsub.s32 %v2461, %v2463
        %v2465 = vrot.slane %v2191, %v2464
        %v2467 = vunpack.c.l.s4 1983009808
        %v2468 = vunpack.c.0.s8 %v2467
        %v2469 = vlaneseq
        %v2470 = vshrl.u32 %v2469, 7
        %v2471 = vsub.s32 %v2468, %v2470
        %v2472 = vrot.slane %v2192, %v2471
        %v2474 = vunpack.c.l.s4 1983009808
        %v2475 = vunpack.c.0.s8 %v2474
        %v2476 = vlaneseq
        %v2477 = vshrl.u32 %v2476, 7
        %v2478 = vsub.s32 %v2475, %v2477
        %v2479 = vrot.slane %v2193, %v2478
        %v2481 = vunpack.c.l.s4 1983009808
        %v2482 = vunpack.c.0.s8 %v2481
        %v2483 = vlaneseq
        %v2484 = vshrl.u32 %v2483, 7
        %v2485 = vsub.s32 %v2482, %v2484
        %v2486 = vrot.slane %v2194, %v2485
        %v2488 = vunpack.c.l.s4 1983009808
        %v2489 = vunpack.c.0.s8 %v2488
        %v2490 = vlaneseq
        %v2491 = vshrl.u32 %v2490, 7
        %v2492 = vsub.s32 %v2489, %v2491
        %v2493 = vrot.slane %v2195, %v2492
        %v2495 = vunpack.c.l.s4 1983009808
        %v2496 = vunpack.c.0.s8 %v2495
        %v2497 = vlaneseq
        %v2498 = vshrl.u32 %v2497, 7
        %v2499 = vsub.s32 %v2496, %v2498
        %v2500 = vrot.slane %v2196, %v2499
        %v2502 = vunpack.c.l.s4 1983009808
        %v2503 = vunpack.c.0.s8 %v2502
        %v2504 = vlaneseq
        %v2505 = vshrl.u32 %v2504, 7
        %v2506 = vsub.s32 %v2503, %v2505
        %v2507 = vrot.slane %v2197, %v2506
        %v2509 = vunpack.c.l.s4 1983009808
        %v2510 = vunpack.c.0.s8 %v2509
        %v2511 = vlaneseq
        %v2512 = vshrl.u32 %v2511, 7
        %v2513 = vsub.s32 %v2510, %v2512
        %v2514 = vrot.slane %v2198, %v2513
        %v2516 = vunpack.c.l.s4 1983009808
        %v2517 = vunpack.c.0.s8 %v2516
        %v2518 = vlaneseq
        %v2519 = vshrl.u32 %v2518, 7
        %v2520 = vsub.s32 %v2517, %v2519
        %v2521 = vrot.slane %v2199, %v2520
        %v2523 = vunpack.c.l.s4 1983009808
        %v2524 = vunpack.c.0.s8 %v2523
        %v2525 = vlaneseq
        %v2526 = vshrl.u32 %v2525, 7
        %v2527 = vsub.s32 %v2524, %v2526
        %v2528 = vrot.slane %v2200, %v2527
        %v2530 = vunpack.c.l.s4 1983009808
        %v2531 = vunpack.c.0.s8 %v2530
        %v2532 = vlaneseq
        %v2533 = vshrl.u32 %v2532, 7
        %v2534 = vsub.s32 %v2531, %v2533
        %v2535 = vrot.slane %v2201, %v2534
        %v2537 = vunpack.c.l.s4 1983009808
        %v2538 = vunpack.c.0.s8 %v2537
        %v2539 = vlaneseq
        %v2540 = vshrl.u32 %v2539, 7
        %v2541 = vsub.s32 %v2538, %v2540
        %v2542 = vrot.slane %v2202, %v2541
        %v2544 = vunpack.c.l.s4 1983009808
        %v2545 = vunpack.c.0.s8 %v2544
        %v2546 = vlaneseq
        %v2547 = vshrl.u32 %v2546, 7
        %v2548 = vsub.s32 %v2545, %v2547
        %v2549 = vrot.slane %v2203, %v2548
        %v2551 = vunpack.c.l.s4 1983009808
        %v2552 = vunpack.c.0.s8 %v2551
        %v2553 = vlaneseq
        %v2554 = vshrl.u32 %v2553, 7
        %v2555 = vsub.s32 %v2552, %v2554
        %v2556 = vrot.slane %v2204, %v2555
        %v2558 = vunpack.c.l.s4 1983009808
        %v2559 = vunpack.c.0.s8 %v2558
        %v2560 = vlaneseq
        %v2561 = vshrl.u32 %v2560, 7
        %v2562 = vsub.s32 %v2559, %v2561
        %v2563 = vrot.slane %v2205, %v2562
        %v2565 = vunpack.c.l.s4 1983009808
        %v2566 = vunpack.c.0.s8 %v2565
        %v2567 = vlaneseq
        %v2568 = vshrl.u32 %v2567, 7
        %v2569 = vsub.s32 %v2566, %v2568
        %v2570 = vrot.slane %v2206, %v2569
        %v2572 = vunpack.c.l.s4 1983009808
        %v2573 = vunpack.c.0.s8 %v2572
        %v2574 = vlaneseq
        %v2575 = vshrl.u32 %v2574, 7
        %v2576 = vsub.s32 %v2573, %v2575
        %v2577 = vrot.slane %v2207, %v2576
        %v2579 = vunpack.c.l.s4 1983009808
        %v2580 = vunpack.c.0.s8 %v2579
        %v2581 = vlaneseq
        %v2582 = vshrl.u32 %v2581, 7
        %v2583 = vsub.s32 %v2580, %v2582
        %v2584 = vrot.slane %v2208, %v2583
        %v2586 = vunpack.c.l.s4 1983009808
        %v2587 = vunpack.c.0.s8 %v2586
        %v2588 = vlaneseq
        %v2589 = vshrl.u32 %v2588, 7
        %v2590 = vsub.s32 %v2587, %v2589
        %v2591 = vrot.slane %v2209, %v2590
        %v2593 = vunpack.c.l.s4 1983009808
        %v2594 = vunpack.c.0.s8 %v2593
        %v2595 = vlaneseq
        %v2596 = vshrl.u32 %v2595, 7
        %v2597 = vsub.s32 %v2594, %v2596
        %v2598 = vrot.slane %v2210, %v2597
        %v2600 = vunpack.c.l.s4 1983009808
        %v2601 = vunpack.c.0.s8 %v2600
        %v2602 = vlaneseq
        %v2603 = vshrl.u32 %v2602, 7
        %v2604 = vsub.s32 %v2601, %v2603
        %v2605 = vrot.slane %v2211, %v2604
        %v2607 = vunpack.c.l.s4 1983009808
        %v2608 = vunpack.c.0.s8 %v2607
        %v2609 = vlaneseq
        %v2610 = vshrl.u32 %v2609, 7
        %v2611 = vsub.s32 %v2608, %v2610
        %v2612 = vrot.slane %v2212, %v2611
        %v2614 = vunpack.c.l.s4 1983009808
        %v2615 = vunpack.c.0.s8 %v2614
        %v2616 = vlaneseq
        %v2617 = vshrl.u32 %v2616, 7
        %v2618 = vsub.s32 %v2615, %v2617
        %v2619 = vrot.slane %v2213, %v2618
        %v2621 = vunpack.c.l.s4 1983009808
        %v2622 = vunpack.c.0.s8 %v2621
        %v2623 = vlaneseq
        %v2624 = vshrl.u32 %v2623, 7
        %v2625 = vsub.s32 %v2622, %v2624
        %v2626 = vrot.slane %v2214, %v2625
        %v2628 = vunpack.c.l.s4 1983009808
        %v2629 = vunpack.c.0.s8 %v2628
        %v2630 = vlaneseq
        %v2631 = vshrl.u32 %v2630, 7
        %v2632 = vsub.s32 %v2629, %v2631
        %v2633 = vrot.slane %v2215, %v2632
        %v2635 = vunpack.c.l.s4 1983009808
        %v2636 = vunpack.c.0.s8 %v2635
        %v2637 = vlaneseq
        %v2638 = vshrl.u32 %v2637, 7
        %v2639 = vsub.s32 %v2636, %v2638
        %v2640 = vrot.slane %v2216, %v2639
        %v2642 = vunpack.c.l.s4 1983009808
        %v2643 = vunpack.c.0.s8 %v2642
        %v2644 = vlaneseq
        %v2645 = vshrl.u32 %v2644, 7
        %v2646 = vsub.s32 %v2643, %v2645
        %v2647 = vrot.slane %v2217, %v2646
        %v2649 = vunpack.c.l.s4 1983009808
        %v2650 = vunpack.c.0.s8 %v2649
        %v2651 = vlaneseq
        %v2652 = vshrl.u32 %v2651, 7
        %v2653 = vsub.s32 %v2650, %v2652
        %v2654 = vrot.slane %v2218, %v2653
        %v2656 = vunpack.c.l.s4 1983009808
        %v2657 = vunpack.c.0.s8 %v2656
        %v2658 = vlaneseq
        %v2659 = vshrl.u32 %v2658, 7
        %v2660 = vsub.s32 %v2657, %v2659
        %v2661 = vrot.slane %v2219, %v2660
        %v2662 = vunpack.c.l.b16 %v2444
        %v2663 = vunpack.c.l.b16 %v2451
        %v2664 = vunpack.c.l.b16 %v2458
        %v2665 = vunpack.c.l.b16 %v2465
        %v2666 = vunpack.c.l.b16 %v2472
        %v2667 = vunpack.c.l.b16 %v2479
        %v2668 = vunpack.c.l.b16 %v2486
        %v2669 = vunpack.c.l.b16 %v2493
        %v2670 = vunpack.c.l.b16 %v2500
        %v2671 = vunpack.c.l.b16 %v2507
        %v2672 = vunpack.c.l.b16 %v2514
        %v2673 = vunpack.c.l.b16 %v2521
        %v2674 = vunpack.c.l.b16 %v2528
        %v2675 = vunpack.c.l.b16 %v2535
        %v2676 = vunpack.c.l.b16 %v2542
        %v2677 = vunpack.c.l.b16 %v2549
        %v2678 = vunpack.c.l.b16 %v2556
        %v2679 = vunpack.c.l.b16 %v2563
        %v2680 = vunpack.c.l.b16 %v2570
        %v2681 = vunpack.c.l.b16 %v2577
        %v2682 = vunpack.c.l.b16 %v2584
        %v2683 = vunpack.c.l.b16 %v2591
        %v2684 = vunpack.c.l.b16 %v2598
        %v2685 = vunpack.c.l.b16 %v2605
        %v2686 = vunpack.c.l.b16 %v2612
        %v2687 = vunpack.c.l.b16 %v2619
        %v2688 = vunpack.c.l.b16 %v2626
        %v2689 = vunpack.c.l.b16 %v2633
        %v2690 = vunpack.c.l.b16 %v2640
        %v2691 = vunpack.c.l.b16 %v2647
        %v2692 = vunpack.c.l.b16 %v2654
        %v2693 = vunpack.c.l.b16 %v2661
        %v2694 = vrot.slane %v2662, 1
        %v2695 = vsel %vm1098, %v2663, %v2694
        %v2696 = vrot.slane %v2664, 7
        %v2697 = vsel %vm1101, %v2696, %v2695
        %v2698 = vrot.slane %v2665, 6
        %v2699 = vsel %vm1104, %v2698, %v2697
        %v2700 = vrot.slane %v2666, 5
        %v2701 = vsel %vm1107, %v2700, %v2699
        %v2702 = vrot.slane %v2667, 4
        %v2703 = vsel %vm1110, %v2702, %v2701
        %v2704 = vrot.slane %v2668, 3
        %v2705 = vsel %vm1113, %v2704, %v2703
        %v2706 = vrot.slane %v2669, 2
        %v2707 = vsel %vm1116, %v2706, %v2705
        %v2708 = vrot.slane %v2670, 1
        %v2709 = vsel %vm1098, %v2671, %v2708
        %v2710 = vrot.slane %v2672, 7
        %v2711 = vsel %vm1101, %v2710, %v2709
        %v2712 = vrot.slane %v2673, 6
        %v2713 = vsel %vm1104, %v2712, %v2711
        %v2714 = vrot.slane %v2674, 5
        %v2715 = vsel %vm1107, %v2714, %v2713
        %v2716 = vrot.slane %v2675, 4
        %v2717 = vsel %vm1110, %v2716, %v2715
        %v2718 = vrot.slane %v2676, 3
        %v2719 = vsel %vm1113, %v2718, %v2717
        %v2720 = vrot.slane %v2677, 2
        %v2721 = vsel %vm1116, %v2720, %v2719
        %v2722 = vrot.slane %v2678, 1
        %v2723 = vsel %vm1098, %v2679, %v2722
        %v2724 = vrot.slane %v2680, 7
        %v2725 = vsel %vm1101, %v2724, %v2723
        %v2726 = vrot.slane %v2681, 6
        %v2727 = vsel %vm1104, %v2726, %v2725
        %v2728 = vrot.slane %v2682, 5
        %v2729 = vsel %vm1107, %v2728, %v2727
        %v2730 = vrot.slane %v2683, 4
        %v2731 = vsel %vm1110, %v2730, %v2729
        %v2732 = vrot.slane %v2684, 3
        %v2733 = vsel %vm1113, %v2732, %v2731
        %v2734 = vrot.slane %v2685, 2
        %v2735 = vsel %vm1116, %v2734, %v2733
        %v2736 = vrot.slane %v2686, 1
        %v2737 = vsel %vm1098, %v2687, %v2736
        %v2738 = vrot.slane %v2688, 7
        %v2739 = vsel %vm1101, %v2738, %v2737
        %v2740 = vrot.slane %v2689, 6
        %v2741 = vsel %vm1104, %v2740, %v2739
        %v2742 = vrot.slane %v2690, 5
        %v2743 = vsel %vm1107, %v2742, %v2741
        %v2744 = vrot.slane %v2691, 4
        %v2745 = vsel %vm1110, %v2744, %v2743
        %v2746 = vrot.slane %v2692, 3
        %v2747 = vsel %vm1113, %v2746, %v2745
        %v2748 = vrot.slane %v2693, 2
        %v2749 = vsel %vm1116, %v2748, %v2747
        %v2750 = vpack.c.b16 %v2721, %v2707
        %v2751 = vpack.c.b16 %v2749, %v2735
        %v2753 = vsel %vm1508, %v2404, 0
        %v2756 = vsel %vm1508, %v2405, 0
        %v2759 = vsel %vm1508, %v2750, 0
        %v2762 = vsel %vm1508, %v2751, 0
        %2764 = vmatprep.subr.bf16.mxu0 0
        %2765 = vmatpush1.bf16.xpose.msra.mxu0 0
        %2766 = vmatprep.subr.bf16.mxu0 0
        %2767 = vmatpush1.bf16.xpose.msra.mxu0 0
        %2768 = vmatprep.subr.bf16.mxu0 0
        %2769 = vmatpush1.bf16.xpose.msra.mxu0 0
        %2770 = vmatprep.subr.bf16.mxu0 0
        %2771 = vmatpush1.bf16.xpose.msra.mxu0 0
        %2772 = vmatprep.subr.bf16.mxu0 0
        %2773 = vmatpush1.bf16.xpose.msra.mxu0 0
        %2774 = vmatprep.subr.bf16.mxu0 0
        %2775 = vmatpush1.bf16.xpose.msra.mxu0 0
        %2776 = vmatprep.subr.bf16.mxu0 0
        %2777 = vmatpush1.bf16.xpose.msra.mxu0 %v2762
        %2778 = vmatprep.subr.bf16.mxu0 0
        %2779 = vmatpush1.bf16.xpose.msra.mxu0 %v2759
        %2780 = vmatprep.subr.bf16.mxu0 0
        %2781 = vmatpush2.bf16.xpose.msra.mxu0 0
        %2782 = vmatprep.subr.bf16.mxu0 0
        %2783 = vmatpush2.bf16.xpose.msra.mxu0 0
        %2784 = vmatprep.subr.bf16.mxu0 0
        %2785 = vmatpush2.bf16.xpose.msra.mxu0 0
        %2786 = vmatprep.subr.bf16.mxu0 0
        %2787 = vmatpush2.bf16.xpose.msra.mxu0 0
        %2788 = vmatprep.subr.bf16.mxu0 0
        %2789 = vmatpush2.bf16.xpose.msra.mxu0 0
        %2790 = vmatprep.subr.bf16.mxu0 0
        %2791 = vmatpush2.bf16.xpose.msra.mxu0 0
        %2792 = vmatprep.subr.bf16.mxu0 0
        %2793 = vmatpush2.bf16.xpose.msra.mxu0 0
        %2794 = vmatprep.subr.bf16.mxu0 0
        %2795 = vmatpush2.bf16.xpose.msra.mxu0 0
        %2796 = vmatprep.mubr.bf16.mxu0 0
        %2797 = vmatmul.mubr.bf16.gmra.mxu0 %v2753
        %v2798 = vpop.f32.mrf.mxu0
        %v2799 = vadd.f32 0.0, %v2798
        %v2800 = vpop.f32.mrf.mxu0
        %v2801 = vpop.f32.mrf.mxu0
        %v2802 = vadd.f32 0.0, %v2801
        %v2803 = vpop.f32.mrf.mxu0
        %2804 = vmatprep.mubr.bf16.mxu0 0
        %2805 = vmatmul.mubr.bf16.gmra.mxu0 %v2756
        %v2806 = vpop.f32.mrf.mxu0
        %v2807 = vadd.f32 0.0, %v2806
        %v2808 = vpop.f32.mrf.mxu0
        %v2809 = vpop.f32.mrf.mxu0
        %v2810 = vadd.f32 0.0, %v2809
        %v2811 = vpop.f32.mrf.mxu0
        %2812 = vdwg.mxu0
        %v2813 = vsel %vm1571, %v2799, -1e+30
        %v2814 = vsel %vm1571, %v2802, -1e+30
        %v2815 = vsel %vm1571, %v2807, -1e+30
        %v2816 = vsel %vm1571, %v2810, -1e+30
        %v2817 = vsel %vm1576, %v2813, -inf
        %2818 = vmax.xlane.f32.xlu0 %v2817
        %v2819 = vpop.xlane.xlu0 %2818
        %v2820 = vsel %vm1576, %v2814, -inf
        %2821 = vmax.xlane.f32.xlu0 %v2820
        %v2822 = vpop.xlane.xlu0 %2821
        %v2823 = vsel %vm1576, %v2815, -inf
        %2824 = vmax.xlane.f32.xlu0 %v2823
        %v2825 = vpop.xlane.xlu0 %2824
        %v2826 = vsel %vm1576, %v2816, -inf
        %2827 = vmax.xlane.f32.xlu0 %v2826
        %v2828 = vpop.xlane.xlu0 %2827
        %v2829 = vsub.f32 %v2813, %v2819
        %v2830 = vsub.f32 %v2814, %v2822
        %v2831 = vsub.f32 %v2815, %v2825
        %v2832 = vsub.f32 %v2816, %v2828
        %v2833 = vmul.f32 %v2829, 1.442695
        %v2834 = vpow.pop %v2833
        %v2835 = vmul.f32 %v2830, 1.442695
        %v2836 = vpow.pop %v2835
        %v2837 = vmul.f32 %v2831, 1.442695
        %v2838 = vpow.pop %v2837
        %v2839 = vmul.f32 %v2832, 1.442695
        %v2840 = vpow.pop %v2839
        %v2841 = vsel %vm1576, %v2834, 0.0
        %2842 = vadd.xlane.f32.xlu0 %v2841
        %v2843 = vpop.xlane.xlu0 %2842
        %v2844 = vsel %vm1576, %v2836, 0.0
        %2845 = vadd.xlane.f32.xlu0 %v2844
        %v2846 = vpop.xlane.xlu0 %2845
        %v2847 = vsel %vm1576, %v2838, 0.0
        %2848 = vadd.xlane.f32.xlu0 %v2847
        %v2849 = vpop.xlane.xlu0 %2848
        %v2850 = vsel %vm1576, %v2840, 0.0
        %2851 = vadd.xlane.f32.xlu0 %v2850
        %v2852 = vpop.xlane.xlu0 %2851
        %v2853 = vrcp.pop %v2843
        %v2854 = vrcp.pop %v2846
        %v2855 = vrcp.pop %v2849
        %v2856 = vrcp.pop %v2852
        %v2857 = vmul.f32 %v2834, %v2853
        %v2858 = vmul.f32 %v2836, %v2854
        %v2859 = vmul.f32 %v2838, %v2855
        %v2860 = vmul.f32 %v2840, %v2856
        %v2861 = vpack.c.bf16 %v2858, %v2857
        %v2862 = vpack.c.bf16 %v2860, %v2859
        %v2896 = vunpack.c.l.s4 1983009808
        %v2897 = vunpack.c.0.s8 %v2896
        %v2898 = vlaneseq
        %v2899 = vshrl.u32 %v2898, 7
        %v2900 = vsub.s32 %v2897, %v2899
        %v2901 = vrot.slane %v2220, %v2900
        %v2903 = vunpack.c.l.s4 1983009808
        %v2904 = vunpack.c.0.s8 %v2903
        %v2905 = vlaneseq
        %v2906 = vshrl.u32 %v2905, 7
        %v2907 = vsub.s32 %v2904, %v2906
        %v2908 = vrot.slane %v2221, %v2907
        %v2910 = vunpack.c.l.s4 1983009808
        %v2911 = vunpack.c.0.s8 %v2910
        %v2912 = vlaneseq
        %v2913 = vshrl.u32 %v2912, 7
        %v2914 = vsub.s32 %v2911, %v2913
        %v2915 = vrot.slane %v2222, %v2914
        %v2917 = vunpack.c.l.s4 1983009808
        %v2918 = vunpack.c.0.s8 %v2917
        %v2919 = vlaneseq
        %v2920 = vshrl.u32 %v2919, 7
        %v2921 = vsub.s32 %v2918, %v2920
        %v2922 = vrot.slane %v2223, %v2921
        %v2924 = vunpack.c.l.s4 1983009808
        %v2925 = vunpack.c.0.s8 %v2924
        %v2926 = vlaneseq
        %v2927 = vshrl.u32 %v2926, 7
        %v2928 = vsub.s32 %v2925, %v2927
        %v2929 = vrot.slane %v2224, %v2928
        %v2931 = vunpack.c.l.s4 1983009808
        %v2932 = vunpack.c.0.s8 %v2931
        %v2933 = vlaneseq
        %v2934 = vshrl.u32 %v2933, 7
        %v2935 = vsub.s32 %v2932, %v2934
        %v2936 = vrot.slane %v2225, %v2935
        %v2938 = vunpack.c.l.s4 1983009808
        %v2939 = vunpack.c.0.s8 %v2938
        %v2940 = vlaneseq
        %v2941 = vshrl.u32 %v2940, 7
        %v2942 = vsub.s32 %v2939, %v2941
        %v2943 = vrot.slane %v2226, %v2942
        %v2945 = vunpack.c.l.s4 1983009808
        %v2946 = vunpack.c.0.s8 %v2945
        %v2947 = vlaneseq
        %v2948 = vshrl.u32 %v2947, 7
        %v2949 = vsub.s32 %v2946, %v2948
        %v2950 = vrot.slane %v2227, %v2949
        %v2952 = vunpack.c.l.s4 1983009808
        %v2953 = vunpack.c.0.s8 %v2952
        %v2954 = vlaneseq
        %v2955 = vshrl.u32 %v2954, 7
        %v2956 = vsub.s32 %v2953, %v2955
        %v2957 = vrot.slane %v2228, %v2956
        %v2959 = vunpack.c.l.s4 1983009808
        %v2960 = vunpack.c.0.s8 %v2959
        %v2961 = vlaneseq
        %v2962 = vshrl.u32 %v2961, 7
        %v2963 = vsub.s32 %v2960, %v2962
        %v2964 = vrot.slane %v2229, %v2963
        %v2966 = vunpack.c.l.s4 1983009808
        %v2967 = vunpack.c.0.s8 %v2966
        %v2968 = vlaneseq
        %v2969 = vshrl.u32 %v2968, 7
        %v2970 = vsub.s32 %v2967, %v2969
        %v2971 = vrot.slane %v2230, %v2970
        %v2973 = vunpack.c.l.s4 1983009808
        %v2974 = vunpack.c.0.s8 %v2973
        %v2975 = vlaneseq
        %v2976 = vshrl.u32 %v2975, 7
        %v2977 = vsub.s32 %v2974, %v2976
        %v2978 = vrot.slane %v2231, %v2977
        %v2980 = vunpack.c.l.s4 1983009808
        %v2981 = vunpack.c.0.s8 %v2980
        %v2982 = vlaneseq
        %v2983 = vshrl.u32 %v2982, 7
        %v2984 = vsub.s32 %v2981, %v2983
        %v2985 = vrot.slane %v2232, %v2984
        %v2987 = vunpack.c.l.s4 1983009808
        %v2988 = vunpack.c.0.s8 %v2987
        %v2989 = vlaneseq
        %v2990 = vshrl.u32 %v2989, 7
        %v2991 = vsub.s32 %v2988, %v2990
        %v2992 = vrot.slane %v2233, %v2991
        %v2994 = vunpack.c.l.s4 1983009808
        %v2995 = vunpack.c.0.s8 %v2994
        %v2996 = vlaneseq
        %v2997 = vshrl.u32 %v2996, 7
        %v2998 = vsub.s32 %v2995, %v2997
        %v2999 = vrot.slane %v2234, %v2998
        %v3001 = vunpack.c.l.s4 1983009808
        %v3002 = vunpack.c.0.s8 %v3001
        %v3003 = vlaneseq
        %v3004 = vshrl.u32 %v3003, 7
        %v3005 = vsub.s32 %v3002, %v3004
        %v3006 = vrot.slane %v2235, %v3005
        %v3008 = vunpack.c.l.s4 1983009808
        %v3009 = vunpack.c.0.s8 %v3008
        %v3010 = vlaneseq
        %v3011 = vshrl.u32 %v3010, 7
        %v3012 = vsub.s32 %v3009, %v3011
        %v3013 = vrot.slane %v2236, %v3012
        %v3015 = vunpack.c.l.s4 1983009808
        %v3016 = vunpack.c.0.s8 %v3015
        %v3017 = vlaneseq
        %v3018 = vshrl.u32 %v3017, 7
        %v3019 = vsub.s32 %v3016, %v3018
        %v3020 = vrot.slane %v2237, %v3019
        %v3022 = vunpack.c.l.s4 1983009808
        %v3023 = vunpack.c.0.s8 %v3022
        %v3024 = vlaneseq
        %v3025 = vshrl.u32 %v3024, 7
        %v3026 = vsub.s32 %v3023, %v3025
        %v3027 = vrot.slane %v2238, %v3026
        %v3029 = vunpack.c.l.s4 1983009808
        %v3030 = vunpack.c.0.s8 %v3029
        %v3031 = vlaneseq
        %v3032 = vshrl.u32 %v3031, 7
        %v3033 = vsub.s32 %v3030, %v3032
        %v3034 = vrot.slane %v2239, %v3033
        %v3036 = vunpack.c.l.s4 1983009808
        %v3037 = vunpack.c.0.s8 %v3036
        %v3038 = vlaneseq
        %v3039 = vshrl.u32 %v3038, 7
        %v3040 = vsub.s32 %v3037, %v3039
        %v3041 = vrot.slane %v2240, %v3040
        %v3043 = vunpack.c.l.s4 1983009808
        %v3044 = vunpack.c.0.s8 %v3043
        %v3045 = vlaneseq
        %v3046 = vshrl.u32 %v3045, 7
        %v3047 = vsub.s32 %v3044, %v3046
        %v3048 = vrot.slane %v2241, %v3047
        %v3050 = vunpack.c.l.s4 1983009808
        %v3051 = vunpack.c.0.s8 %v3050
        %v3052 = vlaneseq
        %v3053 = vshrl.u32 %v3052, 7
        %v3054 = vsub.s32 %v3051, %v3053
        %v3055 = vrot.slane %v2242, %v3054
        %v3057 = vunpack.c.l.s4 1983009808
        %v3058 = vunpack.c.0.s8 %v3057
        %v3059 = vlaneseq
        %v3060 = vshrl.u32 %v3059, 7
        %v3061 = vsub.s32 %v3058, %v3060
        %v3062 = vrot.slane %v2243, %v3061
        %v3064 = vunpack.c.l.s4 1983009808
        %v3065 = vunpack.c.0.s8 %v3064
        %v3066 = vlaneseq
        %v3067 = vshrl.u32 %v3066, 7
        %v3068 = vsub.s32 %v3065, %v3067
        %v3069 = vrot.slane %v2244, %v3068
        %v3071 = vunpack.c.l.s4 1983009808
        %v3072 = vunpack.c.0.s8 %v3071
        %v3073 = vlaneseq
        %v3074 = vshrl.u32 %v3073, 7
        %v3075 = vsub.s32 %v3072, %v3074
        %v3076 = vrot.slane %v2245, %v3075
        %v3078 = vunpack.c.l.s4 1983009808
        %v3079 = vunpack.c.0.s8 %v3078
        %v3080 = vlaneseq
        %v3081 = vshrl.u32 %v3080, 7
        %v3082 = vsub.s32 %v3079, %v3081
        %v3083 = vrot.slane %v2246, %v3082
        %v3085 = vunpack.c.l.s4 1983009808
        %v3086 = vunpack.c.0.s8 %v3085
        %v3087 = vlaneseq
        %v3088 = vshrl.u32 %v3087, 7
        %v3089 = vsub.s32 %v3086, %v3088
        %v3090 = vrot.slane %v2247, %v3089
        %v3092 = vunpack.c.l.s4 1983009808
        %v3093 = vunpack.c.0.s8 %v3092
        %v3094 = vlaneseq
        %v3095 = vshrl.u32 %v3094, 7
        %v3096 = vsub.s32 %v3093, %v3095
        %v3097 = vrot.slane %v2248, %v3096
        %v3099 = vunpack.c.l.s4 1983009808
        %v3100 = vunpack.c.0.s8 %v3099
        %v3101 = vlaneseq
        %v3102 = vshrl.u32 %v3101, 7
        %v3103 = vsub.s32 %v3100, %v3102
        %v3104 = vrot.slane %v2249, %v3103
        %v3106 = vunpack.c.l.s4 1983009808
        %v3107 = vunpack.c.0.s8 %v3106
        %v3108 = vlaneseq
        %v3109 = vshrl.u32 %v3108, 7
        %v3110 = vsub.s32 %v3107, %v3109
        %v3111 = vrot.slane %v2250, %v3110
        %v3113 = vunpack.c.l.s4 1983009808
        %v3114 = vunpack.c.0.s8 %v3113
        %v3115 = vlaneseq
        %v3116 = vshrl.u32 %v3115, 7
        %v3117 = vsub.s32 %v3114, %v3116
        %v3118 = vrot.slane %v2251, %v3117
        %v3119 = vunpack.c.l.b16 %v2901
        %v3120 = vunpack.c.l.b16 %v2908
        %v3121 = vunpack.c.l.b16 %v2915
        %v3122 = vunpack.c.l.b16 %v2922
        %v3123 = vunpack.c.l.b16 %v2929
        %v3124 = vunpack.c.l.b16 %v2936
        %v3125 = vunpack.c.l.b16 %v2943
        %v3126 = vunpack.c.l.b16 %v2950
        %v3127 = vunpack.c.l.b16 %v2957
        %v3128 = vunpack.c.l.b16 %v2964
        %v3129 = vunpack.c.l.b16 %v2971
        %v3130 = vunpack.c.l.b16 %v2978
        %v3131 = vunpack.c.l.b16 %v2985
        %v3132 = vunpack.c.l.b16 %v2992
        %v3133 = vunpack.c.l.b16 %v2999
        %v3134 = vunpack.c.l.b16 %v3006
        %v3135 = vunpack.c.l.b16 %v3013
        %v3136 = vunpack.c.l.b16 %v3020
        %v3137 = vunpack.c.l.b16 %v3027
        %v3138 = vunpack.c.l.b16 %v3034
        %v3139 = vunpack.c.l.b16 %v3041
        %v3140 = vunpack.c.l.b16 %v3048
        %v3141 = vunpack.c.l.b16 %v3055
        %v3142 = vunpack.c.l.b16 %v3062
        %v3143 = vunpack.c.l.b16 %v3069
        %v3144 = vunpack.c.l.b16 %v3076
        %v3145 = vunpack.c.l.b16 %v3083
        %v3146 = vunpack.c.l.b16 %v3090
        %v3147 = vunpack.c.l.b16 %v3097
        %v3148 = vunpack.c.l.b16 %v3104
        %v3149 = vunpack.c.l.b16 %v3111
        %v3150 = vunpack.c.l.b16 %v3118
        %v3151 = vrot.slane %v3119, 1
        %v3152 = vsel %vm1098, %v3120, %v3151
        %v3153 = vrot.slane %v3121, 7
        %v3154 = vsel %vm1101, %v3153, %v3152
        %v3155 = vrot.slane %v3122, 6
        %v3156 = vsel %vm1104, %v3155, %v3154
        %v3157 = vrot.slane %v3123, 5
        %v3158 = vsel %vm1107, %v3157, %v3156
        %v3159 = vrot.slane %v3124, 4
        %v3160 = vsel %vm1110, %v3159, %v3158
        %v3161 = vrot.slane %v3125, 3
        %v3162 = vsel %vm1113, %v3161, %v3160
        %v3163 = vrot.slane %v3126, 2
        %v3164 = vsel %vm1116, %v3163, %v3162
        %v3165 = vrot.slane %v3127, 1
        %v3166 = vsel %vm1098, %v3128, %v3165
        %v3167 = vrot.slane %v3129, 7
        %v3168 = vsel %vm1101, %v3167, %v3166
        %v3169 = vrot.slane %v3130, 6
        %v3170 = vsel %vm1104, %v3169, %v3168
        %v3171 = vrot.slane %v3131, 5
        %v3172 = vsel %vm1107, %v3171, %v3170
        %v3173 = vrot.slane %v3132, 4
        %v3174 = vsel %vm1110, %v3173, %v3172
        %v3175 = vrot.slane %v3133, 3
        %v3176 = vsel %vm1113, %v3175, %v3174
        %v3177 = vrot.slane %v3134, 2
        %v3178 = vsel %vm1116, %v3177, %v3176
        %v3179 = vrot.slane %v3135, 1
        %v3180 = vsel %vm1098, %v3136, %v3179
        %v3181 = vrot.slane %v3137, 7
        %v3182 = vsel %vm1101, %v3181, %v3180
        %v3183 = vrot.slane %v3138, 6
        %v3184 = vsel %vm1104, %v3183, %v3182
        %v3185 = vrot.slane %v3139, 5
        %v3186 = vsel %vm1107, %v3185, %v3184
        %v3187 = vrot.slane %v3140, 4
        %v3188 = vsel %vm1110, %v3187, %v3186
        %v3189 = vrot.slane %v3141, 3
        %v3190 = vsel %vm1113, %v3189, %v3188
        %v3191 = vrot.slane %v3142, 2
        %v3192 = vsel %vm1116, %v3191, %v3190
        %v3193 = vrot.slane %v3143, 1
        %v3194 = vsel %vm1098, %v3144, %v3193
        %v3195 = vrot.slane %v3145, 7
        %v3196 = vsel %vm1101, %v3195, %v3194
        %v3197 = vrot.slane %v3146, 6
        %v3198 = vsel %vm1104, %v3197, %v3196
        %v3199 = vrot.slane %v3147, 5
        %v3200 = vsel %vm1107, %v3199, %v3198
        %v3201 = vrot.slane %v3148, 4
        %v3202 = vsel %vm1110, %v3201, %v3200
        %v3203 = vrot.slane %v3149, 3
        %v3204 = vsel %vm1113, %v3203, %v3202
        %v3205 = vrot.slane %v3150, 2
        %v3206 = vsel %vm1116, %v3205, %v3204
        %v3207 = vpack.c.b16 %v3178, %v3164
        %v3208 = vpack.c.b16 %v3206, %v3192
        %v3212 = vsel %vm1576, %v2861, 0
        %v3215 = vsel %vm1576, %v2862, 0
        %3217 = vmatprep.subr.bf16.mxu0 0
        %3218 = vmatpush1.bf16.msra.mxu0 0
        %3219 = vmatprep.subr.bf16.mxu0 0
        %3220 = vmatpush1.bf16.msra.mxu0 0
        %3221 = vmatprep.subr.bf16.mxu0 0
        %3222 = vmatpush1.bf16.msra.mxu0 0
        %3223 = vmatprep.subr.bf16.mxu0 0
        %3224 = vmatpush1.bf16.msra.mxu0 0
        %3225 = vmatprep.subr.bf16.mxu0 0
        %3226 = vmatpush1.bf16.msra.mxu0 0
        %3227 = vmatprep.subr.bf16.mxu0 0
        %3228 = vmatpush1.bf16.msra.mxu0 0
        %3229 = vmatprep.subr.bf16.mxu0 0
        %3230 = vmatpush1.bf16.msra.mxu0 %v3208
        %3231 = vmatprep.subr.bf16.mxu0 0
        %3232 = vmatpush1.bf16.msra.mxu0 %v3207
        %3233 = vmatprep.subr.bf16.mxu0 0
        %3234 = vmatpush2.bf16.msra.mxu0 0
        %3235 = vmatprep.subr.bf16.mxu0 0
        %3236 = vmatpush2.bf16.msra.mxu0 0
        %3237 = vmatprep.subr.bf16.mxu0 0
        %3238 = vmatpush2.bf16.msra.mxu0 0
        %3239 = vmatprep.subr.bf16.mxu0 0
        %3240 = vmatpush2.bf16.msra.mxu0 0
        %3241 = vmatprep.subr.bf16.mxu0 0
        %3242 = vmatpush2.bf16.msra.mxu0 0
        %3243 = vmatprep.subr.bf16.mxu0 0
        %3244 = vmatpush2.bf16.msra.mxu0 0
        %3245 = vmatprep.subr.bf16.mxu0 0
        %3246 = vmatpush2.bf16.msra.mxu0 0
        %3247 = vmatprep.subr.bf16.mxu0 0
        %3248 = vmatpush2.bf16.msra.mxu0 0
        %3249 = vmatprep.mubr.bf16.mxu0 0
        %3250 = vmatmul.mubr.bf16.gmra.mxu0 %v3212
        %v3251 = vpop.f32.mrf.mxu0
        %v3252 = vadd.f32 0.0, %v3251
        %v3253 = vpop.f32.mrf.mxu0
        %v3254 = vpop.f32.mrf.mxu0
        %v3255 = vadd.f32 0.0, %v3254
        %v3256 = vpop.f32.mrf.mxu0
        %3257 = vmatprep.mubr.bf16.mxu0 0
        %3258 = vmatmul.mubr.bf16.gmra.mxu0 %v3215
        %v3259 = vpop.f32.mrf.mxu0
        %v3260 = vadd.f32 0.0, %v3259
        %v3261 = vpop.f32.mrf.mxu0
        %v3262 = vpop.f32.mrf.mxu0
        %v3263 = vadd.f32 0.0, %v3262
        %v3264 = vpop.f32.mrf.mxu0
        %3265 = vdwg.mxu0
        %v3266 = vpack.c.bf16 %v3255, %v3252
        %v3267 = vpack.c.bf16 %v3263, %v3260
        %v3268 = vld [vmem:[%s4 + $0x4] sm:$0xf]
        %v3270 = vsel %vm1508, %v3266, 0
        %v3273 = vsel %vm1508, %v3267, 0
        %v3276 = vsel %vm2035, %v3268, 0
        %3278 = vmatprep.subr.bf16.mxu0 0
        %3279 = vmatpush1.bf16.msra.mxu0 0
        %3280 = vmatprep.subr.bf16.mxu0 0
        %3281 = vmatpush1.bf16.msra.mxu0 0
        %3282 = vmatprep.subr.bf16.mxu0 0
        %3283 = vmatpush1.bf16.msra.mxu0 0
        %3284 = vmatprep.subr.bf16.mxu0 0
        %3285 = vmatpush1.bf16.msra.mxu0 0
        %3286 = vmatprep.subr.bf16.mxu0 0
        %3287 = vmatpush1.bf16.msra.mxu0 0
        %3288 = vmatprep.subr.bf16.mxu0 0
        %3289 = vmatpush1.bf16.msra.mxu0 0
        %3290 = vmatprep.subr.bf16.mxu0 0
        %3291 = vmatpush1.bf16.msra.mxu0 0
        %3292 = vmatprep.subr.bf16.mxu0 0
        %3293 = vmatpush1.bf16.msra.mxu0 %v3276
        %3294 = vmatprep.subr.bf16.mxu0 0
        %3295 = vmatpush2.bf16.msra.mxu0 0
        %3296 = vmatprep.subr.bf16.mxu0 0
        %3297 = vmatpush2.bf16.msra.mxu0 0
        %3298 = vmatprep.subr.bf16.mxu0 0
        %3299 = vmatpush2.bf16.msra.mxu0 0
        %3300 = vmatprep.subr.bf16.mxu0 0
        %3301 = vmatpush2.bf16.msra.mxu0 0
        %3302 = vmatprep.subr.bf16.mxu0 0
        %3303 = vmatpush2.bf16.msra.mxu0 0
        %3304 = vmatprep.subr.bf16.mxu0 0
        %3305 = vmatpush2.bf16.msra.mxu0 0
        %3306 = vmatprep.subr.bf16.mxu0 0
        %3307 = vmatpush2.bf16.msra.mxu0 0
        %3308 = vmatprep.subr.bf16.mxu0 0
        %3309 = vmatpush2.bf16.msra.mxu0 0
        %3310 = vmatprep.mubr.bf16.mxu0 0
        %3311 = vmatmul.mubr.bf16.gmra.mxu0 %v3270
        %v3312 = vpop.f32.mrf.mxu0
        %v3313 = vadd.f32 0.0, %v3312
        %v3314 = vpop.f32.mrf.mxu0
        %v3315 = vpop.f32.mrf.mxu0
        %v3316 = vadd.f32 0.0, %v3315
        %v3317 = vpop.f32.mrf.mxu0
        %3318 = vmatprep.mubr.bf16.mxu0 0
        %3319 = vmatmul.mubr.bf16.gmra.mxu0 %v3273
        %v3320 = vpop.f32.mrf.mxu0
        %v3321 = vadd.f32 0.0, %v3320
        %v3322 = vpop.f32.mrf.mxu0
        %v3323 = vpop.f32.mrf.mxu0
        %v3324 = vadd.f32 0.0, %v3323
        %v3325 = vpop.f32.mrf.mxu0
        %3326 = vdwg.mxu0
        %v3327 = vadd.f32 %v2088, %v3313
        %v3328 = vadd.f32 %v2089, %v3316
        %v3329 = vadd.f32 %v2090, %v3321
        %v3330 = vadd.f32 %v2091, %v3324
        %v3331 = vld [vmem:[%s754] sm:$0x2]
        %v3332 = vld [vmem:[%s754 + $0x2] sm:$0x2]
        %v3333 = vld [vmem:[%s754 + $0x4] sm:$0x2]
        %v3334 = vld [vmem:[%s754 + $0x6] sm:$0x2]
        %v3335 = vld [vmem:[%s754 + $0x8] sm:$0x2]
        %v3336 = vld [vmem:[%s754 + $0xa] sm:$0x2]
        %v3337 = vld [vmem:[%s754 + $0xc] sm:$0x2]
        %v3338 = vld [vmem:[%s754 + $0xe] sm:$0x2]
        %v3339 = vld [vmem:[%s754 + $0x10] sm:$0x2]
        %v3340 = vld [vmem:[%s754 + $0x12] sm:$0x2]
        %v3341 = vld [vmem:[%s754 + $0x14] sm:$0x2]
        %v3342 = vld [vmem:[%s754 + $0x16] sm:$0x2]
        %v3343 = vld [vmem:[%s754 + $0x18] sm:$0x2]
        %v3344 = vld [vmem:[%s754 + $0x1a] sm:$0x2]
        %v3345 = vld [vmem:[%s754 + $0x1c] sm:$0x2]
        %v3346 = vld [vmem:[%s754 + $0x1e] sm:$0x2]
        %v3347 = vld [vmem:[%s754 + $0x20] sm:$0x2]
        %v3348 = vld [vmem:[%s754 + $0x22] sm:$0x2]
        %v3349 = vld [vmem:[%s754 + $0x24] sm:$0x2]
        %v3350 = vld [vmem:[%s754 + $0x26] sm:$0x2]
        %v3351 = vld [vmem:[%s754 + $0x28] sm:$0x2]
        %v3352 = vld [vmem:[%s754 + $0x2a] sm:$0x2]
        %v3353 = vld [vmem:[%s754 + $0x2c] sm:$0x2]
        %v3354 = vld [vmem:[%s754 + $0x2e] sm:$0x2]
        %v3355 = vld [vmem:[%s754 + $0x30] sm:$0x2]
        %v3356 = vld [vmem:[%s754 + $0x32] sm:$0x2]
        %v3357 = vld [vmem:[%s754 + $0x34] sm:$0x2]
        %v3358 = vld [vmem:[%s754 + $0x36] sm:$0x2]
        %v3359 = vld [vmem:[%s754 + $0x38] sm:$0x2]
        %v3360 = vld [vmem:[%s754 + $0x3a] sm:$0x2]
        %v3361 = vld [vmem:[%s754 + $0x3c] sm:$0x2]
        %v3362 = vld [vmem:[%s754 + $0x3e] sm:$0x2]
        %v3363 = vunpack.c.l.bf16 %v3331
        %v3364 = vunpack.c.l.bf16 %v3332
        %v3365 = vunpack.c.l.bf16 %v3333
        %v3366 = vunpack.c.l.bf16 %v3334
        %v3367 = vunpack.c.l.bf16 %v3335
        %v3368 = vunpack.c.l.bf16 %v3336
        %v3369 = vunpack.c.l.bf16 %v3337
        %v3370 = vunpack.c.l.bf16 %v3338
        %v3371 = vunpack.c.l.bf16 %v3339
        %v3372 = vunpack.c.l.bf16 %v3340
        %v3373 = vunpack.c.l.bf16 %v3341
        %v3374 = vunpack.c.l.bf16 %v3342
        %v3375 = vunpack.c.l.bf16 %v3343
        %v3376 = vunpack.c.l.bf16 %v3344
        %v3377 = vunpack.c.l.bf16 %v3345
        %v3378 = vunpack.c.l.bf16 %v3346
        %v3379 = vunpack.c.l.bf16 %v3347
        %v3380 = vunpack.c.l.bf16 %v3348
        %v3381 = vunpack.c.l.bf16 %v3349
        %v3382 = vunpack.c.l.bf16 %v3350
        %v3383 = vunpack.c.l.bf16 %v3351
        %v3384 = vunpack.c.l.bf16 %v3352
        %v3385 = vunpack.c.l.bf16 %v3353
        %v3386 = vunpack.c.l.bf16 %v3354
        %v3387 = vunpack.c.l.bf16 %v3355
        %v3388 = vunpack.c.l.bf16 %v3356
        %v3389 = vunpack.c.l.bf16 %v3357
        %v3390 = vunpack.c.l.bf16 %v3358
        %v3391 = vunpack.c.l.bf16 %v3359
        %v3392 = vunpack.c.l.bf16 %v3360
        %v3393 = vunpack.c.l.bf16 %v3361
        %v3394 = vunpack.c.l.bf16 %v3362
        %v3395 = vmul.f32 %v3363, 0.35355338
        %v3396 = vmul.f32 %v3364, 0.35355338
        %v3397 = vmul.f32 %v3365, 0.35355338
        %v3398 = vmul.f32 %v3366, 0.35355338
        %v3399 = vmul.f32 %v3367, 0.35355338
        %v3400 = vmul.f32 %v3368, 0.35355338
        %v3401 = vmul.f32 %v3369, 0.35355338
        %v3402 = vmul.f32 %v3370, 0.35355338
        %v3403 = vmul.f32 %v3371, 0.35355338
        %v3404 = vmul.f32 %v3372, 0.35355338
        %v3405 = vmul.f32 %v3373, 0.35355338
        %v3406 = vmul.f32 %v3374, 0.35355338
        %v3407 = vmul.f32 %v3375, 0.35355338
        %v3408 = vmul.f32 %v3376, 0.35355338
        %v3409 = vmul.f32 %v3377, 0.35355338
        %v3410 = vmul.f32 %v3378, 0.35355338
        %v3411 = vmul.f32 %v3379, 0.35355338
        %v3412 = vmul.f32 %v3380, 0.35355338
        %v3413 = vmul.f32 %v3381, 0.35355338
        %v3414 = vmul.f32 %v3382, 0.35355338
        %v3415 = vmul.f32 %v3383, 0.35355338
        %v3416 = vmul.f32 %v3384, 0.35355338
        %v3417 = vmul.f32 %v3385, 0.35355338
        %v3418 = vmul.f32 %v3386, 0.35355338
        %v3419 = vmul.f32 %v3387, 0.35355338
        %v3420 = vmul.f32 %v3388, 0.35355338
        %v3421 = vmul.f32 %v3389, 0.35355338
        %v3422 = vmul.f32 %v3390, 0.35355338
        %v3423 = vmul.f32 %v3391, 0.35355338
        %v3424 = vmul.f32 %v3392, 0.35355338
        %v3425 = vmul.f32 %v3393, 0.35355338
        %v3426 = vmul.f32 %v3394, 0.35355338
        %v3427 = vld [vmem:[%s761] sm:$0x2]
        %v3428 = vld [vmem:[%s761 + $0x2] sm:$0x2]
        %v3429 = vld [vmem:[%s761 + $0x4] sm:$0x2]
        %v3430 = vld [vmem:[%s761 + $0x6] sm:$0x2]
        %v3431 = vld [vmem:[%s761 + $0x8] sm:$0x2]
        %v3432 = vld [vmem:[%s761 + $0xa] sm:$0x2]
        %v3433 = vld [vmem:[%s761 + $0xc] sm:$0x2]
        %v3434 = vld [vmem:[%s761 + $0xe] sm:$0x2]
        %v3435 = vld [vmem:[%s761 + $0x10] sm:$0x2]
        %v3436 = vld [vmem:[%s761 + $0x12] sm:$0x2]
        %v3437 = vld [vmem:[%s761 + $0x14] sm:$0x2]
        %v3438 = vld [vmem:[%s761 + $0x16] sm:$0x2]
        %v3439 = vld [vmem:[%s761 + $0x18] sm:$0x2]
        %v3440 = vld [vmem:[%s761 + $0x1a] sm:$0x2]
        %v3441 = vld [vmem:[%s761 + $0x1c] sm:$0x2]
        %v3442 = vld [vmem:[%s761 + $0x1e] sm:$0x2]
        %v3443 = vld [vmem:[%s761 + $0x20] sm:$0x2]
        %v3444 = vld [vmem:[%s761 + $0x22] sm:$0x2]
        %v3445 = vld [vmem:[%s761 + $0x24] sm:$0x2]
        %v3446 = vld [vmem:[%s761 + $0x26] sm:$0x2]
        %v3447 = vld [vmem:[%s761 + $0x28] sm:$0x2]
        %v3448 = vld [vmem:[%s761 + $0x2a] sm:$0x2]
        %v3449 = vld [vmem:[%s761 + $0x2c] sm:$0x2]
        %v3450 = vld [vmem:[%s761 + $0x2e] sm:$0x2]
        %v3451 = vld [vmem:[%s761 + $0x30] sm:$0x2]
        %v3452 = vld [vmem:[%s761 + $0x32] sm:$0x2]
        %v3453 = vld [vmem:[%s761 + $0x34] sm:$0x2]
        %v3454 = vld [vmem:[%s761 + $0x36] sm:$0x2]
        %v3455 = vld [vmem:[%s761 + $0x38] sm:$0x2]
        %v3456 = vld [vmem:[%s761 + $0x3a] sm:$0x2]
        %v3457 = vld [vmem:[%s761 + $0x3c] sm:$0x2]
        %v3458 = vld [vmem:[%s761 + $0x3e] sm:$0x2]
        %v3459 = vld [vmem:[%s768] sm:$0x2]
        %v3460 = vld [vmem:[%s768 + $0x2] sm:$0x2]
        %v3461 = vld [vmem:[%s768 + $0x4] sm:$0x2]
        %v3462 = vld [vmem:[%s768 + $0x6] sm:$0x2]
        %v3463 = vld [vmem:[%s768 + $0x8] sm:$0x2]
        %v3464 = vld [vmem:[%s768 + $0xa] sm:$0x2]
        %v3465 = vld [vmem:[%s768 + $0xc] sm:$0x2]
        %v3466 = vld [vmem:[%s768 + $0xe] sm:$0x2]
        %v3467 = vld [vmem:[%s768 + $0x10] sm:$0x2]
        %v3468 = vld [vmem:[%s768 + $0x12] sm:$0x2]
        %v3469 = vld [vmem:[%s768 + $0x14] sm:$0x2]
        %v3470 = vld [vmem:[%s768 + $0x16] sm:$0x2]
        %v3471 = vld [vmem:[%s768 + $0x18] sm:$0x2]
        %v3472 = vld [vmem:[%s768 + $0x1a] sm:$0x2]
        %v3473 = vld [vmem:[%s768 + $0x1c] sm:$0x2]
        %v3474 = vld [vmem:[%s768 + $0x1e] sm:$0x2]
        %v3475 = vld [vmem:[%s768 + $0x20] sm:$0x2]
        %v3476 = vld [vmem:[%s768 + $0x22] sm:$0x2]
        %v3477 = vld [vmem:[%s768 + $0x24] sm:$0x2]
        %v3478 = vld [vmem:[%s768 + $0x26] sm:$0x2]
        %v3479 = vld [vmem:[%s768 + $0x28] sm:$0x2]
        %v3480 = vld [vmem:[%s768 + $0x2a] sm:$0x2]
        %v3481 = vld [vmem:[%s768 + $0x2c] sm:$0x2]
        %v3482 = vld [vmem:[%s768 + $0x2e] sm:$0x2]
        %v3483 = vld [vmem:[%s768 + $0x30] sm:$0x2]
        %v3484 = vld [vmem:[%s768 + $0x32] sm:$0x2]
        %v3485 = vld [vmem:[%s768 + $0x34] sm:$0x2]
        %v3486 = vld [vmem:[%s768 + $0x36] sm:$0x2]
        %v3487 = vld [vmem:[%s768 + $0x38] sm:$0x2]
        %v3488 = vld [vmem:[%s768 + $0x3a] sm:$0x2]
        %v3489 = vld [vmem:[%s768 + $0x3c] sm:$0x2]
        %v3490 = vld [vmem:[%s768 + $0x3e] sm:$0x2]
        %v3491 = vpack.c.bf16 %v3395, %v3395
        %v3492 = vpack.c.bf16 %v3396, %v3396
        %v3493 = vpack.c.bf16 %v3397, %v3397
        %v3494 = vpack.c.bf16 %v3398, %v3398
        %v3495 = vpack.c.bf16 %v3399, %v3399
        %v3496 = vpack.c.bf16 %v3400, %v3400
        %v3497 = vpack.c.bf16 %v3401, %v3401
        %v3498 = vpack.c.bf16 %v3402, %v3402
        %v3499 = vpack.c.bf16 %v3403, %v3403
        %v3500 = vpack.c.bf16 %v3404, %v3404
        %v3501 = vpack.c.bf16 %v3405, %v3405
        %v3502 = vpack.c.bf16 %v3406, %v3406
        %v3503 = vpack.c.bf16 %v3407, %v3407
        %v3504 = vpack.c.bf16 %v3408, %v3408
        %v3505 = vpack.c.bf16 %v3409, %v3409
        %v3506 = vpack.c.bf16 %v3410, %v3410
        %v3507 = vpack.c.bf16 %v3411, %v3411
        %v3508 = vpack.c.bf16 %v3412, %v3412
        %v3509 = vpack.c.bf16 %v3413, %v3413
        %v3510 = vpack.c.bf16 %v3414, %v3414
        %v3511 = vpack.c.bf16 %v3415, %v3415
        %v3512 = vpack.c.bf16 %v3416, %v3416
        %v3513 = vpack.c.bf16 %v3417, %v3417
        %v3514 = vpack.c.bf16 %v3418, %v3418
        %v3515 = vpack.c.bf16 %v3419, %v3419
        %v3516 = vpack.c.bf16 %v3420, %v3420
        %v3517 = vpack.c.bf16 %v3421, %v3421
        %v3518 = vpack.c.bf16 %v3422, %v3422
        %v3519 = vpack.c.bf16 %v3423, %v3423
        %v3520 = vpack.c.bf16 %v3424, %v3424
        %v3521 = vpack.c.bf16 %v3425, %v3425
        %v3522 = vpack.c.bf16 %v3426, %v3426
        %v3555 = vunpack.c.l.b16 %v3491
        %v3556 = vunpack.c.l.b16 %v3492
        %v3557 = vunpack.c.l.b16 %v3493
        %v3558 = vunpack.c.l.b16 %v3494
        %v3559 = vunpack.c.l.b16 %v3495
        %v3560 = vunpack.c.l.b16 %v3496
        %v3561 = vunpack.c.l.b16 %v3497
        %v3562 = vunpack.c.l.b16 %v3498
        %v3563 = vunpack.c.l.b16 %v3499
        %v3564 = vunpack.c.l.b16 %v3500
        %v3565 = vunpack.c.l.b16 %v3501
        %v3566 = vunpack.c.l.b16 %v3502
        %v3567 = vunpack.c.l.b16 %v3503
        %v3568 = vunpack.c.l.b16 %v3504
        %v3569 = vunpack.c.l.b16 %v3505
        %v3570 = vunpack.c.l.b16 %v3506
        %v3571 = vunpack.c.l.b16 %v3507
        %v3572 = vunpack.c.l.b16 %v3508
        %v3573 = vunpack.c.l.b16 %v3509
        %v3574 = vunpack.c.l.b16 %v3510
        %v3575 = vunpack.c.l.b16 %v3511
        %v3576 = vunpack.c.l.b16 %v3512
        %v3577 = vunpack.c.l.b16 %v3513
        %v3578 = vunpack.c.l.b16 %v3514
        %v3579 = vunpack.c.l.b16 %v3515
        %v3580 = vunpack.c.l.b16 %v3516
        %v3581 = vunpack.c.l.b16 %v3517
        %v3582 = vunpack.c.l.b16 %v3518
        %v3583 = vunpack.c.l.b16 %v3519
        %v3584 = vunpack.c.l.b16 %v3520
        %v3585 = vunpack.c.l.b16 %v3521
        %v3586 = vunpack.c.l.b16 %v3522
        %v3587 = vrot.slane %v3555, 2
        %v3588 = vrot.slane %v3556, 1
        %v3589 = vsel %vm1098, %v3588, %v3587
        %v3590 = vsel %vm1101, %v3557, %v3589
        %v3591 = vrot.slane %v3558, 7
        %v3592 = vsel %vm1104, %v3591, %v3590
        %v3593 = vrot.slane %v3559, 6
        %v3594 = vsel %vm1107, %v3593, %v3592
        %v3595 = vrot.slane %v3560, 5
        %v3596 = vsel %vm1110, %v3595, %v3594
        %v3597 = vrot.slane %v3561, 4
        %v3598 = vsel %vm1113, %v3597, %v3596
        %v3599 = vrot.slane %v3562, 3
        %v3600 = vsel %vm1116, %v3599, %v3598
        %v3601 = vrot.slane %v3563, 2
        %v3602 = vrot.slane %v3564, 1
        %v3603 = vsel %vm1098, %v3602, %v3601
        %v3604 = vsel %vm1101, %v3565, %v3603
        %v3605 = vrot.slane %v3566, 7
        %v3606 = vsel %vm1104, %v3605, %v3604
        %v3607 = vrot.slane %v3567, 6
        %v3608 = vsel %vm1107, %v3607, %v3606
        %v3609 = vrot.slane %v3568, 5
        %v3610 = vsel %vm1110, %v3609, %v3608
        %v3611 = vrot.slane %v3569, 4
        %v3612 = vsel %vm1113, %v3611, %v3610
        %v3613 = vrot.slane %v3570, 3
        %v3614 = vsel %vm1116, %v3613, %v3612
        %v3615 = vrot.slane %v3571, 2
        %v3616 = vrot.slane %v3572, 1
        %v3617 = vsel %vm1098, %v3616, %v3615
        %v3618 = vsel %vm1101, %v3573, %v3617
        %v3619 = vrot.slane %v3574, 7
        %v3620 = vsel %vm1104, %v3619, %v3618
        %v3621 = vrot.slane %v3575, 6
        %v3622 = vsel %vm1107, %v3621, %v3620
        %v3623 = vrot.slane %v3576, 5
        %v3624 = vsel %vm1110, %v3623, %v3622
        %v3625 = vrot.slane %v3577, 4
        %v3626 = vsel %vm1113, %v3625, %v3624
        %v3627 = vrot.slane %v3578, 3
        %v3628 = vsel %vm1116, %v3627, %v3626
        %v3629 = vrot.slane %v3579, 2
        %v3630 = vrot.slane %v3580, 1
        %v3631 = vsel %vm1098, %v3630, %v3629
        %v3632 = vsel %vm1101, %v3581, %v3631
        %v3633 = vrot.slane %v3582, 7
        %v3634 = vsel %vm1104, %v3633, %v3632
        %v3635 = vrot.slane %v3583, 6
        %v3636 = vsel %vm1107, %v3635, %v3634
        %v3637 = vrot.slane %v3584, 5
        %v3638 = vsel %vm1110, %v3637, %v3636
        %v3639 = vrot.slane %v3585, 4
        %v3640 = vsel %vm1113, %v3639, %v3638
        %v3641 = vrot.slane %v3586, 3
        %v3642 = vsel %vm1116, %v3641, %v3640
        %v3643 = vpack.c.b16 %v3614, %v3600
        %v3644 = vpack.c.b16 %v3642, %v3628
        %v3678 = vunpack.c.l.s4 1983009808
        %v3679 = vunpack.c.0.s8 %v3678
        %v3680 = vlaneseq
        %v3681 = vshrl.u32 %v3680, 7
        %v3682 = vsub.s32 %v3679, %v3681
        %v3683 = vrot.slane %v3427, %v3682
        %v3685 = vunpack.c.l.s4 1983009808
        %v3686 = vunpack.c.0.s8 %v3685
        %v3687 = vlaneseq
        %v3688 = vshrl.u32 %v3687, 7
        %v3689 = vsub.s32 %v3686, %v3688
        %v3690 = vrot.slane %v3428, %v3689
        %v3692 = vunpack.c.l.s4 1983009808
        %v3693 = vunpack.c.0.s8 %v3692
        %v3694 = vlaneseq
        %v3695 = vshrl.u32 %v3694, 7
        %v3696 = vsub.s32 %v3693, %v3695
        %v3697 = vrot.slane %v3429, %v3696
        %v3699 = vunpack.c.l.s4 1983009808
        %v3700 = vunpack.c.0.s8 %v3699
        %v3701 = vlaneseq
        %v3702 = vshrl.u32 %v3701, 7
        %v3703 = vsub.s32 %v3700, %v3702
        %v3704 = vrot.slane %v3430, %v3703
        %v3706 = vunpack.c.l.s4 1983009808
        %v3707 = vunpack.c.0.s8 %v3706
        %v3708 = vlaneseq
        %v3709 = vshrl.u32 %v3708, 7
        %v3710 = vsub.s32 %v3707, %v3709
        %v3711 = vrot.slane %v3431, %v3710
        %v3713 = vunpack.c.l.s4 1983009808
        %v3714 = vunpack.c.0.s8 %v3713
        %v3715 = vlaneseq
        %v3716 = vshrl.u32 %v3715, 7
        %v3717 = vsub.s32 %v3714, %v3716
        %v3718 = vrot.slane %v3432, %v3717
        %v3720 = vunpack.c.l.s4 1983009808
        %v3721 = vunpack.c.0.s8 %v3720
        %v3722 = vlaneseq
        %v3723 = vshrl.u32 %v3722, 7
        %v3724 = vsub.s32 %v3721, %v3723
        %v3725 = vrot.slane %v3433, %v3724
        %v3727 = vunpack.c.l.s4 1983009808
        %v3728 = vunpack.c.0.s8 %v3727
        %v3729 = vlaneseq
        %v3730 = vshrl.u32 %v3729, 7
        %v3731 = vsub.s32 %v3728, %v3730
        %v3732 = vrot.slane %v3434, %v3731
        %v3734 = vunpack.c.l.s4 1983009808
        %v3735 = vunpack.c.0.s8 %v3734
        %v3736 = vlaneseq
        %v3737 = vshrl.u32 %v3736, 7
        %v3738 = vsub.s32 %v3735, %v3737
        %v3739 = vrot.slane %v3435, %v3738
        %v3741 = vunpack.c.l.s4 1983009808
        %v3742 = vunpack.c.0.s8 %v3741
        %v3743 = vlaneseq
        %v3744 = vshrl.u32 %v3743, 7
        %v3745 = vsub.s32 %v3742, %v3744
        %v3746 = vrot.slane %v3436, %v3745
        %v3748 = vunpack.c.l.s4 1983009808
        %v3749 = vunpack.c.0.s8 %v3748
        %v3750 = vlaneseq
        %v3751 = vshrl.u32 %v3750, 7
        %v3752 = vsub.s32 %v3749, %v3751
        %v3753 = vrot.slane %v3437, %v3752
        %v3755 = vunpack.c.l.s4 1983009808
        %v3756 = vunpack.c.0.s8 %v3755
        %v3757 = vlaneseq
        %v3758 = vshrl.u32 %v3757, 7
        %v3759 = vsub.s32 %v3756, %v3758
        %v3760 = vrot.slane %v3438, %v3759
        %v3762 = vunpack.c.l.s4 1983009808
        %v3763 = vunpack.c.0.s8 %v3762
        %v3764 = vlaneseq
        %v3765 = vshrl.u32 %v3764, 7
        %v3766 = vsub.s32 %v3763, %v3765
        %v3767 = vrot.slane %v3439, %v3766
        %v3769 = vunpack.c.l.s4 1983009808
        %v3770 = vunpack.c.0.s8 %v3769
        %v3771 = vlaneseq
        %v3772 = vshrl.u32 %v3771, 7
        %v3773 = vsub.s32 %v3770, %v3772
        %v3774 = vrot.slane %v3440, %v3773
        %v3776 = vunpack.c.l.s4 1983009808
        %v3777 = vunpack.c.0.s8 %v3776
        %v3778 = vlaneseq
        %v3779 = vshrl.u32 %v3778, 7
        %v3780 = vsub.s32 %v3777, %v3779
        %v3781 = vrot.slane %v3441, %v3780
        %v3783 = vunpack.c.l.s4 1983009808
        %v3784 = vunpack.c.0.s8 %v3783
        %v3785 = vlaneseq
        %v3786 = vshrl.u32 %v3785, 7
        %v3787 = vsub.s32 %v3784, %v3786
        %v3788 = vrot.slane %v3442, %v3787
        %v3790 = vunpack.c.l.s4 1983009808
        %v3791 = vunpack.c.0.s8 %v3790
        %v3792 = vlaneseq
        %v3793 = vshrl.u32 %v3792, 7
        %v3794 = vsub.s32 %v3791, %v3793
        %v3795 = vrot.slane %v3443, %v3794
        %v3797 = vunpack.c.l.s4 1983009808
        %v3798 = vunpack.c.0.s8 %v3797
        %v3799 = vlaneseq
        %v3800 = vshrl.u32 %v3799, 7
        %v3801 = vsub.s32 %v3798, %v3800
        %v3802 = vrot.slane %v3444, %v3801
        %v3804 = vunpack.c.l.s4 1983009808
        %v3805 = vunpack.c.0.s8 %v3804
        %v3806 = vlaneseq
        %v3807 = vshrl.u32 %v3806, 7
        %v3808 = vsub.s32 %v3805, %v3807
        %v3809 = vrot.slane %v3445, %v3808
        %v3811 = vunpack.c.l.s4 1983009808
        %v3812 = vunpack.c.0.s8 %v3811
        %v3813 = vlaneseq
        %v3814 = vshrl.u32 %v3813, 7
        %v3815 = vsub.s32 %v3812, %v3814
        %v3816 = vrot.slane %v3446, %v3815
        %v3818 = vunpack.c.l.s4 1983009808
        %v3819 = vunpack.c.0.s8 %v3818
        %v3820 = vlaneseq
        %v3821 = vshrl.u32 %v3820, 7
        %v3822 = vsub.s32 %v3819, %v3821
        %v3823 = vrot.slane %v3447, %v3822
        %v3825 = vunpack.c.l.s4 1983009808
        %v3826 = vunpack.c.0.s8 %v3825
        %v3827 = vlaneseq
        %v3828 = vshrl.u32 %v3827, 7
        %v3829 = vsub.s32 %v3826, %v3828
        %v3830 = vrot.slane %v3448, %v3829
        %v3832 = vunpack.c.l.s4 1983009808
        %v3833 = vunpack.c.0.s8 %v3832
        %v3834 = vlaneseq
        %v3835 = vshrl.u32 %v3834, 7
        %v3836 = vsub.s32 %v3833, %v3835
        %v3837 = vrot.slane %v3449, %v3836
        %v3839 = vunpack.c.l.s4 1983009808
        %v3840 = vunpack.c.0.s8 %v3839
        %v3841 = vlaneseq
        %v3842 = vshrl.u32 %v3841, 7
        %v3843 = vsub.s32 %v3840, %v3842
        %v3844 = vrot.slane %v3450, %v3843
        %v3846 = vunpack.c.l.s4 1983009808
        %v3847 = vunpack.c.0.s8 %v3846
        %v3848 = vlaneseq
        %v3849 = vshrl.u32 %v3848, 7
        %v3850 = vsub.s32 %v3847, %v3849
        %v3851 = vrot.slane %v3451, %v3850
        %v3853 = vunpack.c.l.s4 1983009808
        %v3854 = vunpack.c.0.s8 %v3853
        %v3855 = vlaneseq
        %v3856 = vshrl.u32 %v3855, 7
        %v3857 = vsub.s32 %v3854, %v3856
        %v3858 = vrot.slane %v3452, %v3857
        %v3860 = vunpack.c.l.s4 1983009808
        %v3861 = vunpack.c.0.s8 %v3860
        %v3862 = vlaneseq
        %v3863 = vshrl.u32 %v3862, 7
        %v3864 = vsub.s32 %v3861, %v3863
        %v3865 = vrot.slane %v3453, %v3864
        %v3867 = vunpack.c.l.s4 1983009808
        %v3868 = vunpack.c.0.s8 %v3867
        %v3869 = vlaneseq
        %v3870 = vshrl.u32 %v3869, 7
        %v3871 = vsub.s32 %v3868, %v3870
        %v3872 = vrot.slane %v3454, %v3871
        %v3874 = vunpack.c.l.s4 1983009808
        %v3875 = vunpack.c.0.s8 %v3874
        %v3876 = vlaneseq
        %v3877 = vshrl.u32 %v3876, 7
        %v3878 = vsub.s32 %v3875, %v3877
        %v3879 = vrot.slane %v3455, %v3878
        %v3881 = vunpack.c.l.s4 1983009808
        %v3882 = vunpack.c.0.s8 %v3881
        %v3883 = vlaneseq
        %v3884 = vshrl.u32 %v3883, 7
        %v3885 = vsub.s32 %v3882, %v3884
        %v3886 = vrot.slane %v3456, %v3885
        %v3888 = vunpack.c.l.s4 1983009808
        %v3889 = vunpack.c.0.s8 %v3888
        %v3890 = vlaneseq
        %v3891 = vshrl.u32 %v3890, 7
        %v3892 = vsub.s32 %v3889, %v3891
        %v3893 = vrot.slane %v3457, %v3892
        %v3895 = vunpack.c.l.s4 1983009808
        %v3896 = vunpack.c.0.s8 %v3895
        %v3897 = vlaneseq
        %v3898 = vshrl.u32 %v3897, 7
        %v3899 = vsub.s32 %v3896, %v3898
        %v3900 = vrot.slane %v3458, %v3899
        %v3901 = vunpack.c.l.b16 %v3683
        %v3902 = vunpack.c.l.b16 %v3690
        %v3903 = vunpack.c.l.b16 %v3697
        %v3904 = vunpack.c.l.b16 %v3704
        %v3905 = vunpack.c.l.b16 %v3711
        %v3906 = vunpack.c.l.b16 %v3718
        %v3907 = vunpack.c.l.b16 %v3725
        %v3908 = vunpack.c.l.b16 %v3732
        %v3909 = vunpack.c.l.b16 %v3739
        %v3910 = vunpack.c.l.b16 %v3746
        %v3911 = vunpack.c.l.b16 %v3753
        %v3912 = vunpack.c.l.b16 %v3760
        %v3913 = vunpack.c.l.b16 %v3767
        %v3914 = vunpack.c.l.b16 %v3774
        %v3915 = vunpack.c.l.b16 %v3781
        %v3916 = vunpack.c.l.b16 %v3788
        %v3917 = vunpack.c.l.b16 %v3795
        %v3918 = vunpack.c.l.b16 %v3802
        %v3919 = vunpack.c.l.b16 %v3809
        %v3920 = vunpack.c.l.b16 %v3816
        %v3921 = vunpack.c.l.b16 %v3823
        %v3922 = vunpack.c.l.b16 %v3830
        %v3923 = vunpack.c.l.b16 %v3837
        %v3924 = vunpack.c.l.b16 %v3844
        %v3925 = vunpack.c.l.b16 %v3851
        %v3926 = vunpack.c.l.b16 %v3858
        %v3927 = vunpack.c.l.b16 %v3865
        %v3928 = vunpack.c.l.b16 %v3872
        %v3929 = vunpack.c.l.b16 %v3879
        %v3930 = vunpack.c.l.b16 %v3886
        %v3931 = vunpack.c.l.b16 %v3893
        %v3932 = vunpack.c.l.b16 %v3900
        %v3933 = vrot.slane %v3901, 2
        %v3934 = vrot.slane %v3902, 1
        %v3935 = vsel %vm1098, %v3934, %v3933
        %v3936 = vsel %vm1101, %v3903, %v3935
        %v3937 = vrot.slane %v3904, 7
        %v3938 = vsel %vm1104, %v3937, %v3936
        %v3939 = vrot.slane %v3905, 6
        %v3940 = vsel %vm1107, %v3939, %v3938
        %v3941 = vrot.slane %v3906, 5
        %v3942 = vsel %vm1110, %v3941, %v3940
        %v3943 = vrot.slane %v3907, 4
        %v3944 = vsel %vm1113, %v3943, %v3942
        %v3945 = vrot.slane %v3908, 3
        %v3946 = vsel %vm1116, %v3945, %v3944
        %v3947 = vrot.slane %v3909, 2
        %v3948 = vrot.slane %v3910, 1
        %v3949 = vsel %vm1098, %v3948, %v3947
        %v3950 = vsel %vm1101, %v3911, %v3949
        %v3951 = vrot.slane %v3912, 7
        %v3952 = vsel %vm1104, %v3951, %v3950
        %v3953 = vrot.slane %v3913, 6
        %v3954 = vsel %vm1107, %v3953, %v3952
        %v3955 = vrot.slane %v3914, 5
        %v3956 = vsel %vm1110, %v3955, %v3954
        %v3957 = vrot.slane %v3915, 4
        %v3958 = vsel %vm1113, %v3957, %v3956
        %v3959 = vrot.slane %v3916, 3
        %v3960 = vsel %vm1116, %v3959, %v3958
        %v3961 = vrot.slane %v3917, 2
        %v3962 = vrot.slane %v3918, 1
        %v3963 = vsel %vm1098, %v3962, %v3961
        %v3964 = vsel %vm1101, %v3919, %v3963
        %v3965 = vrot.slane %v3920, 7
        %v3966 = vsel %vm1104, %v3965, %v3964
        %v3967 = vrot.slane %v3921, 6
        %v3968 = vsel %vm1107, %v3967, %v3966
        %v3969 = vrot.slane %v3922, 5
        %v3970 = vsel %vm1110, %v3969, %v3968
        %v3971 = vrot.slane %v3923, 4
        %v3972 = vsel %vm1113, %v3971, %v3970
        %v3973 = vrot.slane %v3924, 3
        %v3974 = vsel %vm1116, %v3973, %v3972
        %v3975 = vrot.slane %v3925, 2
        %v3976 = vrot.slane %v3926, 1
        %v3977 = vsel %vm1098, %v3976, %v3975
        %v3978 = vsel %vm1101, %v3927, %v3977
        %v3979 = vrot.slane %v3928, 7
        %v3980 = vsel %vm1104, %v3979, %v3978
        %v3981 = vrot.slane %v3929, 6
        %v3982 = vsel %vm1107, %v3981, %v3980
        %v3983 = vrot.slane %v3930, 5
        %v3984 = vsel %vm1110, %v3983, %v3982
        %v3985 = vrot.slane %v3931, 4
        %v3986 = vsel %vm1113, %v3985, %v3984
        %v3987 = vrot.slane %v3932, 3
        %v3988 = vsel %vm1116, %v3987, %v3986
        %v3989 = vpack.c.b16 %v3960, %v3946
        %v3990 = vpack.c.b16 %v3988, %v3974
        %v3992 = vsel %vm1508, %v3643, 0
        %v3995 = vsel %vm1508, %v3644, 0
        %v3998 = vsel %vm1508, %v3989, 0
        %v4001 = vsel %vm1508, %v3990, 0
        %4003 = vmatprep.subr.bf16.mxu0 0
        %4004 = vmatpush1.bf16.xpose.msra.mxu0 0
        %4005 = vmatprep.subr.bf16.mxu0 0
        %4006 = vmatpush1.bf16.xpose.msra.mxu0 0
        %4007 = vmatprep.subr.bf16.mxu0 0
        %4008 = vmatpush1.bf16.xpose.msra.mxu0 0
        %4009 = vmatprep.subr.bf16.mxu0 0
        %4010 = vmatpush1.bf16.xpose.msra.mxu0 0
        %4011 = vmatprep.subr.bf16.mxu0 0
        %4012 = vmatpush1.bf16.xpose.msra.mxu0 0
        %4013 = vmatprep.subr.bf16.mxu0 0
        %4014 = vmatpush1.bf16.xpose.msra.mxu0 0
        %4015 = vmatprep.subr.bf16.mxu0 0
        %4016 = vmatpush1.bf16.xpose.msra.mxu0 %v4001
        %4017 = vmatprep.subr.bf16.mxu0 0
        %4018 = vmatpush1.bf16.xpose.msra.mxu0 %v3998
        %4019 = vmatprep.subr.bf16.mxu0 0
        %4020 = vmatpush2.bf16.xpose.msra.mxu0 0
        %4021 = vmatprep.subr.bf16.mxu0 0
        %4022 = vmatpush2.bf16.xpose.msra.mxu0 0
        %4023 = vmatprep.subr.bf16.mxu0 0
        %4024 = vmatpush2.bf16.xpose.msra.mxu0 0
        %4025 = vmatprep.subr.bf16.mxu0 0
        %4026 = vmatpush2.bf16.xpose.msra.mxu0 0
        %4027 = vmatprep.subr.bf16.mxu0 0
        %4028 = vmatpush2.bf16.xpose.msra.mxu0 0
        %4029 = vmatprep.subr.bf16.mxu0 0
        %4030 = vmatpush2.bf16.xpose.msra.mxu0 0
        %4031 = vmatprep.subr.bf16.mxu0 0
        %4032 = vmatpush2.bf16.xpose.msra.mxu0 0
        %4033 = vmatprep.subr.bf16.mxu0 0
        %4034 = vmatpush2.bf16.xpose.msra.mxu0 0
        %4035 = vmatprep.mubr.bf16.mxu0 0
        %4036 = vmatmul.mubr.bf16.gmra.mxu0 %v3992
        %v4037 = vpop.f32.mrf.mxu0
        %v4038 = vadd.f32 0.0, %v4037
        %v4039 = vpop.f32.mrf.mxu0
        %v4040 = vpop.f32.mrf.mxu0
        %v4041 = vadd.f32 0.0, %v4040
        %v4042 = vpop.f32.mrf.mxu0
        %4043 = vmatprep.mubr.bf16.mxu0 0
        %4044 = vmatmul.mubr.bf16.gmra.mxu0 %v3995
        %v4045 = vpop.f32.mrf.mxu0
        %v4046 = vadd.f32 0.0, %v4045
        %v4047 = vpop.f32.mrf.mxu0
        %v4048 = vpop.f32.mrf.mxu0
        %v4049 = vadd.f32 0.0, %v4048
        %v4050 = vpop.f32.mrf.mxu0
        %4051 = vdwg.mxu0
        %v4052 = vsel %vm1571, %v4038, -1e+30
        %v4053 = vsel %vm1571, %v4041, -1e+30
        %v4054 = vsel %vm1571, %v4046, -1e+30
        %v4055 = vsel %vm1571, %v4049, -1e+30
        %v4056 = vsel %vm1576, %v4052, -inf
        %4057 = vmax.xlane.f32.xlu0 %v4056
        %v4058 = vpop.xlane.xlu0 %4057
        %v4059 = vsel %vm1576, %v4053, -inf
        %4060 = vmax.xlane.f32.xlu0 %v4059
        %v4061 = vpop.xlane.xlu0 %4060
        %v4062 = vsel %vm1576, %v4054, -inf
        %4063 = vmax.xlane.f32.xlu0 %v4062
        %v4064 = vpop.xlane.xlu0 %4063
        %v4065 = vsel %vm1576, %v4055, -inf
        %4066 = vmax.xlane.f32.xlu0 %v4065
        %v4067 = vpop.xlane.xlu0 %4066
        %v4068 = vsub.f32 %v4052, %v4058
        %v4069 = vsub.f32 %v4053, %v4061
        %v4070 = vsub.f32 %v4054, %v4064
        %v4071 = vsub.f32 %v4055, %v4067
        %v4072 = vmul.f32 %v4068, 1.442695
        %v4073 = vpow.pop %v4072
        %v4074 = vmul.f32 %v4069, 1.442695
        %v4075 = vpow.pop %v4074
        %v4076 = vmul.f32 %v4070, 1.442695
        %v4077 = vpow.pop %v4076
        %v4078 = vmul.f32 %v4071, 1.442695
        %v4079 = vpow.pop %v4078
        %v4080 = vsel %vm1576, %v4073, 0.0
        %4081 = vadd.xlane.f32.xlu0 %v4080
        %v4082 = vpop.xlane.xlu0 %4081
        %v4083 = vsel %vm1576, %v4075, 0.0
        %4084 = vadd.xlane.f32.xlu0 %v4083
        %v4085 = vpop.xlane.xlu0 %4084
        %v4086 = vsel %vm1576, %v4077, 0.0
        %4087 = vadd.xlane.f32.xlu0 %v4086
        %v4088 = vpop.xlane.xlu0 %4087
        %v4089 = vsel %vm1576, %v4079, 0.0
        %4090 = vadd.xlane.f32.xlu0 %v4089
        %v4091 = vpop.xlane.xlu0 %4090
        %v4092 = vrcp.pop %v4082
        %v4093 = vrcp.pop %v4085
        %v4094 = vrcp.pop %v4088
        %v4095 = vrcp.pop %v4091
        %v4096 = vmul.f32 %v4073, %v4092
        %v4097 = vmul.f32 %v4075, %v4093
        %v4098 = vmul.f32 %v4077, %v4094
        %v4099 = vmul.f32 %v4079, %v4095
        %v4100 = vpack.c.bf16 %v4097, %v4096
        %v4101 = vpack.c.bf16 %v4099, %v4098
        %v4135 = vunpack.c.l.s4 1983009808
        %v4136 = vunpack.c.0.s8 %v4135
        %v4137 = vlaneseq
        %v4138 = vshrl.u32 %v4137, 7
        %v4139 = vsub.s32 %v4136, %v4138
        %v4140 = vrot.slane %v3459, %v4139
        %v4142 = vunpack.c.l.s4 1983009808
        %v4143 = vunpack.c.0.s8 %v4142
        %v4144 = vlaneseq
        %v4145 = vshrl.u32 %v4144, 7
        %v4146 = vsub.s32 %v4143, %v4145
        %v4147 = vrot.slane %v3460, %v4146
        %v4149 = vunpack.c.l.s4 1983009808
        %v4150 = vunpack.c.0.s8 %v4149
        %v4151 = vlaneseq
        %v4152 = vshrl.u32 %v4151, 7
        %v4153 = vsub.s32 %v4150, %v4152
        %v4154 = vrot.slane %v3461, %v4153
        %v4156 = vunpack.c.l.s4 1983009808
        %v4157 = vunpack.c.0.s8 %v4156
        %v4158 = vlaneseq
        %v4159 = vshrl.u32 %v4158, 7
        %v4160 = vsub.s32 %v4157, %v4159
        %v4161 = vrot.slane %v3462, %v4160
        %v4163 = vunpack.c.l.s4 1983009808
        %v4164 = vunpack.c.0.s8 %v4163
        %v4165 = vlaneseq
        %v4166 = vshrl.u32 %v4165, 7
        %v4167 = vsub.s32 %v4164, %v4166
        %v4168 = vrot.slane %v3463, %v4167
        %v4170 = vunpack.c.l.s4 1983009808
        %v4171 = vunpack.c.0.s8 %v4170
        %v4172 = vlaneseq
        %v4173 = vshrl.u32 %v4172, 7
        %v4174 = vsub.s32 %v4171, %v4173
        %v4175 = vrot.slane %v3464, %v4174
        %v4177 = vunpack.c.l.s4 1983009808
        %v4178 = vunpack.c.0.s8 %v4177
        %v4179 = vlaneseq
        %v4180 = vshrl.u32 %v4179, 7
        %v4181 = vsub.s32 %v4178, %v4180
        %v4182 = vrot.slane %v3465, %v4181
        %v4184 = vunpack.c.l.s4 1983009808
        %v4185 = vunpack.c.0.s8 %v4184
        %v4186 = vlaneseq
        %v4187 = vshrl.u32 %v4186, 7
        %v4188 = vsub.s32 %v4185, %v4187
        %v4189 = vrot.slane %v3466, %v4188
        %v4191 = vunpack.c.l.s4 1983009808
        %v4192 = vunpack.c.0.s8 %v4191
        %v4193 = vlaneseq
        %v4194 = vshrl.u32 %v4193, 7
        %v4195 = vsub.s32 %v4192, %v4194
        %v4196 = vrot.slane %v3467, %v4195
        %v4198 = vunpack.c.l.s4 1983009808
        %v4199 = vunpack.c.0.s8 %v4198
        %v4200 = vlaneseq
        %v4201 = vshrl.u32 %v4200, 7
        %v4202 = vsub.s32 %v4199, %v4201
        %v4203 = vrot.slane %v3468, %v4202
        %v4205 = vunpack.c.l.s4 1983009808
        %v4206 = vunpack.c.0.s8 %v4205
        %v4207 = vlaneseq
        %v4208 = vshrl.u32 %v4207, 7
        %v4209 = vsub.s32 %v4206, %v4208
        %v4210 = vrot.slane %v3469, %v4209
        %v4212 = vunpack.c.l.s4 1983009808
        %v4213 = vunpack.c.0.s8 %v4212
        %v4214 = vlaneseq
        %v4215 = vshrl.u32 %v4214, 7
        %v4216 = vsub.s32 %v4213, %v4215
        %v4217 = vrot.slane %v3470, %v4216
        %v4219 = vunpack.c.l.s4 1983009808
        %v4220 = vunpack.c.0.s8 %v4219
        %v4221 = vlaneseq
        %v4222 = vshrl.u32 %v4221, 7
        %v4223 = vsub.s32 %v4220, %v4222
        %v4224 = vrot.slane %v3471, %v4223
        %v4226 = vunpack.c.l.s4 1983009808
        %v4227 = vunpack.c.0.s8 %v4226
        %v4228 = vlaneseq
        %v4229 = vshrl.u32 %v4228, 7
        %v4230 = vsub.s32 %v4227, %v4229
        %v4231 = vrot.slane %v3472, %v4230
        %v4233 = vunpack.c.l.s4 1983009808
        %v4234 = vunpack.c.0.s8 %v4233
        %v4235 = vlaneseq
        %v4236 = vshrl.u32 %v4235, 7
        %v4237 = vsub.s32 %v4234, %v4236
        %v4238 = vrot.slane %v3473, %v4237
        %v4240 = vunpack.c.l.s4 1983009808
        %v4241 = vunpack.c.0.s8 %v4240
        %v4242 = vlaneseq
        %v4243 = vshrl.u32 %v4242, 7
        %v4244 = vsub.s32 %v4241, %v4243
        %v4245 = vrot.slane %v3474, %v4244
        %v4247 = vunpack.c.l.s4 1983009808
        %v4248 = vunpack.c.0.s8 %v4247
        %v4249 = vlaneseq
        %v4250 = vshrl.u32 %v4249, 7
        %v4251 = vsub.s32 %v4248, %v4250
        %v4252 = vrot.slane %v3475, %v4251
        %v4254 = vunpack.c.l.s4 1983009808
        %v4255 = vunpack.c.0.s8 %v4254
        %v4256 = vlaneseq
        %v4257 = vshrl.u32 %v4256, 7
        %v4258 = vsub.s32 %v4255, %v4257
        %v4259 = vrot.slane %v3476, %v4258
        %v4261 = vunpack.c.l.s4 1983009808
        %v4262 = vunpack.c.0.s8 %v4261
        %v4263 = vlaneseq
        %v4264 = vshrl.u32 %v4263, 7
        %v4265 = vsub.s32 %v4262, %v4264
        %v4266 = vrot.slane %v3477, %v4265
        %v4268 = vunpack.c.l.s4 1983009808
        %v4269 = vunpack.c.0.s8 %v4268
        %v4270 = vlaneseq
        %v4271 = vshrl.u32 %v4270, 7
        %v4272 = vsub.s32 %v4269, %v4271
        %v4273 = vrot.slane %v3478, %v4272
        %v4275 = vunpack.c.l.s4 1983009808
        %v4276 = vunpack.c.0.s8 %v4275
        %v4277 = vlaneseq
        %v4278 = vshrl.u32 %v4277, 7
        %v4279 = vsub.s32 %v4276, %v4278
        %v4280 = vrot.slane %v3479, %v4279
        %v4282 = vunpack.c.l.s4 1983009808
        %v4283 = vunpack.c.0.s8 %v4282
        %v4284 = vlaneseq
        %v4285 = vshrl.u32 %v4284, 7
        %v4286 = vsub.s32 %v4283, %v4285
        %v4287 = vrot.slane %v3480, %v4286
        %v4289 = vunpack.c.l.s4 1983009808
        %v4290 = vunpack.c.0.s8 %v4289
        %v4291 = vlaneseq
        %v4292 = vshrl.u32 %v4291, 7
        %v4293 = vsub.s32 %v4290, %v4292
        %v4294 = vrot.slane %v3481, %v4293
        %v4296 = vunpack.c.l.s4 1983009808
        %v4297 = vunpack.c.0.s8 %v4296
        %v4298 = vlaneseq
        %v4299 = vshrl.u32 %v4298, 7
        %v4300 = vsub.s32 %v4297, %v4299
        %v4301 = vrot.slane %v3482, %v4300
        %v4303 = vunpack.c.l.s4 1983009808
        %v4304 = vunpack.c.0.s8 %v4303
        %v4305 = vlaneseq
        %v4306 = vshrl.u32 %v4305, 7
        %v4307 = vsub.s32 %v4304, %v4306
        %v4308 = vrot.slane %v3483, %v4307
        %v4310 = vunpack.c.l.s4 1983009808
        %v4311 = vunpack.c.0.s8 %v4310
        %v4312 = vlaneseq
        %v4313 = vshrl.u32 %v4312, 7
        %v4314 = vsub.s32 %v4311, %v4313
        %v4315 = vrot.slane %v3484, %v4314
        %v4317 = vunpack.c.l.s4 1983009808
        %v4318 = vunpack.c.0.s8 %v4317
        %v4319 = vlaneseq
        %v4320 = vshrl.u32 %v4319, 7
        %v4321 = vsub.s32 %v4318, %v4320
        %v4322 = vrot.slane %v3485, %v4321
        %v4324 = vunpack.c.l.s4 1983009808
        %v4325 = vunpack.c.0.s8 %v4324
        %v4326 = vlaneseq
        %v4327 = vshrl.u32 %v4326, 7
        %v4328 = vsub.s32 %v4325, %v4327
        %v4329 = vrot.slane %v3486, %v4328
        %v4331 = vunpack.c.l.s4 1983009808
        %v4332 = vunpack.c.0.s8 %v4331
        %v4333 = vlaneseq
        %v4334 = vshrl.u32 %v4333, 7
        %v4335 = vsub.s32 %v4332, %v4334
        %v4336 = vrot.slane %v3487, %v4335
        %v4338 = vunpack.c.l.s4 1983009808
        %v4339 = vunpack.c.0.s8 %v4338
        %v4340 = vlaneseq
        %v4341 = vshrl.u32 %v4340, 7
        %v4342 = vsub.s32 %v4339, %v4341
        %v4343 = vrot.slane %v3488, %v4342
        %v4345 = vunpack.c.l.s4 1983009808
        %v4346 = vunpack.c.0.s8 %v4345
        %v4347 = vlaneseq
        %v4348 = vshrl.u32 %v4347, 7
        %v4349 = vsub.s32 %v4346, %v4348
        %v4350 = vrot.slane %v3489, %v4349
        %v4352 = vunpack.c.l.s4 1983009808
        %v4353 = vunpack.c.0.s8 %v4352
        %v4354 = vlaneseq
        %v4355 = vshrl.u32 %v4354, 7
        %v4356 = vsub.s32 %v4353, %v4355
        %v4357 = vrot.slane %v3490, %v4356
        %v4358 = vunpack.c.l.b16 %v4140
        %v4359 = vunpack.c.l.b16 %v4147
        %v4360 = vunpack.c.l.b16 %v4154
        %v4361 = vunpack.c.l.b16 %v4161
        %v4362 = vunpack.c.l.b16 %v4168
        %v4363 = vunpack.c.l.b16 %v4175
        %v4364 = vunpack.c.l.b16 %v4182
        %v4365 = vunpack.c.l.b16 %v4189
        %v4366 = vunpack.c.l.b16 %v4196
        %v4367 = vunpack.c.l.b16 %v4203
        %v4368 = vunpack.c.l.b16 %v4210
        %v4369 = vunpack.c.l.b16 %v4217
        %v4370 = vunpack.c.l.b16 %v4224
        %v4371 = vunpack.c.l.b16 %v4231
        %v4372 = vunpack.c.l.b16 %v4238
        %v4373 = vunpack.c.l.b16 %v4245
        %v4374 = vunpack.c.l.b16 %v4252
        %v4375 = vunpack.c.l.b16 %v4259
        %v4376 = vunpack.c.l.b16 %v4266
        %v4377 = vunpack.c.l.b16 %v4273
        %v4378 = vunpack.c.l.b16 %v4280
        %v4379 = vunpack.c.l.b16 %v4287
        %v4380 = vunpack.c.l.b16 %v4294
        %v4381 = vunpack.c.l.b16 %v4301
        %v4382 = vunpack.c.l.b16 %v4308
        %v4383 = vunpack.c.l.b16 %v4315
        %v4384 = vunpack.c.l.b16 %v4322
        %v4385 = vunpack.c.l.b16 %v4329
        %v4386 = vunpack.c.l.b16 %v4336
        %v4387 = vunpack.c.l.b16 %v4343
        %v4388 = vunpack.c.l.b16 %v4350
        %v4389 = vunpack.c.l.b16 %v4357
        %v4390 = vrot.slane %v4358, 2
        %v4391 = vrot.slane %v4359, 1
        %v4392 = vsel %vm1098, %v4391, %v4390
        %v4393 = vsel %vm1101, %v4360, %v4392
        %v4394 = vrot.slane %v4361, 7
        %v4395 = vsel %vm1104, %v4394, %v4393
        %v4396 = vrot.slane %v4362, 6
        %v4397 = vsel %vm1107, %v4396, %v4395
        %v4398 = vrot.slane %v4363, 5
        %v4399 = vsel %vm1110, %v4398, %v4397
        %v4400 = vrot.slane %v4364, 4
        %v4401 = vsel %vm1113, %v4400, %v4399
        %v4402 = vrot.slane %v4365, 3
        %v4403 = vsel %vm1116, %v4402, %v4401
        %v4404 = vrot.slane %v4366, 2
        %v4405 = vrot.slane %v4367, 1
        %v4406 = vsel %vm1098, %v4405, %v4404
        %v4407 = vsel %vm1101, %v4368, %v4406
        %v4408 = vrot.slane %v4369, 7
        %v4409 = vsel %vm1104, %v4408, %v4407
        %v4410 = vrot.slane %v4370, 6
        %v4411 = vsel %vm1107, %v4410, %v4409
        %v4412 = vrot.slane %v4371, 5
        %v4413 = vsel %vm1110, %v4412, %v4411
        %v4414 = vrot.slane %v4372, 4
        %v4415 = vsel %vm1113, %v4414, %v4413
        %v4416 = vrot.slane %v4373, 3
        %v4417 = vsel %vm1116, %v4416, %v4415
        %v4418 = vrot.slane %v4374, 2
        %v4419 = vrot.slane %v4375, 1
        %v4420 = vsel %vm1098, %v4419, %v4418
        %v4421 = vsel %vm1101, %v4376, %v4420
        %v4422 = vrot.slane %v4377, 7
        %v4423 = vsel %vm1104, %v4422, %v4421
        %v4424 = vrot.slane %v4378, 6
        %v4425 = vsel %vm1107, %v4424, %v4423
        %v4426 = vrot.slane %v4379, 5
        %v4427 = vsel %vm1110, %v4426, %v4425
        %v4428 = vrot.slane %v4380, 4
        %v4429 = vsel %vm1113, %v4428, %v4427
        %v4430 = vrot.slane %v4381, 3
        %v4431 = vsel %vm1116, %v4430, %v4429
        %v4432 = vrot.slane %v4382, 2
        %v4433 = vrot.slane %v4383, 1
        %v4434 = vsel %vm1098, %v4433, %v4432
        %v4435 = vsel %vm1101, %v4384, %v4434
        %v4436 = vrot.slane %v4385, 7
        %v4437 = vsel %vm1104, %v4436, %v4435
        %v4438 = vrot.slane %v4386, 6
        %v4439 = vsel %vm1107, %v4438, %v4437
        %v4440 = vrot.slane %v4387, 5
        %v4441 = vsel %vm1110, %v4440, %v4439
        %v4442 = vrot.slane %v4388, 4
        %v4443 = vsel %vm1113, %v4442, %v4441
        %v4444 = vrot.slane %v4389, 3
        %v4445 = vsel %vm1116, %v4444, %v4443
        %v4446 = vpack.c.b16 %v4417, %v4403
        %v4447 = vpack.c.b16 %v4445, %v4431
        %v4451 = vsel %vm1576, %v4100, 0
        %v4454 = vsel %vm1576, %v4101, 0
        %4456 = vmatprep.subr.bf16.mxu0 0
        %4457 = vmatpush1.bf16.msra.mxu0 0
        %4458 = vmatprep.subr.bf16.mxu0 0
        %4459 = vmatpush1.bf16.msra.mxu0 0
        %4460 = vmatprep.subr.bf16.mxu0 0
        %4461 = vmatpush1.bf16.msra.mxu0 0
        %4462 = vmatprep.subr.bf16.mxu0 0
        %4463 = vmatpush1.bf16.msra.mxu0 0
        %4464 = vmatprep.subr.bf16.mxu0 0
        %4465 = vmatpush1.bf16.msra.mxu0 0
        %4466 = vmatprep.subr.bf16.mxu0 0
        %4467 = vmatpush1.bf16.msra.mxu0 0
        %4468 = vmatprep.subr.bf16.mxu0 0
        %4469 = vmatpush1.bf16.msra.mxu0 %v4447
        %4470 = vmatprep.subr.bf16.mxu0 0
        %4471 = vmatpush1.bf16.msra.mxu0 %v4446
        %4472 = vmatprep.subr.bf16.mxu0 0
        %4473 = vmatpush2.bf16.msra.mxu0 0
        %4474 = vmatprep.subr.bf16.mxu0 0
        %4475 = vmatpush2.bf16.msra.mxu0 0
        %4476 = vmatprep.subr.bf16.mxu0 0
        %4477 = vmatpush2.bf16.msra.mxu0 0
        %4478 = vmatprep.subr.bf16.mxu0 0
        %4479 = vmatpush2.bf16.msra.mxu0 0
        %4480 = vmatprep.subr.bf16.mxu0 0
        %4481 = vmatpush2.bf16.msra.mxu0 0
        %4482 = vmatprep.subr.bf16.mxu0 0
        %4483 = vmatpush2.bf16.msra.mxu0 0
        %4484 = vmatprep.subr.bf16.mxu0 0
        %4485 = vmatpush2.bf16.msra.mxu0 0
        %4486 = vmatprep.subr.bf16.mxu0 0
        %4487 = vmatpush2.bf16.msra.mxu0 0
        %4488 = vmatprep.mubr.bf16.mxu0 0
        %4489 = vmatmul.mubr.bf16.gmra.mxu0 %v4451
        %v4490 = vpop.f32.mrf.mxu0
        %v4491 = vadd.f32 0.0, %v4490
        %v4492 = vpop.f32.mrf.mxu0
        %v4493 = vpop.f32.mrf.mxu0
        %v4494 = vadd.f32 0.0, %v4493
        %v4495 = vpop.f32.mrf.mxu0
        %4496 = vmatprep.mubr.bf16.mxu0 0
        %4497 = vmatmul.mubr.bf16.gmra.mxu0 %v4454
        %v4498 = vpop.f32.mrf.mxu0
        %v4499 = vadd.f32 0.0, %v4498
        %v4500 = vpop.f32.mrf.mxu0
        %v4501 = vpop.f32.mrf.mxu0
        %v4502 = vadd.f32 0.0, %v4501
        %v4503 = vpop.f32.mrf.mxu0
        %4504 = vdwg.mxu0
        %v4505 = vpack.c.bf16 %v4494, %v4491
        %v4506 = vpack.c.bf16 %v4502, %v4499
        %v4507 = vld [vmem:[%s4 + $0x8] sm:$0xf]
        %v4509 = vsel %vm1508, %v4505, 0
        %v4512 = vsel %vm1508, %v4506, 0
        %v4515 = vsel %vm2035, %v4507, 0
        %4517 = vmatprep.subr.bf16.mxu0 0
        %4518 = vmatpush1.bf16.msra.mxu0 0
        %4519 = vmatprep.subr.bf16.mxu0 0
        %4520 = vmatpush1.bf16.msra.mxu0 0
        %4521 = vmatprep.subr.bf16.mxu0 0
        %4522 = vmatpush1.bf16.msra.mxu0 0
        %4523 = vmatprep.subr.bf16.mxu0 0
        %4524 = vmatpush1.bf16.msra.mxu0 0
        %4525 = vmatprep.subr.bf16.mxu0 0
        %4526 = vmatpush1.bf16.msra.mxu0 0
        %4527 = vmatprep.subr.bf16.mxu0 0
        %4528 = vmatpush1.bf16.msra.mxu0 0
        %4529 = vmatprep.subr.bf16.mxu0 0
        %4530 = vmatpush1.bf16.msra.mxu0 0
        %4531 = vmatprep.subr.bf16.mxu0 0
        %4532 = vmatpush1.bf16.msra.mxu0 %v4515
        %4533 = vmatprep.subr.bf16.mxu0 0
        %4534 = vmatpush2.bf16.msra.mxu0 0
        %4535 = vmatprep.subr.bf16.mxu0 0
        %4536 = vmatpush2.bf16.msra.mxu0 0
        %4537 = vmatprep.subr.bf16.mxu0 0
        %4538 = vmatpush2.bf16.msra.mxu0 0
        %4539 = vmatprep.subr.bf16.mxu0 0
        %4540 = vmatpush2.bf16.msra.mxu0 0
        %4541 = vmatprep.subr.bf16.mxu0 0
        %4542 = vmatpush2.bf16.msra.mxu0 0
        %4543 = vmatprep.subr.bf16.mxu0 0
        %4544 = vmatpush2.bf16.msra.mxu0 0
        %4545 = vmatprep.subr.bf16.mxu0 0
        %4546 = vmatpush2.bf16.msra.mxu0 0
        %4547 = vmatprep.subr.bf16.mxu0 0
        %4548 = vmatpush2.bf16.msra.mxu0 0
        %4549 = vmatprep.mubr.bf16.mxu0 0
        %4550 = vmatmul.mubr.bf16.gmra.mxu0 %v4509
        %v4551 = vpop.f32.mrf.mxu0
        %v4552 = vadd.f32 0.0, %v4551
        %v4553 = vpop.f32.mrf.mxu0
        %v4554 = vpop.f32.mrf.mxu0
        %v4555 = vadd.f32 0.0, %v4554
        %v4556 = vpop.f32.mrf.mxu0
        %4557 = vmatprep.mubr.bf16.mxu0 0
        %4558 = vmatmul.mubr.bf16.gmra.mxu0 %v4512
        %v4559 = vpop.f32.mrf.mxu0
        %v4560 = vadd.f32 0.0, %v4559
        %v4561 = vpop.f32.mrf.mxu0
        %v4562 = vpop.f32.mrf.mxu0
        %v4563 = vadd.f32 0.0, %v4562
        %v4564 = vpop.f32.mrf.mxu0
        %4565 = vdwg.mxu0
        %v4566 = vadd.f32 %v3327, %v4552
        %v4567 = vadd.f32 %v3328, %v4555
        %v4568 = vadd.f32 %v3329, %v4560
        %v4569 = vadd.f32 %v3330, %v4563
        %v4570 = vld [vmem:[%s754] sm:$0x2]
        %v4571 = vld [vmem:[%s754 + $0x2] sm:$0x2]
        %v4572 = vld [vmem:[%s754 + $0x4] sm:$0x2]
        %v4573 = vld [vmem:[%s754 + $0x6] sm:$0x2]
        %v4574 = vld [vmem:[%s754 + $0x8] sm:$0x2]
        %v4575 = vld [vmem:[%s754 + $0xa] sm:$0x2]
        %v4576 = vld [vmem:[%s754 + $0xc] sm:$0x2]
        %v4577 = vld [vmem:[%s754 + $0xe] sm:$0x2]
        %v4578 = vld [vmem:[%s754 + $0x10] sm:$0x2]
        %v4579 = vld [vmem:[%s754 + $0x12] sm:$0x2]
        %v4580 = vld [vmem:[%s754 + $0x14] sm:$0x2]
        %v4581 = vld [vmem:[%s754 + $0x16] sm:$0x2]
        %v4582 = vld [vmem:[%s754 + $0x18] sm:$0x2]
        %v4583 = vld [vmem:[%s754 + $0x1a] sm:$0x2]
        %v4584 = vld [vmem:[%s754 + $0x1c] sm:$0x2]
        %v4585 = vld [vmem:[%s754 + $0x1e] sm:$0x2]
        %v4586 = vld [vmem:[%s754 + $0x20] sm:$0x2]
        %v4587 = vld [vmem:[%s754 + $0x22] sm:$0x2]
        %v4588 = vld [vmem:[%s754 + $0x24] sm:$0x2]
        %v4589 = vld [vmem:[%s754 + $0x26] sm:$0x2]
        %v4590 = vld [vmem:[%s754 + $0x28] sm:$0x2]
        %v4591 = vld [vmem:[%s754 + $0x2a] sm:$0x2]
        %v4592 = vld [vmem:[%s754 + $0x2c] sm:$0x2]
        %v4593 = vld [vmem:[%s754 + $0x2e] sm:$0x2]
        %v4594 = vld [vmem:[%s754 + $0x30] sm:$0x2]
        %v4595 = vld [vmem:[%s754 + $0x32] sm:$0x2]
        %v4596 = vld [vmem:[%s754 + $0x34] sm:$0x2]
        %v4597 = vld [vmem:[%s754 + $0x36] sm:$0x2]
        %v4598 = vld [vmem:[%s754 + $0x38] sm:$0x2]
        %v4599 = vld [vmem:[%s754 + $0x3a] sm:$0x2]
        %v4600 = vld [vmem:[%s754 + $0x3c] sm:$0x2]
        %v4601 = vld [vmem:[%s754 + $0x3e] sm:$0x2]
        %v4602 = vunpack.c.l.bf16 %v4570
        %v4603 = vunpack.c.l.bf16 %v4571
        %v4604 = vunpack.c.l.bf16 %v4572
        %v4605 = vunpack.c.l.bf16 %v4573
        %v4606 = vunpack.c.l.bf16 %v4574
        %v4607 = vunpack.c.l.bf16 %v4575
        %v4608 = vunpack.c.l.bf16 %v4576
        %v4609 = vunpack.c.l.bf16 %v4577
        %v4610 = vunpack.c.l.bf16 %v4578
        %v4611 = vunpack.c.l.bf16 %v4579
        %v4612 = vunpack.c.l.bf16 %v4580
        %v4613 = vunpack.c.l.bf16 %v4581
        %v4614 = vunpack.c.l.bf16 %v4582
        %v4615 = vunpack.c.l.bf16 %v4583
        %v4616 = vunpack.c.l.bf16 %v4584
        %v4617 = vunpack.c.l.bf16 %v4585
        %v4618 = vunpack.c.l.bf16 %v4586
        %v4619 = vunpack.c.l.bf16 %v4587
        %v4620 = vunpack.c.l.bf16 %v4588
        %v4621 = vunpack.c.l.bf16 %v4589
        %v4622 = vunpack.c.l.bf16 %v4590
        %v4623 = vunpack.c.l.bf16 %v4591
        %v4624 = vunpack.c.l.bf16 %v4592
        %v4625 = vunpack.c.l.bf16 %v4593
        %v4626 = vunpack.c.l.bf16 %v4594
        %v4627 = vunpack.c.l.bf16 %v4595
        %v4628 = vunpack.c.l.bf16 %v4596
        %v4629 = vunpack.c.l.bf16 %v4597
        %v4630 = vunpack.c.l.bf16 %v4598
        %v4631 = vunpack.c.l.bf16 %v4599
        %v4632 = vunpack.c.l.bf16 %v4600
        %v4633 = vunpack.c.l.bf16 %v4601
        %v4634 = vmul.f32 %v4602, 0.35355338
        %v4635 = vmul.f32 %v4603, 0.35355338
        %v4636 = vmul.f32 %v4604, 0.35355338
        %v4637 = vmul.f32 %v4605, 0.35355338
        %v4638 = vmul.f32 %v4606, 0.35355338
        %v4639 = vmul.f32 %v4607, 0.35355338
        %v4640 = vmul.f32 %v4608, 0.35355338
        %v4641 = vmul.f32 %v4609, 0.35355338
        %v4642 = vmul.f32 %v4610, 0.35355338
        %v4643 = vmul.f32 %v4611, 0.35355338
        %v4644 = vmul.f32 %v4612, 0.35355338
        %v4645 = vmul.f32 %v4613, 0.35355338
        %v4646 = vmul.f32 %v4614, 0.35355338
        %v4647 = vmul.f32 %v4615, 0.35355338
        %v4648 = vmul.f32 %v4616, 0.35355338
        %v4649 = vmul.f32 %v4617, 0.35355338
        %v4650 = vmul.f32 %v4618, 0.35355338
        %v4651 = vmul.f32 %v4619, 0.35355338
        %v4652 = vmul.f32 %v4620, 0.35355338
        %v4653 = vmul.f32 %v4621, 0.35355338
        %v4654 = vmul.f32 %v4622, 0.35355338
        %v4655 = vmul.f32 %v4623, 0.35355338
        %v4656 = vmul.f32 %v4624, 0.35355338
        %v4657 = vmul.f32 %v4625, 0.35355338
        %v4658 = vmul.f32 %v4626, 0.35355338
        %v4659 = vmul.f32 %v4627, 0.35355338
        %v4660 = vmul.f32 %v4628, 0.35355338
        %v4661 = vmul.f32 %v4629, 0.35355338
        %v4662 = vmul.f32 %v4630, 0.35355338
        %v4663 = vmul.f32 %v4631, 0.35355338
        %v4664 = vmul.f32 %v4632, 0.35355338
        %v4665 = vmul.f32 %v4633, 0.35355338
        %v4666 = vld [vmem:[%s761] sm:$0x2]
        %v4667 = vld [vmem:[%s761 + $0x2] sm:$0x2]
        %v4668 = vld [vmem:[%s761 + $0x4] sm:$0x2]
        %v4669 = vld [vmem:[%s761 + $0x6] sm:$0x2]
        %v4670 = vld [vmem:[%s761 + $0x8] sm:$0x2]
        %v4671 = vld [vmem:[%s761 + $0xa] sm:$0x2]
        %v4672 = vld [vmem:[%s761 + $0xc] sm:$0x2]
        %v4673 = vld [vmem:[%s761 + $0xe] sm:$0x2]
        %v4674 = vld [vmem:[%s761 + $0x10] sm:$0x2]
        %v4675 = vld [vmem:[%s761 + $0x12] sm:$0x2]
        %v4676 = vld [vmem:[%s761 + $0x14] sm:$0x2]
        %v4677 = vld [vmem:[%s761 + $0x16] sm:$0x2]
        %v4678 = vld [vmem:[%s761 + $0x18] sm:$0x2]
        %v4679 = vld [vmem:[%s761 + $0x1a] sm:$0x2]
        %v4680 = vld [vmem:[%s761 + $0x1c] sm:$0x2]
        %v4681 = vld [vmem:[%s761 + $0x1e] sm:$0x2]
        %v4682 = vld [vmem:[%s761 + $0x20] sm:$0x2]
        %v4683 = vld [vmem:[%s761 + $0x22] sm:$0x2]
        %v4684 = vld [vmem:[%s761 + $0x24] sm:$0x2]
        %v4685 = vld [vmem:[%s761 + $0x26] sm:$0x2]
        %v4686 = vld [vmem:[%s761 + $0x28] sm:$0x2]
        %v4687 = vld [vmem:[%s761 + $0x2a] sm:$0x2]
        %v4688 = vld [vmem:[%s761 + $0x2c] sm:$0x2]
        %v4689 = vld [vmem:[%s761 + $0x2e] sm:$0x2]
        %v4690 = vld [vmem:[%s761 + $0x30] sm:$0x2]
        %v4691 = vld [vmem:[%s761 + $0x32] sm:$0x2]
        %v4692 = vld [vmem:[%s761 + $0x34] sm:$0x2]
        %v4693 = vld [vmem:[%s761 + $0x36] sm:$0x2]
        %v4694 = vld [vmem:[%s761 + $0x38] sm:$0x2]
        %v4695 = vld [vmem:[%s761 + $0x3a] sm:$0x2]
        %v4696 = vld [vmem:[%s761 + $0x3c] sm:$0x2]
        %v4697 = vld [vmem:[%s761 + $0x3e] sm:$0x2]
        %v4698 = vld [vmem:[%s768] sm:$0x2]
        %v4699 = vld [vmem:[%s768 + $0x2] sm:$0x2]
        %v4700 = vld [vmem:[%s768 + $0x4] sm:$0x2]
        %v4701 = vld [vmem:[%s768 + $0x6] sm:$0x2]
        %v4702 = vld [vmem:[%s768 + $0x8] sm:$0x2]
        %v4703 = vld [vmem:[%s768 + $0xa] sm:$0x2]
        %v4704 = vld [vmem:[%s768 + $0xc] sm:$0x2]
        %v4705 = vld [vmem:[%s768 + $0xe] sm:$0x2]
        %v4706 = vld [vmem:[%s768 + $0x10] sm:$0x2]
        %v4707 = vld [vmem:[%s768 + $0x12] sm:$0x2]
        %v4708 = vld [vmem:[%s768 + $0x14] sm:$0x2]
        %v4709 = vld [vmem:[%s768 + $0x16] sm:$0x2]
        %v4710 = vld [vmem:[%s768 + $0x18] sm:$0x2]
        %v4711 = vld [vmem:[%s768 + $0x1a] sm:$0x2]
        %v4712 = vld [vmem:[%s768 + $0x1c] sm:$0x2]
        %v4713 = vld [vmem:[%s768 + $0x1e] sm:$0x2]
        %v4714 = vld [vmem:[%s768 + $0x20] sm:$0x2]
        %v4715 = vld [vmem:[%s768 + $0x22] sm:$0x2]
        %v4716 = vld [vmem:[%s768 + $0x24] sm:$0x2]
        %v4717 = vld [vmem:[%s768 + $0x26] sm:$0x2]
        %v4718 = vld [vmem:[%s768 + $0x28] sm:$0x2]
        %v4719 = vld [vmem:[%s768 + $0x2a] sm:$0x2]
        %v4720 = vld [vmem:[%s768 + $0x2c] sm:$0x2]
        %v4721 = vld [vmem:[%s768 + $0x2e] sm:$0x2]
        %v4722 = vld [vmem:[%s768 + $0x30] sm:$0x2]
        %v4723 = vld [vmem:[%s768 + $0x32] sm:$0x2]
        %v4724 = vld [vmem:[%s768 + $0x34] sm:$0x2]
        %v4725 = vld [vmem:[%s768 + $0x36] sm:$0x2]
        %v4726 = vld [vmem:[%s768 + $0x38] sm:$0x2]
        %v4727 = vld [vmem:[%s768 + $0x3a] sm:$0x2]
        %v4728 = vld [vmem:[%s768 + $0x3c] sm:$0x2]
        %v4729 = vld [vmem:[%s768 + $0x3e] sm:$0x2]
        %v4730 = vpack.c.bf16 %v4634, %v4634
        %v4731 = vpack.c.bf16 %v4635, %v4635
        %v4732 = vpack.c.bf16 %v4636, %v4636
        %v4733 = vpack.c.bf16 %v4637, %v4637
        %v4734 = vpack.c.bf16 %v4638, %v4638
        %v4735 = vpack.c.bf16 %v4639, %v4639
        %v4736 = vpack.c.bf16 %v4640, %v4640
        %v4737 = vpack.c.bf16 %v4641, %v4641
        %v4738 = vpack.c.bf16 %v4642, %v4642
        %v4739 = vpack.c.bf16 %v4643, %v4643
        %v4740 = vpack.c.bf16 %v4644, %v4644
        %v4741 = vpack.c.bf16 %v4645, %v4645
        %v4742 = vpack.c.bf16 %v4646, %v4646
        %v4743 = vpack.c.bf16 %v4647, %v4647
        %v4744 = vpack.c.bf16 %v4648, %v4648
        %v4745 = vpack.c.bf16 %v4649, %v4649
        %v4746 = vpack.c.bf16 %v4650, %v4650
        %v4747 = vpack.c.bf16 %v4651, %v4651
        %v4748 = vpack.c.bf16 %v4652, %v4652
        %v4749 = vpack.c.bf16 %v4653, %v4653
        %v4750 = vpack.c.bf16 %v4654, %v4654
        %v4751 = vpack.c.bf16 %v4655, %v4655
        %v4752 = vpack.c.bf16 %v4656, %v4656
        %v4753 = vpack.c.bf16 %v4657, %v4657
        %v4754 = vpack.c.bf16 %v4658, %v4658
        %v4755 = vpack.c.bf16 %v4659, %v4659
        %v4756 = vpack.c.bf16 %v4660, %v4660
        %v4757 = vpack.c.bf16 %v4661, %v4661
        %v4758 = vpack.c.bf16 %v4662, %v4662
        %v4759 = vpack.c.bf16 %v4663, %v4663
        %v4760 = vpack.c.bf16 %v4664, %v4664
        %v4761 = vpack.c.bf16 %v4665, %v4665
        %v4794 = vunpack.c.l.b16 %v4730
        %v4795 = vunpack.c.l.b16 %v4731
        %v4796 = vunpack.c.l.b16 %v4732
        %v4797 = vunpack.c.l.b16 %v4733
        %v4798 = vunpack.c.l.b16 %v4734
        %v4799 = vunpack.c.l.b16 %v4735
        %v4800 = vunpack.c.l.b16 %v4736
        %v4801 = vunpack.c.l.b16 %v4737
        %v4802 = vunpack.c.l.b16 %v4738
        %v4803 = vunpack.c.l.b16 %v4739
        %v4804 = vunpack.c.l.b16 %v4740
        %v4805 = vunpack.c.l.b16 %v4741
        %v4806 = vunpack.c.l.b16 %v4742
        %v4807 = vunpack.c.l.b16 %v4743
        %v4808 = vunpack.c.l.b16 %v4744
        %v4809 = vunpack.c.l.b16 %v4745
        %v4810 = vunpack.c.l.b16 %v4746
        %v4811 = vunpack.c.l.b16 %v4747
        %v4812 = vunpack.c.l.b16 %v4748
        %v4813 = vunpack.c.l.b16 %v4749
        %v4814 = vunpack.c.l.b16 %v4750
        %v4815 = vunpack.c.l.b16 %v4751
        %v4816 = vunpack.c.l.b16 %v4752
        %v4817 = vunpack.c.l.b16 %v4753
        %v4818 = vunpack.c.l.b16 %v4754
        %v4819 = vunpack.c.l.b16 %v4755
        %v4820 = vunpack.c.l.b16 %v4756
        %v4821 = vunpack.c.l.b16 %v4757
        %v4822 = vunpack.c.l.b16 %v4758
        %v4823 = vunpack.c.l.b16 %v4759
        %v4824 = vunpack.c.l.b16 %v4760
        %v4825 = vunpack.c.l.b16 %v4761
        %v4826 = vrot.slane %v4794, 3
        %v4827 = vrot.slane %v4795, 2
        %v4828 = vsel %vm1098, %v4827, %v4826
        %v4829 = vrot.slane %v4796, 1
        %v4830 = vsel %vm1101, %v4829, %v4828
        %v4831 = vsel %vm1104, %v4797, %v4830
        %v4832 = vrot.slane %v4798, 7
        %v4833 = vsel %vm1107, %v4832, %v4831
        %v4834 = vrot.slane %v4799, 6
        %v4835 = vsel %vm1110, %v4834, %v4833
        %v4836 = vrot.slane %v4800, 5
        %v4837 = vsel %vm1113, %v4836, %v4835
        %v4838 = vrot.slane %v4801, 4
        %v4839 = vsel %vm1116, %v4838, %v4837
        %v4840 = vrot.slane %v4802, 3
        %v4841 = vrot.slane %v4803, 2
        %v4842 = vsel %vm1098, %v4841, %v4840
        %v4843 = vrot.slane %v4804, 1
        %v4844 = vsel %vm1101, %v4843, %v4842
        %v4845 = vsel %vm1104, %v4805, %v4844
        %v4846 = vrot.slane %v4806, 7
        %v4847 = vsel %vm1107, %v4846, %v4845
        %v4848 = vrot.slane %v4807, 6
        %v4849 = vsel %vm1110, %v4848, %v4847
        %v4850 = vrot.slane %v4808, 5
        %v4851 = vsel %vm1113, %v4850, %v4849
        %v4852 = vrot.slane %v4809, 4
        %v4853 = vsel %vm1116, %v4852, %v4851
        %v4854 = vrot.slane %v4810, 3
        %v4855 = vrot.slane %v4811, 2
        %v4856 = vsel %vm1098, %v4855, %v4854
        %v4857 = vrot.slane %v4812, 1
        %v4858 = vsel %vm1101, %v4857, %v4856
        %v4859 = vsel %vm1104, %v4813, %v4858
        %v4860 = vrot.slane %v4814, 7
        %v4861 = vsel %vm1107, %v4860, %v4859
        %v4862 = vrot.slane %v4815, 6
        %v4863 = vsel %vm1110, %v4862, %v4861
        %v4864 = vrot.slane %v4816, 5
        %v4865 = vsel %vm1113, %v4864, %v4863
        %v4866 = vrot.slane %v4817, 4
        %v4867 = vsel %vm1116, %v4866, %v4865
        %v4868 = vrot.slane %v4818, 3
        %v4869 = vrot.slane %v4819, 2
        %v4870 = vsel %vm1098, %v4869, %v4868
        %v4871 = vrot.slane %v4820, 1
        %v4872 = vsel %vm1101, %v4871, %v4870
        %v4873 = vsel %vm1104, %v4821, %v4872
        %v4874 = vrot.slane %v4822, 7
        %v4875 = vsel %vm1107, %v4874, %v4873
        %v4876 = vrot.slane %v4823, 6
        %v4877 = vsel %vm1110, %v4876, %v4875
        %v4878 = vrot.slane %v4824, 5
        %v4879 = vsel %vm1113, %v4878, %v4877
        %v4880 = vrot.slane %v4825, 4
        %v4881 = vsel %vm1116, %v4880, %v4879
        %v4882 = vpack.c.b16 %v4853, %v4839
        %v4883 = vpack.c.b16 %v4881, %v4867
        %v4917 = vunpack.c.l.s4 1983009808
        %v4918 = vunpack.c.0.s8 %v4917
        %v4919 = vlaneseq
        %v4920 = vshrl.u32 %v4919, 7
        %v4921 = vsub.s32 %v4918, %v4920
        %v4922 = vrot.slane %v4666, %v4921
        %v4924 = vunpack.c.l.s4 1983009808
        %v4925 = vunpack.c.0.s8 %v4924
        %v4926 = vlaneseq
        %v4927 = vshrl.u32 %v4926, 7
        %v4928 = vsub.s32 %v4925, %v4927
        %v4929 = vrot.slane %v4667, %v4928
        %v4931 = vunpack.c.l.s4 1983009808
        %v4932 = vunpack.c.0.s8 %v4931
        %v4933 = vlaneseq
        %v4934 = vshrl.u32 %v4933, 7
        %v4935 = vsub.s32 %v4932, %v4934
        %v4936 = vrot.slane %v4668, %v4935
        %v4938 = vunpack.c.l.s4 1983009808
        %v4939 = vunpack.c.0.s8 %v4938
        %v4940 = vlaneseq
        %v4941 = vshrl.u32 %v4940, 7
        %v4942 = vsub.s32 %v4939, %v4941
        %v4943 = vrot.slane %v4669, %v4942
        %v4945 = vunpack.c.l.s4 1983009808
        %v4946 = vunpack.c.0.s8 %v4945
        %v4947 = vlaneseq
        %v4948 = vshrl.u32 %v4947, 7
        %v4949 = vsub.s32 %v4946, %v4948
        %v4950 = vrot.slane %v4670, %v4949
        %v4952 = vunpack.c.l.s4 1983009808
        %v4953 = vunpack.c.0.s8 %v4952
        %v4954 = vlaneseq
        %v4955 = vshrl.u32 %v4954, 7
        %v4956 = vsub.s32 %v4953, %v4955
        %v4957 = vrot.slane %v4671, %v4956
        %v4959 = vunpack.c.l.s4 1983009808
        %v4960 = vunpack.c.0.s8 %v4959
        %v4961 = vlaneseq
        %v4962 = vshrl.u32 %v4961, 7
        %v4963 = vsub.s32 %v4960, %v4962
        %v4964 = vrot.slane %v4672, %v4963
        %v4966 = vunpack.c.l.s4 1983009808
        %v4967 = vunpack.c.0.s8 %v4966
        %v4968 = vlaneseq
        %v4969 = vshrl.u32 %v4968, 7
        %v4970 = vsub.s32 %v4967, %v4969
        %v4971 = vrot.slane %v4673, %v4970
        %v4973 = vunpack.c.l.s4 1983009808
        %v4974 = vunpack.c.0.s8 %v4973
        %v4975 = vlaneseq
        %v4976 = vshrl.u32 %v4975, 7
        %v4977 = vsub.s32 %v4974, %v4976
        %v4978 = vrot.slane %v4674, %v4977
        %v4980 = vunpack.c.l.s4 1983009808
        %v4981 = vunpack.c.0.s8 %v4980
        %v4982 = vlaneseq
        %v4983 = vshrl.u32 %v4982, 7
        %v4984 = vsub.s32 %v4981, %v4983
        %v4985 = vrot.slane %v4675, %v4984
        %v4987 = vunpack.c.l.s4 1983009808
        %v4988 = vunpack.c.0.s8 %v4987
        %v4989 = vlaneseq
        %v4990 = vshrl.u32 %v4989, 7
        %v4991 = vsub.s32 %v4988, %v4990
        %v4992 = vrot.slane %v4676, %v4991
        %v4994 = vunpack.c.l.s4 1983009808
        %v4995 = vunpack.c.0.s8 %v4994
        %v4996 = vlaneseq
        %v4997 = vshrl.u32 %v4996, 7
        %v4998 = vsub.s32 %v4995, %v4997
        %v4999 = vrot.slane %v4677, %v4998
        %v5001 = vunpack.c.l.s4 1983009808
        %v5002 = vunpack.c.0.s8 %v5001
        %v5003 = vlaneseq
        %v5004 = vshrl.u32 %v5003, 7
        %v5005 = vsub.s32 %v5002, %v5004
        %v5006 = vrot.slane %v4678, %v5005
        %v5008 = vunpack.c.l.s4 1983009808
        %v5009 = vunpack.c.0.s8 %v5008
        %v5010 = vlaneseq
        %v5011 = vshrl.u32 %v5010, 7
        %v5012 = vsub.s32 %v5009, %v5011
        %v5013 = vrot.slane %v4679, %v5012
        %v5015 = vunpack.c.l.s4 1983009808
        %v5016 = vunpack.c.0.s8 %v5015
        %v5017 = vlaneseq
        %v5018 = vshrl.u32 %v5017, 7
        %v5019 = vsub.s32 %v5016, %v5018
        %v5020 = vrot.slane %v4680, %v5019
        %v5022 = vunpack.c.l.s4 1983009808
        %v5023 = vunpack.c.0.s8 %v5022
        %v5024 = vlaneseq
        %v5025 = vshrl.u32 %v5024, 7
        %v5026 = vsub.s32 %v5023, %v5025
        %v5027 = vrot.slane %v4681, %v5026
        %v5029 = vunpack.c.l.s4 1983009808
        %v5030 = vunpack.c.0.s8 %v5029
        %v5031 = vlaneseq
        %v5032 = vshrl.u32 %v5031, 7
        %v5033 = vsub.s32 %v5030, %v5032
        %v5034 = vrot.slane %v4682, %v5033
        %v5036 = vunpack.c.l.s4 1983009808
        %v5037 = vunpack.c.0.s8 %v5036
        %v5038 = vlaneseq
        %v5039 = vshrl.u32 %v5038, 7
        %v5040 = vsub.s32 %v5037, %v5039
        %v5041 = vrot.slane %v4683, %v5040
        %v5043 = vunpack.c.l.s4 1983009808
        %v5044 = vunpack.c.0.s8 %v5043
        %v5045 = vlaneseq
        %v5046 = vshrl.u32 %v5045, 7
        %v5047 = vsub.s32 %v5044, %v5046
        %v5048 = vrot.slane %v4684, %v5047
        %v5050 = vunpack.c.l.s4 1983009808
        %v5051 = vunpack.c.0.s8 %v5050
        %v5052 = vlaneseq
        %v5053 = vshrl.u32 %v5052, 7
        %v5054 = vsub.s32 %v5051, %v5053
        %v5055 = vrot.slane %v4685, %v5054
        %v5057 = vunpack.c.l.s4 1983009808
        %v5058 = vunpack.c.0.s8 %v5057
        %v5059 = vlaneseq
        %v5060 = vshrl.u32 %v5059, 7
        %v5061 = vsub.s32 %v5058, %v5060
        %v5062 = vrot.slane %v4686, %v5061
        %v5064 = vunpack.c.l.s4 1983009808
        %v5065 = vunpack.c.0.s8 %v5064
        %v5066 = vlaneseq
        %v5067 = vshrl.u32 %v5066, 7
        %v5068 = vsub.s32 %v5065, %v5067
        %v5069 = vrot.slane %v4687, %v5068
        %v5071 = vunpack.c.l.s4 1983009808
        %v5072 = vunpack.c.0.s8 %v5071
        %v5073 = vlaneseq
        %v5074 = vshrl.u32 %v5073, 7
        %v5075 = vsub.s32 %v5072, %v5074
        %v5076 = vrot.slane %v4688, %v5075
        %v5078 = vunpack.c.l.s4 1983009808
        %v5079 = vunpack.c.0.s8 %v5078
        %v5080 = vlaneseq
        %v5081 = vshrl.u32 %v5080, 7
        %v5082 = vsub.s32 %v5079, %v5081
        %v5083 = vrot.slane %v4689, %v5082
        %v5085 = vunpack.c.l.s4 1983009808
        %v5086 = vunpack.c.0.s8 %v5085
        %v5087 = vlaneseq
        %v5088 = vshrl.u32 %v5087, 7
        %v5089 = vsub.s32 %v5086, %v5088
        %v5090 = vrot.slane %v4690, %v5089
        %v5092 = vunpack.c.l.s4 1983009808
        %v5093 = vunpack.c.0.s8 %v5092
        %v5094 = vlaneseq
        %v5095 = vshrl.u32 %v5094, 7
        %v5096 = vsub.s32 %v5093, %v5095
        %v5097 = vrot.slane %v4691, %v5096
        %v5099 = vunpack.c.l.s4 1983009808
        %v5100 = vunpack.c.0.s8 %v5099
        %v5101 = vlaneseq
        %v5102 = vshrl.u32 %v5101, 7
        %v5103 = vsub.s32 %v5100, %v5102
        %v5104 = vrot.slane %v4692, %v5103
        %v5106 = vunpack.c.l.s4 1983009808
        %v5107 = vunpack.c.0.s8 %v5106
        %v5108 = vlaneseq
        %v5109 = vshrl.u32 %v5108, 7
        %v5110 = vsub.s32 %v5107, %v5109
        %v5111 = vrot.slane %v4693, %v5110
        %v5113 = vunpack.c.l.s4 1983009808
        %v5114 = vunpack.c.0.s8 %v5113
        %v5115 = vlaneseq
        %v5116 = vshrl.u32 %v5115, 7
        %v5117 = vsub.s32 %v5114, %v5116
        %v5118 = vrot.slane %v4694, %v5117
        %v5120 = vunpack.c.l.s4 1983009808
        %v5121 = vunpack.c.0.s8 %v5120
        %v5122 = vlaneseq
        %v5123 = vshrl.u32 %v5122, 7
        %v5124 = vsub.s32 %v5121, %v5123
        %v5125 = vrot.slane %v4695, %v5124
        %v5127 = vunpack.c.l.s4 1983009808
        %v5128 = vunpack.c.0.s8 %v5127
        %v5129 = vlaneseq
        %v5130 = vshrl.u32 %v5129, 7
        %v5131 = vsub.s32 %v5128, %v5130
        %v5132 = vrot.slane %v4696, %v5131
        %v5134 = vunpack.c.l.s4 1983009808
        %v5135 = vunpack.c.0.s8 %v5134
        %v5136 = vlaneseq
        %v5137 = vshrl.u32 %v5136, 7
        %v5138 = vsub.s32 %v5135, %v5137
        %v5139 = vrot.slane %v4697, %v5138
        %v5140 = vunpack.c.l.b16 %v4922
        %v5141 = vunpack.c.l.b16 %v4929
        %v5142 = vunpack.c.l.b16 %v4936
        %v5143 = vunpack.c.l.b16 %v4943
        %v5144 = vunpack.c.l.b16 %v4950
        %v5145 = vunpack.c.l.b16 %v4957
        %v5146 = vunpack.c.l.b16 %v4964
        %v5147 = vunpack.c.l.b16 %v4971
        %v5148 = vunpack.c.l.b16 %v4978
        %v5149 = vunpack.c.l.b16 %v4985
        %v5150 = vunpack.c.l.b16 %v4992
        %v5151 = vunpack.c.l.b16 %v4999
        %v5152 = vunpack.c.l.b16 %v5006
        %v5153 = vunpack.c.l.b16 %v5013
        %v5154 = vunpack.c.l.b16 %v5020
        %v5155 = vunpack.c.l.b16 %v5027
        %v5156 = vunpack.c.l.b16 %v5034
        %v5157 = vunpack.c.l.b16 %v5041
        %v5158 = vunpack.c.l.b16 %v5048
        %v5159 = vunpack.c.l.b16 %v5055
        %v5160 = vunpack.c.l.b16 %v5062
        %v5161 = vunpack.c.l.b16 %v5069
        %v5162 = vunpack.c.l.b16 %v5076
        %v5163 = vunpack.c.l.b16 %v5083
        %v5164 = vunpack.c.l.b16 %v5090
        %v5165 = vunpack.c.l.b16 %v5097
        %v5166 = vunpack.c.l.b16 %v5104
        %v5167 = vunpack.c.l.b16 %v5111
        %v5168 = vunpack.c.l.b16 %v5118
        %v5169 = vunpack.c.l.b16 %v5125
        %v5170 = vunpack.c.l.b16 %v5132
        %v5171 = vunpack.c.l.b16 %v5139
        %v5172 = vrot.slane %v5140, 3
        %v5173 = vrot.slane %v5141, 2
        %v5174 = vsel %vm1098, %v5173, %v5172
        %v5175 = vrot.slane %v5142, 1
        %v5176 = vsel %vm1101, %v5175, %v5174
        %v5177 = vsel %vm1104, %v5143, %v5176
        %v5178 = vrot.slane %v5144, 7
        %v5179 = vsel %vm1107, %v5178, %v5177
        %v5180 = vrot.slane %v5145, 6
        %v5181 = vsel %vm1110, %v5180, %v5179
        %v5182 = vrot.slane %v5146, 5
        %v5183 = vsel %vm1113, %v5182, %v5181
        %v5184 = vrot.slane %v5147, 4
        %v5185 = vsel %vm1116, %v5184, %v5183
        %v5186 = vrot.slane %v5148, 3
        %v5187 = vrot.slane %v5149, 2
        %v5188 = vsel %vm1098, %v5187, %v5186
        %v5189 = vrot.slane %v5150, 1
        %v5190 = vsel %vm1101, %v5189, %v5188
        %v5191 = vsel %vm1104, %v5151, %v5190
        %v5192 = vrot.slane %v5152, 7
        %v5193 = vsel %vm1107, %v5192, %v5191
        %v5194 = vrot.slane %v5153, 6
        %v5195 = vsel %vm1110, %v5194, %v5193
        %v5196 = vrot.slane %v5154, 5
        %v5197 = vsel %vm1113, %v5196, %v5195
        %v5198 = vrot.slane %v5155, 4
        %v5199 = vsel %vm1116, %v5198, %v5197
        %v5200 = vrot.slane %v5156, 3
        %v5201 = vrot.slane %v5157, 2
        %v5202 = vsel %vm1098, %v5201, %v5200
        %v5203 = vrot.slane %v5158, 1
        %v5204 = vsel %vm1101, %v5203, %v5202
        %v5205 = vsel %vm1104, %v5159, %v5204
        %v5206 = vrot.slane %v5160, 7
        %v5207 = vsel %vm1107, %v5206, %v5205
        %v5208 = vrot.slane %v5161, 6
        %v5209 = vsel %vm1110, %v5208, %v5207
        %v5210 = vrot.slane %v5162, 5
        %v5211 = vsel %vm1113, %v5210, %v5209
        %v5212 = vrot.slane %v5163, 4
        %v5213 = vsel %vm1116, %v5212, %v5211
        %v5214 = vrot.slane %v5164, 3
        %v5215 = vrot.slane %v5165, 2
        %v5216 = vsel %vm1098, %v5215, %v5214
        %v5217 = vrot.slane %v5166, 1
        %v5218 = vsel %vm1101, %v5217, %v5216
        %v5219 = vsel %vm1104, %v5167, %v5218
        %v5220 = vrot.slane %v5168, 7
        %v5221 = vsel %vm1107, %v5220, %v5219
        %v5222 = vrot.slane %v5169, 6
        %v5223 = vsel %vm1110, %v5222, %v5221
        %v5224 = vrot.slane %v5170, 5
        %v5225 = vsel %vm1113, %v5224, %v5223
        %v5226 = vrot.slane %v5171, 4
        %v5227 = vsel %vm1116, %v5226, %v5225
        %v5228 = vpack.c.b16 %v5199, %v5185
        %v5229 = vpack.c.b16 %v5227, %v5213
        %v5231 = vsel %vm1508, %v4882, 0
        %v5234 = vsel %vm1508, %v4883, 0
        %v5237 = vsel %vm1508, %v5228, 0
        %v5240 = vsel %vm1508, %v5229, 0
        %5242 = vmatprep.subr.bf16.mxu0 0
        %5243 = vmatpush1.bf16.xpose.msra.mxu0 0
        %5244 = vmatprep.subr.bf16.mxu0 0
        %5245 = vmatpush1.bf16.xpose.msra.mxu0 0
        %5246 = vmatprep.subr.bf16.mxu0 0
        %5247 = vmatpush1.bf16.xpose.msra.mxu0 0
        %5248 = vmatprep.subr.bf16.mxu0 0
        %5249 = vmatpush1.bf16.xpose.msra.mxu0 0
        %5250 = vmatprep.subr.bf16.mxu0 0
        %5251 = vmatpush1.bf16.xpose.msra.mxu0 0
        %5252 = vmatprep.subr.bf16.mxu0 0
        %5253 = vmatpush1.bf16.xpose.msra.mxu0 0
        %5254 = vmatprep.subr.bf16.mxu0 0
        %5255 = vmatpush1.bf16.xpose.msra.mxu0 %v5240
        %5256 = vmatprep.subr.bf16.mxu0 0
        %5257 = vmatpush1.bf16.xpose.msra.mxu0 %v5237
        %5258 = vmatprep.subr.bf16.mxu0 0
        %5259 = vmatpush2.bf16.xpose.msra.mxu0 0
        %5260 = vmatprep.subr.bf16.mxu0 0
        %5261 = vmatpush2.bf16.xpose.msra.mxu0 0
        %5262 = vmatprep.subr.bf16.mxu0 0
        %5263 = vmatpush2.bf16.xpose.msra.mxu0 0
        %5264 = vmatprep.subr.bf16.mxu0 0
        %5265 = vmatpush2.bf16.xpose.msra.mxu0 0
        %5266 = vmatprep.subr.bf16.mxu0 0
        %5267 = vmatpush2.bf16.xpose.msra.mxu0 0
        %5268 = vmatprep.subr.bf16.mxu0 0
        %5269 = vmatpush2.bf16.xpose.msra.mxu0 0
        %5270 = vmatprep.subr.bf16.mxu0 0
        %5271 = vmatpush2.bf16.xpose.msra.mxu0 0
        %5272 = vmatprep.subr.bf16.mxu0 0
        %5273 = vmatpush2.bf16.xpose.msra.mxu0 0
        %5274 = vmatprep.mubr.bf16.mxu0 0
        %5275 = vmatmul.mubr.bf16.gmra.mxu0 %v5231
        %v5276 = vpop.f32.mrf.mxu0
        %v5277 = vadd.f32 0.0, %v5276
        %v5278 = vpop.f32.mrf.mxu0
        %v5279 = vpop.f32.mrf.mxu0
        %v5280 = vadd.f32 0.0, %v5279
        %v5281 = vpop.f32.mrf.mxu0
        %5282 = vmatprep.mubr.bf16.mxu0 0
        %5283 = vmatmul.mubr.bf16.gmra.mxu0 %v5234
        %v5284 = vpop.f32.mrf.mxu0
        %v5285 = vadd.f32 0.0, %v5284
        %v5286 = vpop.f32.mrf.mxu0
        %v5287 = vpop.f32.mrf.mxu0
        %v5288 = vadd.f32 0.0, %v5287
        %v5289 = vpop.f32.mrf.mxu0
        %5290 = vdwg.mxu0
        %v5291 = vsel %vm1571, %v5277, -1e+30
        %v5292 = vsel %vm1571, %v5280, -1e+30
        %v5293 = vsel %vm1571, %v5285, -1e+30
        %v5294 = vsel %vm1571, %v5288, -1e+30
        %v5295 = vsel %vm1576, %v5291, -inf
        %5296 = vmax.xlane.f32.xlu0 %v5295
        %v5297 = vpop.xlane.xlu0 %5296
        %v5298 = vsel %vm1576, %v5292, -inf
        %5299 = vmax.xlane.f32.xlu0 %v5298
        %v5300 = vpop.xlane.xlu0 %5299
        %v5301 = vsel %vm1576, %v5293, -inf
        %5302 = vmax.xlane.f32.xlu0 %v5301
        %v5303 = vpop.xlane.xlu0 %5302
        %v5304 = vsel %vm1576, %v5294, -inf
        %5305 = vmax.xlane.f32.xlu0 %v5304
        %v5306 = vpop.xlane.xlu0 %5305
        %v5307 = vsub.f32 %v5291, %v5297
        %v5308 = vsub.f32 %v5292, %v5300
        %v5309 = vsub.f32 %v5293, %v5303
        %v5310 = vsub.f32 %v5294, %v5306
        %v5311 = vmul.f32 %v5307, 1.442695
        %v5312 = vpow.pop %v5311
        %v5313 = vmul.f32 %v5308, 1.442695
        %v5314 = vpow.pop %v5313
        %v5315 = vmul.f32 %v5309, 1.442695
        %v5316 = vpow.pop %v5315
        %v5317 = vmul.f32 %v5310, 1.442695
        %v5318 = vpow.pop %v5317
        %v5319 = vsel %vm1576, %v5312, 0.0
        %5320 = vadd.xlane.f32.xlu0 %v5319
        %v5321 = vpop.xlane.xlu0 %5320
        %v5322 = vsel %vm1576, %v5314, 0.0
        %5323 = vadd.xlane.f32.xlu0 %v5322
        %v5324 = vpop.xlane.xlu0 %5323
        %v5325 = vsel %vm1576, %v5316, 0.0
        %5326 = vadd.xlane.f32.xlu0 %v5325
        %v5327 = vpop.xlane.xlu0 %5326
        %v5328 = vsel %vm1576, %v5318, 0.0
        %5329 = vadd.xlane.f32.xlu0 %v5328
        %v5330 = vpop.xlane.xlu0 %5329
        %v5331 = vrcp.pop %v5321
        %v5332 = vrcp.pop %v5324
        %v5333 = vrcp.pop %v5327
        %v5334 = vrcp.pop %v5330
        %v5335 = vmul.f32 %v5312, %v5331
        %v5336 = vmul.f32 %v5314, %v5332
        %v5337 = vmul.f32 %v5316, %v5333
        %v5338 = vmul.f32 %v5318, %v5334
        %v5339 = vpack.c.bf16 %v5336, %v5335
        %v5340 = vpack.c.bf16 %v5338, %v5337
        %v5374 = vunpack.c.l.s4 1983009808
        %v5375 = vunpack.c.0.s8 %v5374
        %v5376 = vlaneseq
        %v5377 = vshrl.u32 %v5376, 7
        %v5378 = vsub.s32 %v5375, %v5377
        %v5379 = vrot.slane %v4698, %v5378
        %v5381 = vunpack.c.l.s4 1983009808
        %v5382 = vunpack.c.0.s8 %v5381
        %v5383 = vlaneseq
        %v5384 = vshrl.u32 %v5383, 7
        %v5385 = vsub.s32 %v5382, %v5384
        %v5386 = vrot.slane %v4699, %v5385
        %v5388 = vunpack.c.l.s4 1983009808
        %v5389 = vunpack.c.0.s8 %v5388
        %v5390 = vlaneseq
        %v5391 = vshrl.u32 %v5390, 7
        %v5392 = vsub.s32 %v5389, %v5391
        %v5393 = vrot.slane %v4700, %v5392
        %v5395 = vunpack.c.l.s4 1983009808
        %v5396 = vunpack.c.0.s8 %v5395
        %v5397 = vlaneseq
        %v5398 = vshrl.u32 %v5397, 7
        %v5399 = vsub.s32 %v5396, %v5398
        %v5400 = vrot.slane %v4701, %v5399
        %v5402 = vunpack.c.l.s4 1983009808
        %v5403 = vunpack.c.0.s8 %v5402
        %v5404 = vlaneseq
        %v5405 = vshrl.u32 %v5404, 7
        %v5406 = vsub.s32 %v5403, %v5405
        %v5407 = vrot.slane %v4702, %v5406
        %v5409 = vunpack.c.l.s4 1983009808
        %v5410 = vunpack.c.0.s8 %v5409
        %v5411 = vlaneseq
        %v5412 = vshrl.u32 %v5411, 7
        %v5413 = vsub.s32 %v5410, %v5412
        %v5414 = vrot.slane %v4703, %v5413
        %v5416 = vunpack.c.l.s4 1983009808
        %v5417 = vunpack.c.0.s8 %v5416
        %v5418 = vlaneseq
        %v5419 = vshrl.u32 %v5418, 7
        %v5420 = vsub.s32 %v5417, %v5419
        %v5421 = vrot.slane %v4704, %v5420
        %v5423 = vunpack.c.l.s4 1983009808
        %v5424 = vunpack.c.0.s8 %v5423
        %v5425 = vlaneseq
        %v5426 = vshrl.u32 %v5425, 7
        %v5427 = vsub.s32 %v5424, %v5426
        %v5428 = vrot.slane %v4705, %v5427
        %v5430 = vunpack.c.l.s4 1983009808
        %v5431 = vunpack.c.0.s8 %v5430
        %v5432 = vlaneseq
        %v5433 = vshrl.u32 %v5432, 7
        %v5434 = vsub.s32 %v5431, %v5433
        %v5435 = vrot.slane %v4706, %v5434
        %v5437 = vunpack.c.l.s4 1983009808
        %v5438 = vunpack.c.0.s8 %v5437
        %v5439 = vlaneseq
        %v5440 = vshrl.u32 %v5439, 7
        %v5441 = vsub.s32 %v5438, %v5440
        %v5442 = vrot.slane %v4707, %v5441
        %v5444 = vunpack.c.l.s4 1983009808
        %v5445 = vunpack.c.0.s8 %v5444
        %v5446 = vlaneseq
        %v5447 = vshrl.u32 %v5446, 7
        %v5448 = vsub.s32 %v5445, %v5447
        %v5449 = vrot.slane %v4708, %v5448
        %v5451 = vunpack.c.l.s4 1983009808
        %v5452 = vunpack.c.0.s8 %v5451
        %v5453 = vlaneseq
        %v5454 = vshrl.u32 %v5453, 7
        %v5455 = vsub.s32 %v5452, %v5454
        %v5456 = vrot.slane %v4709, %v5455
        %v5458 = vunpack.c.l.s4 1983009808
        %v5459 = vunpack.c.0.s8 %v5458
        %v5460 = vlaneseq
        %v5461 = vshrl.u32 %v5460, 7
        %v5462 = vsub.s32 %v5459, %v5461
        %v5463 = vrot.slane %v4710, %v5462
        %v5465 = vunpack.c.l.s4 1983009808
        %v5466 = vunpack.c.0.s8 %v5465
        %v5467 = vlaneseq
        %v5468 = vshrl.u32 %v5467, 7
        %v5469 = vsub.s32 %v5466, %v5468
        %v5470 = vrot.slane %v4711, %v5469
        %v5472 = vunpack.c.l.s4 1983009808
        %v5473 = vunpack.c.0.s8 %v5472
        %v5474 = vlaneseq
        %v5475 = vshrl.u32 %v5474, 7
        %v5476 = vsub.s32 %v5473, %v5475
        %v5477 = vrot.slane %v4712, %v5476
        %v5479 = vunpack.c.l.s4 1983009808
        %v5480 = vunpack.c.0.s8 %v5479
        %v5481 = vlaneseq
        %v5482 = vshrl.u32 %v5481, 7
        %v5483 = vsub.s32 %v5480, %v5482
        %v5484 = vrot.slane %v4713, %v5483
        %v5486 = vunpack.c.l.s4 1983009808
        %v5487 = vunpack.c.0.s8 %v5486
        %v5488 = vlaneseq
        %v5489 = vshrl.u32 %v5488, 7
        %v5490 = vsub.s32 %v5487, %v5489
        %v5491 = vrot.slane %v4714, %v5490
        %v5493 = vunpack.c.l.s4 1983009808
        %v5494 = vunpack.c.0.s8 %v5493
        %v5495 = vlaneseq
        %v5496 = vshrl.u32 %v5495, 7
        %v5497 = vsub.s32 %v5494, %v5496
        %v5498 = vrot.slane %v4715, %v5497
        %v5500 = vunpack.c.l.s4 1983009808
        %v5501 = vunpack.c.0.s8 %v5500
        %v5502 = vlaneseq
        %v5503 = vshrl.u32 %v5502, 7
        %v5504 = vsub.s32 %v5501, %v5503
        %v5505 = vrot.slane %v4716, %v5504
        %v5507 = vunpack.c.l.s4 1983009808
        %v5508 = vunpack.c.0.s8 %v5507
        %v5509 = vlaneseq
        %v5510 = vshrl.u32 %v5509, 7
        %v5511 = vsub.s32 %v5508, %v5510
        %v5512 = vrot.slane %v4717, %v5511
        %v5514 = vunpack.c.l.s4 1983009808
        %v5515 = vunpack.c.0.s8 %v5514
        %v5516 = vlaneseq
        %v5517 = vshrl.u32 %v5516, 7
        %v5518 = vsub.s32 %v5515, %v5517
        %v5519 = vrot.slane %v4718, %v5518
        %v5521 = vunpack.c.l.s4 1983009808
        %v5522 = vunpack.c.0.s8 %v5521
        %v5523 = vlaneseq
        %v5524 = vshrl.u32 %v5523, 7
        %v5525 = vsub.s32 %v5522, %v5524
        %v5526 = vrot.slane %v4719, %v5525
        %v5528 = vunpack.c.l.s4 1983009808
        %v5529 = vunpack.c.0.s8 %v5528
        %v5530 = vlaneseq
        %v5531 = vshrl.u32 %v5530, 7
        %v5532 = vsub.s32 %v5529, %v5531
        %v5533 = vrot.slane %v4720, %v5532
        %v5535 = vunpack.c.l.s4 1983009808
        %v5536 = vunpack.c.0.s8 %v5535
        %v5537 = vlaneseq
        %v5538 = vshrl.u32 %v5537, 7
        %v5539 = vsub.s32 %v5536, %v5538
        %v5540 = vrot.slane %v4721, %v5539
        %v5542 = vunpack.c.l.s4 1983009808
        %v5543 = vunpack.c.0.s8 %v5542
        %v5544 = vlaneseq
        %v5545 = vshrl.u32 %v5544, 7
        %v5546 = vsub.s32 %v5543, %v5545
        %v5547 = vrot.slane %v4722, %v5546
        %v5549 = vunpack.c.l.s4 1983009808
        %v5550 = vunpack.c.0.s8 %v5549
        %v5551 = vlaneseq
        %v5552 = vshrl.u32 %v5551, 7
        %v5553 = vsub.s32 %v5550, %v5552
        %v5554 = vrot.slane %v4723, %v5553
        %v5556 = vunpack.c.l.s4 1983009808
        %v5557 = vunpack.c.0.s8 %v5556
        %v5558 = vlaneseq
        %v5559 = vshrl.u32 %v5558, 7
        %v5560 = vsub.s32 %v5557, %v5559
        %v5561 = vrot.slane %v4724, %v5560
        %v5563 = vunpack.c.l.s4 1983009808
        %v5564 = vunpack.c.0.s8 %v5563
        %v5565 = vlaneseq
        %v5566 = vshrl.u32 %v5565, 7
        %v5567 = vsub.s32 %v5564, %v5566
        %v5568 = vrot.slane %v4725, %v5567
        %v5570 = vunpack.c.l.s4 1983009808
        %v5571 = vunpack.c.0.s8 %v5570
        %v5572 = vlaneseq
        %v5573 = vshrl.u32 %v5572, 7
        %v5574 = vsub.s32 %v5571, %v5573
        %v5575 = vrot.slane %v4726, %v5574
        %v5577 = vunpack.c.l.s4 1983009808
        %v5578 = vunpack.c.0.s8 %v5577
        %v5579 = vlaneseq
        %v5580 = vshrl.u32 %v5579, 7
        %v5581 = vsub.s32 %v5578, %v5580
        %v5582 = vrot.slane %v4727, %v5581
        %v5584 = vunpack.c.l.s4 1983009808
        %v5585 = vunpack.c.0.s8 %v5584
        %v5586 = vlaneseq
        %v5587 = vshrl.u32 %v5586, 7
        %v5588 = vsub.s32 %v5585, %v5587
        %v5589 = vrot.slane %v4728, %v5588
        %v5591 = vunpack.c.l.s4 1983009808
        %v5592 = vunpack.c.0.s8 %v5591
        %v5593 = vlaneseq
        %v5594 = vshrl.u32 %v5593, 7
        %v5595 = vsub.s32 %v5592, %v5594
        %v5596 = vrot.slane %v4729, %v5595
        %v5597 = vunpack.c.l.b16 %v5379
        %v5598 = vunpack.c.l.b16 %v5386
        %v5599 = vunpack.c.l.b16 %v5393
        %v5600 = vunpack.c.l.b16 %v5400
        %v5601 = vunpack.c.l.b16 %v5407
        %v5602 = vunpack.c.l.b16 %v5414
        %v5603 = vunpack.c.l.b16 %v5421
        %v5604 = vunpack.c.l.b16 %v5428
        %v5605 = vunpack.c.l.b16 %v5435
        %v5606 = vunpack.c.l.b16 %v5442
        %v5607 = vunpack.c.l.b16 %v5449
        %v5608 = vunpack.c.l.b16 %v5456
        %v5609 = vunpack.c.l.b16 %v5463
        %v5610 = vunpack.c.l.b16 %v5470
        %v5611 = vunpack.c.l.b16 %v5477
        %v5612 = vunpack.c.l.b16 %v5484
        %v5613 = vunpack.c.l.b16 %v5491
        %v5614 = vunpack.c.l.b16 %v5498
        %v5615 = vunpack.c.l.b16 %v5505
        %v5616 = vunpack.c.l.b16 %v5512
        %v5617 = vunpack.c.l.b16 %v5519
        %v5618 = vunpack.c.l.b16 %v5526
        %v5619 = vunpack.c.l.b16 %v5533
        %v5620 = vunpack.c.l.b16 %v5540
        %v5621 = vunpack.c.l.b16 %v5547
        %v5622 = vunpack.c.l.b16 %v5554
        %v5623 = vunpack.c.l.b16 %v5561
        %v5624 = vunpack.c.l.b16 %v5568
        %v5625 = vunpack.c.l.b16 %v5575
        %v5626 = vunpack.c.l.b16 %v5582
        %v5627 = vunpack.c.l.b16 %v5589
        %v5628 = vunpack.c.l.b16 %v5596
        %v5629 = vrot.slane %v5597, 3
        %v5630 = vrot.slane %v5598, 2
        %v5631 = vsel %vm1098, %v5630, %v5629
        %v5632 = vrot.slane %v5599, 1
        %v5633 = vsel %vm1101, %v5632, %v5631
        %v5634 = vsel %vm1104, %v5600, %v5633
        %v5635 = vrot.slane %v5601, 7
        %v5636 = vsel %vm1107, %v5635, %v5634
        %v5637 = vrot.slane %v5602, 6
        %v5638 = vsel %vm1110, %v5637, %v5636
        %v5639 = vrot.slane %v5603, 5
        %v5640 = vsel %vm1113, %v5639, %v5638
        %v5641 = vrot.slane %v5604, 4
        %v5642 = vsel %vm1116, %v5641, %v5640
        %v5643 = vrot.slane %v5605, 3
        %v5644 = vrot.slane %v5606, 2
        %v5645 = vsel %vm1098, %v5644, %v5643
        %v5646 = vrot.slane %v5607, 1
        %v5647 = vsel %vm1101, %v5646, %v5645
        %v5648 = vsel %vm1104, %v5608, %v5647
        %v5649 = vrot.slane %v5609, 7
        %v5650 = vsel %vm1107, %v5649, %v5648
        %v5651 = vrot.slane %v5610, 6
        %v5652 = vsel %vm1110, %v5651, %v5650
        %v5653 = vrot.slane %v5611, 5
        %v5654 = vsel %vm1113, %v5653, %v5652
        %v5655 = vrot.slane %v5612, 4
        %v5656 = vsel %vm1116, %v5655, %v5654
        %v5657 = vrot.slane %v5613, 3
        %v5658 = vrot.slane %v5614, 2
        %v5659 = vsel %vm1098, %v5658, %v5657
        %v5660 = vrot.slane %v5615, 1
        %v5661 = vsel %vm1101, %v5660, %v5659
        %v5662 = vsel %vm1104, %v5616, %v5661
        %v5663 = vrot.slane %v5617, 7
        %v5664 = vsel %vm1107, %v5663, %v5662
        %v5665 = vrot.slane %v5618, 6
        %v5666 = vsel %vm1110, %v5665, %v5664
        %v5667 = vrot.slane %v5619, 5
        %v5668 = vsel %vm1113, %v5667, %v5666
        %v5669 = vrot.slane %v5620, 4
        %v5670 = vsel %vm1116, %v5669, %v5668
        %v5671 = vrot.slane %v5621, 3
        %v5672 = vrot.slane %v5622, 2
        %v5673 = vsel %vm1098, %v5672, %v5671
        %v5674 = vrot.slane %v5623, 1
        %v5675 = vsel %vm1101, %v5674, %v5673
        %v5676 = vsel %vm1104, %v5624, %v5675
        %v5677 = vrot.slane %v5625, 7
        %v5678 = vsel %vm1107, %v5677, %v5676
        %v5679 = vrot.slane %v5626, 6
        %v5680 = vsel %vm1110, %v5679, %v5678
        %v5681 = vrot.slane %v5627, 5
        %v5682 = vsel %vm1113, %v5681, %v5680
        %v5683 = vrot.slane %v5628, 4
        %v5684 = vsel %vm1116, %v5683, %v5682
        %v5685 = vpack.c.b16 %v5656, %v5642
        %v5686 = vpack.c.b16 %v5684, %v5670
        %v5690 = vsel %vm1576, %v5339, 0
        %v5693 = vsel %vm1576, %v5340, 0
        %5695 = vmatprep.subr.bf16.mxu0 0
        %5696 = vmatpush1.bf16.msra.mxu0 0
        %5697 = vmatprep.subr.bf16.mxu0 0
        %5698 = vmatpush1.bf16.msra.mxu0 0
        %5699 = vmatprep.subr.bf16.mxu0 0
        %5700 = vmatpush1.bf16.msra.mxu0 0
        %5701 = vmatprep.subr.bf16.mxu0 0
        %5702 = vmatpush1.bf16.msra.mxu0 0
        %5703 = vmatprep.subr.bf16.mxu0 0
        %5704 = vmatpush1.bf16.msra.mxu0 0
        %5705 = vmatprep.subr.bf16.mxu0 0
        %5706 = vmatpush1.bf16.msra.mxu0 0
        %5707 = vmatprep.subr.bf16.mxu0 0
        %5708 = vmatpush1.bf16.msra.mxu0 %v5686
        %5709 = vmatprep.subr.bf16.mxu0 0
        %5710 = vmatpush1.bf16.msra.mxu0 %v5685
        %5711 = vmatprep.subr.bf16.mxu0 0
        %5712 = vmatpush2.bf16.msra.mxu0 0
        %5713 = vmatprep.subr.bf16.mxu0 0
        %5714 = vmatpush2.bf16.msra.mxu0 0
        %5715 = vmatprep.subr.bf16.mxu0 0
        %5716 = vmatpush2.bf16.msra.mxu0 0
        %5717 = vmatprep.subr.bf16.mxu0 0
        %5718 = vmatpush2.bf16.msra.mxu0 0
        %5719 = vmatprep.subr.bf16.mxu0 0
        %5720 = vmatpush2.bf16.msra.mxu0 0
        %5721 = vmatprep.subr.bf16.mxu0 0
        %5722 = vmatpush2.bf16.msra.mxu0 0
        %5723 = vmatprep.subr.bf16.mxu0 0
        %5724 = vmatpush2.bf16.msra.mxu0 0
        %5725 = vmatprep.subr.bf16.mxu0 0
        %5726 = vmatpush2.bf16.msra.mxu0 0
        %5727 = vmatprep.mubr.bf16.mxu0 0
        %5728 = vmatmul.mubr.bf16.gmra.mxu0 %v5690
        %v5729 = vpop.f32.mrf.mxu0
        %v5730 = vadd.f32 0.0, %v5729
        %v5731 = vpop.f32.mrf.mxu0
        %v5732 = vpop.f32.mrf.mxu0
        %v5733 = vadd.f32 0.0, %v5732
        %v5734 = vpop.f32.mrf.mxu0
        %5735 = vmatprep.mubr.bf16.mxu0 0
        %5736 = vmatmul.mubr.bf16.gmra.mxu0 %v5693
        %v5737 = vpop.f32.mrf.mxu0
        %v5738 = vadd.f32 0.0, %v5737
        %v5739 = vpop.f32.mrf.mxu0
        %v5740 = vpop.f32.mrf.mxu0
        %v5741 = vadd.f32 0.0, %v5740
        %v5742 = vpop.f32.mrf.mxu0
        %5743 = vdwg.mxu0
        %v5744 = vpack.c.bf16 %v5733, %v5730
        %v5745 = vpack.c.bf16 %v5741, %v5738
        %v5746 = vld [vmem:[%s4 + $0xc] sm:$0xf]
        %v5748 = vsel %vm1508, %v5744, 0
        %v5751 = vsel %vm1508, %v5745, 0
        %v5754 = vsel %vm2035, %v5746, 0
        %5756 = vmatprep.subr.bf16.mxu0 0
        %5757 = vmatpush1.bf16.msra.mxu0 0
        %5758 = vmatprep.subr.bf16.mxu0 0
        %5759 = vmatpush1.bf16.msra.mxu0 0
        %5760 = vmatprep.subr.bf16.mxu0 0
        %5761 = vmatpush1.bf16.msra.mxu0 0
        %5762 = vmatprep.subr.bf16.mxu0 0
        %5763 = vmatpush1.bf16.msra.mxu0 0
        %5764 = vmatprep.subr.bf16.mxu0 0
        %5765 = vmatpush1.bf16.msra.mxu0 0
        %5766 = vmatprep.subr.bf16.mxu0 0
        %5767 = vmatpush1.bf16.msra.mxu0 0
        %5768 = vmatprep.subr.bf16.mxu0 0
        %5769 = vmatpush1.bf16.msra.mxu0 0
        %5770 = vmatprep.subr.bf16.mxu0 0
        %5771 = vmatpush1.bf16.msra.mxu0 %v5754
        %5772 = vmatprep.subr.bf16.mxu0 0
        %5773 = vmatpush2.bf16.msra.mxu0 0
        %5774 = vmatprep.subr.bf16.mxu0 0
        %5775 = vmatpush2.bf16.msra.mxu0 0
        %5776 = vmatprep.subr.bf16.mxu0 0
        %5777 = vmatpush2.bf16.msra.mxu0 0
        %5778 = vmatprep.subr.bf16.mxu0 0
        %5779 = vmatpush2.bf16.msra.mxu0 0
        %5780 = vmatprep.subr.bf16.mxu0 0
        %5781 = vmatpush2.bf16.msra.mxu0 0
        %5782 = vmatprep.subr.bf16.mxu0 0
        %5783 = vmatpush2.bf16.msra.mxu0 0
        %5784 = vmatprep.subr.bf16.mxu0 0
        %5785 = vmatpush2.bf16.msra.mxu0 0
        %5786 = vmatprep.subr.bf16.mxu0 0
        %5787 = vmatpush2.bf16.msra.mxu0 0
        %5788 = vmatprep.mubr.bf16.mxu0 0
        %5789 = vmatmul.mubr.bf16.gmra.mxu0 %v5748
        %v5790 = vpop.f32.mrf.mxu0
        %v5791 = vadd.f32 0.0, %v5790
        %v5792 = vpop.f32.mrf.mxu0
        %v5793 = vpop.f32.mrf.mxu0
        %v5794 = vadd.f32 0.0, %v5793
        %v5795 = vpop.f32.mrf.mxu0
        %5796 = vmatprep.mubr.bf16.mxu0 0
        %5797 = vmatmul.mubr.bf16.gmra.mxu0 %v5751
        %v5798 = vpop.f32.mrf.mxu0
        %v5799 = vadd.f32 0.0, %v5798
        %v5800 = vpop.f32.mrf.mxu0
        %v5801 = vpop.f32.mrf.mxu0
        %v5802 = vadd.f32 0.0, %v5801
        %v5803 = vpop.f32.mrf.mxu0
        %5804 = vdwg.mxu0
        %v5805 = vadd.f32 %v4566, %v5791
        %v5806 = vadd.f32 %v4567, %v5794
        %v5807 = vadd.f32 %v4568, %v5799
        %v5808 = vadd.f32 %v4569, %v5802
        %v5809 = vpack.c.bf16 %v5806, %v5805
        %v5810 = vpack.c.bf16 %v5808, %v5807
        %v5813 = vunpack.c.l.b16 %v5809
        %v5814 = vunpack.c.h.b16 %v5809
        %v5815 = vunpack.c.l.b16 %v5810
        %v5816 = vunpack.c.h.b16 %v5810
        %v5817 = vpack.c.b16 %v5813, %v5813
        %v5818 = vpack.c.b16 %v5814, %v5814
        %v5819 = vpack.c.b16 %v5815, %v5815
        %v5820 = vpack.c.b16 %v5816, %v5816
        %vm5825 = vcmask 257024
        %5826 = vst.msk [vmem:[%s817] sm:$0xf] %vm5825, %v5817
        %5827 = vst.msk [vmem:[%s817 + $0x4] sm:$0xf] %vm5825, %v5818
        %5828 = vst.msk [vmem:[%s817 + $0x8] sm:$0xf] %vm5825, %v5819
        %5829 = vst.msk [vmem:[%s817 + $0xc] sm:$0xf] %vm5825, %v5820
        %p5830 = scmp.lt.s32.totalorder %s17, 1
        %s5831 = scalar_select %p5830, %s17, 1
        %s5832 = smul.addr %s5831, 4
        %s5833 = smul.addr %s5832, 4
        %s5834 = scalar_lea.vmem %s6, %s5833
        // Predicated region
        $region168: #{vit_forward.10} parent=154 // pred_check
          %p5835 = pneg %p181
        $region169: #{vit_forward.10} parent=154 // pred_check_branch
          %5837 = sbr.rel (%p5835) target = $region171
        $region170: #{vit_forward.10} parent=154 // pred_region
          _
        $region171: #{vit_forward.10} parent=154 // pred_fallthru
          _
      $region155: #{vit_forward.10} parent=5 // pred_fallthru
        _
      %p5838 = scmp.le.s32.totalorder 2, %s12
      // Predicated region
      $region172: #{vit_forward.10} parent=5 // pred_check
        %p5839 = pneg %p5838
      $region173: #{vit_forward.10} parent=5 // pred_check_branch
        %5841 = sbr.rel (%p5839) target = $region175
      $region174: #{vit_forward.10} parent=5 // pred_region
        %s5842 = ssub.s32 %s12, 2
        // Predicated region
        $region176: #{vit_forward.10} parent=174 // pred_check
          %p5843 = pneg %p187
        $region177: #{vit_forward.10} parent=174 // pred_check_branch
          %5845 = sbr.rel (%p5843) target = $region179
        $region178: #{vit_forward.10} parent=174 // pred_region
          %p5846 = scmp.lt.s32.totalorder %s18, 1
          %s5847 = scalar_select %p5846, %s18, 1
          %s5848 = smul.addr %s5847, 4
          %s5849 = smul.addr %s5848, 4
          %s5850 = scalar_lea.vmem %s6, %s5849
        $region179: #{vit_forward.10} parent=174 // pred_fallthru
          _
      $region175: #{vit_forward.10} parent=5 // pred_fallthru
        _
    $region6: #{vit_forward.10} parent=1 // loop_footer
      %s16 = sadd.s32 1, %s12
    $region7: #{vit_forward.10} parent=1 // loop_footer_branch
      %11 = sbr.rel target = $region3
    $region8: #{vit_forward.10} parent=1 // loop_exit
      _

</llo_original>
